<compile_context>
chip_gen: v7x
topology: tpu7x:2x2x1
jax: 0.10.0
libtpu: 0.0.40
codegen_flags: <defaults>
</compile_context>

<pallas_src>
import math
import functools

import jax
import jax.numpy as jnp
from jax import lax
from jax.experimental import pallas as pl
from jax.experimental.pallas import tpu as pltpu  # noqa: F401  (kept for TPU-specific tuning)


# ----------------------------------------------------------------------------
# Helpers (traced inside kernels)
# ----------------------------------------------------------------------------

def _full_spec(shape):
    nd = len(shape)
    return pl.BlockSpec(tuple(shape), lambda *_: (0,) * nd)


def _layernorm(x, g, b, eps):
    mu = jnp.mean(x, axis=-1, keepdims=True)
    xc = x - mu
    var = jnp.mean(xc * xc, axis=-1, keepdims=True)
    return xc * lax.rsqrt(var + eps) * g + b


def _mha_core(q, k, v, mask, nhead, dh, scale):
    """q: (B,Tq,E), k/v: (B,Tk,E), mask: additive (1,1,Tk) or None -> (B,Tq,E).

    Per-head slices of the E axis match PyTorch MultiheadAttention's head split.
    All heads are processed inside the single kernel invocation.
    """
    outs = []
    for h in range(nhead):
        sl = slice(h * dh, (h + 1) * dh)
        qh, kh, vh = q[:, :, sl], k[:, :, sl], v[:, :, sl]
        s = jnp.einsum("bqd,bkd->bqk", qh, kh,
                       preferred_element_type=jnp.float32) * scale
        if mask is not None:
            s = s + mask
        m = jnp.max(s, axis=-1, keepdims=True)
        p = jnp.exp(s - m)
        p = p * pl.reciprocal(jnp.sum(p, axis=-1, keepdims=True), approx=True)
        outs.append(jnp.einsum("bqk,bkd->bqd", p, vh,
                               preferred_element_type=jnp.float32))
    return jnp.concatenate(outs, axis=-1)


# ----------------------------------------------------------------------------
# Pallas kernels
# ----------------------------------------------------------------------------

def _src_embed_kernel(x_ref, w_ref, b_ref, pos_ref, o_ref):
    """Fused TokenEmbedding (Linear) + PositionalEncoding for the source."""
    B, S, F = x_ref.shape
    E = w_ref.shape[1]
    x = x_ref[...].reshape(B * S, F)
    emb = jnp.dot(x, w_ref[...], preferred_element_type=jnp.float32) + b_ref[...]
    o_ref[...] = (emb.reshape(B, S, E) + pos_ref[...][None, :, :]).astype(o_ref.dtype)


def _trg_embed_kernel(x_ref, w_ref, b_ref, pos_ref, o_ref):
    """Fused TokenEmbedding (Fin==1 -> lane broadcast, no K=1 matmul) + PositionalEncoding."""
    x = x_ref[...]                       # (B, T, 1)
    w = w_ref[...][None, :, :]           # (1, 1, E)
    b = b_ref[...][None, :, :]           # (1, 1, E)
    pos = pos_ref[...][None, :, :]       # (1, T, E)
    o_ref[...] = (x * w + b + pos).astype(o_ref.dtype)


def _encoder_layer_kernel(x_ref, wqkv_ref, bqkv_ref, wo_ref, bo_ref,
                          g1_ref, be1_ref, wf1_ref, bf1_ref, wf2_ref, bf2_ref,
                          g2_ref, be2_ref, o_ref, *, nhead, scale, eps):
    """Whole nn.TransformerEncoderLayer in one kernel (post-norm, ReLU, eval mode)."""
    B, T, E = x_ref.shape
    dh = E // nhead
    x2d = x_ref[...].reshape(B * T, E)

    # --- self-attention: fused QKV projection + per-head SDPA + output projection ---
    qkv = jnp.dot(x2d, wqkv_ref[...], preferred_element_type=jnp.float32) + bqkv_ref[...]
    qkv = qkv.reshape(B, T, 3 * E)
    sa = _mha_core(qkv[:, :, :E], qkv[:, :, E:2 * E], qkv[:, :, 2 * E:],
                   None, nhead, dh, scale)
    sa = jnp.dot(sa.reshape(B * T, E), wo_ref[...],
                 preferred_element_type=jnp.float32) + bo_ref[...]
    x1 = _layernorm(sa + x2d, g1_ref[...], be1_ref[...], eps)

    # --- feed-forward + add & norm ---
    h = jnp.maximum(jnp.dot(x1, wf1_ref[...],
                            preferred_element_type=jnp.float32) + bf1_ref[...], 0.0)
    f = jnp.dot(h, wf2_ref[...], preferred_element_type=jnp.float32) + bf2_ref[...]
    x2 = _layernorm(f + x1, g2_ref[...], be2_ref[...], eps)
    o_ref[...] = x2.reshape(B, T, E).astype(o_ref.dtype)


def _decoder_layer_kernel(x_ref, mem_ref, mask_ref,
                          wqkv_s_ref, bqkv_s_ref, wo_s_ref, bo_s_ref, g1_ref, be1_ref,
                          wqkv_c_ref, bqkv_c_ref, wo_c_ref, bo_c_ref, g2_ref, be2_ref,
                          wf1_ref, bf1_ref, wf2_ref, bf2_ref, g3_ref, be3_ref,
                          o_ref, *, nhead, scale, eps):
    """Whole nn.TransformerDecoderLayer in one kernel (post-norm, ReLU, eval mode)."""
    B, T, E = x_ref.shape
    S = mem_ref.shape[1]
    dh = E // nhead
    x2d = x_ref[...].reshape(B * T, E)
    mem2d = mem_ref[...].reshape(B * S, E)
    mask = mask_ref[...][None]           # (1, 1, T) additive key-length mask

    # --- self-attention over the (padded) target prefix ---
    qkv = jnp.dot(x2d, wqkv_s_ref[...], preferred_element_type=jnp.float32) + bqkv_s_ref[...]
    qkv = qkv.reshape(B, T, 3 * E)
    sa = _mha_core(qkv[:, :, :E], qkv[:, :, E:2 * E], qkv[:, :, 2 * E:],
                   mask, nhead, dh, scale)
    sa = jnp.dot(sa.reshape(B * T, E), wo_s_ref[...],
                 preferred_element_type=jnp.float32) + bo_s_ref[...]
    x1 = _layernorm(sa + x2d, g1_ref[...], be1_ref[...], eps)

    # --- cross-attention: Q from tgt, fused K/V in-proj from encoder memory ---
    wc = wqkv_c_ref[...]
    bc = bqkv_c_ref[...]
    q = jnp.dot(x1, wc[:, :E], preferred_element_type=jnp.float32) + bc[:, :E]
    kv = jnp.dot(mem2d, wc[:, E:], preferred_element_type=jnp.float32) + bc[:, E:]
    q = q.reshape(B, T, E)
    kv = kv.reshape(B, S, 2 * E)
    ca = _mha_core(q, kv[:, :, :E], kv[:, :, E:], None, nhead, dh, scale)
    ca = jnp.dot(ca.reshape(B * T, E), wo_c_ref[...],
                 preferred_element_type=jnp.float32) + bo_c_ref[...]
    x2 = _layernorm(ca + x1, g2_ref[...], be2_ref[...], eps)

    # --- feed-forward + add & norm ---
    h = jnp.maximum(jnp.dot(x2, wf1_ref[...],
                            preferred_element_type=jnp.float32) + bf1_ref[...], 0.0)
    f = jnp.dot(h, wf2_ref[...], preferred_element_type=jnp.float32) + bf2_ref[...]
    x3 = _layernorm(f + x2, g3_ref[...], be3_ref[...], eps)
    o_ref[...] = x3.reshape(B, T, E).astype(o_ref.dtype)


def _generator_kernel(x_ref, w_ref, b_ref, o_ref):
    """Fout == 1 generator as a lane reduction (no N=1 matmul)."""
    o = jnp.sum(x_ref[...] * w_ref[...], axis=-1, keepdims=True) + b_ref[...]
    o_ref[...] = o.astype(o_ref.dtype)


# ----------------------------------------------------------------------------
# pallas_call wrappers
# ----------------------------------------------------------------------------

def src_embed(src, w, b, pos):
    B, S, _ = src.shape
    E = w.shape[1]
    args = (src, w, b, pos)
    return pl.pallas_call(
        _src_embed_kernel,
        out_shape=jax.ShapeDtypeStruct((B, S, E), src.dtype),
        in_specs=[_full_spec(a.shape) for a in args],
        out_specs=_full_spec((B, S, E)),
    )(*args)


def trg_embed(trg, w, b, pos):
    B, T, _ = trg.shape
    E = w.shape[1]
    args = (trg, w, b, pos)
    return pl.pallas_call(
        _trg_embed_kernel,
        out_shape=jax.ShapeDtypeStruct((B, T, E), trg.dtype),
        in_specs=[_full_spec(a.shape) for a in args],
        out_specs=_full_spec((B, T, E)),
    )(*args)


def encoder_layer(x, p, nhead):
    B, T, E = x.shape
    kern = functools.partial(_encoder_layer_kernel, nhead=nhead,
                             scale=1.0 / math.sqrt(E // nhead), eps=1e-5)
    args = (x, p["sa_wqkv"], p["sa_bqkv"], p["sa_wo"], p["sa_bo"],
            p["ln1_g"], p["ln1_b"], p["ff1_w"], p["ff1_b"],
            p["ff2_w"], p["ff2_b"], p["ln2_g"], p["ln2_b"])
    return pl.pallas_call(
        kern,
        out_shape=jax.ShapeDtypeStruct((B, T, E), x.dtype),
        in_specs=[_full_spec(a.shape) for a in args],
        out_specs=_full_spec((B, T, E)),
    )(*args)


def decoder_layer(x, memory, mask, p, nhead):
    B, T, E = x.shape
    kern = functools.partial(_decoder_layer_kernel, nhead=nhead,
                             scale=1.0 / math.sqrt(E // nhead), eps=1e-5)
    args = (x, memory, mask,
            p["sa_wqkv"], p["sa_bqkv"], p["sa_wo"], p["sa_bo"], p["ln1_g"], p["ln1_b"],
            p["ca_wqkv"], p["ca_bqkv"], p["ca_wo"], p["ca_bo"], p["ln2_g"], p["ln2_b"],
            p["ff1_w"], p["ff1_b"], p["ff2_w"], p["ff2_b"], p["ln3_g"], p["ln3_b"])
    return pl.pallas_call(
        kern,
        out_shape=jax.ShapeDtypeStruct((B, T, E), x.dtype),
        in_specs=[_full_spec(a.shape) for a in args],
        out_specs=_full_spec((B, T, E)),
    )(*args)


def generator(x, w, b):
    B, E = x.shape
    args = (x, w, b)
    return pl.pallas_call(
        _generator_kernel,
        out_shape=jax.ShapeDtypeStruct((B, 1), x.dtype),
        in_specs=[_full_spec(a.shape) for a in args],
        out_specs=_full_spec((B, 1)),
    )(*args)


# ----------------------------------------------------------------------------
# Parameters (deterministic; xavier_uniform for dim>1, zeros/ones otherwise).
# Weights are stored PRE-TRANSPOSED as (Fin, Fout) so kernels never transpose.
# ----------------------------------------------------------------------------

def _xavier(key, shape):
    fan_in, fan_out = shape
    a = math.sqrt(6.0 / (fan_in + fan_out))
    return jax.random.uniform(key, shape, jnp.float32, -a, a)


def _make_attn_params(key, e):
    k1, k2 = jax.random.split(key)
    return dict(
        wqkv=_xavier(k1, (e, 3 * e)), bqkv=jnp.zeros((1, 3 * e), jnp.float32),
        wo=_xavier(k2, (e, e)), bo=jnp.zeros((1, e), jnp.float32),
    )


def _make_layer_params(key, e, hidden, is_decoder):
    keys = jax.random.split(key, 4)
    sa = _make_attn_params(keys[0], e)
    p = {
        "sa_wqkv": sa["wqkv"], "sa_bqkv": sa["bqkv"], "sa_wo": sa["wo"], "sa_bo": sa["bo"],
        "ff1_w": _xavier(keys[2], (e, hidden)), "ff1_b": jnp.zeros((1, hidden), jnp.float32),
        "ff2_w": _xavier(keys[3], (hidden, e)), "ff2_b": jnp.zeros((1, e), jnp.float32),
        "ln1_g": jnp.ones((1, e), jnp.float32), "ln1_b": jnp.zeros((1, e), jnp.float32),
        "ln2_g": jnp.ones((1, e), jnp.float32), "ln2_b": jnp.zeros((1, e), jnp.float32),
    }
    if is_decoder:
        ca = _make_attn_params(keys[1], e)
        p.update({
            "ca_wqkv": ca["wqkv"], "ca_bqkv": ca["bqkv"],
            "ca_wo": ca["wo"], "ca_bo": ca["bo"],
            "ln3_g": jnp.ones((1, e), jnp.float32), "ln3_b": jnp.zeros((1, e), jnp.float32),
        })
    return p


def _make_pos_embedding(e, maxlen):
    den = jnp.exp(-jnp.arange(0, e, 2, dtype=jnp.float32) * math.log(10000.0) / e)
    pos = jnp.arange(0, maxlen, dtype=jnp.float32).reshape(maxlen, 1)
    pe = jnp.zeros((maxlen, e), jnp.float32)
    pe = pe.at[:, 0::2].set(jnp.sin(pos * den))
    pe = pe.at[:, 1::2].set(jnp.cos(pos * den))
    return pe                                    # (maxlen, E)


def make_params(key, cfg, maxlen=64):
    e, f, h, nl = cfg["emb_size"], cfg["feature_size"], cfg["hidden_dim"], cfg["num_layers"]
    keys = jax.random.split(key, 4 + 2 * nl)
    return {
        "src_emb_w": _xavier(keys[0], (f, e)), "src_emb_b": jnp.zeros((1, e), jnp.float32),
        "trg_emb_w": _xavier(keys[1], (1, e)), "trg_emb_b": jnp.zeros((1, e), jnp.float32),
        "gen_w": _xavier(keys[2], (1, e)),       # used as a lane-reduction weight (Fout=1)
        "gen_b": jnp.zeros((1, 1), jnp.float32),
        "pos_emb": _make_pos_embedding(e, maxlen),
        "enc_layers": [_make_layer_params(keys[4 + i], e, h, False) for i in range(nl)],
        "dec_layers": [_make_layer_params(keys[4 + nl + i], e, h, True) for i in range(nl)],
    }


# ----------------------------------------------------------------------------
# Full forward pass (mirrors Seq2SeqTransformer.forward, eval mode)
# ----------------------------------------------------------------------------

def seq2seq_transformer_forward(src, params, cfg):
    """src: (B, S, feature_size) -> (B, trg_len), matching the PyTorch module."""
    nhead, trg_len = cfg["nhead"], cfg["trg_len"]
    B, S, _ = src.shape
    pos = params["pos_emb"]

    # ---- encoder ----
    memory = src_embed(src, params["src_emb_w"], params["src_emb_b"], pos[:S])
    for lp in params["enc_layers"]:
        memory = encoder_layer(memory, lp, nhead)

    # ---- shape-static greedy decode ----
    # The target prefix lives in a fixed 8-aligned buffer; an additive key-length mask
    # reproduces the reference module's variable-length, un-masked decoder self-attention
    # exactly, so every step reuses identical kernels (single compilation under jit).
    t_dec = ((trg_len + 7) // 8) * 8
    trg = jnp.zeros((B, t_dec, 1), src.dtype)
    key_idx = jnp.arange(t_dec, dtype=jnp.int32)
    outs = []
    for s in range(trg_len):
        mask = jnp.where(key_idx < s + 1, 0.0, -1e30).astype(jnp.float32).reshape(1, t_dec)
        out = trg_embed(trg, params["trg_emb_w"], params["trg_emb_b"], pos[:t_dec])
        for lp in params["dec_layers"]:
            out = decoder_layer(out, memory, mask, lp, nhead)
        # generator only on the last valid position (position-wise -> identical to PyTorch)
        last = generator(out[:, s, :], params["gen_w"], params["gen_b"])   # (B, 1)
        outs.append(last[:, 0])
        if s + 1 < t_dec:
            trg = trg.at[:, s + 1, :].set(last)
    return jnp.stack(outs, axis=1)                                         # (B, trg_len)


# ----------------------------------------------------------------------------
# main
# ----------------------------------------------------------------------------

if __name__ == "__main__":
    key = jax.random.PRNGKey(0)
    k_params, k_src = jax.random.split(key)

    cfg = dict(feature_size=4, emb_size=32, hidden_dim=64,
               num_layers=2, nhead=4, trg_len=5)
    batch, seq = 2, 8

    params = make_params(k_params, cfg)
    src = jax.random.normal(k_src, (batch, seq, cfg["feature_size"]), jnp.float32)

    fwd = jax.jit(functools.partial(seq2seq_transformer_forward, cfg=cfg))
    out = jax.block_until_ready(fwd(src, params))

    assert out.shape == (batch, cfg["trg_len"]), out.shape
    assert bool(jnp.all(jnp.isfinite(out)))
    print("KERNEL_OK")
</pallas_src>

<mosaic_0001>
module attributes {stable_mosaic.version = 11 : i64} {
  func.func @_src_embed_kernel(%arg0: memref<2x8x4xf32, #tpu.memory_space<vmem>>, %arg1: memref<4x32xf32, #tpu.memory_space<vmem>>, %arg2: memref<1x32xf32, #tpu.memory_space<vmem>>, %arg3: memref<8x32xf32, #tpu.memory_space<vmem>>, %arg4: memref<2x8x32xf32, #tpu.memory_space<vmem>>) attributes {dimension_semantics = [], scalar_prefetch = 0 : i64, scratch_operands = 0 : i64, tpu.core_type = #tpu.core_type<tc>} {
    %c0 = arith.constant 0 : index
    %c0_0 = arith.constant 0 : index
    %c0_1 = arith.constant 0 : index
    %0 = vector.load %arg0[%c0, %c0_0, %c0_1] : memref<2x8x4xf32, #tpu.memory_space<vmem>>, vector<2x8x4xf32>
    %1 = vector.shape_cast %0 : vector<2x8x4xf32> to vector<16x4xf32>
    %c0_2 = arith.constant 0 : index
    %c0_3 = arith.constant 0 : index
    %2 = vector.load %arg1[%c0_2, %c0_3] : memref<4x32xf32, #tpu.memory_space<vmem>>, vector<4x32xf32>
    %cst = arith.constant dense<0.000000e+00> : vector<16x32xf32>
    %3 = tpu.matmul %1, %2, %cst {dimension_numbers = #tpu.dot_dimension_numbers<[1], [0], [0], [1], [0, 0, 1, 1], [], []>} : vector<16x4xf32>, vector<4x32xf32>, vector<16x32xf32> -> vector<16x32xf32>
    %c0_4 = arith.constant 0 : index
    %c0_5 = arith.constant 0 : index
    %4 = vector.load %arg2[%c0_4, %c0_5] : memref<1x32xf32, #tpu.memory_space<vmem>>, vector<1x32xf32>
    %5 = vector.broadcast %4 : vector<1x32xf32> to vector<16x32xf32>
    %6 = arith.addf %3, %5 : vector<16x32xf32>
    %7 = vector.shape_cast %6 : vector<16x32xf32> to vector<2x8x32xf32>
    %c0_6 = arith.constant 0 : index
    %c0_7 = arith.constant 0 : index
    %8 = vector.load %arg3[%c0_6, %c0_7] : memref<8x32xf32, #tpu.memory_space<vmem>>, vector<8x32xf32>
    %9 = vector.shape_cast %8 : vector<8x32xf32> to vector<1x8x32xf32>
    %10 = vector.broadcast %9 : vector<1x8x32xf32> to vector<2x8x32xf32>
    %11 = arith.addf %7, %10 : vector<2x8x32xf32>
    %c0_8 = arith.constant 0 : index
    %c0_9 = arith.constant 0 : index
    %c0_10 = arith.constant 0 : index
    %12 = vector.load %arg4[%c0_8, %c0_9, %c0_10] : memref<2x8x32xf32, #tpu.memory_space<vmem>>, vector<2x8x32xf32>
    tpu.vector_store %arg4[%c0_8, %c0_9, %c0_10], %11 {strides = array<i32>} : memref<2x8x32xf32, #tpu.memory_space<vmem>>, vector<2x8x32xf32>,
    return
  }
}

module attributes {stable_mosaic.version = 11 : i64} {
  func.func @_trg_embed_kernel(%arg0: memref<2x8x1xf32, #tpu.memory_space<vmem>>, %arg1: memref<1x32xf32, #tpu.memory_space<vmem>>, %arg2: memref<1x32xf32, #tpu.memory_space<vmem>>, %arg3: memref<8x32xf32, #tpu.memory_space<vmem>>, %arg4: memref<2x8x32xf32, #tpu.memory_space<vmem>>) attributes {dimension_semantics = [], scalar_prefetch = 0 : i64, scratch_operands = 0 : i64, tpu.core_type = #tpu.core_type<tc>} {
    %c0 = arith.constant 0 : index
    %c0_0 = arith.constant 0 : index
    %c0_1 = arith.constant 0 : index
    %0 = vector.load %arg0[%c0, %c0_0, %c0_1] : memref<2x8x1xf32, #tpu.memory_space<vmem>>, vector<2x8x1xf32>
    %c0_2 = arith.constant 0 : index
    %c0_3 = arith.constant 0 : index
    %1 = vector.load %arg1[%c0_2, %c0_3] : memref<1x32xf32, #tpu.memory_space<vmem>>, vector<1x32xf32>
    %2 = vector.shape_cast %1 : vector<1x32xf32> to vector<1x1x32xf32>
    %c0_4 = arith.constant 0 : index
    %c0_5 = arith.constant 0 : index
    %3 = vector.load %arg2[%c0_4, %c0_5] : memref<1x32xf32, #tpu.memory_space<vmem>>, vector<1x32xf32>
    %4 = vector.shape_cast %3 : vector<1x32xf32> to vector<1x1x32xf32>
    %c0_6 = arith.constant 0 : index
    %c0_7 = arith.constant 0 : index
    %5 = vector.load %arg3[%c0_6, %c0_7] : memref<8x32xf32, #tpu.memory_space<vmem>>, vector<8x32xf32>
    %6 = vector.shape_cast %5 : vector<8x32xf32> to vector<1x8x32xf32>
    %7 = vector.broadcast %0 : vector<2x8x1xf32> to vector<2x8x32xf32>
    %8 = vector.broadcast %2 : vector<1x1x32xf32> to vector<2x8x32xf32>
    %9 = arith.mulf %7, %8 : vector<2x8x32xf32>
    %10 = vector.broadcast %4 : vector<1x1x32xf32> to vector<2x8x32xf32>
    %11 = arith.addf %9, %10 : vector<2x8x32xf32>
    %12 = vector.broadcast %6 : vector<1x8x32xf32> to vector<2x8x32xf32>
    %13 = arith.addf %11, %12 : vector<2x8x32xf32>
    %c0_8 = arith.constant 0 : index
    %c0_9 = arith.constant 0 : index
    %c0_10 = arith.constant 0 : index
    %14 = vector.load %arg4[%c0_8, %c0_9, %c0_10] : memref<2x8x32xf32, #tpu.memory_space<vmem>>, vector<2x8x32xf32>
    tpu.vector_store %arg4[%c0_8, %c0_9, %c0_10], %13 {strides = array<i32>} : memref<2x8x32xf32, #tpu.memory_space<vmem>>, vector<2x8x32xf32>,
    return
  }
}

module attributes {stable_mosaic.version = 11 : i64} {
  func.func @_encoder_layer_kernel(%arg0: memref<2x8x32xf32, #tpu.memory_space<vmem>>, %arg1: memref<32x96xf32, #tpu.memory_space<vmem>>, %arg2: memref<1x96xf32, #tpu.memory_space<vmem>>, %arg3: memref<32x32xf32, #tpu.memory_space<vmem>>, %arg4: memref<1x32xf32, #tpu.memory_space<vmem>>, %arg5: memref<1x32xf32, #tpu.memory_space<vmem>>, %arg6: memref<1x32xf32, #tpu.memory_space<vmem>>, %arg7: memref<32x64xf32, #tpu.memory_space<vmem>>, %arg8: memref<1x64xf32, #tpu.memory_space<vmem>>, %arg9: memref<64x32xf32, #tpu.memory_space<vmem>>, %arg10: memref<1x32xf32, #tpu.memory_space<vmem>>, %arg11: memref<1x32xf32, #tpu.memory_space<vmem>>, %arg12: memref<1x32xf32, #tpu.memory_space<vmem>>, %arg13: memref<2x8x32xf32, #tpu.memory_space<vmem>>) attributes {dimension_semantics = [], scalar_prefetch = 0 : i64, scratch_operands = 0 : i64, tpu.core_type = #tpu.core_type<tc>} {
    %c0 = arith.constant 0 : index
    %c0_0 = arith.constant 0 : index
    %c0_1 = arith.constant 0 : index
    %0 = vector.load %arg0[%c0, %c0_0, %c0_1] : memref<2x8x32xf32, #tpu.memory_space<vmem>>, vector<2x8x32xf32>
    %1 = vector.shape_cast %0 : vector<2x8x32xf32> to vector<16x32xf32>
    %c0_2 = arith.constant 0 : index
    %c0_3 = arith.constant 0 : index
    %2 = vector.load %arg1[%c0_2, %c0_3] : memref<32x96xf32, #tpu.memory_space<vmem>>, vector<32x96xf32>
    %cst = arith.constant dense<0.000000e+00> : vector<16x96xf32>
    %3 = tpu.matmul %1, %2, %cst {dimension_numbers = #tpu.dot_dimension_numbers<[1], [0], [0], [1], [0, 0, 1, 1], [], []>} : vector<16x32xf32>, vector<32x96xf32>, vector<16x96xf32> -> vector<16x96xf32>
    %c0_4 = arith.constant 0 : index
    %c0_5 = arith.constant 0 : index
    %4 = vector.load %arg2[%c0_4, %c0_5] : memref<1x96xf32, #tpu.memory_space<vmem>>, vector<1x96xf32>
    %5 = vector.broadcast %4 : vector<1x96xf32> to vector<16x96xf32>
    %6 = arith.addf %3, %5 : vector<16x96xf32>
    %7 = vector.shape_cast %6 : vector<16x96xf32> to vector<2x8x96xf32>
    %8 = vector.extract_strided_slice %7 {offsets = [0, 0, 0], sizes = [2, 8, 32], strides = [1, 1, 1]} : vector<2x8x96xf32> to vector<2x8x32xf32>
    %9 = vector.extract_strided_slice %7 {offsets = [0, 0, 32], sizes = [2, 8, 32], strides = [1, 1, 1]} : vector<2x8x96xf32> to vector<2x8x32xf32>
    %10 = vector.extract_strided_slice %7 {offsets = [0, 0, 64], sizes = [2, 8, 32], strides = [1, 1, 1]} : vector<2x8x96xf32> to vector<2x8x32xf32>
    %11 = vector.extract_strided_slice %8 {offsets = [0, 0, 0], sizes = [2, 8, 8], strides = [1, 1, 1]} : vector<2x8x32xf32> to vector<2x8x8xf32>
    %12 = vector.extract_strided_slice %9 {offsets = [0, 0, 0], sizes = [2, 8, 8], strides = [1, 1, 1]} : vector<2x8x32xf32> to vector<2x8x8xf32>
    %13 = vector.extract_strided_slice %10 {offsets = [0, 0, 0], sizes = [2, 8, 8], strides = [1, 1, 1]} : vector<2x8x32xf32> to vector<2x8x8xf32>
    "tpu.trace_start"() <{level = 10 : i32, message = "bqd,bkd->bqk"}> : () -> ()
    %cst_6 = arith.constant dense<0.000000e+00> : vector<2x8x8xf32>
    %14 = tpu.matmul %11, %12, %cst_6 {dimension_numbers = #tpu.dot_dimension_numbers<[2], [2], [1], [1], [0, 0, 0, 1, 1, 1], [0], [0]>} : vector<2x8x8xf32>, vector<2x8x8xf32>, vector<2x8x8xf32> -> vector<2x8x8xf32>
    "tpu.trace_stop"() : () -> ()
    %cst_7 = arith.constant 0.353553385 : f32
    %15 = vector.broadcast %cst_7 : f32 to vector<2x8x8xf32>
    %16 = arith.mulf %14, %15 : vector<2x8x8xf32>
    %cst_8 = arith.constant dense<0xFF800000> : vector<2x8xf32>
    %17 = vector.multi_reduction <maximumf>, %16, %cst_8 [2] : vector<2x8x8xf32> to vector<2x8xf32>
    %18 = vector.shape_cast %17 : vector<2x8xf32> to vector<2x8x1xf32>
    %19 = vector.broadcast %18 : vector<2x8x1xf32> to vector<2x8x8xf32>
    %20 = arith.subf %16, %19 : vector<2x8x8xf32>
    %21 = math.exp %20 : vector<2x8x8xf32>
    %cst_9 = arith.constant dense<0.000000e+00> : vector<2x8xf32>
    %22 = vector.multi_reduction <add>, %21, %cst_9 [2] : vector<2x8x8xf32> to vector<2x8xf32>
    %23 = vector.shape_cast %22 : vector<2x8xf32> to vector<2x8x1xf32>
    %24 = tpu.reciprocal %23 {approx = true} : vector<2x8x1xf32> -> vector<2x8x1xf32>
    %25 = vector.broadcast %24 : vector<2x8x1xf32> to vector<2x8x8xf32>
    %26 = arith.mulf %21, %25 : vector<2x8x8xf32>
    "tpu.trace_start"() <{level = 10 : i32, message = "bqk,bkd->bqd"}> : () -> ()
    %cst_10 = arith.constant dense<0.000000e+00> : vector<2x8x8xf32>
    %27 = tpu.matmul %26, %13, %cst_10 {dimension_numbers = #tpu.dot_dimension_numbers<[2], [1], [1], [2], [0, 0, 0, 1, 1, 2], [0], [0]>} : vector<2x8x8xf32>, vector<2x8x8xf32>, vector<2x8x8xf32> -> vector<2x8x8xf32>
    "tpu.trace_stop"() : () -> ()
    %28 = vector.extract_strided_slice %8 {offsets = [0, 0, 8], sizes = [2, 8, 8], strides = [1, 1, 1]} : vector<2x8x32xf32> to vector<2x8x8xf32>
    %29 = vector.extract_strided_slice %9 {offsets = [0, 0, 8], sizes = [2, 8, 8], strides = [1, 1, 1]} : vector<2x8x32xf32> to vector<2x8x8xf32>
    %30 = vector.extract_strided_slice %10 {offsets = [0, 0, 8], sizes = [2, 8, 8], strides = [1, 1, 1]} : vector<2x8x32xf32> to vector<2x8x8xf32>
    "tpu.trace_start"() <{level = 10 : i32, message = "bqd,bkd->bqk"}> : () -> ()
    %cst_11 = arith.constant dense<0.000000e+00> : vector<2x8x8xf32>
    %31 = tpu.matmul %28, %29, %cst_11 {dimension_numbers = #tpu.dot_dimension_numbers<[2], [2], [1], [1], [0, 0, 0, 1, 1, 1], [0], [0]>} : vector<2x8x8xf32>, vector<2x8x8xf32>, vector<2x8x8xf32> -> vector<2x8x8xf32>
    "tpu.trace_stop"() : () -> ()
    %cst_12 = arith.constant 0.353553385 : f32
    %32 = vector.broadcast %cst_12 : f32 to vector<2x8x8xf32>
    %33 = arith.mulf %31, %32 : vector<2x8x8xf32>
    %cst_13 = arith.constant dense<0xFF800000> : vector<2x8xf32>
    %34 = vector.multi_reduction <maximumf>, %33, %cst_13 [2] : vector<2x8x8xf32> to vector<2x8xf32>
    %35 = vector.shape_cast %34 : vector<2x8xf32> to vector<2x8x1xf32>
    %36 = vector.broadcast %35 : vector<2x8x1xf32> to vector<2x8x8xf32>
    %37 = arith.subf %33, %36 : vector<2x8x8xf32>
    %38 = math.exp %37 : vector<2x8x8xf32>
    %cst_14 = arith.constant dense<0.000000e+00> : vector<2x8xf32>
    %39 = vector.multi_reduction <add>, %38, %cst_14 [2] : vector<2x8x8xf32> to vector<2x8xf32>
    %40 = vector.shape_cast %39 : vector<2x8xf32> to vector<2x8x1xf32>
    %41 = tpu.reciprocal %40 {approx = true} : vector<2x8x1xf32> -> vector<2x8x1xf32>
    %42 = vector.broadcast %41 : vector<2x8x1xf32> to vector<2x8x8xf32>
    %43 = arith.mulf %38, %42 : vector<2x8x8xf32>
    "tpu.trace_start"() <{level = 10 : i32, message = "bqk,bkd->bqd"}> : () -> ()
    %cst_15 = arith.constant dense<0.000000e+00> : vector<2x8x8xf32>
    %44 = tpu.matmul %43, %30, %cst_15 {dimension_numbers = #tpu.dot_dimension_numbers<[2], [1], [1], [2], [0, 0, 0, 1, 1, 2], [0], [0]>} : vector<2x8x8xf32>, vector<2x8x8xf32>, vector<2x8x8xf32> -> vector<2x8x8xf32>
    "tpu.trace_stop"() : () -> ()
    %45 = vector.extract_strided_slice %8 {offsets = [0, 0, 16], sizes = [2, 8, 8], strides = [1, 1, 1]} : vector<2x8x32xf32> to vector<2x8x8xf32>
    %46 = vector.extract_strided_slice %9 {offsets = [0, 0, 16], sizes = [2, 8, 8], strides = [1, 1, 1]} : vector<2x8x32xf32> to vector<2x8x8xf32>
    %47 = vector.extract_strided_slice %10 {offsets = [0, 0, 16], sizes = [2, 8, 8], strides = [1, 1, 1]} : vector<2x8x32xf32> to vector<2x8x8xf32>
    "tpu.trace_start"() <{level = 10 : i32, message = "bqd,bkd->bqk"}> : () -> ()
    %cst_16 = arith.constant dense<0.000000e+00> : vector<2x8x8xf32>
    %48 = tpu.matmul %45, %46, %cst_16 {dimension_numbers = #tpu.dot_dimension_numbers<[2], [2], [1], [1], [0, 0, 0, 1, 1, 1], [0], [0]>} : vector<2x8x8xf32>, vector<2x8x8xf32>, vector<2x8x8xf32> -> vector<2x8x8xf32>
    "tpu.trace_stop"() : () -> ()
    %cst_17 = arith.constant 0.353553385 : f32
    %49 = vector.broadcast %cst_17 : f32 to vector<2x8x8xf32>
    %50 = arith.mulf %48, %49 : vector<2x8x8xf32>
    %cst_18 = arith.constant dense<0xFF800000> : vector<2x8xf32>
    %51 = vector.multi_reduction <maximumf>, %50, %cst_18 [2] : vector<2x8x8xf32> to vector<2x8xf32>
    %52 = vector.shape_cast %51 : vector<2x8xf32> to vector<2x8x1xf32>
    %53 = vector.broadcast %52 : vector<2x8x1xf32> to vector<2x8x8xf32>
    %54 = arith.subf %50, %53 : vector<2x8x8xf32>
    %55 = math.exp %54 : vector<2x8x8xf32>
    %cst_19 = arith.constant dense<0.000000e+00> : vector<2x8xf32>
    %56 = vector.multi_reduction <add>, %55, %cst_19 [2] : vector<2x8x8xf32> to vector<2x8xf32>
    %57 = vector.shape_cast %56 : vector<2x8xf32> to vector<2x8x1xf32>
    %58 = tpu.reciprocal %57 {approx = true} : vector<2x8x1xf32> -> vector<2x8x1xf32>
    %59 = vector.broadcast %58 : vector<2x8x1xf32> to vector<2x8x8xf32>
    %60 = arith.mulf %55, %59 : vector<2x8x8xf32>
    "tpu.trace_start"() <{level = 10 : i32, message = "bqk,bkd->bqd"}> : () -> ()
    %cst_20 = arith.constant dense<0.000000e+00> : vector<2x8x8xf32>
    %61 = tpu.matmul %60, %47, %cst_20 {dimension_numbers = #tpu.dot_dimension_numbers<[2], [1], [1], [2], [0, 0, 0, 1, 1, 2], [0], [0]>} : vector<2x8x8xf32>, vector<2x8x8xf32>, vector<2x8x8xf32> -> vector<2x8x8xf32>
    "tpu.trace_stop"() : () -> ()
    %62 = vector.extract_strided_slice %8 {offsets = [0, 0, 24], sizes = [2, 8, 8], strides = [1, 1, 1]} : vector<2x8x32xf32> to vector<2x8x8xf32>
    %63 = vector.extract_strided_slice %9 {offsets = [0, 0, 24], sizes = [2, 8, 8], strides = [1, 1, 1]} : vector<2x8x32xf32> to vector<2x8x8xf32>
    %64 = vector.extract_strided_slice %10 {offsets = [0, 0, 24], sizes = [2, 8, 8], strides = [1, 1, 1]} : vector<2x8x32xf32> to vector<2x8x8xf32>
    "tpu.trace_start"() <{level = 10 : i32, message = "bqd,bkd->bqk"}> : () -> ()
    %cst_21 = arith.constant dense<0.000000e+00> : vector<2x8x8xf32>
    %65 = tpu.matmul %62, %63, %cst_21 {dimension_numbers = #tpu.dot_dimension_numbers<[2], [2], [1], [1], [0, 0, 0, 1, 1, 1], [0], [0]>} : vector<2x8x8xf32>, vector<2x8x8xf32>, vector<2x8x8xf32> -> vector<2x8x8xf32>
    "tpu.trace_stop"() : () -> ()
    %cst_22 = arith.constant 0.353553385 : f32
    %66 = vector.broadcast %cst_22 : f32 to vector<2x8x8xf32>
    %67 = arith.mulf %65, %66 : vector<2x8x8xf32>
    %cst_23 = arith.constant dense<0xFF800000> : vector<2x8xf32>
    %68 = vector.multi_reduction <maximumf>, %67, %cst_23 [2] : vector<2x8x8xf32> to vector<2x8xf32>
    %69 = vector.shape_cast %68 : vector<2x8xf32> to vector<2x8x1xf32>
    %70 = vector.broadcast %69 : vector<2x8x1xf32> to vector<2x8x8xf32>
    %71 = arith.subf %67, %70 : vector<2x8x8xf32>
    %72 = math.exp %71 : vector<2x8x8xf32>
    %cst_24 = arith.constant dense<0.000000e+00> : vector<2x8xf32>
    %73 = vector.multi_reduction <add>, %72, %cst_24 [2] : vector<2x8x8xf32> to vector<2x8xf32>
    %74 = vector.shape_cast %73 : vector<2x8xf32> to vector<2x8x1xf32>
    %75 = tpu.reciprocal %74 {approx = true} : vector<2x8x1xf32> -> vector<2x8x1xf32>
    %76 = vector.broadcast %75 : vector<2x8x1xf32> to vector<2x8x8xf32>
    %77 = arith.mulf %72, %76 : vector<2x8x8xf32>
    "tpu.trace_start"() <{level = 10 : i32, message = "bqk,bkd->bqd"}> : () -> ()
    %cst_25 = arith.constant dense<0.000000e+00> : vector<2x8x8xf32>
    %78 = tpu.matmul %77, %64, %cst_25 {dimension_numbers = #tpu.dot_dimension_numbers<[2], [1], [1], [2], [0, 0, 0, 1, 1, 2], [0], [0]>} : vector<2x8x8xf32>, vector<2x8x8xf32>, vector<2x8x8xf32> -> vector<2x8x8xf32>
    "tpu.trace_stop"() : () -> ()
    %79 = tpu.concatenate %27, %44, %61, %78 in 2 : vector<2x8x8xf32>, vector<2x8x8xf32>, vector<2x8x8xf32>, vector<2x8x8xf32> -> vector<2x8x32xf32>
    %80 = vector.shape_cast %79 : vector<2x8x32xf32> to vector<16x32xf32>
    %c0_26 = arith.constant 0 : index
    %c0_27 = arith.constant 0 : index
    %81 = vector.load %arg3[%c0_26, %c0_27] : memref<32x32xf32, #tpu.memory_space<vmem>>, vector<32x32xf32>
    %cst_28 = arith.constant dense<0.000000e+00> : vector<16x32xf32>
    %82 = tpu.matmul %80, %81, %cst_28 {dimension_numbers = #tpu.dot_dimension_numbers<[1], [0], [0], [1], [0, 0, 1, 1], [], []>} : vector<16x32xf32>, vector<32x32xf32>, vector<16x32xf32> -> vector<16x32xf32>
    %c0_29 = arith.constant 0 : index
    %c0_30 = arith.constant 0 : index
    %83 = vector.load %arg4[%c0_29, %c0_30] : memref<1x32xf32, #tpu.memory_space<vmem>>, vector<1x32xf32>
    %84 = vector.broadcast %83 : vector<1x32xf32> to vector<16x32xf32>
    %85 = arith.addf %82, %84 : vector<16x32xf32>
    %86 = arith.addf %85, %1 : vector<16x32xf32>
    %c0_31 = arith.constant 0 : index
    %c0_32 = arith.constant 0 : index
    %87 = vector.load %arg5[%c0_31, %c0_32] : memref<1x32xf32, #tpu.memory_space<vmem>>, vector<1x32xf32>
    %c0_33 = arith.constant 0 : index
    %c0_34 = arith.constant 0 : index
    %88 = vector.load %arg6[%c0_33, %c0_34] : memref<1x32xf32, #tpu.memory_space<vmem>>, vector<1x32xf32>
    %cst_35 = arith.constant dense<0.000000e+00> : vector<16xf32>
    %89 = vector.multi_reduction <add>, %86, %cst_35 [1] : vector<16x32xf32> to vector<16xf32>
    %90 = vector.shape_cast %89 : vector<16xf32> to vector<16x1xf32>
    %cst_36 = arith.constant 3.200000e+01 : f32
    %91 = vector.broadcast %cst_36 : f32 to vector<16x1xf32>
    %92 = arith.divf %90, %91 : vector<16x1xf32>
    %93 = vector.broadcast %92 : vector<16x1xf32> to vector<16x32xf32>
    %94 = arith.subf %86, %93 : vector<16x32xf32>
    %95 = arith.mulf %94, %94 : vector<16x32xf32>
    %cst_37 = arith.constant dense<0.000000e+00> : vector<16xf32>
    %96 = vector.multi_reduction <add>, %95, %cst_37 [1] : vector<16x32xf32> to vector<16xf32>
    %97 = vector.shape_cast %96 : vector<16xf32> to vector<16x1xf32>
    %cst_38 = arith.constant 3.200000e+01 : f32
    %98 = vector.broadcast %cst_38 : f32 to vector<16x1xf32>
    %99 = arith.divf %97, %98 : vector<16x1xf32>
    %cst_39 = arith.constant 9.99999974E-6 : f32
    %100 = vector.broadcast %cst_39 : f32 to vector<16x1xf32>
    %101 = arith.addf %99, %100 : vector<16x1xf32>
    %102 = math.rsqrt %101 : vector<16x1xf32>
    %103 = vector.broadcast %102 : vector<16x1xf32> to vector<16x32xf32>
    %104 = arith.mulf %94, %103 : vector<16x32xf32>
    %105 = vector.broadcast %87 : vector<1x32xf32> to vector<16x32xf32>
    %106 = arith.mulf %104, %105 : vector<16x32xf32>
    %107 = vector.broadcast %88 : vector<1x32xf32> to vector<16x32xf32>
    %108 = arith.addf %106, %107 : vector<16x32xf32>
    %c0_40 = arith.constant 0 : index
    %c0_41 = arith.constant 0 : index
    %109 = vector.load %arg7[%c0_40, %c0_41] : memref<32x64xf32, #tpu.memory_space<vmem>>, vector<32x64xf32>
    %cst_42 = arith.constant dense<0.000000e+00> : vector<16x64xf32>
    %110 = tpu.matmul %108, %109, %cst_42 {dimension_numbers = #tpu.dot_dimension_numbers<[1], [0], [0], [1], [0, 0, 1, 1], [], []>} : vector<16x32xf32>, vector<32x64xf32>, vector<16x64xf32> -> vector<16x64xf32>
    %c0_43 = arith.constant 0 : index
    %c0_44 = arith.constant 0 : index
    %111 = vector.load %arg8[%c0_43, %c0_44] : memref<1x64xf32, #tpu.memory_space<vmem>>, vector<1x64xf32>
    %112 = vector.broadcast %111 : vector<1x64xf32> to vector<16x64xf32>
    %113 = arith.addf %110, %112 : vector<16x64xf32>
    %cst_45 = arith.constant 0.000000e+00 : f32
    %114 = vector.broadcast %cst_45 : f32 to vector<16x64xf32>
    %115 = arith.maximumf %113, %114 : vector<16x64xf32>
    %c0_46 = arith.constant 0 : index
    %c0_47 = arith.constant 0 : index
    %116 = vector.load %arg9[%c0_46, %c0_47] : memref<64x32xf32, #tpu.memory_space<vmem>>, vector<64x32xf32>
    %cst_48 = arith.constant dense<0.000000e+00> : vector<16x32xf32>
    %117 = tpu.matmul %115, %116, %cst_48 {dimension_numbers = #tpu.dot_dimension_numbers<[1], [0], [0], [1], [0, 0, 1, 1], [], []>} : vector<16x64xf32>, vector<64x32xf32>, vector<16x32xf32> -> vector<16x32xf32>
    %c0_49 = arith.constant 0 : index
    %c0_50 = arith.constant 0 : index
    %118 = vector.load %arg10[%c0_49, %c0_50] : memref<1x32xf32, #tpu.memory_space<vmem>>, vector<1x32xf32>
    %119 = vector.broadcast %118 : vector<1x32xf32> to vector<16x32xf32>
    %120 = arith.addf %117, %119 : vector<16x32xf32>
    %121 = arith.addf %120, %108 : vector<16x32xf32>
    %c0_51 = arith.constant 0 : index
    %c0_52 = arith.constant 0 : index
    %122 = vector.load %arg11[%c0_51, %c0_52] : memref<1x32xf32, #tpu.memory_space<vmem>>, vector<1x32xf32>
    %c0_53 = arith.constant 0 : index
    %c0_54 = arith.constant 0 : index
    %123 = vector.load %arg12[%c0_53, %c0_54] : memref<1x32xf32, #tpu.memory_space<vmem>>, vector<1x32xf32>
    %cst_55 = arith.constant dense<0.000000e+00> : vector<16xf32>
    %124 = vector.multi_reduction <add>, %121, %cst_55 [1] : vector<16x32xf32> to vector<16xf32>
    %125 = vector.shape_cast %124 : vector<16xf32> to vector<16x1xf32>
    %cst_56 = arith.constant 3.200000e+01 : f32
    %126 = vector.broadcast %cst_56 : f32 to vector<16x1xf32>
    %127 = arith.divf %125, %126 : vector<16x1xf32>
    %128 = vector.broadcast %127 : vector<16x1xf32> to vector<16x32xf32>
    %129 = arith.subf %121, %128 : vector<16x32xf32>
    %130 = arith.mulf %129, %129 : vector<16x32xf32>
    %cst_57 = arith.constant dense<0.000000e+00> : vector<16xf32>
    %131 = vector.multi_reduction <add>, %130, %cst_57 [1] : vector<16x32xf32> to vector<16xf32>
    %132 = vector.shape_cast %131 : vector<16xf32> to vector<16x1xf32>
    %cst_58 = arith.constant 3.200000e+01 : f32
    %133 = vector.broadcast %cst_58 : f32 to vector<16x1xf32>
    %134 = arith.divf %132, %133 : vector<16x1xf32>
    %cst_59 = arith.constant 9.99999974E-6 : f32
    %135 = vector.broadcast %cst_59 : f32 to vector<16x1xf32>
    %136 = arith.addf %134, %135 : vector<16x1xf32>
    %137 = math.rsqrt %136 : vector<16x1xf32>
    %138 = vector.broadcast %137 : vector<16x1xf32> to vector<16x32xf32>
    %139 = arith.mulf %129, %138 : vector<16x32xf32>
    %140 = vector.broadcast %122 : vector<1x32xf32> to vector<16x32xf32>
    %141 = arith.mulf %139, %140 : vector<16x32xf32>
    %142 = vector.broadcast %123 : vector<1x32xf32> to vector<16x32xf32>
    %143 = arith.addf %141, %142 : vector<16x32xf32>
    %144 = vector.shape_cast %143 : vector<16x32xf32> to vector<2x8x32xf32>
    %c0_60 = arith.constant 0 : index
    %c0_61 = arith.constant 0 : index
    %c0_62 = arith.constant 0 : index
    %145 = vector.load %arg13[%c0_60, %c0_61, %c0_62] : memref<2x8x32xf32, #tpu.memory_space<vmem>>, vector<2x8x32xf32>
    tpu.vector_store %arg13[%c0_60, %c0_61, %c0_62], %144 {strides = array<i32>} : memref<2x8x32xf32, #tpu.memory_space<vmem>>, vector<2x8x32xf32>,
    return
  }
}

module attributes {stable_mosaic.version = 11 : i64} {
  func.func @_decoder_layer_kernel(%arg0: memref<2x8x32xf32, #tpu.memory_space<vmem>>, %arg1: memref<2x8x32xf32, #tpu.memory_space<vmem>>, %arg2: memref<1x8xf32, #tpu.memory_space<vmem>>, %arg3: memref<32x96xf32, #tpu.memory_space<vmem>>, %arg4: memref<1x96xf32, #tpu.memory_space<vmem>>, %arg5: memref<32x32xf32, #tpu.memory_space<vmem>>, %arg6: memref<1x32xf32, #tpu.memory_space<vmem>>, %arg7: memref<1x32xf32, #tpu.memory_space<vmem>>, %arg8: memref<1x32xf32, #tpu.memory_space<vmem>>, %arg9: memref<32x96xf32, #tpu.memory_space<vmem>>, %arg10: memref<1x96xf32, #tpu.memory_space<vmem>>, %arg11: memref<32x32xf32, #tpu.memory_space<vmem>>, %arg12: memref<1x32xf32, #tpu.memory_space<vmem>>, %arg13: memref<1x32xf32, #tpu.memory_space<vmem>>, %arg14: memref<1x32xf32, #tpu.memory_space<vmem>>, %arg15: memref<32x64xf32, #tpu.memory_space<vmem>>, %arg16: memref<1x64xf32, #tpu.memory_space<vmem>>, %arg17: memref<64x32xf32, #tpu.memory_space<vmem>>, %arg18: memref<1x32xf32, #tpu.memory_space<vmem>>, %arg19: memref<1x32xf32, #tpu.memory_space<vmem>>, %arg20: memref<1x32xf32, #tpu.memory_space<vmem>>, %arg21: memref<2x8x32xf32, #tpu.memory_space<vmem>>) attributes {dimension_semantics = [], scalar_prefetch = 0 : i64, scratch_operands = 0 : i64, tpu.core_type = #tpu.core_type<tc>} {
    %c0 = arith.constant 0 : index
    %c0_0 = arith.constant 0 : index
    %c0_1 = arith.constant 0 : index
    %0 = vector.load %arg0[%c0, %c0_0, %c0_1] : memref<2x8x32xf32, #tpu.memory_space<vmem>>, vector<2x8x32xf32>
    %1 = vector.shape_cast %0 : vector<2x8x32xf32> to vector<16x32xf32>
    %c0_2 = arith.constant 0 : index
    %c0_3 = arith.constant 0 : index
    %c0_4 = arith.constant 0 : index
    %2 = vector.load %arg1[%c0_2, %c0_3, %c0_4] : memref<2x8x32xf32, #tpu.memory_space<vmem>>, vector<2x8x32xf32>
    %3 = vector.shape_cast %2 : vector<2x8x32xf32> to vector<16x32xf32>
    %c0_5 = arith.constant 0 : index
    %c0_6 = arith.constant 0 : index
    %4 = vector.load %arg2[%c0_5, %c0_6] : memref<1x8xf32, #tpu.memory_space<vmem>>, vector<1x8xf32>
    %5 = vector.shape_cast %4 : vector<1x8xf32> to vector<1x1x8xf32>
    %c0_7 = arith.constant 0 : index
    %c0_8 = arith.constant 0 : index
    %6 = vector.load %arg3[%c0_7, %c0_8] : memref<32x96xf32, #tpu.memory_space<vmem>>, vector<32x96xf32>
    %cst = arith.constant dense<0.000000e+00> : vector<16x96xf32>
    %7 = tpu.matmul %1, %6, %cst {dimension_numbers = #tpu.dot_dimension_numbers<[1], [0], [0], [1], [0, 0, 1, 1], [], []>} : vector<16x32xf32>, vector<32x96xf32>, vector<16x96xf32> -> vector<16x96xf32>
    %c0_9 = arith.constant 0 : index
    %c0_10 = arith.constant 0 : index
    %8 = vector.load %arg4[%c0_9, %c0_10] : memref<1x96xf32, #tpu.memory_space<vmem>>, vector<1x96xf32>
    %9 = vector.broadcast %8 : vector<1x96xf32> to vector<16x96xf32>
    %10 = arith.addf %7, %9 : vector<16x96xf32>
    %11 = vector.shape_cast %10 : vector<16x96xf32> to vector<2x8x96xf32>
    %12 = vector.extract_strided_slice %11 {offsets = [0, 0, 0], sizes = [2, 8, 32], strides = [1, 1, 1]} : vector<2x8x96xf32> to vector<2x8x32xf32>
    %13 = vector.extract_strided_slice %11 {offsets = [0, 0, 32], sizes = [2, 8, 32], strides = [1, 1, 1]} : vector<2x8x96xf32> to vector<2x8x32xf32>
    %14 = vector.extract_strided_slice %11 {offsets = [0, 0, 64], sizes = [2, 8, 32], strides = [1, 1, 1]} : vector<2x8x96xf32> to vector<2x8x32xf32>
    %15 = vector.extract_strided_slice %12 {offsets = [0, 0, 0], sizes = [2, 8, 8], strides = [1, 1, 1]} : vector<2x8x32xf32> to vector<2x8x8xf32>
    %16 = vector.extract_strided_slice %13 {offsets = [0, 0, 0], sizes = [2, 8, 8], strides = [1, 1, 1]} : vector<2x8x32xf32> to vector<2x8x8xf32>
    %17 = vector.extract_strided_slice %14 {offsets = [0, 0, 0], sizes = [2, 8, 8], strides = [1, 1, 1]} : vector<2x8x32xf32> to vector<2x8x8xf32>
    "tpu.trace_start"() <{level = 10 : i32, message = "bqd,bkd->bqk"}> : () -> ()
    %cst_11 = arith.constant dense<0.000000e+00> : vector<2x8x8xf32>
    %18 = tpu.matmul %15, %16, %cst_11 {dimension_numbers = #tpu.dot_dimension_numbers<[2], [2], [1], [1], [0, 0, 0, 1, 1, 1], [0], [0]>} : vector<2x8x8xf32>, vector<2x8x8xf32>, vector<2x8x8xf32> -> vector<2x8x8xf32>
    "tpu.trace_stop"() : () -> ()
    %cst_12 = arith.constant 0.353553385 : f32
    %19 = vector.broadcast %cst_12 : f32 to vector<2x8x8xf32>
    %20 = arith.mulf %18, %19 : vector<2x8x8xf32>
    %21 = vector.broadcast %5 : vector<1x1x8xf32> to vector<2x8x8xf32>
    %22 = arith.addf %20, %21 : vector<2x8x8xf32>
    %cst_13 = arith.constant dense<0xFF800000> : vector<2x8xf32>
    %23 = vector.multi_reduction <maximumf>, %22, %cst_13 [2] : vector<2x8x8xf32> to vector<2x8xf32>
    %24 = vector.shape_cast %23 : vector<2x8xf32> to vector<2x8x1xf32>
    %25 = vector.broadcast %24 : vector<2x8x1xf32> to vector<2x8x8xf32>
    %26 = arith.subf %22, %25 : vector<2x8x8xf32>
    %27 = math.exp %26 : vector<2x8x8xf32>
    %cst_14 = arith.constant dense<0.000000e+00> : vector<2x8xf32>
    %28 = vector.multi_reduction <add>, %27, %cst_14 [2] : vector<2x8x8xf32> to vector<2x8xf32>
    %29 = vector.shape_cast %28 : vector<2x8xf32> to vector<2x8x1xf32>
    %30 = tpu.reciprocal %29 {approx = true} : vector<2x8x1xf32> -> vector<2x8x1xf32>
    %31 = vector.broadcast %30 : vector<2x8x1xf32> to vector<2x8x8xf32>
    %32 = arith.mulf %27, %31 : vector<2x8x8xf32>
    "tpu.trace_start"() <{level = 10 : i32, message = "bqk,bkd->bqd"}> : () -> ()
    %cst_15 = arith.constant dense<0.000000e+00> : vector<2x8x8xf32>
    %33 = tpu.matmul %32, %17, %cst_15 {dimension_numbers = #tpu.dot_dimension_numbers<[2], [1], [1], [2], [0, 0, 0, 1, 1, 2], [0], [0]>} : vector<2x8x8xf32>, vector<2x8x8xf32>, vector<2x8x8xf32> -> vector<2x8x8xf32>
    "tpu.trace_stop"() : () -> ()
    %34 = vector.extract_strided_slice %12 {offsets = [0, 0, 8], sizes = [2, 8, 8], strides = [1, 1, 1]} : vector<2x8x32xf32> to vector<2x8x8xf32>
    %35 = vector.extract_strided_slice %13 {offsets = [0, 0, 8], sizes = [2, 8, 8], strides = [1, 1, 1]} : vector<2x8x32xf32> to vector<2x8x8xf32>
    %36 = vector.extract_strided_slice %14 {offsets = [0, 0, 8], sizes = [2, 8, 8], strides = [1, 1, 1]} : vector<2x8x32xf32> to vector<2x8x8xf32>
    "tpu.trace_start"() <{level = 10 : i32, message = "bqd,bkd->bqk"}> : () -> ()
    %cst_16 = arith.constant dense<0.000000e+00> : vector<2x8x8xf32>
    %37 = tpu.matmul %34, %35, %cst_16 {dimension_numbers = #tpu.dot_dimension_numbers<[2], [2], [1], [1], [0, 0, 0, 1, 1, 1], [0], [0]>} : vector<2x8x8xf32>, vector<2x8x8xf32>, vector<2x8x8xf32> -> vector<2x8x8xf32>
    "tpu.trace_stop"() : () -> ()
    %cst_17 = arith.constant 0.353553385 : f32
    %38 = vector.broadcast %cst_17 : f32 to vector<2x8x8xf32>
    %39 = arith.mulf %37, %38 : vector<2x8x8xf32>
    %40 = vector.broadcast %5 : vector<1x1x8xf32> to vector<2x8x8xf32>
    %41 = arith.addf %39, %40 : vector<2x8x8xf32>
    %cst_18 = arith.constant dense<0xFF800000> : vector<2x8xf32>
    %42 = vector.multi_reduction <maximumf>, %41, %cst_18 [2] : vector<2x8x8xf32> to vector<2x8xf32>
    %43 = vector.shape_cast %42 : vector<2x8xf32> to vector<2x8x1xf32>
    %44 = vector.broadcast %43 : vector<2x8x1xf32> to vector<2x8x8xf32>
    %45 = arith.subf %41, %44 : vector<2x8x8xf32>
    %46 = math.exp %45 : vector<2x8x8xf32>
    %cst_19 = arith.constant dense<0.000000e+00> : vector<2x8xf32>
    %47 = vector.multi_reduction <add>, %46, %cst_19 [2] : vector<2x8x8xf32> to vector<2x8xf32>
    %48 = vector.shape_cast %47 : vector<2x8xf32> to vector<2x8x1xf32>
    %49 = tpu.reciprocal %48 {approx = true} : vector<2x8x1xf32> -> vector<2x8x1xf32>
    %50 = vector.broadcast %49 : vector<2x8x1xf32> to vector<2x8x8xf32>
    %51 = arith.mulf %46, %50 : vector<2x8x8xf32>
    "tpu.trace_start"() <{level = 10 : i32, message = "bqk,bkd->bqd"}> : () -> ()
    %cst_20 = arith.constant dense<0.000000e+00> : vector<2x8x8xf32>
    %52 = tpu.matmul %51, %36, %cst_20 {dimension_numbers = #tpu.dot_dimension_numbers<[2], [1], [1], [2], [0, 0, 0, 1, 1, 2], [0], [0]>} : vector<2x8x8xf32>, vector<2x8x8xf32>, vector<2x8x8xf32> -> vector<2x8x8xf32>
    "tpu.trace_stop"() : () -> ()
    %53 = vector.extract_strided_slice %12 {offsets = [0, 0, 16], sizes = [2, 8, 8], strides = [1, 1, 1]} : vector<2x8x32xf32> to vector<2x8x8xf32>
    %54 = vector.extract_strided_slice %13 {offsets = [0, 0, 16], sizes = [2, 8, 8], strides = [1, 1, 1]} : vector<2x8x32xf32> to vector<2x8x8xf32>
    %55 = vector.extract_strided_slice %14 {offsets = [0, 0, 16], sizes = [2, 8, 8], strides = [1, 1, 1]} : vector<2x8x32xf32> to vector<2x8x8xf32>
    "tpu.trace_start"() <{level = 10 : i32, message = "bqd,bkd->bqk"}> : () -> ()
    %cst_21 = arith.constant dense<0.000000e+00> : vector<2x8x8xf32>
    %56 = tpu.matmul %53, %54, %cst_21 {dimension_numbers = #tpu.dot_dimension_numbers<[2], [2], [1], [1], [0, 0, 0, 1, 1, 1], [0], [0]>} : vector<2x8x8xf32>, vector<2x8x8xf32>, vector<2x8x8xf32> -> vector<2x8x8xf32>
    "tpu.trace_stop"() : () -> ()
    %cst_22 = arith.constant 0.353553385 : f32
    %57 = vector.broadcast %cst_22 : f32 to vector<2x8x8xf32>
    %58 = arith.mulf %56, %57 : vector<2x8x8xf32>
    %59 = vector.broadcast %5 : vector<1x1x8xf32> to vector<2x8x8xf32>
    %60 = arith.addf %58, %59 : vector<2x8x8xf32>
    %cst_23 = arith.constant dense<0xFF800000> : vector<2x8xf32>
    %61 = vector.multi_reduction <maximumf>, %60, %cst_23 [2] : vector<2x8x8xf32> to vector<2x8xf32>
    %62 = vector.shape_cast %61 : vector<2x8xf32> to vector<2x8x1xf32>
    %63 = vector.broadcast %62 : vector<2x8x1xf32> to vector<2x8x8xf32>
    %64 = arith.subf %60, %63 : vector<2x8x8xf32>
    %65 = math.exp %64 : vector<2x8x8xf32>
    %cst_24 = arith.constant dense<0.000000e+00> : vector<2x8xf32>
    %66 = vector.multi_reduction <add>, %65, %cst_24 [2] : vector<2x8x8xf32> to vector<2x8xf32>
    %67 = vector.shape_cast %66 : vector<2x8xf32> to vector<2x8x1xf32>
    %68 = tpu.reciprocal %67 {approx = true} : vector<2x8x1xf32> -> vector<2x8x1xf32>
    %69 = vector.broadcast %68 : vector<2x8x1xf32> to vector<2x8x8xf32>
    %70 = arith.mulf %65, %69 : vector<2x8x8xf32>
    "tpu.trace_start"() <{level = 10 : i32, message = "bqk,bkd->bqd"}> : () -> ()
    %cst_25 = arith.constant dense<0.000000e+00> : vector<2x8x8xf32>
    %71 = tpu.matmul %70, %55, %cst_25 {dimension_numbers = #tpu.dot_dimension_numbers<[2], [1], [1], [2], [0, 0, 0, 1, 1, 2], [0], [0]>} : vector<2x8x8xf32>, vector<2x8x8xf32>, vector<2x8x8xf32> -> vector<2x8x8xf32>
    "tpu.trace_stop"() : () -> ()
    %72 = vector.extract_strided_slice %12 {offsets = [0, 0, 24], sizes = [2, 8, 8], strides = [1, 1, 1]} : vector<2x8x32xf32> to vector<2x8x8xf32>
    %73 = vector.extract_strided_slice %13 {offsets = [0, 0, 24], sizes = [2, 8, 8], strides = [1, 1, 1]} : vector<2x8x32xf32> to vector<2x8x8xf32>
    %74 = vector.extract_strided_slice %14 {offsets = [0, 0, 24], sizes = [2, 8, 8], strides = [1, 1, 1]} : vector<2x8x32xf32> to vector<2x8x8xf32>
    "tpu.trace_start"() <{level = 10 : i32, message = "bqd,bkd->bqk"}> : () -> ()
    %cst_26 = arith.constant dense<0.000000e+00> : vector<2x8x8xf32>
    %75 = tpu.matmul %72, %73, %cst_26 {dimension_numbers = #tpu.dot_dimension_numbers<[2], [2], [1], [1], [0, 0, 0, 1, 1, 1], [0], [0]>} : vector<2x8x8xf32>, vector<2x8x8xf32>, vector<2x8x8xf32> -> vector<2x8x8xf32>
    "tpu.trace_stop"() : () -> ()
    %cst_27 = arith.constant 0.353553385 : f32
    %76 = vector.broadcast %cst_27 : f32 to vector<2x8x8xf32>
    %77 = arith.mulf %75, %76 : vector<2x8x8xf32>
    %78 = vector.broadcast %5 : vector<1x1x8xf32> to vector<2x8x8xf32>
    %79 = arith.addf %77, %78 : vector<2x8x8xf32>
    %cst_28 = arith.constant dense<0xFF800000> : vector<2x8xf32>
    %80 = vector.multi_reduction <maximumf>, %79, %cst_28 [2] : vector<2x8x8xf32> to vector<2x8xf32>
    %81 = vector.shape_cast %80 : vector<2x8xf32> to vector<2x8x1xf32>
    %82 = vector.broadcast %81 : vector<2x8x1xf32> to vector<2x8x8xf32>
    %83 = arith.subf %79, %82 : vector<2x8x8xf32>
    %84 = math.exp %83 : vector<2x8x8xf32>
    %cst_29 = arith.constant dense<0.000000e+00> : vector<2x8xf32>
    %85 = vector.multi_reduction <add>, %84, %cst_29 [2] : vector<2x8x8xf32> to vector<2x8xf32>
    %86 = vector.shape_cast %85 : vector<2x8xf32> to vector<2x8x1xf32>
    %87 = tpu.reciprocal %86 {approx = true} : vector<2x8x1xf32> -> vector<2x8x1xf32>
    %88 = vector.broadcast %87 : vector<2x8x1xf32> to vector<2x8x8xf32>
    %89 = arith.mulf %84, %88 : vector<2x8x8xf32>
    "tpu.trace_start"() <{level = 10 : i32, message = "bqk,bkd->bqd"}> : () -> ()
    %cst_30 = arith.constant dense<0.000000e+00> : vector<2x8x8xf32>
    %90 = tpu.matmul %89, %74, %cst_30 {dimension_numbers = #tpu.dot_dimension_numbers<[2], [1], [1], [2], [0, 0, 0, 1, 1, 2], [0], [0]>} : vector<2x8x8xf32>, vector<2x8x8xf32>, vector<2x8x8xf32> -> vector<2x8x8xf32>
    "tpu.trace_stop"() : () -> ()
    %91 = tpu.concatenate %33, %52, %71, %90 in 2 : vector<2x8x8xf32>, vector<2x8x8xf32>, vector<2x8x8xf32>, vector<2x8x8xf32> -> vector<2x8x32xf32>
    %92 = vector.shape_cast %91 : vector<2x8x32xf32> to vector<16x32xf32>
    %c0_31 = arith.constant 0 : index
    %c0_32 = arith.constant 0 : index
    %93 = vector.load %arg5[%c0_31, %c0_32] : memref<32x32xf32, #tpu.memory_space<vmem>>, vector<32x32xf32>
    %cst_33 = arith.constant dense<0.000000e+00> : vector<16x32xf32>
    %94 = tpu.matmul %92, %93, %cst_33 {dimension_numbers = #tpu.dot_dimension_numbers<[1], [0], [0], [1], [0, 0, 1, 1], [], []>} : vector<16x32xf32>, vector<32x32xf32>, vector<16x32xf32> -> vector<16x32xf32>
    %c0_34 = arith.constant 0 : index
    %c0_35 = arith.constant 0 : index
    %95 = vector.load %arg6[%c0_34, %c0_35] : memref<1x32xf32, #tpu.memory_space<vmem>>, vector<1x32xf32>
    %96 = vector.broadcast %95 : vector<1x32xf32> to vector<16x32xf32>
    %97 = arith.addf %94, %96 : vector<16x32xf32>
    %98 = arith.addf %97, %1 : vector<16x32xf32>
    %c0_36 = arith.constant 0 : index
    %c0_37 = arith.constant 0 : index
    %99 = vector.load %arg7[%c0_36, %c0_37] : memref<1x32xf32, #tpu.memory_space<vmem>>, vector<1x32xf32>
    %c0_38 = arith.constant 0 : index
    %c0_39 = arith.constant 0 : index
    %100 = vector.load %arg8[%c0_38, %c0_39] : memref<1x32xf32, #tpu.memory_space<vmem>>, vector<1x32xf32>
    %cst_40 = arith.constant dense<0.000000e+00> : vector<16xf32>
    %101 = vector.multi_reduction <add>, %98, %cst_40 [1] : vector<16x32xf32> to vector<16xf32>
    %102 = vector.shape_cast %101 : vector<16xf32> to vector<16x1xf32>
    %cst_41 = arith.constant 3.200000e+01 : f32
    %103 = vector.broadcast %cst_41 : f32 to vector<16x1xf32>
    %104 = arith.divf %102, %103 : vector<16x1xf32>
    %105 = vector.broadcast %104 : vector<16x1xf32> to vector<16x32xf32>
    %106 = arith.subf %98, %105 : vector<16x32xf32>
    %107 = arith.mulf %106, %106 : vector<16x32xf32>
    %cst_42 = arith.constant dense<0.000000e+00> : vector<16xf32>
    %108 = vector.multi_reduction <add>, %107, %cst_42 [1] : vector<16x32xf32> to vector<16xf32>
    %109 = vector.shape_cast %108 : vector<16xf32> to vector<16x1xf32>
    %cst_43 = arith.constant 3.200000e+01 : f32
    %110 = vector.broadcast %cst_43 : f32 to vector<16x1xf32>
    %111 = arith.divf %109, %110 : vector<16x1xf32>
    %cst_44 = arith.constant 9.99999974E-6 : f32
    %112 = vector.broadcast %cst_44 : f32 to vector<16x1xf32>
    %113 = arith.addf %111, %112 : vector<16x1xf32>
    %114 = math.rsqrt %113 : vector<16x1xf32>
    %115 = vector.broadcast %114 : vector<16x1xf32> to vector<16x32xf32>
    %116 = arith.mulf %106, %115 : vector<16x32xf32>
    %117 = vector.broadcast %99 : vector<1x32xf32> to vector<16x32xf32>
    %118 = arith.mulf %116, %117 : vector<16x32xf32>
    %119 = vector.broadcast %100 : vector<1x32xf32> to vector<16x32xf32>
    %120 = arith.addf %118, %119 : vector<16x32xf32>
    %c0_45 = arith.constant 0 : index
    %c0_46 = arith.constant 0 : index
    %121 = vector.load %arg9[%c0_45, %c0_46] : memref<32x96xf32, #tpu.memory_space<vmem>>, vector<32x96xf32>
    %c0_47 = arith.constant 0 : index
    %c0_48 = arith.constant 0 : index
    %122 = vector.load %arg10[%c0_47, %c0_48] : memref<1x96xf32, #tpu.memory_space<vmem>>, vector<1x96xf32>
    %123 = vector.extract_strided_slice %121 {offsets = [0, 0], sizes = [32, 32], strides = [1, 1]} : vector<32x96xf32> to vector<32x32xf32>
    %cst_49 = arith.constant dense<0.000000e+00> : vector<16x32xf32>
    %124 = tpu.matmul %120, %123, %cst_49 {dimension_numbers = #tpu.dot_dimension_numbers<[1], [0], [0], [1], [0, 0, 1, 1], [], []>} : vector<16x32xf32>, vector<32x32xf32>, vector<16x32xf32> -> vector<16x32xf32>
    %125 = vector.extract_strided_slice %122 {offsets = [0, 0], sizes = [1, 32], strides = [1, 1]} : vector<1x96xf32> to vector<1x32xf32>
    %126 = vector.broadcast %125 : vector<1x32xf32> to vector<16x32xf32>
    %127 = arith.addf %124, %126 : vector<16x32xf32>
    %128 = vector.extract_strided_slice %121 {offsets = [0, 32], sizes = [32, 64], strides = [1, 1]} : vector<32x96xf32> to vector<32x64xf32>
    %cst_50 = arith.constant dense<0.000000e+00> : vector<16x64xf32>
    %129 = tpu.matmul %3, %128, %cst_50 {dimension_numbers = #tpu.dot_dimension_numbers<[1], [0], [0], [1], [0, 0, 1, 1], [], []>} : vector<16x32xf32>, vector<32x64xf32>, vector<16x64xf32> -> vector<16x64xf32>
    %130 = vector.extract_strided_slice %122 {offsets = [0, 32], sizes = [1, 64], strides = [1, 1]} : vector<1x96xf32> to vector<1x64xf32>
    %131 = vector.broadcast %130 : vector<1x64xf32> to vector<16x64xf32>
    %132 = arith.addf %129, %131 : vector<16x64xf32>
    %133 = vector.shape_cast %127 : vector<16x32xf32> to vector<2x8x32xf32>
    %134 = vector.shape_cast %132 : vector<16x64xf32> to vector<2x8x64xf32>
    %135 = vector.extract_strided_slice %134 {offsets = [0, 0, 0], sizes = [2, 8, 32], strides = [1, 1, 1]} : vector<2x8x64xf32> to vector<2x8x32xf32>
    %136 = vector.extract_strided_slice %134 {offsets = [0, 0, 32], sizes = [2, 8, 32], strides = [1, 1, 1]} : vector<2x8x64xf32> to vector<2x8x32xf32>
    %137 = vector.extract_strided_slice %133 {offsets = [0, 0, 0], sizes = [2, 8, 8], strides = [1, 1, 1]} : vector<2x8x32xf32> to vector<2x8x8xf32>
    %138 = vector.extract_strided_slice %135 {offsets = [0, 0, 0], sizes = [2, 8, 8], strides = [1, 1, 1]} : vector<2x8x32xf32> to vector<2x8x8xf32>
    %139 = vector.extract_strided_slice %136 {offsets = [0, 0, 0], sizes = [2, 8, 8], strides = [1, 1, 1]} : vector<2x8x32xf32> to vector<2x8x8xf32>
    "tpu.trace_start"() <{level = 10 : i32, message = "bqd,bkd->bqk"}> : () -> ()
    %cst_51 = arith.constant dense<0.000000e+00> : vector<2x8x8xf32>
    %140 = tpu.matmul %137, %138, %cst_51 {dimension_numbers = #tpu.dot_dimension_numbers<[2], [2], [1], [1], [0, 0, 0, 1, 1, 1], [0], [0]>} : vector<2x8x8xf32>, vector<2x8x8xf32>, vector<2x8x8xf32> -> vector<2x8x8xf32>
    "tpu.trace_stop"() : () -> ()
    %cst_52 = arith.constant 0.353553385 : f32
    %141 = vector.broadcast %cst_52 : f32 to vector<2x8x8xf32>
    %142 = arith.mulf %140, %141 : vector<2x8x8xf32>
    %cst_53 = arith.constant dense<0xFF800000> : vector<2x8xf32>
    %143 = vector.multi_reduction <maximumf>, %142, %cst_53 [2] : vector<2x8x8xf32> to vector<2x8xf32>
    %144 = vector.shape_cast %143 : vector<2x8xf32> to vector<2x8x1xf32>
    %145 = vector.broadcast %144 : vector<2x8x1xf32> to vector<2x8x8xf32>
    %146 = arith.subf %142, %145 : vector<2x8x8xf32>
    %147 = math.exp %146 : vector<2x8x8xf32>
    %cst_54 = arith.constant dense<0.000000e+00> : vector<2x8xf32>
    %148 = vector.multi_reduction <add>, %147, %cst_54 [2] : vector<2x8x8xf32> to vector<2x8xf32>
    %149 = vector.shape_cast %148 : vector<2x8xf32> to vector<2x8x1xf32>
    %150 = tpu.reciprocal %149 {approx = true} : vector<2x8x1xf32> -> vector<2x8x1xf32>
    %151 = vector.broadcast %150 : vector<2x8x1xf32> to vector<2x8x8xf32>
    %152 = arith.mulf %147, %151 : vector<2x8x8xf32>
    "tpu.trace_start"() <{level = 10 : i32, message = "bqk,bkd->bqd"}> : () -> ()
    %cst_55 = arith.constant dense<0.000000e+00> : vector<2x8x8xf32>
    %153 = tpu.matmul %152, %139, %cst_55 {dimension_numbers = #tpu.dot_dimension_numbers<[2], [1], [1], [2], [0, 0, 0, 1, 1, 2], [0], [0]>} : vector<2x8x8xf32>, vector<2x8x8xf32>, vector<2x8x8xf32> -> vector<2x8x8xf32>
    "tpu.trace_stop"() : () -> ()
    %154 = vector.extract_strided_slice %133 {offsets = [0, 0, 8], sizes = [2, 8, 8], strides = [1, 1, 1]} : vector<2x8x32xf32> to vector<2x8x8xf32>
    %155 = vector.extract_strided_slice %135 {offsets = [0, 0, 8], sizes = [2, 8, 8], strides = [1, 1, 1]} : vector<2x8x32xf32> to vector<2x8x8xf32>
    %156 = vector.extract_strided_slice %136 {offsets = [0, 0, 8], sizes = [2, 8, 8], strides = [1, 1, 1]} : vector<2x8x32xf32> to vector<2x8x8xf32>
    "tpu.trace_start"() <{level = 10 : i32, message = "bqd,bkd->bqk"}> : () -> ()
    %cst_56 = arith.constant dense<0.000000e+00> : vector<2x8x8xf32>
    %157 = tpu.matmul %154, %155, %cst_56 {dimension_numbers = #tpu.dot_dimension_numbers<[2], [2], [1], [1], [0, 0, 0, 1, 1, 1], [0], [0]>} : vector<2x8x8xf32>, vector<2x8x8xf32>, vector<2x8x8xf32> -> vector<2x8x8xf32>
    "tpu.trace_stop"() : () -> ()
    %cst_57 = arith.constant 0.353553385 : f32
    %158 = vector.broadcast %cst_57 : f32 to vector<2x8x8xf32>
    %159 = arith.mulf %157, %158 : vector<2x8x8xf32>
    %cst_58 = arith.constant dense<0xFF800000> : vector<2x8xf32>
    %160 = vector.multi_reduction <maximumf>, %159, %cst_58 [2] : vector<2x8x8xf32> to vector<2x8xf32>
    %161 = vector.shape_cast %160 : vector<2x8xf32> to vector<2x8x1xf32>
    %162 = vector.broadcast %161 : vector<2x8x1xf32> to vector<2x8x8xf32>
    %163 = arith.subf %159, %162 : vector<2x8x8xf32>
    %164 = math.exp %163 : vector<2x8x8xf32>
    %cst_59 = arith.constant dense<0.000000e+00> : vector<2x8xf32>
    %165 = vector.multi_reduction <add>, %164, %cst_59 [2] : vector<2x8x8xf32> to vector<2x8xf32>
    %166 = vector.shape_cast %165 : vector<2x8xf32> to vector<2x8x1xf32>
    %167 = tpu.reciprocal %166 {approx = true} : vector<2x8x1xf32> -> vector<2x8x1xf32>
    %168 = vector.broadcast %167 : vector<2x8x1xf32> to vector<2x8x8xf32>
    %169 = arith.mulf %164, %168 : vector<2x8x8xf32>
    "tpu.trace_start"() <{level = 10 : i32, message = "bqk,bkd->bqd"}> : () -> ()
    %cst_60 = arith.constant dense<0.000000e+00> : vector<2x8x8xf32>
    %170 = tpu.matmul %169, %156, %cst_60 {dimension_numbers = #tpu.dot_dimension_numbers<[2], [1], [1], [2], [0, 0, 0, 1, 1, 2], [0], [0]>} : vector<2x8x8xf32>, vector<2x8x8xf32>, vector<2x8x8xf32> -> vector<2x8x8xf32>
    "tpu.trace_stop"() : () -> ()
    %171 = vector.extract_strided_slice %133 {offsets = [0, 0, 16], sizes = [2, 8, 8], strides = [1, 1, 1]} : vector<2x8x32xf32> to vector<2x8x8xf32>
    %172 = vector.extract_strided_slice %135 {offsets = [0, 0, 16], sizes = [2, 8, 8], strides = [1, 1, 1]} : vector<2x8x32xf32> to vector<2x8x8xf32>
    %173 = vector.extract_strided_slice %136 {offsets = [0, 0, 16], sizes = [2, 8, 8], strides = [1, 1, 1]} : vector<2x8x32xf32> to vector<2x8x8xf32>
    "tpu.trace_start"() <{level = 10 : i32, message = "bqd,bkd->bqk"}> : () -> ()
    %cst_61 = arith.constant dense<0.000000e+00> : vector<2x8x8xf32>
    %174 = tpu.matmul %171, %172, %cst_61 {dimension_numbers = #tpu.dot_dimension_numbers<[2], [2], [1], [1], [0, 0, 0, 1, 1, 1], [0], [0]>} : vector<2x8x8xf32>, vector<2x8x8xf32>, vector<2x8x8xf32> -> vector<2x8x8xf32>
    "tpu.trace_stop"() : () -> ()
    %cst_62 = arith.constant 0.353553385 : f32
    %175 = vector.broadcast %cst_62 : f32 to vector<2x8x8xf32>
    %176 = arith.mulf %174, %175 : vector<2x8x8xf32>
    %cst_63 = arith.constant dense<0xFF800000> : vector<2x8xf32>
    %177 = vector.multi_reduction <maximumf>, %176, %cst_63 [2] : vector<2x8x8xf32> to vector<2x8xf32>
    %178 = vector.shape_cast %177 : vector<2x8xf32> to vector<2x8x1xf32>
    %179 = vector.broadcast %178 : vector<2x8x1xf32> to vector<2x8x8xf32>
    %180 = arith.subf %176, %179 : vector<2x8x8xf32>
    %181 = math.exp %180 : vector<2x8x8xf32>
    %cst_64 = arith.constant dense<0.000000e+00> : vector<2x8xf32>
    %182 = vector.multi_reduction <add>, %181, %cst_64 [2] : vector<2x8x8xf32> to vector<2x8xf32>
    %183 = vector.shape_cast %182 : vector<2x8xf32> to vector<2x8x1xf32>
    %184 = tpu.reciprocal %183 {approx = true} : vector<2x8x1xf32> -> vector<2x8x1xf32>
    %185 = vector.broadcast %184 : vector<2x8x1xf32> to vector<2x8x8xf32>
    %186 = arith.mulf %181, %185 : vector<2x8x8xf32>
    "tpu.trace_start"() <{level = 10 : i32, message = "bqk,bkd->bqd"}> : () -> ()
    %cst_65 = arith.constant dense<0.000000e+00> : vector<2x8x8xf32>
    %187 = tpu.matmul %186, %173, %cst_65 {dimension_numbers = #tpu.dot_dimension_numbers<[2], [1], [1], [2], [0, 0, 0, 1, 1, 2], [0], [0]>} : vector<2x8x8xf32>, vector<2x8x8xf32>, vector<2x8x8xf32> -> vector<2x8x8xf32>
    "tpu.trace_stop"() : () -> ()
    %188 = vector.extract_strided_slice %133 {offsets = [0, 0, 24], sizes = [2, 8, 8], strides = [1, 1, 1]} : vector<2x8x32xf32> to vector<2x8x8xf32>
    %189 = vector.extract_strided_slice %135 {offsets = [0, 0, 24], sizes = [2, 8, 8], strides = [1, 1, 1]} : vector<2x8x32xf32> to vector<2x8x8xf32>
    %190 = vector.extract_strided_slice %136 {offsets = [0, 0, 24], sizes = [2, 8, 8], strides = [1, 1, 1]} : vector<2x8x32xf32> to vector<2x8x8xf32>
    "tpu.trace_start"() <{level = 10 : i32, message = "bqd,bkd->bqk"}> : () -> ()
    %cst_66 = arith.constant dense<0.000000e+00> : vector<2x8x8xf32>
    %191 = tpu.matmul %188, %189, %cst_66 {dimension_numbers = #tpu.dot_dimension_numbers<[2], [2], [1], [1], [0, 0, 0, 1, 1, 1], [0], [0]>} : vector<2x8x8xf32>, vector<2x8x8xf32>, vector<2x8x8xf32> -> vector<2x8x8xf32>
    "tpu.trace_stop"() : () -> ()
    %cst_67 = arith.constant 0.353553385 : f32
    %192 = vector.broadcast %cst_67 : f32 to vector<2x8x8xf32>
    %193 = arith.mulf %191, %192 : vector<2x8x8xf32>
    %cst_68 = arith.constant dense<0xFF800000> : vector<2x8xf32>
    %194 = vector.multi_reduction <maximumf>, %193, %cst_68 [2] : vector<2x8x8xf32> to vector<2x8xf32>
    %195 = vector.shape_cast %194 : vector<2x8xf32> to vector<2x8x1xf32>
    %196 = vector.broadcast %195 : vector<2x8x1xf32> to vector<2x8x8xf32>
    %197 = arith.subf %193, %196 : vector<2x8x8xf32>
    %198 = math.exp %197 : vector<2x8x8xf32>
    %cst_69 = arith.constant dense<0.000000e+00> : vector<2x8xf32>
    %199 = vector.multi_reduction <add>, %198, %cst_69 [2] : vector<2x8x8xf32> to vector<2x8xf32>
    %200 = vector.shape_cast %199 : vector<2x8xf32> to vector<2x8x1xf32>
    %201 = tpu.reciprocal %200 {approx = true} : vector<2x8x1xf32> -> vector<2x8x1xf32>
    %202 = vector.broadcast %201 : vector<2x8x1xf32> to vector<2x8x8xf32>
    %203 = arith.mulf %198, %202 : vector<2x8x8xf32>
    "tpu.trace_start"() <{level = 10 : i32, message = "bqk,bkd->bqd"}> : () -> ()
    %cst_70 = arith.constant dense<0.000000e+00> : vector<2x8x8xf32>
    %204 = tpu.matmul %203, %190, %cst_70 {dimension_numbers = #tpu.dot_dimension_numbers<[2], [1], [1], [2], [0, 0, 0, 1, 1, 2], [0], [0]>} : vector<2x8x8xf32>, vector<2x8x8xf32>, vector<2x8x8xf32> -> vector<2x8x8xf32>
    "tpu.trace_stop"() : () -> ()
    %205 = tpu.concatenate %153, %170, %187, %204 in 2 : vector<2x8x8xf32>, vector<2x8x8xf32>, vector<2x8x8xf32>, vector<2x8x8xf32> -> vector<2x8x32xf32>
    %206 = vector.shape_cast %205 : vector<2x8x32xf32> to vector<16x32xf32>
    %c0_71 = arith.constant 0 : index
    %c0_72 = arith.constant 0 : index
    %207 = vector.load %arg11[%c0_71, %c0_72] : memref<32x32xf32, #tpu.memory_space<vmem>>, vector<32x32xf32>
    %cst_73 = arith.constant dense<0.000000e+00> : vector<16x32xf32>
    %208 = tpu.matmul %206, %207, %cst_73 {dimension_numbers = #tpu.dot_dimension_numbers<[1], [0], [0], [1], [0, 0, 1, 1], [], []>} : vector<16x32xf32>, vector<32x32xf32>, vector<16x32xf32> -> vector<16x32xf32>
    %c0_74 = arith.constant 0 : index
    %c0_75 = arith.constant 0 : index
    %209 = vector.load %arg12[%c0_74, %c0_75] : memref<1x32xf32, #tpu.memory_space<vmem>>, vector<1x32xf32>
    %210 = vector.broadcast %209 : vector<1x32xf32> to vector<16x32xf32>
    %211 = arith.addf %208, %210 : vector<16x32xf32>
    %212 = arith.addf %211, %120 : vector<16x32xf32>
    %c0_76 = arith.constant 0 : index
    %c0_77 = arith.constant 0 : index
    %213 = vector.load %arg13[%c0_76, %c0_77] : memref<1x32xf32, #tpu.memory_space<vmem>>, vector<1x32xf32>
    %c0_78 = arith.constant 0 : index
    %c0_79 = arith.constant 0 : index
    %214 = vector.load %arg14[%c0_78, %c0_79] : memref<1x32xf32, #tpu.memory_space<vmem>>, vector<1x32xf32>
    %cst_80 = arith.constant dense<0.000000e+00> : vector<16xf32>
    %215 = vector.multi_reduction <add>, %212, %cst_80 [1] : vector<16x32xf32> to vector<16xf32>
    %216 = vector.shape_cast %215 : vector<16xf32> to vector<16x1xf32>
    %cst_81 = arith.constant 3.200000e+01 : f32
    %217 = vector.broadcast %cst_81 : f32 to vector<16x1xf32>
    %218 = arith.divf %216, %217 : vector<16x1xf32>
    %219 = vector.broadcast %218 : vector<16x1xf32> to vector<16x32xf32>
    %220 = arith.subf %212, %219 : vector<16x32xf32>
    %221 = arith.mulf %220, %220 : vector<16x32xf32>
    %cst_82 = arith.constant dense<0.000000e+00> : vector<16xf32>
    %222 = vector.multi_reduction <add>, %221, %cst_82 [1] : vector<16x32xf32> to vector<16xf32>
    %223 = vector.shape_cast %222 : vector<16xf32> to vector<16x1xf32>
    %cst_83 = arith.constant 3.200000e+01 : f32
    %224 = vector.broadcast %cst_83 : f32 to vector<16x1xf32>
    %225 = arith.divf %223, %224 : vector<16x1xf32>
    %cst_84 = arith.constant 9.99999974E-6 : f32
    %226 = vector.broadcast %cst_84 : f32 to vector<16x1xf32>
    %227 = arith.addf %225, %226 : vector<16x1xf32>
    %228 = math.rsqrt %227 : vector<16x1xf32>
    %229 = vector.broadcast %228 : vector<16x1xf32> to vector<16x32xf32>
    %230 = arith.mulf %220, %229 : vector<16x32xf32>
    %231 = vector.broadcast %213 : vector<1x32xf32> to vector<16x32xf32>
    %232 = arith.mulf %230, %231 : vector<16x32xf32>
    %233 = vector.broadcast %214 : vector<1x32xf32> to vector<16x32xf32>
    %234 = arith.addf %232, %233 : vector<16x32xf32>
    %c0_85 = arith.constant 0 : index
    %c0_86 = arith.constant 0 : index
    %235 = vector.load %arg15[%c0_85, %c0_86] : memref<32x64xf32, #tpu.memory_space<vmem>>, vector<32x64xf32>
    %cst_87 = arith.constant dense<0.000000e+00> : vector<16x64xf32>
    %236 = tpu.matmul %234, %235, %cst_87 {dimension_numbers = #tpu.dot_dimension_numbers<[1], [0], [0], [1], [0, 0, 1, 1], [], []>} : vector<16x32xf32>, vector<32x64xf32>, vector<16x64xf32> -> vector<16x64xf32>
    %c0_88 = arith.constant 0 : index
    %c0_89 = arith.constant 0 : index
    %237 = vector.load %arg16[%c0_88, %c0_89] : memref<1x64xf32, #tpu.memory_space<vmem>>, vector<1x64xf32>
    %238 = vector.broadcast %237 : vector<1x64xf32> to vector<16x64xf32>
    %239 = arith.addf %236, %238 : vector<16x64xf32>
    %cst_90 = arith.constant 0.000000e+00 : f32
    %240 = vector.broadcast %cst_90 : f32 to vector<16x64xf32>
    %241 = arith.maximumf %239, %240 : vector<16x64xf32>
    %c0_91 = arith.constant 0 : index
    %c0_92 = arith.constant 0 : index
    %242 = vector.load %arg17[%c0_91, %c0_92] : memref<64x32xf32, #tpu.memory_space<vmem>>, vector<64x32xf32>
    %cst_93 = arith.constant dense<0.000000e+00> : vector<16x32xf32>
    %243 = tpu.matmul %241, %242, %cst_93 {dimension_numbers = #tpu.dot_dimension_numbers<[1], [0], [0], [1], [0, 0, 1, 1], [], []>} : vector<16x64xf32>, vector<64x32xf32>, vector<16x32xf32> -> vector<16x32xf32>
    %c0_94 = arith.constant 0 : index
    %c0_95 = arith.constant 0 : index
    %244 = vector.load %arg18[%c0_94, %c0_95] : memref<1x32xf32, #tpu.memory_space<vmem>>, vector<1x32xf32>
    %245 = vector.broadcast %244 : vector<1x32xf32> to vector<16x32xf32>
    %246 = arith.addf %243, %245 : vector<16x32xf32>
    %247 = arith.addf %246, %234 : vector<16x32xf32>
    %c0_96 = arith.constant 0 : index
    %c0_97 = arith.constant 0 : index
    %248 = vector.load %arg19[%c0_96, %c0_97] : memref<1x32xf32, #tpu.memory_space<vmem>>, vector<1x32xf32>
    %c0_98 = arith.constant 0 : index
    %c0_99 = arith.constant 0 : index
    %249 = vector.load %arg20[%c0_98, %c0_99] : memref<1x32xf32, #tpu.memory_space<vmem>>, vector<1x32xf32>
    %cst_100 = arith.constant dense<0.000000e+00> : vector<16xf32>
    %250 = vector.multi_reduction <add>, %247, %cst_100 [1] : vector<16x32xf32> to vector<16xf32>
    %251 = vector.shape_cast %250 : vector<16xf32> to vector<16x1xf32>
    %cst_101 = arith.constant 3.200000e+01 : f32
    %252 = vector.broadcast %cst_101 : f32 to vector<16x1xf32>
    %253 = arith.divf %251, %252 : vector<16x1xf32>
    %254 = vector.broadcast %253 : vector<16x1xf32> to vector<16x32xf32>
    %255 = arith.subf %247, %254 : vector<16x32xf32>
    %256 = arith.mulf %255, %255 : vector<16x32xf32>
    %cst_102 = arith.constant dense<0.000000e+00> : vector<16xf32>
    %257 = vector.multi_reduction <add>, %256, %cst_102 [1] : vector<16x32xf32> to vector<16xf32>
    %258 = vector.shape_cast %257 : vector<16xf32> to vector<16x1xf32>
    %cst_103 = arith.constant 3.200000e+01 : f32
    %259 = vector.broadcast %cst_103 : f32 to vector<16x1xf32>
    %260 = arith.divf %258, %259 : vector<16x1xf32>
    %cst_104 = arith.constant 9.99999974E-6 : f32
    %261 = vector.broadcast %cst_104 : f32 to vector<16x1xf32>
    %262 = arith.addf %260, %261 : vector<16x1xf32>
    %263 = math.rsqrt %262 : vector<16x1xf32>
    %264 = vector.broadcast %263 : vector<16x1xf32> to vector<16x32xf32>
    %265 = arith.mulf %255, %264 : vector<16x32xf32>
    %266 = vector.broadcast %248 : vector<1x32xf32> to vector<16x32xf32>
    %267 = arith.mulf %265, %266 : vector<16x32xf32>
    %268 = vector.broadcast %249 : vector<1x32xf32> to vector<16x32xf32>
    %269 = arith.addf %267, %268 : vector<16x32xf32>
    %270 = vector.shape_cast %269 : vector<16x32xf32> to vector<2x8x32xf32>
    %c0_105 = arith.constant 0 : index
    %c0_106 = arith.constant 0 : index
    %c0_107 = arith.constant 0 : index
    %271 = vector.load %arg21[%c0_105, %c0_106, %c0_107] : memref<2x8x32xf32, #tpu.memory_space<vmem>>, vector<2x8x32xf32>
    tpu.vector_store %arg21[%c0_105, %c0_106, %c0_107], %270 {strides = array<i32>} : memref<2x8x32xf32, #tpu.memory_space<vmem>>, vector<2x8x32xf32>,
    return
  }
}

module attributes {stable_mosaic.version = 11 : i64} {
  func.func @_generator_kernel(%arg0: memref<2x32xf32, #tpu.memory_space<vmem>>, %arg1: memref<1x32xf32, #tpu.memory_space<vmem>>, %arg2: memref<1x1xf32, #tpu.memory_space<vmem>>, %arg3: memref<2x1xf32, #tpu.memory_space<vmem>>) attributes {dimension_semantics = [], scalar_prefetch = 0 : i64, scratch_operands = 0 : i64, tpu.core_type = #tpu.core_type<tc>} {
    %c0 = arith.constant 0 : index
    %c0_0 = arith.constant 0 : index
    %0 = vector.load %arg0[%c0, %c0_0] : memref<2x32xf32, #tpu.memory_space<vmem>>, vector<2x32xf32>
    %c0_1 = arith.constant 0 : index
    %c0_2 = arith.constant 0 : index
    %1 = vector.load %arg1[%c0_1, %c0_2] : memref<1x32xf32, #tpu.memory_space<vmem>>, vector<1x32xf32>
    %2 = vector.broadcast %1 : vector<1x32xf32> to vector<2x32xf32>
    %3 = arith.mulf %0, %2 : vector<2x32xf32>
    %cst = arith.constant dense<0.000000e+00> : vector<2xf32>
    %4 = vector.multi_reduction <add>, %3, %cst [1] : vector<2x32xf32> to vector<2xf32>
    %5 = vector.shape_cast %4 : vector<2xf32> to vector<2x1xf32>
    %c0_3 = arith.constant 0 : index
    %c0_4 = arith.constant 0 : index
    %6 = vector.load %arg2[%c0_3, %c0_4] : memref<1x1xf32, #tpu.memory_space<vmem>>, vector<1x1xf32>
    %7 = vector.broadcast %6 : vector<1x1xf32> to vector<2x1xf32>
    %8 = arith.addf %5, %7 : vector<2x1xf32>
    %c0_5 = arith.constant 0 : index
    %c0_6 = arith.constant 0 : index
    %9 = vector.load %arg3[%c0_5, %c0_6] : memref<2x1xf32, #tpu.memory_space<vmem>>, vector<2x1xf32>
    tpu.vector_store %arg3[%c0_5, %c0_6], %8 {strides = array<i32>} : memref<2x1xf32, #tpu.memory_space<vmem>>, vector<2x1xf32>,
    return
  }
}

</mosaic_0001>

<llo_original>
// kernel: seq2seq_transformer_forward.23
$region0: #{seq2seq_transformer_forward.23}
  #allocation0 [shape = 'u32[]', space=smem, size = 0x4, offset = 0x4, fixed_abs, tag = 'smem constant byte address 0x4 - core index']
  #allocation1 [shape = 'u32[144,128]{1,0:T(1,128)}', space=vmem, size = 0x12000, scoped, tag = 'internal scratch']
  %s0 = inlined_call_operand.vmem [shape: f32[2,8,4], index: 0, kind: input, shape index: {}]
  %s1 = inlined_call_operand.vmem [shape: f32[4,32], index: 1, kind: input, shape index: {}]
  %s2 = inlined_call_operand.vmem [shape: f32[1,32], index: 2, kind: input, shape index: {}]
  %s3 = inlined_call_operand.vmem [shape: f32[8,32], index: 3, kind: input, shape index: {}]
  %s4 = inlined_call_operand.vmem [shape: f32[2,8,32], index: 4, kind: output, shape index: {}]
  %s5 = sld [smem:[#allocation0]]
  $region26: #{seq2seq_transformer_forward.23} parent=0
    _
  %s7 = ssub.s32 1, %s5
  %s8 = scalar_select 0, %s7, %s5
  // Predicated region
  $region2: #{seq2seq_transformer_forward.23} parent=0 // pred_check
    _
  $region3: #{seq2seq_transformer_forward.23} parent=0 // pred_check_branch
    %10 = sbr.rel (0) target = $region5
  $region4: #{seq2seq_transformer_forward.23} parent=0 // pred_region
    _
  $region5: #{seq2seq_transformer_forward.23} parent=0 // pred_fallthru
    _
  // Predicated region
  $region6: #{seq2seq_transformer_forward.23} parent=0 // pred_check
    _
  $region7: #{seq2seq_transformer_forward.23} parent=0 // pred_check_branch
    %12 = sbr.rel (0) target = $region9
  $region8: #{seq2seq_transformer_forward.23} parent=0 // pred_region
    _
  $region9: #{seq2seq_transformer_forward.23} parent=0 // pred_fallthru
    _
  // Predicated region
  $region10: #{seq2seq_transformer_forward.23} parent=0 // pred_check
    _
  $region11: #{seq2seq_transformer_forward.23} parent=0 // pred_check_branch
    %14 = sbr.rel (0) target = $region13
  $region12: #{seq2seq_transformer_forward.23} parent=0 // pred_region
    _
  $region13: #{seq2seq_transformer_forward.23} parent=0 // pred_fallthru
    _
  // Predicated region
  $region14: #{seq2seq_transformer_forward.23} parent=0 // pred_check
    _
  $region15: #{seq2seq_transformer_forward.23} parent=0 // pred_check_branch
    %16 = sbr.rel (0) target = $region17
  $region16: #{seq2seq_transformer_forward.23} parent=0 // pred_region
    _
  $region17: #{seq2seq_transformer_forward.23} parent=0 // pred_fallthru
    _
  %v17 = vld [vmem:[%s0] sm:$0xff]
  %v18 = vld [vmem:[%s0 + $0x8] sm:$0xff]
  %v19 = vld [vmem:[%s1] sm:$0xf]
  %v20 = vld [vmem:[%s2] sm:$0x1]
  %v22 = vlaneseq
  %v23 = vshrl.u32 %v22, 7
  %v24 = vsub.s32 0, %v23
  %v25 = vrot.slane %v20, %v24
  %vm27 = vcmask 31744
  %v29 = vsel %vm27, %v17, 0
  %v32 = vsel %vm27, %v18, 0
  %vm34 = vcmask 1043456
  %v36 = vsel %vm34, %v19, 0
  %38 = vmatprep.subr.mxu0 0.0
  %39 = vmatpush1.msra.mxu0 %v36
  %40 = vmatprep.subr.mxu0 0.0
  %41 = vmatpush1.msra.mxu0 0.0
  %42 = vmatprep.subr.mxu0 0.0
  %43 = vmatpush1.msra.mxu0 0.0
  %44 = vmatprep.subr.mxu0 0.0
  %45 = vmatpush1.msra.mxu0 0.0
  %46 = vmatprep.subr.mxu0 0.0
  %47 = vmatpush1.msra.mxu0 0.0
  %48 = vmatprep.subr.mxu0 0.0
  %49 = vmatpush1.msra.mxu0 0.0
  %50 = vmatprep.subr.mxu0 0.0
  %51 = vmatpush1.msra.mxu0 0.0
  %52 = vmatprep.subr.mxu0 0.0
  %53 = vmatpush1.msra.mxu0 0.0
  %54 = vmatprep.subr.mxu0 0.0
  %55 = vmatpush1.msra.mxu0 0.0
  %56 = vmatprep.subr.mxu0 0.0
  %57 = vmatpush1.msra.mxu0 0.0
  %58 = vmatprep.subr.mxu0 0.0
  %59 = vmatpush1.msra.mxu0 0.0
  %60 = vmatprep.subr.mxu0 0.0
  %61 = vmatpush1.msra.mxu0 0.0
  %62 = vmatprep.subr.mxu0 0.0
  %63 = vmatpush1.msra.mxu0 0.0
  %64 = vmatprep.subr.mxu0 0.0
  %65 = vmatpush1.msra.mxu0 0.0
  %66 = vmatprep.subr.mxu0 0.0
  %67 = vmatpush1.msra.mxu0 0.0
  %68 = vmatprep.subr.mxu0 0.0
  %69 = vmatpush1.msra.mxu0 0.0
  %70 = vmatprep.subr.mxu0 0.0
  %71 = vmatpush1.msra.mxu0 0.0
  %72 = vmatprep.subr.mxu0 0.0
  %73 = vmatpush1.msra.mxu0 0.0
  %74 = vmatprep.subr.mxu0 0.0
  %75 = vmatpush1.msra.mxu0 0.0
  %76 = vmatprep.subr.mxu0 0.0
  %77 = vmatpush1.msra.mxu0 0.0
  %78 = vmatprep.subr.mxu0 0.0
  %79 = vmatpush1.msra.mxu0 0.0
  %80 = vmatprep.subr.mxu0 0.0
  %81 = vmatpush1.msra.mxu0 0.0
  %82 = vmatprep.subr.mxu0 0.0
  %83 = vmatpush1.msra.mxu0 0.0
  %84 = vmatprep.subr.mxu0 0.0
  %85 = vmatpush1.msra.mxu0 0.0
  %86 = vmatprep.subr.mxu0 0.0
  %87 = vmatpush1.msra.mxu0 0.0
  %88 = vmatprep.subr.mxu0 0.0
  %89 = vmatpush1.msra.mxu0 0.0
  %90 = vmatprep.subr.mxu0 0.0
  %91 = vmatpush1.msra.mxu0 0.0
  %92 = vmatprep.subr.mxu0 0.0
  %93 = vmatpush1.msra.mxu0 0.0
  %94 = vmatprep.subr.mxu0 0.0
  %95 = vmatpush1.msra.mxu0 0.0
  %96 = vmatprep.subr.mxu0 0.0
  %97 = vmatpush1.msra.mxu0 0.0
  %98 = vmatprep.subr.mxu0 0.0
  %99 = vmatpush1.msra.mxu0 0.0
  %100 = vmatprep.subr.mxu0 0.0
  %101 = vmatpush1.msra.mxu0 0.0
  %102 = vmatprep.mubr.f32.mxu0 0.0
  %103 = vmatmul.mubr.f32.gmra.mrb[0].mxu0 %v29
  %v104 = vpop.f32.mrb[0].mxu0
  %v105 = vadd.f32 %v25, %v104
  %v106 = vpop.f32.mrb[0].mxu0
  %107 = vmatprep.mubr.f32.mxu0 0.0
  %108 = vmatmul.mubr.f32.gmra.mrb[0].mxu0 %v32
  %v109 = vpop.f32.mrb[0].mxu0
  %v110 = vadd.f32 %v25, %v109
  %v111 = vpop.f32.mrb[0].mxu0
  %112 = vdwg.mxu0
  %v113 = vld [vmem:[%s3] sm:$0xff]
  %v114 = vadd.f32 %v105, %v113
  %v115 = vadd.f32 %v110, %v113
  %vm116 = vcmask 261120
  %117 = vst.msk [vmem:[%s4] sm:$0xff] %vm116, %v114
  %118 = vst.msk [vmem:[%s4 + $0x8] sm:$0xff] %vm116, %v115
  // Predicated region
  $region18: #{seq2seq_transformer_forward.23} parent=0 // pred_check
    _
  $region19: #{seq2seq_transformer_forward.23} parent=0 // pred_check_branch
    %120 = sbr.rel (0) target = $region21
  $region20: #{seq2seq_transformer_forward.23} parent=0 // pred_region
    _
  $region21: #{seq2seq_transformer_forward.23} parent=0 // pred_fallthru
    _
  // Predicated region
  $region22: #{seq2seq_transformer_forward.23} parent=0 // pred_check
    _
  $region23: #{seq2seq_transformer_forward.23} parent=0 // pred_check_branch
    %122 = sbr.rel (0) target = $region25
  $region24: #{seq2seq_transformer_forward.23} parent=0 // pred_region
    _
  $region25: #{seq2seq_transformer_forward.23} parent=0 // pred_fallthru
    _

// kernel: seq2seq_transformer_forward.26
$region0: #{seq2seq_transformer_forward.26}
  #allocation0 [shape = 'u32[]', space=smem, size = 0x4, offset = 0x4, fixed_abs, tag = 'smem constant byte address 0x4 - core index']
  #allocation1 [shape = 'u32[144,128]{1,0:T(1,128)}', space=vmem, size = 0x12000, scoped, tag = 'internal scratch']
  %s0 = inlined_call_operand.vmem [shape: f32[2,8,1], index: 0, kind: input, shape index: {}]
  %s1 = inlined_call_operand.vmem [shape: f32[1,32], index: 1, kind: input, shape index: {}]
  %s2 = inlined_call_operand.vmem [shape: f32[1,32], index: 2, kind: input, shape index: {}]
  %s3 = inlined_call_operand.vmem [shape: f32[8,32], index: 3, kind: input, shape index: {}]
  %s4 = inlined_call_operand.vmem [shape: f32[2,8,32], index: 4, kind: output, shape index: {}]
  %s5 = sld [smem:[#allocation0]]
  $region26: #{seq2seq_transformer_forward.26} parent=0
    _
  %s7 = ssub.s32 1, %s5
  %s8 = scalar_select 0, %s7, %s5
  // Predicated region
  $region2: #{seq2seq_transformer_forward.26} parent=0 // pred_check
    _
  $region3: #{seq2seq_transformer_forward.26} parent=0 // pred_check_branch
    %10 = sbr.rel (0) target = $region5
  $region4: #{seq2seq_transformer_forward.26} parent=0 // pred_region
    _
  $region5: #{seq2seq_transformer_forward.26} parent=0 // pred_fallthru
    _
  // Predicated region
  $region6: #{seq2seq_transformer_forward.26} parent=0 // pred_check
    _
  $region7: #{seq2seq_transformer_forward.26} parent=0 // pred_check_branch
    %12 = sbr.rel (0) target = $region9
  $region8: #{seq2seq_transformer_forward.26} parent=0 // pred_region
    _
  $region9: #{seq2seq_transformer_forward.26} parent=0 // pred_fallthru
    _
  // Predicated region
  $region10: #{seq2seq_transformer_forward.26} parent=0 // pred_check
    _
  $region11: #{seq2seq_transformer_forward.26} parent=0 // pred_check_branch
    %14 = sbr.rel (0) target = $region13
  $region12: #{seq2seq_transformer_forward.26} parent=0 // pred_region
    _
  $region13: #{seq2seq_transformer_forward.26} parent=0 // pred_fallthru
    _
  // Predicated region
  $region14: #{seq2seq_transformer_forward.26} parent=0 // pred_check
    _
  $region15: #{seq2seq_transformer_forward.26} parent=0 // pred_check_branch
    %16 = sbr.rel (0) target = $region17
  $region16: #{seq2seq_transformer_forward.26} parent=0 // pred_region
    _
  $region17: #{seq2seq_transformer_forward.26} parent=0 // pred_fallthru
    _
  %v17 = vld [vmem:[%s0] sm:$0xff]
  %v18 = vld [vmem:[%s0 + $0x8] sm:$0xff]
  %v19 = vld [vmem:[%s1] sm:$0x1]
  %v20 = vld [vmem:[%s2] sm:$0x1]
  %v21 = vld [vmem:[%s3] sm:$0xff]
  %23 = vset.pattern.permute.xlu0 0
  %24 = vperm.xlu0 %23, %v17
  %v25 = vpop.permute.xlu0 %24
  %28 = vset.pattern.permute.xlu0 0
  %29 = vperm.xlu0 %28, %v18
  %v30 = vpop.permute.xlu0 %29
  %v33 = vlaneseq
  %v34 = vshrl.u32 %v33, 7
  %v35 = vsub.s32 0, %v34
  %v36 = vrot.slane %v19, %v35
  %v38 = vmul.f32 %v25, %v36
  %v39 = vmul.f32 %v30, %v36
  %v41 = vlaneseq
  %v42 = vshrl.u32 %v41, 7
  %v43 = vsub.s32 0, %v42
  %v44 = vrot.slane %v20, %v43
  %v46 = vadd.f32 %v38, %v44
  %v47 = vadd.f32 %v39, %v44
  %v48 = vadd.f32 %v46, %v21
  %v49 = vadd.f32 %v47, %v21
  %vm50 = vcmask 261120
  %51 = vst.msk [vmem:[%s4] sm:$0xff] %vm50, %v48
  %52 = vst.msk [vmem:[%s4 + $0x8] sm:$0xff] %vm50, %v49
  // Predicated region
  $region18: #{seq2seq_transformer_forward.26} parent=0 // pred_check
    _
  $region19: #{seq2seq_transformer_forward.26} parent=0 // pred_check_branch
    %54 = sbr.rel (0) target = $region21
  $region20: #{seq2seq_transformer_forward.26} parent=0 // pred_region
    _
  $region21: #{seq2seq_transformer_forward.26} parent=0 // pred_fallthru
    _
  // Predicated region
  $region22: #{seq2seq_transformer_forward.26} parent=0 // pred_check
    _
  $region23: #{seq2seq_transformer_forward.26} parent=0 // pred_check_branch
    %56 = sbr.rel (0) target = $region25
  $region24: #{seq2seq_transformer_forward.26} parent=0 // pred_region
    _
  $region25: #{seq2seq_transformer_forward.26} parent=0 // pred_fallthru
    _

// kernel: seq2seq_transformer_forward.29
$region0: #{seq2seq_transformer_forward.29}
  #allocation0 [shape = 'u32[]', space=smem, size = 0x4, offset = 0x4, fixed_abs, tag = 'smem constant byte address 0x4 - core index']
  #allocation1 [shape = 'u32[144,128]{1,0:T(1,128)}', space=vmem, size = 0x12000, scoped, tag = 'internal scratch']
  #allocation2 [shape = 'f32[1,1]{1,0:T(1,128)S(1)}', space=vmem, size = 0x200, scoped, tag = 'scoped memory for seq2seq_transformer_forward.29']
  %s0 = inlined_call_operand.vmem [shape: f32[2,32], index: 0, kind: input, shape index: {}]
  %s1 = inlined_call_operand.vmem [shape: f32[1,32], index: 1, kind: input, shape index: {}]
  %s2 = inlined_call_operand.<no memory space> [shape: f32[1,1], index: 2, kind: input, shape index: {}]
  %s3 = inlined_call_operand.vmem [shape: f32[2,1], index: 3, kind: output, shape index: {}]
  %s4 = sld [smem:[#allocation0]]
  $region22: #{seq2seq_transformer_forward.29} parent=0
    _
  %s6 = ssub.s32 1, %s4
  %s7 = scalar_select 0, %s6, %s4
  %v8 = vstv %s2
  %9 = vst [vmem:[#allocation2] sm:$0x1] %v8
  // Predicated region
  $region2: #{seq2seq_transformer_forward.29} parent=0 // pred_check
    _
  $region3: #{seq2seq_transformer_forward.29} parent=0 // pred_check_branch
    %11 = sbr.rel (0) target = $region5
  $region4: #{seq2seq_transformer_forward.29} parent=0 // pred_region
    _
  $region5: #{seq2seq_transformer_forward.29} parent=0 // pred_fallthru
    _
  // Predicated region
  $region6: #{seq2seq_transformer_forward.29} parent=0 // pred_check
    _
  $region7: #{seq2seq_transformer_forward.29} parent=0 // pred_check_branch
    %13 = sbr.rel (0) target = $region9
  $region8: #{seq2seq_transformer_forward.29} parent=0 // pred_region
    _
  $region9: #{seq2seq_transformer_forward.29} parent=0 // pred_fallthru
    _
  // Predicated region
  $region10: #{seq2seq_transformer_forward.29} parent=0 // pred_check
    _
  $region11: #{seq2seq_transformer_forward.29} parent=0 // pred_check_branch
    %15 = sbr.rel (0) target = $region13
  $region12: #{seq2seq_transformer_forward.29} parent=0 // pred_region
    _
  $region13: #{seq2seq_transformer_forward.29} parent=0 // pred_fallthru
    _
  %v16 = vld [vmem:[%s0] sm:$0x3]
  %v17 = vld [vmem:[%s1] sm:$0x1]
  %v19 = vlaneseq
  %v20 = vshrl.u32 %v19, 7
  %v21 = vsub.s32 0, %v20
  %v22 = vrot.slane %v17, %v21
  %v24 = vmul.f32 %v16, %v22
  %vm25 = vcmask 254976
  %v26 = vsel %vm25, %v24, 0.0
  %27 = vadd.xlane.f32.xlu0 %v26
  %v28 = vpop.xlane.xlu0 %27
  %v29 = vld [vmem:[#allocation2] sm:$0x1]
  %v31 = vlaneseq
  %v32 = vshrl.u32 %v31, 7
  %v33 = vsub.s32 0, %v32
  %v34 = vrot.slane %v29, %v33
  %v36 = vadd.f32 %v28, %v34
  %vm37 = vcmask 1024
  %38 = vst.msk [vmem:[%s3] sm:$0x3] %vm37, %v36
  // Predicated region
  $region14: #{seq2seq_transformer_forward.29} parent=0 // pred_check
    _
  $region15: #{seq2seq_transformer_forward.29} parent=0 // pred_check_branch
    %40 = sbr.rel (0) target = $region17
  $region16: #{seq2seq_transformer_forward.29} parent=0 // pred_region
    _
  $region17: #{seq2seq_transformer_forward.29} parent=0 // pred_fallthru
    _
  // Predicated region
  $region18: #{seq2seq_transformer_forward.29} parent=0 // pred_check
    _
  $region19: #{seq2seq_transformer_forward.29} parent=0 // pred_check_branch
    %42 = sbr.rel (0) target = $region21
  $region20: #{seq2seq_transformer_forward.29} parent=0 // pred_region
    _
  $region21: #{seq2seq_transformer_forward.29} parent=0 // pred_fallthru
    _

// kernel: seq2seq_transformer_forward.24
$region0: #{seq2seq_transformer_forward.24}
  #allocation0 [shape = 'u32[]', space=smem, size = 0x4, offset = 0x4, fixed_abs, tag = 'smem constant byte address 0x4 - core index']
  #allocation1 [shape = 'u32[144,128]{1,0:T(1,128)}', space=vmem, size = 0x12000, scoped, tag = 'internal scratch']
  %s0 = inlined_call_operand.vmem [shape: f32[2,8,32], index: 0, kind: input, shape index: {}]
  %s1 = inlined_call_operand.vmem [shape: f32[32,96], index: 1, kind: input, shape index: {}]
  %s2 = inlined_call_operand.vmem [shape: f32[1,96], index: 2, kind: input, shape index: {}]
  %s3 = inlined_call_operand.vmem [shape: f32[32,32], index: 3, kind: input, shape index: {}]
  %s4 = inlined_call_operand.vmem [shape: f32[1,32], index: 4, kind: input, shape index: {}]
  %s5 = inlined_call_operand.vmem [shape: f32[1,32], index: 5, kind: input, shape index: {}]
  %s6 = inlined_call_operand.vmem [shape: f32[1,32], index: 6, kind: input, shape index: {}]
  %s7 = inlined_call_operand.vmem [shape: f32[32,64], index: 7, kind: input, shape index: {}]
  %s8 = inlined_call_operand.vmem [shape: f32[1,64], index: 8, kind: input, shape index: {}]
  %s9 = inlined_call_operand.vmem [shape: f32[64,32], index: 9, kind: input, shape index: {}]
  %s10 = inlined_call_operand.vmem [shape: f32[1,32], index: 10, kind: input, shape index: {}]
  %s11 = inlined_call_operand.vmem [shape: f32[1,32], index: 11, kind: input, shape index: {}]
  %s12 = inlined_call_operand.vmem [shape: f32[1,32], index: 12, kind: input, shape index: {}]
  %s13 = inlined_call_operand.vmem [shape: f32[2,8,32], index: 13, kind: output, shape index: {}]
  %s14 = sld [smem:[#allocation0]]
  $region62: #{seq2seq_transformer_forward.24} parent=0
    _
  %s16 = ssub.s32 1, %s14
  %s17 = scalar_select 0, %s16, %s14
  // Predicated region
  $region2: #{seq2seq_transformer_forward.24} parent=0 // pred_check
    _
  $region3: #{seq2seq_transformer_forward.24} parent=0 // pred_check_branch
    %19 = sbr.rel (0) target = $region5
  $region4: #{seq2seq_transformer_forward.24} parent=0 // pred_region
    _
  $region5: #{seq2seq_transformer_forward.24} parent=0 // pred_fallthru
    _
  // Predicated region
  $region6: #{seq2seq_transformer_forward.24} parent=0 // pred_check
    _
  $region7: #{seq2seq_transformer_forward.24} parent=0 // pred_check_branch
    %21 = sbr.rel (0) target = $region9
  $region8: #{seq2seq_transformer_forward.24} parent=0 // pred_region
    _
  $region9: #{seq2seq_transformer_forward.24} parent=0 // pred_fallthru
    _
  // Predicated region
  $region10: #{seq2seq_transformer_forward.24} parent=0 // pred_check
    _
  $region11: #{seq2seq_transformer_forward.24} parent=0 // pred_check_branch
    %23 = sbr.rel (0) target = $region13
  $region12: #{seq2seq_transformer_forward.24} parent=0 // pred_region
    _
  $region13: #{seq2seq_transformer_forward.24} parent=0 // pred_fallthru
    _
  // Predicated region
  $region14: #{seq2seq_transformer_forward.24} parent=0 // pred_check
    _
  $region15: #{seq2seq_transformer_forward.24} parent=0 // pred_check_branch
    %25 = sbr.rel (0) target = $region17
  $region16: #{seq2seq_transformer_forward.24} parent=0 // pred_region
    _
  $region17: #{seq2seq_transformer_forward.24} parent=0 // pred_fallthru
    _
  // Predicated region
  $region18: #{seq2seq_transformer_forward.24} parent=0 // pred_check
    _
  $region19: #{seq2seq_transformer_forward.24} parent=0 // pred_check_branch
    %27 = sbr.rel (0) target = $region21
  $region20: #{seq2seq_transformer_forward.24} parent=0 // pred_region
    _
  $region21: #{seq2seq_transformer_forward.24} parent=0 // pred_fallthru
    _
  // Predicated region
  $region22: #{seq2seq_transformer_forward.24} parent=0 // pred_check
    _
  $region23: #{seq2seq_transformer_forward.24} parent=0 // pred_check_branch
    %29 = sbr.rel (0) target = $region25
  $region24: #{seq2seq_transformer_forward.24} parent=0 // pred_region
    _
  $region25: #{seq2seq_transformer_forward.24} parent=0 // pred_fallthru
    _
  // Predicated region
  $region26: #{seq2seq_transformer_forward.24} parent=0 // pred_check
    _
  $region27: #{seq2seq_transformer_forward.24} parent=0 // pred_check_branch
    %31 = sbr.rel (0) target = $region29
  $region28: #{seq2seq_transformer_forward.24} parent=0 // pred_region
    _
  $region29: #{seq2seq_transformer_forward.24} parent=0 // pred_fallthru
    _
  // Predicated region
  $region30: #{seq2seq_transformer_forward.24} parent=0 // pred_check
    _
  $region31: #{seq2seq_transformer_forward.24} parent=0 // pred_check_branch
    %33 = sbr.rel (0) target = $region33
  $region32: #{seq2seq_transformer_forward.24} parent=0 // pred_region
    _
  $region33: #{seq2seq_transformer_forward.24} parent=0 // pred_fallthru
    _
  // Predicated region
  $region34: #{seq2seq_transformer_forward.24} parent=0 // pred_check
    _
  $region35: #{seq2seq_transformer_forward.24} parent=0 // pred_check_branch
    %35 = sbr.rel (0) target = $region37
  $region36: #{seq2seq_transformer_forward.24} parent=0 // pred_region
    _
  $region37: #{seq2seq_transformer_forward.24} parent=0 // pred_fallthru
    _
  // Predicated region
  $region38: #{seq2seq_transformer_forward.24} parent=0 // pred_check
    _
  $region39: #{seq2seq_transformer_forward.24} parent=0 // pred_check_branch
    %37 = sbr.rel (0) target = $region41
  $region40: #{seq2seq_transformer_forward.24} parent=0 // pred_region
    _
  $region41: #{seq2seq_transformer_forward.24} parent=0 // pred_fallthru
    _
  // Predicated region
  $region42: #{seq2seq_transformer_forward.24} parent=0 // pred_check
    _
  $region43: #{seq2seq_transformer_forward.24} parent=0 // pred_check_branch
    %39 = sbr.rel (0) target = $region45
  $region44: #{seq2seq_transformer_forward.24} parent=0 // pred_region
    _
  $region45: #{seq2seq_transformer_forward.24} parent=0 // pred_fallthru
    _
  // Predicated region
  $region46: #{seq2seq_transformer_forward.24} parent=0 // pred_check
    _
  $region47: #{seq2seq_transformer_forward.24} parent=0 // pred_check_branch
    %41 = sbr.rel (0) target = $region49
  $region48: #{seq2seq_transformer_forward.24} parent=0 // pred_region
    _
  $region49: #{seq2seq_transformer_forward.24} parent=0 // pred_fallthru
    _
  // Predicated region
  $region50: #{seq2seq_transformer_forward.24} parent=0 // pred_check
    _
  $region51: #{seq2seq_transformer_forward.24} parent=0 // pred_check_branch
    %43 = sbr.rel (0) target = $region53
  $region52: #{seq2seq_transformer_forward.24} parent=0 // pred_region
    _
  $region53: #{seq2seq_transformer_forward.24} parent=0 // pred_fallthru
    _
  %v44 = vld [vmem:[%s0] sm:$0xff]
  %v45 = vld [vmem:[%s0 + $0x8] sm:$0xff]
  %v46 = vld [vmem:[%s1] sm:$0xff]
  %v47 = vld [vmem:[%s1 + $0x8] sm:$0xff]
  %v48 = vld [vmem:[%s1 + $0x10] sm:$0xff]
  %v49 = vld [vmem:[%s1 + $0x18] sm:$0xff]
  %v50 = vld [vmem:[%s2] sm:$0x1]
  %v52 = vlaneseq
  %v53 = vshrl.u32 %v52, 7
  %v54 = vsub.s32 0, %v53
  %v55 = vrot.slane %v50, %v54
  %vm57 = vcmask 261120
  %v59 = vsel %vm57, %v44, 0
  %v62 = vsel %vm57, %v45, 0
  %64 = vmatprep.subr.mxu0 0.0
  %65 = vmatpush1.msra.mxu0 %v46
  %66 = vmatprep.subr.mxu0 0.0
  %67 = vmatpush1.msra.mxu0 %v47
  %68 = vmatprep.subr.mxu0 0.0
  %69 = vmatpush1.msra.mxu0 %v48
  %70 = vmatprep.subr.mxu0 0.0
  %71 = vmatpush1.msra.mxu0 %v49
  %72 = vmatprep.subr.mxu0 0.0
  %73 = vmatpush1.msra.mxu0 0.0
  %74 = vmatprep.subr.mxu0 0.0
  %75 = vmatpush1.msra.mxu0 0.0
  %76 = vmatprep.subr.mxu0 0.0
  %77 = vmatpush1.msra.mxu0 0.0
  %78 = vmatprep.subr.mxu0 0.0
  %79 = vmatpush1.msra.mxu0 0.0
  %80 = vmatprep.subr.mxu0 0.0
  %81 = vmatpush1.msra.mxu0 0.0
  %82 = vmatprep.subr.mxu0 0.0
  %83 = vmatpush1.msra.mxu0 0.0
  %84 = vmatprep.subr.mxu0 0.0
  %85 = vmatpush1.msra.mxu0 0.0
  %86 = vmatprep.subr.mxu0 0.0
  %87 = vmatpush1.msra.mxu0 0.0
  %88 = vmatprep.subr.mxu0 0.0
  %89 = vmatpush1.msra.mxu0 0.0
  %90 = vmatprep.subr.mxu0 0.0
  %91 = vmatpush1.msra.mxu0 0.0
  %92 = vmatprep.subr.mxu0 0.0
  %93 = vmatpush1.msra.mxu0 0.0
  %94 = vmatprep.subr.mxu0 0.0
  %95 = vmatpush1.msra.mxu0 0.0
  %96 = vmatprep.subr.mxu0 0.0
  %97 = vmatpush1.msra.mxu0 0.0
  %98 = vmatprep.subr.mxu0 0.0
  %99 = vmatpush1.msra.mxu0 0.0
  %100 = vmatprep.subr.mxu0 0.0
  %101 = vmatpush1.msra.mxu0 0.0
  %102 = vmatprep.subr.mxu0 0.0
  %103 = vmatpush1.msra.mxu0 0.0
  %104 = vmatprep.subr.mxu0 0.0
  %105 = vmatpush1.msra.mxu0 0.0
  %106 = vmatprep.subr.mxu0 0.0
  %107 = vmatpush1.msra.mxu0 0.0
  %108 = vmatprep.subr.mxu0 0.0
  %109 = vmatpush1.msra.mxu0 0.0
  %110 = vmatprep.subr.mxu0 0.0
  %111 = vmatpush1.msra.mxu0 0.0
  %112 = vmatprep.subr.mxu0 0.0
  %113 = vmatpush1.msra.mxu0 0.0
  %114 = vmatprep.subr.mxu0 0.0
  %115 = vmatpush1.msra.mxu0 0.0
  %116 = vmatprep.subr.mxu0 0.0
  %117 = vmatpush1.msra.mxu0 0.0
  %118 = vmatprep.subr.mxu0 0.0
  %119 = vmatpush1.msra.mxu0 0.0
  %120 = vmatprep.subr.mxu0 0.0
  %121 = vmatpush1.msra.mxu0 0.0
  %122 = vmatprep.subr.mxu0 0.0
  %123 = vmatpush1.msra.mxu0 0.0
  %124 = vmatprep.subr.mxu0 0.0
  %125 = vmatpush1.msra.mxu0 0.0
  %126 = vmatprep.subr.mxu0 0.0
  %127 = vmatpush1.msra.mxu0 0.0
  %128 = vmatprep.mubr.f32.mxu0 0.0
  %129 = vmatmul.mubr.f32.gmra.mrb[0].mxu0 %v59
  %v130 = vpop.f32.mrb[0].mxu0
  %v131 = vadd.f32 %v55, %v130
  %v132 = vpop.f32.mrb[0].mxu0
  %133 = vmatprep.mubr.f32.mxu0 0.0
  %134 = vmatmul.mubr.f32.gmra.mrb[0].mxu0 %v62
  %v135 = vpop.f32.mrb[0].mxu0
  %v136 = vadd.f32 %v55, %v135
  %v137 = vpop.f32.mrb[0].mxu0
  %138 = vdwg.mxu0
  %140 = vrot.lane.b32.xlu0 %v131, 96
  %v141 = vpop.permute.xlu0 %140
  %vm142 = vcmask 64512
  %v143 = vsel %vm142, %v131, 0
  %v145 = vsel %vm142, %v141, 0
  %147 = vmatprep.subr.mxu0 0.0
  %148 = vmatpush1.xpose.msra.mxu0 %v145
  %149 = vmatprep.subr.mxu0 0.0
  %150 = vmatpush1.xpose.msra.mxu0 0.0
  %151 = vmatprep.subr.mxu0 0.0
  %152 = vmatpush1.xpose.msra.mxu0 0.0
  %153 = vmatprep.subr.mxu0 0.0
  %154 = vmatpush1.xpose.msra.mxu0 0.0
  %155 = vmatprep.subr.mxu0 0.0
  %156 = vmatpush1.xpose.msra.mxu0 0.0
  %157 = vmatprep.subr.mxu0 0.0
  %158 = vmatpush1.xpose.msra.mxu0 0.0
  %159 = vmatprep.subr.mxu0 0.0
  %160 = vmatpush1.xpose.msra.mxu0 0.0
  %161 = vmatprep.subr.mxu0 0.0
  %162 = vmatpush1.xpose.msra.mxu0 0.0
  %163 = vmatprep.subr.mxu0 0.0
  %164 = vmatpush1.xpose.msra.mxu0 0.0
  %165 = vmatprep.subr.mxu0 0.0
  %166 = vmatpush1.xpose.msra.mxu0 0.0
  %167 = vmatprep.subr.mxu0 0.0
  %168 = vmatpush1.xpose.msra.mxu0 0.0
  %169 = vmatprep.subr.mxu0 0.0
  %170 = vmatpush1.xpose.msra.mxu0 0.0
  %171 = vmatprep.subr.mxu0 0.0
  %172 = vmatpush1.xpose.msra.mxu0 0.0
  %173 = vmatprep.subr.mxu0 0.0
  %174 = vmatpush1.xpose.msra.mxu0 0.0
  %175 = vmatprep.subr.mxu0 0.0
  %176 = vmatpush1.xpose.msra.mxu0 0.0
  %177 = vmatprep.subr.mxu0 0.0
  %178 = vmatpush1.xpose.msra.mxu0 0.0
  %179 = vmatprep.subr.mxu0 0.0
  %180 = vmatpush1.xpose.msra.mxu0 0.0
  %181 = vmatprep.subr.mxu0 0.0
  %182 = vmatpush1.xpose.msra.mxu0 0.0
  %183 = vmatprep.subr.mxu0 0.0
  %184 = vmatpush1.xpose.msra.mxu0 0.0
  %185 = vmatprep.subr.mxu0 0.0
  %186 = vmatpush1.xpose.msra.mxu0 0.0
  %187 = vmatprep.subr.mxu0 0.0
  %188 = vmatpush1.xpose.msra.mxu0 0.0
  %189 = vmatprep.subr.mxu0 0.0
  %190 = vmatpush1.xpose.msra.mxu0 0.0
  %191 = vmatprep.subr.mxu0 0.0
  %192 = vmatpush1.xpose.msra.mxu0 0.0
  %193 = vmatprep.subr.mxu0 0.0
  %194 = vmatpush1.xpose.msra.mxu0 0.0
  %195 = vmatprep.subr.mxu0 0.0
  %196 = vmatpush1.xpose.msra.mxu0 0.0
  %197 = vmatprep.subr.mxu0 0.0
  %198 = vmatpush1.xpose.msra.mxu0 0.0
  %199 = vmatprep.subr.mxu0 0.0
  %200 = vmatpush1.xpose.msra.mxu0 0.0
  %201 = vmatprep.subr.mxu0 0.0
  %202 = vmatpush1.xpose.msra.mxu0 0.0
  %203 = vmatprep.subr.mxu0 0.0
  %204 = vmatpush1.xpose.msra.mxu0 0.0
  %205 = vmatprep.subr.mxu0 0.0
  %206 = vmatpush1.xpose.msra.mxu0 0.0
  %207 = vmatprep.subr.mxu0 0.0
  %208 = vmatpush1.xpose.msra.mxu0 0.0
  %209 = vmatprep.subr.mxu0 0.0
  %210 = vmatpush1.xpose.msra.mxu0 0.0
  %211 = vmatprep.mubr.f32.mxu0 0.0
  %212 = vmatmul.mubr.f32.gmra.mrb[0].mxu0 %v143
  %v213 = vpop.f32.mrb[0].mxu0
  %v214 = vadd.f32 0.0, %v213
  %v215 = vpop.f32.mrb[0].mxu0
  %216 = vdwg.mxu0
  %218 = vrot.lane.b32.xlu0 %v136, 96
  %v219 = vpop.permute.xlu0 %218
  %v220 = vsel %vm142, %v136, 0
  %v222 = vsel %vm142, %v219, 0
  %224 = vmatprep.subr.mxu0 0.0
  %225 = vmatpush1.xpose.msra.mxu0 %v222
  %226 = vmatprep.subr.mxu0 0.0
  %227 = vmatpush1.xpose.msra.mxu0 0.0
  %228 = vmatprep.subr.mxu0 0.0
  %229 = vmatpush1.xpose.msra.mxu0 0.0
  %230 = vmatprep.subr.mxu0 0.0
  %231 = vmatpush1.xpose.msra.mxu0 0.0
  %232 = vmatprep.subr.mxu0 0.0
  %233 = vmatpush1.xpose.msra.mxu0 0.0
  %234 = vmatprep.subr.mxu0 0.0
  %235 = vmatpush1.xpose.msra.mxu0 0.0
  %236 = vmatprep.subr.mxu0 0.0
  %237 = vmatpush1.xpose.msra.mxu0 0.0
  %238 = vmatprep.subr.mxu0 0.0
  %239 = vmatpush1.xpose.msra.mxu0 0.0
  %240 = vmatprep.subr.mxu0 0.0
  %241 = vmatpush1.xpose.msra.mxu0 0.0
  %242 = vmatprep.subr.mxu0 0.0
  %243 = vmatpush1.xpose.msra.mxu0 0.0
  %244 = vmatprep.subr.mxu0 0.0
  %245 = vmatpush1.xpose.msra.mxu0 0.0
  %246 = vmatprep.subr.mxu0 0.0
  %247 = vmatpush1.xpose.msra.mxu0 0.0
  %248 = vmatprep.subr.mxu0 0.0
  %249 = vmatpush1.xpose.msra.mxu0 0.0
  %250 = vmatprep.subr.mxu0 0.0
  %251 = vmatpush1.xpose.msra.mxu0 0.0
  %252 = vmatprep.subr.mxu0 0.0
  %253 = vmatpush1.xpose.msra.mxu0 0.0
  %254 = vmatprep.subr.mxu0 0.0
  %255 = vmatpush1.xpose.msra.mxu0 0.0
  %256 = vmatprep.subr.mxu0 0.0
  %257 = vmatpush1.xpose.msra.mxu0 0.0
  %258 = vmatprep.subr.mxu0 0.0
  %259 = vmatpush1.xpose.msra.mxu0 0.0
  %260 = vmatprep.subr.mxu0 0.0
  %261 = vmatpush1.xpose.msra.mxu0 0.0
  %262 = vmatprep.subr.mxu0 0.0
  %263 = vmatpush1.xpose.msra.mxu0 0.0
  %264 = vmatprep.subr.mxu0 0.0
  %265 = vmatpush1.xpose.msra.mxu0 0.0
  %266 = vmatprep.subr.mxu0 0.0
  %267 = vmatpush1.xpose.msra.mxu0 0.0
  %268 = vmatprep.subr.mxu0 0.0
  %269 = vmatpush1.xpose.msra.mxu0 0.0
  %270 = vmatprep.subr.mxu0 0.0
  %271 = vmatpush1.xpose.msra.mxu0 0.0
  %272 = vmatprep.subr.mxu0 0.0
  %273 = vmatpush1.xpose.msra.mxu0 0.0
  %274 = vmatprep.subr.mxu0 0.0
  %275 = vmatpush1.xpose.msra.mxu0 0.0
  %276 = vmatprep.subr.mxu0 0.0
  %277 = vmatpush1.xpose.msra.mxu0 0.0
  %278 = vmatprep.subr.mxu0 0.0
  %279 = vmatpush1.xpose.msra.mxu0 0.0
  %280 = vmatprep.subr.mxu0 0.0
  %281 = vmatpush1.xpose.msra.mxu0 0.0
  %282 = vmatprep.subr.mxu0 0.0
  %283 = vmatpush1.xpose.msra.mxu0 0.0
  %284 = vmatprep.subr.mxu0 0.0
  %285 = vmatpush1.xpose.msra.mxu0 0.0
  %286 = vmatprep.subr.mxu0 0.0
  %287 = vmatpush1.xpose.msra.mxu0 0.0
  %288 = vmatprep.mubr.f32.mxu0 0.0
  %289 = vmatmul.mubr.f32.gmra.mrb[0].mxu0 %v220
  %v290 = vpop.f32.mrb[0].mxu0
  %v291 = vadd.f32 0.0, %v290
  %v292 = vpop.f32.mrb[0].mxu0
  %293 = vdwg.mxu0
  %v294 = vmul.f32 %v214, 0.35355338
  %v295 = vmul.f32 %v291, 0.35355338
  %v296 = vsel %vm142, %v294, -inf
  %297 = vmax.xlane.f32.xlu0 %v296
  %v298 = vpop.xlane.xlu0 %297
  %v299 = vsel %vm142, %v295, -inf
  %300 = vmax.xlane.f32.xlu0 %v299
  %v301 = vpop.xlane.xlu0 %300
  %v302 = vsub.f32 %v294, %v298
  %v303 = vsub.f32 %v295, %v301
  %v304 = vmul.f32 %v302, 1.442695
  %v305 = vpow.pop %v304
  %v306 = vmul.f32 %v303, 1.442695
  %v307 = vpow.pop %v306
  %v308 = vsel %vm142, %v305, 0.0
  %309 = vadd.xlane.f32.xlu0 %v308
  %v310 = vpop.xlane.xlu0 %309
  %v311 = vsel %vm142, %v307, 0.0
  %312 = vadd.xlane.f32.xlu0 %v311
  %v313 = vpop.xlane.xlu0 %312
  %v314 = vrcp.pop %v310
  %v315 = vrcp.pop %v313
  %v316 = vmul.f32 %v305, %v314
  %v317 = vmul.f32 %v307, %v315
  %318 = vrot.lane.b32.xlu0 %v131, 64
  %v319 = vpop.permute.xlu0 %318
  %v322 = vsel %vm142, %v316, 0
  %324 = vmatprep.subr.mxu0 0.0
  %325 = vmatpush1.msra.mxu0 %v319
  %326 = vmatprep.subr.mxu0 0.0
  %327 = vmatpush1.msra.mxu0 0.0
  %328 = vmatprep.subr.mxu0 0.0
  %329 = vmatpush1.msra.mxu0 0.0
  %330 = vmatprep.subr.mxu0 0.0
  %331 = vmatpush1.msra.mxu0 0.0
  %332 = vmatprep.subr.mxu0 0.0
  %333 = vmatpush1.msra.mxu0 0.0
  %334 = vmatprep.subr.mxu0 0.0
  %335 = vmatpush1.msra.mxu0 0.0
  %336 = vmatprep.subr.mxu0 0.0
  %337 = vmatpush1.msra.mxu0 0.0
  %338 = vmatprep.subr.mxu0 0.0
  %339 = vmatpush1.msra.mxu0 0.0
  %340 = vmatprep.subr.mxu0 0.0
  %341 = vmatpush1.msra.mxu0 0.0
  %342 = vmatprep.subr.mxu0 0.0
  %343 = vmatpush1.msra.mxu0 0.0
  %344 = vmatprep.subr.mxu0 0.0
  %345 = vmatpush1.msra.mxu0 0.0
  %346 = vmatprep.subr.mxu0 0.0
  %347 = vmatpush1.msra.mxu0 0.0
  %348 = vmatprep.subr.mxu0 0.0
  %349 = vmatpush1.msra.mxu0 0.0
  %350 = vmatprep.subr.mxu0 0.0
  %351 = vmatpush1.msra.mxu0 0.0
  %352 = vmatprep.subr.mxu0 0.0
  %353 = vmatpush1.msra.mxu0 0.0
  %354 = vmatprep.subr.mxu0 0.0
  %355 = vmatpush1.msra.mxu0 0.0
  %356 = vmatprep.subr.mxu0 0.0
  %357 = vmatpush1.msra.mxu0 0.0
  %358 = vmatprep.subr.mxu0 0.0
  %359 = vmatpush1.msra.mxu0 0.0
  %360 = vmatprep.subr.mxu0 0.0
  %361 = vmatpush1.msra.mxu0 0.0
  %362 = vmatprep.subr.mxu0 0.0
  %363 = vmatpush1.msra.mxu0 0.0
  %364 = vmatprep.subr.mxu0 0.0
  %365 = vmatpush1.msra.mxu0 0.0
  %366 = vmatprep.subr.mxu0 0.0
  %367 = vmatpush1.msra.mxu0 0.0
  %368 = vmatprep.subr.mxu0 0.0
  %369 = vmatpush1.msra.mxu0 0.0
  %370 = vmatprep.subr.mxu0 0.0
  %371 = vmatpush1.msra.mxu0 0.0
  %372 = vmatprep.subr.mxu0 0.0
  %373 = vmatpush1.msra.mxu0 0.0
  %374 = vmatprep.subr.mxu0 0.0
  %375 = vmatpush1.msra.mxu0 0.0
  %376 = vmatprep.subr.mxu0 0.0
  %377 = vmatpush1.msra.mxu0 0.0
  %378 = vmatprep.subr.mxu0 0.0
  %379 = vmatpush1.msra.mxu0 0.0
  %380 = vmatprep.subr.mxu0 0.0
  %381 = vmatpush1.msra.mxu0 0.0
  %382 = vmatprep.subr.mxu0 0.0
  %383 = vmatpush1.msra.mxu0 0.0
  %384 = vmatprep.subr.mxu0 0.0
  %385 = vmatpush1.msra.mxu0 0.0
  %386 = vmatprep.subr.mxu0 0.0
  %387 = vmatpush1.msra.mxu0 0.0
  %388 = vmatprep.mubr.f32.mxu0 0.0
  %389 = vmatmul.mubr.f32.gmra.mrb[0].mxu0 %v322
  %v390 = vpop.f32.mrb[0].mxu0
  %v391 = vadd.f32 0.0, %v390
  %v392 = vpop.f32.mrb[0].mxu0
  %393 = vdwg.mxu0
  %394 = vrot.lane.b32.xlu0 %v136, 64
  %v395 = vpop.permute.xlu0 %394
  %v398 = vsel %vm142, %v317, 0
  %400 = vmatprep.subr.mxu0 0.0
  %401 = vmatpush1.msra.mxu0 %v395
  %402 = vmatprep.subr.mxu0 0.0
  %403 = vmatpush1.msra.mxu0 0.0
  %404 = vmatprep.subr.mxu0 0.0
  %405 = vmatpush1.msra.mxu0 0.0
  %406 = vmatprep.subr.mxu0 0.0
  %407 = vmatpush1.msra.mxu0 0.0
  %408 = vmatprep.subr.mxu0 0.0
  %409 = vmatpush1.msra.mxu0 0.0
  %410 = vmatprep.subr.mxu0 0.0
  %411 = vmatpush1.msra.mxu0 0.0
  %412 = vmatprep.subr.mxu0 0.0
  %413 = vmatpush1.msra.mxu0 0.0
  %414 = vmatprep.subr.mxu0 0.0
  %415 = vmatpush1.msra.mxu0 0.0
  %416 = vmatprep.subr.mxu0 0.0
  %417 = vmatpush1.msra.mxu0 0.0
  %418 = vmatprep.subr.mxu0 0.0
  %419 = vmatpush1.msra.mxu0 0.0
  %420 = vmatprep.subr.mxu0 0.0
  %421 = vmatpush1.msra.mxu0 0.0
  %422 = vmatprep.subr.mxu0 0.0
  %423 = vmatpush1.msra.mxu0 0.0
  %424 = vmatprep.subr.mxu0 0.0
  %425 = vmatpush1.msra.mxu0 0.0
  %426 = vmatprep.subr.mxu0 0.0
  %427 = vmatpush1.msra.mxu0 0.0
  %428 = vmatprep.subr.mxu0 0.0
  %429 = vmatpush1.msra.mxu0 0.0
  %430 = vmatprep.subr.mxu0 0.0
  %431 = vmatpush1.msra.mxu0 0.0
  %432 = vmatprep.subr.mxu0 0.0
  %433 = vmatpush1.msra.mxu0 0.0
  %434 = vmatprep.subr.mxu0 0.0
  %435 = vmatpush1.msra.mxu0 0.0
  %436 = vmatprep.subr.mxu0 0.0
  %437 = vmatpush1.msra.mxu0 0.0
  %438 = vmatprep.subr.mxu0 0.0
  %439 = vmatpush1.msra.mxu0 0.0
  %440 = vmatprep.subr.mxu0 0.0
  %441 = vmatpush1.msra.mxu0 0.0
  %442 = vmatprep.subr.mxu0 0.0
  %443 = vmatpush1.msra.mxu0 0.0
  %444 = vmatprep.subr.mxu0 0.0
  %445 = vmatpush1.msra.mxu0 0.0
  %446 = vmatprep.subr.mxu0 0.0
  %447 = vmatpush1.msra.mxu0 0.0
  %448 = vmatprep.subr.mxu0 0.0
  %449 = vmatpush1.msra.mxu0 0.0
  %450 = vmatprep.subr.mxu0 0.0
  %451 = vmatpush1.msra.mxu0 0.0
  %452 = vmatprep.subr.mxu0 0.0
  %453 = vmatpush1.msra.mxu0 0.0
  %454 = vmatprep.subr.mxu0 0.0
  %455 = vmatpush1.msra.mxu0 0.0
  %456 = vmatprep.subr.mxu0 0.0
  %457 = vmatpush1.msra.mxu0 0.0
  %458 = vmatprep.subr.mxu0 0.0
  %459 = vmatpush1.msra.mxu0 0.0
  %460 = vmatprep.subr.mxu0 0.0
  %461 = vmatpush1.msra.mxu0 0.0
  %462 = vmatprep.subr.mxu0 0.0
  %463 = vmatpush1.msra.mxu0 0.0
  %464 = vmatprep.mubr.f32.mxu0 0.0
  %465 = vmatmul.mubr.f32.gmra.mrb[0].mxu0 %v398
  %v466 = vpop.f32.mrb[0].mxu0
  %v467 = vadd.f32 0.0, %v466
  %v468 = vpop.f32.mrb[0].mxu0
  %469 = vdwg.mxu0
  %470 = vrot.lane.b32.xlu0 %v131, 120
  %v471 = vpop.permute.xlu0 %470
  %472 = vrot.lane.b32.xlu0 %v131, 88
  %v473 = vpop.permute.xlu0 %472
  %v474 = vsel %vm142, %v471, 0
  %v476 = vsel %vm142, %v473, 0
  %478 = vmatprep.subr.mxu0 0.0
  %479 = vmatpush1.xpose.msra.mxu0 %v476
  %480 = vmatprep.subr.mxu0 0.0
  %481 = vmatpush1.xpose.msra.mxu0 0.0
  %482 = vmatprep.subr.mxu0 0.0
  %483 = vmatpush1.xpose.msra.mxu0 0.0
  %484 = vmatprep.subr.mxu0 0.0
  %485 = vmatpush1.xpose.msra.mxu0 0.0
  %486 = vmatprep.subr.mxu0 0.0
  %487 = vmatpush1.xpose.msra.mxu0 0.0
  %488 = vmatprep.subr.mxu0 0.0
  %489 = vmatpush1.xpose.msra.mxu0 0.0
  %490 = vmatprep.subr.mxu0 0.0
  %491 = vmatpush1.xpose.msra.mxu0 0.0
  %492 = vmatprep.subr.mxu0 0.0
  %493 = vmatpush1.xpose.msra.mxu0 0.0
  %494 = vmatprep.subr.mxu0 0.0
  %495 = vmatpush1.xpose.msra.mxu0 0.0
  %496 = vmatprep.subr.mxu0 0.0
  %497 = vmatpush1.xpose.msra.mxu0 0.0
  %498 = vmatprep.subr.mxu0 0.0
  %499 = vmatpush1.xpose.msra.mxu0 0.0
  %500 = vmatprep.subr.mxu0 0.0
  %501 = vmatpush1.xpose.msra.mxu0 0.0
  %502 = vmatprep.subr.mxu0 0.0
  %503 = vmatpush1.xpose.msra.mxu0 0.0
  %504 = vmatprep.subr.mxu0 0.0
  %505 = vmatpush1.xpose.msra.mxu0 0.0
  %506 = vmatprep.subr.mxu0 0.0
  %507 = vmatpush1.xpose.msra.mxu0 0.0
  %508 = vmatprep.subr.mxu0 0.0
  %509 = vmatpush1.xpose.msra.mxu0 0.0
  %510 = vmatprep.subr.mxu0 0.0
  %511 = vmatpush1.xpose.msra.mxu0 0.0
  %512 = vmatprep.subr.mxu0 0.0
  %513 = vmatpush1.xpose.msra.mxu0 0.0
  %514 = vmatprep.subr.mxu0 0.0
  %515 = vmatpush1.xpose.msra.mxu0 0.0
  %516 = vmatprep.subr.mxu0 0.0
  %517 = vmatpush1.xpose.msra.mxu0 0.0
  %518 = vmatprep.subr.mxu0 0.0
  %519 = vmatpush1.xpose.msra.mxu0 0.0
  %520 = vmatprep.subr.mxu0 0.0
  %521 = vmatpush1.xpose.msra.mxu0 0.0
  %522 = vmatprep.subr.mxu0 0.0
  %523 = vmatpush1.xpose.msra.mxu0 0.0
  %524 = vmatprep.subr.mxu0 0.0
  %525 = vmatpush1.xpose.msra.mxu0 0.0
  %526 = vmatprep.subr.mxu0 0.0
  %527 = vmatpush1.xpose.msra.mxu0 0.0
  %528 = vmatprep.subr.mxu0 0.0
  %529 = vmatpush1.xpose.msra.mxu0 0.0
  %530 = vmatprep.subr.mxu0 0.0
  %531 = vmatpush1.xpose.msra.mxu0 0.0
  %532 = vmatprep.subr.mxu0 0.0
  %533 = vmatpush1.xpose.msra.mxu0 0.0
  %534 = vmatprep.subr.mxu0 0.0
  %535 = vmatpush1.xpose.msra.mxu0 0.0
  %536 = vmatprep.subr.mxu0 0.0
  %537 = vmatpush1.xpose.msra.mxu0 0.0
  %538 = vmatprep.subr.mxu0 0.0
  %539 = vmatpush1.xpose.msra.mxu0 0.0
  %540 = vmatprep.subr.mxu0 0.0
  %541 = vmatpush1.xpose.msra.mxu0 0.0
  %542 = vmatprep.mubr.f32.mxu0 0.0
  %543 = vmatmul.mubr.f32.gmra.mrb[0].mxu0 %v474
  %v544 = vpop.f32.mrb[0].mxu0
  %v545 = vadd.f32 0.0, %v544
  %v546 = vpop.f32.mrb[0].mxu0
  %547 = vdwg.mxu0
  %548 = vrot.lane.b32.xlu0 %v136, 120
  %v549 = vpop.permute.xlu0 %548
  %550 = vrot.lane.b32.xlu0 %v136, 88
  %v551 = vpop.permute.xlu0 %550
  %v552 = vsel %vm142, %v549, 0
  %v554 = vsel %vm142, %v551, 0
  %556 = vmatprep.subr.mxu0 0.0
  %557 = vmatpush1.xpose.msra.mxu0 %v554
  %558 = vmatprep.subr.mxu0 0.0
  %559 = vmatpush1.xpose.msra.mxu0 0.0
  %560 = vmatprep.subr.mxu0 0.0
  %561 = vmatpush1.xpose.msra.mxu0 0.0
  %562 = vmatprep.subr.mxu0 0.0
  %563 = vmatpush1.xpose.msra.mxu0 0.0
  %564 = vmatprep.subr.mxu0 0.0
  %565 = vmatpush1.xpose.msra.mxu0 0.0
  %566 = vmatprep.subr.mxu0 0.0
  %567 = vmatpush1.xpose.msra.mxu0 0.0
  %568 = vmatprep.subr.mxu0 0.0
  %569 = vmatpush1.xpose.msra.mxu0 0.0
  %570 = vmatprep.subr.mxu0 0.0
  %571 = vmatpush1.xpose.msra.mxu0 0.0
  %572 = vmatprep.subr.mxu0 0.0
  %573 = vmatpush1.xpose.msra.mxu0 0.0
  %574 = vmatprep.subr.mxu0 0.0
  %575 = vmatpush1.xpose.msra.mxu0 0.0
  %576 = vmatprep.subr.mxu0 0.0
  %577 = vmatpush1.xpose.msra.mxu0 0.0
  %578 = vmatprep.subr.mxu0 0.0
  %579 = vmatpush1.xpose.msra.mxu0 0.0
  %580 = vmatprep.subr.mxu0 0.0
  %581 = vmatpush1.xpose.msra.mxu0 0.0
  %582 = vmatprep.subr.mxu0 0.0
  %583 = vmatpush1.xpose.msra.mxu0 0.0
  %584 = vmatprep.subr.mxu0 0.0
  %585 = vmatpush1.xpose.msra.mxu0 0.0
  %586 = vmatprep.subr.mxu0 0.0
  %587 = vmatpush1.xpose.msra.mxu0 0.0
  %588 = vmatprep.subr.mxu0 0.0
  %589 = vmatpush1.xpose.msra.mxu0 0.0
  %590 = vmatprep.subr.mxu0 0.0
  %591 = vmatpush1.xpose.msra.mxu0 0.0
  %592 = vmatprep.subr.mxu0 0.0
  %593 = vmatpush1.xpose.msra.mxu0 0.0
  %594 = vmatprep.subr.mxu0 0.0
  %595 = vmatpush1.xpose.msra.mxu0 0.0
  %596 = vmatprep.subr.mxu0 0.0
  %597 = vmatpush1.xpose.msra.mxu0 0.0
  %598 = vmatprep.subr.mxu0 0.0
  %599 = vmatpush1.xpose.msra.mxu0 0.0
  %600 = vmatprep.subr.mxu0 0.0
  %601 = vmatpush1.xpose.msra.mxu0 0.0
  %602 = vmatprep.subr.mxu0 0.0
  %603 = vmatpush1.xpose.msra.mxu0 0.0
  %604 = vmatprep.subr.mxu0 0.0
  %605 = vmatpush1.xpose.msra.mxu0 0.0
  %606 = vmatprep.subr.mxu0 0.0
  %607 = vmatpush1.xpose.msra.mxu0 0.0
  %608 = vmatprep.subr.mxu0 0.0
  %609 = vmatpush1.xpose.msra.mxu0 0.0
  %610 = vmatprep.subr.mxu0 0.0
  %611 = vmatpush1.xpose.msra.mxu0 0.0
  %612 = vmatprep.subr.mxu0 0.0
  %613 = vmatpush1.xpose.msra.mxu0 0.0
  %614 = vmatprep.subr.mxu0 0.0
  %615 = vmatpush1.xpose.msra.mxu0 0.0
  %616 = vmatprep.subr.mxu0 0.0
  %617 = vmatpush1.xpose.msra.mxu0 0.0
  %618 = vmatprep.subr.mxu0 0.0
  %619 = vmatpush1.xpose.msra.mxu0 0.0
  %620 = vmatprep.mubr.f32.mxu0 0.0
  %621 = vmatmul.mubr.f32.gmra.mrb[0].mxu0 %v552
  %v622 = vpop.f32.mrb[0].mxu0
  %v623 = vadd.f32 0.0, %v622
  %v624 = vpop.f32.mrb[0].mxu0
  %625 = vdwg.mxu0
  %v626 = vmul.f32 %v545, 0.35355338
  %v627 = vmul.f32 %v623, 0.35355338
  %v628 = vsel %vm142, %v626, -inf
  %629 = vmax.xlane.f32.xlu0 %v628
  %v630 = vpop.xlane.xlu0 %629
  %v631 = vsel %vm142, %v627, -inf
  %632 = vmax.xlane.f32.xlu0 %v631
  %v633 = vpop.xlane.xlu0 %632
  %v634 = vsub.f32 %v626, %v630
  %v635 = vsub.f32 %v627, %v633
  %v636 = vmul.f32 %v634, 1.442695
  %v637 = vpow.pop %v636
  %v638 = vmul.f32 %v635, 1.442695
  %v639 = vpow.pop %v638
  %v640 = vsel %vm142, %v637, 0.0
  %641 = vadd.xlane.f32.xlu0 %v640
  %v642 = vpop.xlane.xlu0 %641
  %v643 = vsel %vm142, %v639, 0.0
  %644 = vadd.xlane.f32.xlu0 %v643
  %v645 = vpop.xlane.xlu0 %644
  %v646 = vrcp.pop %v642
  %v647 = vrcp.pop %v645
  %v648 = vmul.f32 %v637, %v646
  %v649 = vmul.f32 %v639, %v647
  %650 = vrot.lane.b32.xlu0 %v131, 56
  %v651 = vpop.permute.xlu0 %650
  %v654 = vsel %vm142, %v648, 0
  %656 = vmatprep.subr.mxu0 0.0
  %657 = vmatpush1.msra.mxu0 %v651
  %658 = vmatprep.subr.mxu0 0.0
  %659 = vmatpush1.msra.mxu0 0.0
  %660 = vmatprep.subr.mxu0 0.0
  %661 = vmatpush1.msra.mxu0 0.0
  %662 = vmatprep.subr.mxu0 0.0
  %663 = vmatpush1.msra.mxu0 0.0
  %664 = vmatprep.subr.mxu0 0.0
  %665 = vmatpush1.msra.mxu0 0.0
  %666 = vmatprep.subr.mxu0 0.0
  %667 = vmatpush1.msra.mxu0 0.0
  %668 = vmatprep.subr.mxu0 0.0
  %669 = vmatpush1.msra.mxu0 0.0
  %670 = vmatprep.subr.mxu0 0.0
  %671 = vmatpush1.msra.mxu0 0.0
  %672 = vmatprep.subr.mxu0 0.0
  %673 = vmatpush1.msra.mxu0 0.0
  %674 = vmatprep.subr.mxu0 0.0
  %675 = vmatpush1.msra.mxu0 0.0
  %676 = vmatprep.subr.mxu0 0.0
  %677 = vmatpush1.msra.mxu0 0.0
  %678 = vmatprep.subr.mxu0 0.0
  %679 = vmatpush1.msra.mxu0 0.0
  %680 = vmatprep.subr.mxu0 0.0
  %681 = vmatpush1.msra.mxu0 0.0
  %682 = vmatprep.subr.mxu0 0.0
  %683 = vmatpush1.msra.mxu0 0.0
  %684 = vmatprep.subr.mxu0 0.0
  %685 = vmatpush1.msra.mxu0 0.0
  %686 = vmatprep.subr.mxu0 0.0
  %687 = vmatpush1.msra.mxu0 0.0
  %688 = vmatprep.subr.mxu0 0.0
  %689 = vmatpush1.msra.mxu0 0.0
  %690 = vmatprep.subr.mxu0 0.0
  %691 = vmatpush1.msra.mxu0 0.0
  %692 = vmatprep.subr.mxu0 0.0
  %693 = vmatpush1.msra.mxu0 0.0
  %694 = vmatprep.subr.mxu0 0.0
  %695 = vmatpush1.msra.mxu0 0.0
  %696 = vmatprep.subr.mxu0 0.0
  %697 = vmatpush1.msra.mxu0 0.0
  %698 = vmatprep.subr.mxu0 0.0
  %699 = vmatpush1.msra.mxu0 0.0
  %700 = vmatprep.subr.mxu0 0.0
  %701 = vmatpush1.msra.mxu0 0.0
  %702 = vmatprep.subr.mxu0 0.0
  %703 = vmatpush1.msra.mxu0 0.0
  %704 = vmatprep.subr.mxu0 0.0
  %705 = vmatpush1.msra.mxu0 0.0
  %706 = vmatprep.subr.mxu0 0.0
  %707 = vmatpush1.msra.mxu0 0.0
  %708 = vmatprep.subr.mxu0 0.0
  %709 = vmatpush1.msra.mxu0 0.0
  %710 = vmatprep.subr.mxu0 0.0
  %711 = vmatpush1.msra.mxu0 0.0
  %712 = vmatprep.subr.mxu0 0.0
  %713 = vmatpush1.msra.mxu0 0.0
  %714 = vmatprep.subr.mxu0 0.0
  %715 = vmatpush1.msra.mxu0 0.0
  %716 = vmatprep.subr.mxu0 0.0
  %717 = vmatpush1.msra.mxu0 0.0
  %718 = vmatprep.subr.mxu0 0.0
  %719 = vmatpush1.msra.mxu0 0.0
  %720 = vmatprep.mubr.f32.mxu0 0.0
  %721 = vmatmul.mubr.f32.gmra.mrb[0].mxu0 %v654
  %v722 = vpop.f32.mrb[0].mxu0
  %v723 = vadd.f32 0.0, %v722
  %v724 = vpop.f32.mrb[0].mxu0
  %725 = vdwg.mxu0
  %726 = vrot.lane.b32.xlu0 %v136, 56
  %v727 = vpop.permute.xlu0 %726
  %v730 = vsel %vm142, %v649, 0
  %732 = vmatprep.subr.mxu0 0.0
  %733 = vmatpush1.msra.mxu0 %v727
  %734 = vmatprep.subr.mxu0 0.0
  %735 = vmatpush1.msra.mxu0 0.0
  %736 = vmatprep.subr.mxu0 0.0
  %737 = vmatpush1.msra.mxu0 0.0
  %738 = vmatprep.subr.mxu0 0.0
  %739 = vmatpush1.msra.mxu0 0.0
  %740 = vmatprep.subr.mxu0 0.0
  %741 = vmatpush1.msra.mxu0 0.0
  %742 = vmatprep.subr.mxu0 0.0
  %743 = vmatpush1.msra.mxu0 0.0
  %744 = vmatprep.subr.mxu0 0.0
  %745 = vmatpush1.msra.mxu0 0.0
  %746 = vmatprep.subr.mxu0 0.0
  %747 = vmatpush1.msra.mxu0 0.0
  %748 = vmatprep.subr.mxu0 0.0
  %749 = vmatpush1.msra.mxu0 0.0
  %750 = vmatprep.subr.mxu0 0.0
  %751 = vmatpush1.msra.mxu0 0.0
  %752 = vmatprep.subr.mxu0 0.0
  %753 = vmatpush1.msra.mxu0 0.0
  %754 = vmatprep.subr.mxu0 0.0
  %755 = vmatpush1.msra.mxu0 0.0
  %756 = vmatprep.subr.mxu0 0.0
  %757 = vmatpush1.msra.mxu0 0.0
  %758 = vmatprep.subr.mxu0 0.0
  %759 = vmatpush1.msra.mxu0 0.0
  %760 = vmatprep.subr.mxu0 0.0
  %761 = vmatpush1.msra.mxu0 0.0
  %762 = vmatprep.subr.mxu0 0.0
  %763 = vmatpush1.msra.mxu0 0.0
  %764 = vmatprep.subr.mxu0 0.0
  %765 = vmatpush1.msra.mxu0 0.0
  %766 = vmatprep.subr.mxu0 0.0
  %767 = vmatpush1.msra.mxu0 0.0
  %768 = vmatprep.subr.mxu0 0.0
  %769 = vmatpush1.msra.mxu0 0.0
  %770 = vmatprep.subr.mxu0 0.0
  %771 = vmatpush1.msra.mxu0 0.0
  %772 = vmatprep.subr.mxu0 0.0
  %773 = vmatpush1.msra.mxu0 0.0
  %774 = vmatprep.subr.mxu0 0.0
  %775 = vmatpush1.msra.mxu0 0.0
  %776 = vmatprep.subr.mxu0 0.0
  %777 = vmatpush1.msra.mxu0 0.0
  %778 = vmatprep.subr.mxu0 0.0
  %779 = vmatpush1.msra.mxu0 0.0
  %780 = vmatprep.subr.mxu0 0.0
  %781 = vmatpush1.msra.mxu0 0.0
  %782 = vmatprep.subr.mxu0 0.0
  %783 = vmatpush1.msra.mxu0 0.0
  %784 = vmatprep.subr.mxu0 0.0
  %785 = vmatpush1.msra.mxu0 0.0
  %786 = vmatprep.subr.mxu0 0.0
  %787 = vmatpush1.msra.mxu0 0.0
  %788 = vmatprep.subr.mxu0 0.0
  %789 = vmatpush1.msra.mxu0 0.0
  %790 = vmatprep.subr.mxu0 0.0
  %791 = vmatpush1.msra.mxu0 0.0
  %792 = vmatprep.subr.mxu0 0.0
  %793 = vmatpush1.msra.mxu0 0.0
  %794 = vmatprep.subr.mxu0 0.0
  %795 = vmatpush1.msra.mxu0 0.0
  %796 = vmatprep.mubr.f32.mxu0 0.0
  %797 = vmatmul.mubr.f32.gmra.mrb[0].mxu0 %v730
  %v798 = vpop.f32.mrb[0].mxu0
  %v799 = vadd.f32 0.0, %v798
  %v800 = vpop.f32.mrb[0].mxu0
  %801 = vdwg.mxu0
  %802 = vrot.lane.b32.xlu0 %v131, 112
  %v803 = vpop.permute.xlu0 %802
  %804 = vrot.lane.b32.xlu0 %v131, 80
  %v805 = vpop.permute.xlu0 %804
  %v806 = vsel %vm142, %v803, 0
  %v808 = vsel %vm142, %v805, 0
  %810 = vmatprep.subr.mxu0 0.0
  %811 = vmatpush1.xpose.msra.mxu0 %v808
  %812 = vmatprep.subr.mxu0 0.0
  %813 = vmatpush1.xpose.msra.mxu0 0.0
  %814 = vmatprep.subr.mxu0 0.0
  %815 = vmatpush1.xpose.msra.mxu0 0.0
  %816 = vmatprep.subr.mxu0 0.0
  %817 = vmatpush1.xpose.msra.mxu0 0.0
  %818 = vmatprep.subr.mxu0 0.0
  %819 = vmatpush1.xpose.msra.mxu0 0.0
  %820 = vmatprep.subr.mxu0 0.0
  %821 = vmatpush1.xpose.msra.mxu0 0.0
  %822 = vmatprep.subr.mxu0 0.0
  %823 = vmatpush1.xpose.msra.mxu0 0.0
  %824 = vmatprep.subr.mxu0 0.0
  %825 = vmatpush1.xpose.msra.mxu0 0.0
  %826 = vmatprep.subr.mxu0 0.0
  %827 = vmatpush1.xpose.msra.mxu0 0.0
  %828 = vmatprep.subr.mxu0 0.0
  %829 = vmatpush1.xpose.msra.mxu0 0.0
  %830 = vmatprep.subr.mxu0 0.0
  %831 = vmatpush1.xpose.msra.mxu0 0.0
  %832 = vmatprep.subr.mxu0 0.0
  %833 = vmatpush1.xpose.msra.mxu0 0.0
  %834 = vmatprep.subr.mxu0 0.0
  %835 = vmatpush1.xpose.msra.mxu0 0.0
  %836 = vmatprep.subr.mxu0 0.0
  %837 = vmatpush1.xpose.msra.mxu0 0.0
  %838 = vmatprep.subr.mxu0 0.0
  %839 = vmatpush1.xpose.msra.mxu0 0.0
  %840 = vmatprep.subr.mxu0 0.0
  %841 = vmatpush1.xpose.msra.mxu0 0.0
  %842 = vmatprep.subr.mxu0 0.0
  %843 = vmatpush1.xpose.msra.mxu0 0.0
  %844 = vmatprep.subr.mxu0 0.0
  %845 = vmatpush1.xpose.msra.mxu0 0.0
  %846 = vmatprep.subr.mxu0 0.0
  %847 = vmatpush1.xpose.msra.mxu0 0.0
  %848 = vmatprep.subr.mxu0 0.0
  %849 = vmatpush1.xpose.msra.mxu0 0.0
  %850 = vmatprep.subr.mxu0 0.0
  %851 = vmatpush1.xpose.msra.mxu0 0.0
  %852 = vmatprep.subr.mxu0 0.0
  %853 = vmatpush1.xpose.msra.mxu0 0.0
  %854 = vmatprep.subr.mxu0 0.0
  %855 = vmatpush1.xpose.msra.mxu0 0.0
  %856 = vmatprep.subr.mxu0 0.0
  %857 = vmatpush1.xpose.msra.mxu0 0.0
  %858 = vmatprep.subr.mxu0 0.0
  %859 = vmatpush1.xpose.msra.mxu0 0.0
  %860 = vmatprep.subr.mxu0 0.0
  %861 = vmatpush1.xpose.msra.mxu0 0.0
  %862 = vmatprep.subr.mxu0 0.0
  %863 = vmatpush1.xpose.msra.mxu0 0.0
  %864 = vmatprep.subr.mxu0 0.0
  %865 = vmatpush1.xpose.msra.mxu0 0.0
  %866 = vmatprep.subr.mxu0 0.0
  %867 = vmatpush1.xpose.msra.mxu0 0.0
  %868 = vmatprep.subr.mxu0 0.0
  %869 = vmatpush1.xpose.msra.mxu0 0.0
  %870 = vmatprep.subr.mxu0 0.0
  %871 = vmatpush1.xpose.msra.mxu0 0.0
  %872 = vmatprep.subr.mxu0 0.0
  %873 = vmatpush1.xpose.msra.mxu0 0.0
  %874 = vmatprep.mubr.f32.mxu0 0.0
  %875 = vmatmul.mubr.f32.gmra.mrb[0].mxu0 %v806
  %v876 = vpop.f32.mrb[0].mxu0
  %v877 = vadd.f32 0.0, %v876
  %v878 = vpop.f32.mrb[0].mxu0
  %879 = vdwg.mxu0
  %880 = vrot.lane.b32.xlu0 %v136, 112
  %v881 = vpop.permute.xlu0 %880
  %882 = vrot.lane.b32.xlu0 %v136, 80
  %v883 = vpop.permute.xlu0 %882
  %v884 = vsel %vm142, %v881, 0
  %v886 = vsel %vm142, %v883, 0
  %888 = vmatprep.subr.mxu0 0.0
  %889 = vmatpush1.xpose.msra.mxu0 %v886
  %890 = vmatprep.subr.mxu0 0.0
  %891 = vmatpush1.xpose.msra.mxu0 0.0
  %892 = vmatprep.subr.mxu0 0.0
  %893 = vmatpush1.xpose.msra.mxu0 0.0
  %894 = vmatprep.subr.mxu0 0.0
  %895 = vmatpush1.xpose.msra.mxu0 0.0
  %896 = vmatprep.subr.mxu0 0.0
  %897 = vmatpush1.xpose.msra.mxu0 0.0
  %898 = vmatprep.subr.mxu0 0.0
  %899 = vmatpush1.xpose.msra.mxu0 0.0
  %900 = vmatprep.subr.mxu0 0.0
  %901 = vmatpush1.xpose.msra.mxu0 0.0
  %902 = vmatprep.subr.mxu0 0.0
  %903 = vmatpush1.xpose.msra.mxu0 0.0
  %904 = vmatprep.subr.mxu0 0.0
  %905 = vmatpush1.xpose.msra.mxu0 0.0
  %906 = vmatprep.subr.mxu0 0.0
  %907 = vmatpush1.xpose.msra.mxu0 0.0
  %908 = vmatprep.subr.mxu0 0.0
  %909 = vmatpush1.xpose.msra.mxu0 0.0
  %910 = vmatprep.subr.mxu0 0.0
  %911 = vmatpush1.xpose.msra.mxu0 0.0
  %912 = vmatprep.subr.mxu0 0.0
  %913 = vmatpush1.xpose.msra.mxu0 0.0
  %914 = vmatprep.subr.mxu0 0.0
  %915 = vmatpush1.xpose.msra.mxu0 0.0
  %916 = vmatprep.subr.mxu0 0.0
  %917 = vmatpush1.xpose.msra.mxu0 0.0
  %918 = vmatprep.subr.mxu0 0.0
  %919 = vmatpush1.xpose.msra.mxu0 0.0
  %920 = vmatprep.subr.mxu0 0.0
  %921 = vmatpush1.xpose.msra.mxu0 0.0
  %922 = vmatprep.subr.mxu0 0.0
  %923 = vmatpush1.xpose.msra.mxu0 0.0
  %924 = vmatprep.subr.mxu0 0.0
  %925 = vmatpush1.xpose.msra.mxu0 0.0
  %926 = vmatprep.subr.mxu0 0.0
  %927 = vmatpush1.xpose.msra.mxu0 0.0
  %928 = vmatprep.subr.mxu0 0.0
  %929 = vmatpush1.xpose.msra.mxu0 0.0
  %930 = vmatprep.subr.mxu0 0.0
  %931 = vmatpush1.xpose.msra.mxu0 0.0
  %932 = vmatprep.subr.mxu0 0.0
  %933 = vmatpush1.xpose.msra.mxu0 0.0
  %934 = vmatprep.subr.mxu0 0.0
  %935 = vmatpush1.xpose.msra.mxu0 0.0
  %936 = vmatprep.subr.mxu0 0.0
  %937 = vmatpush1.xpose.msra.mxu0 0.0
  %938 = vmatprep.subr.mxu0 0.0
  %939 = vmatpush1.xpose.msra.mxu0 0.0
  %940 = vmatprep.subr.mxu0 0.0
  %941 = vmatpush1.xpose.msra.mxu0 0.0
  %942 = vmatprep.subr.mxu0 0.0
  %943 = vmatpush1.xpose.msra.mxu0 0.0
  %944 = vmatprep.subr.mxu0 0.0
  %945 = vmatpush1.xpose.msra.mxu0 0.0
  %946 = vmatprep.subr.mxu0 0.0
  %947 = vmatpush1.xpose.msra.mxu0 0.0
  %948 = vmatprep.subr.mxu0 0.0
  %949 = vmatpush1.xpose.msra.mxu0 0.0
  %950 = vmatprep.subr.mxu0 0.0
  %951 = vmatpush1.xpose.msra.mxu0 0.0
  %952 = vmatprep.mubr.f32.mxu0 0.0
  %953 = vmatmul.mubr.f32.gmra.mrb[0].mxu0 %v884
  %v954 = vpop.f32.mrb[0].mxu0
  %v955 = vadd.f32 0.0, %v954
  %v956 = vpop.f32.mrb[0].mxu0
  %957 = vdwg.mxu0
  %v958 = vmul.f32 %v877, 0.35355338
  %v959 = vmul.f32 %v955, 0.35355338
  %v960 = vsel %vm142, %v958, -inf
  %961 = vmax.xlane.f32.xlu0 %v960
  %v962 = vpop.xlane.xlu0 %961
  %v963 = vsel %vm142, %v959, -inf
  %964 = vmax.xlane.f32.xlu0 %v963
  %v965 = vpop.xlane.xlu0 %964
  %v966 = vsub.f32 %v958, %v962
  %v967 = vsub.f32 %v959, %v965
  %v968 = vmul.f32 %v966, 1.442695
  %v969 = vpow.pop %v968
  %v970 = vmul.f32 %v967, 1.442695
  %v971 = vpow.pop %v970
  %v972 = vsel %vm142, %v969, 0.0
  %973 = vadd.xlane.f32.xlu0 %v972
  %v974 = vpop.xlane.xlu0 %973
  %v975 = vsel %vm142, %v971, 0.0
  %976 = vadd.xlane.f32.xlu0 %v975
  %v977 = vpop.xlane.xlu0 %976
  %v978 = vrcp.pop %v974
  %v979 = vrcp.pop %v977
  %v980 = vmul.f32 %v969, %v978
  %v981 = vmul.f32 %v971, %v979
  %982 = vrot.lane.b32.xlu0 %v131, 48
  %v983 = vpop.permute.xlu0 %982
  %v986 = vsel %vm142, %v980, 0
  %988 = vmatprep.subr.mxu0 0.0
  %989 = vmatpush1.msra.mxu0 %v983
  %990 = vmatprep.subr.mxu0 0.0
  %991 = vmatpush1.msra.mxu0 0.0
  %992 = vmatprep.subr.mxu0 0.0
  %993 = vmatpush1.msra.mxu0 0.0
  %994 = vmatprep.subr.mxu0 0.0
  %995 = vmatpush1.msra.mxu0 0.0
  %996 = vmatprep.subr.mxu0 0.0
  %997 = vmatpush1.msra.mxu0 0.0
  %998 = vmatprep.subr.mxu0 0.0
  %999 = vmatpush1.msra.mxu0 0.0
  %1000 = vmatprep.subr.mxu0 0.0
  %1001 = vmatpush1.msra.mxu0 0.0
  %1002 = vmatprep.subr.mxu0 0.0
  %1003 = vmatpush1.msra.mxu0 0.0
  %1004 = vmatprep.subr.mxu0 0.0
  %1005 = vmatpush1.msra.mxu0 0.0
  %1006 = vmatprep.subr.mxu0 0.0
  %1007 = vmatpush1.msra.mxu0 0.0
  %1008 = vmatprep.subr.mxu0 0.0
  %1009 = vmatpush1.msra.mxu0 0.0
  %1010 = vmatprep.subr.mxu0 0.0
  %1011 = vmatpush1.msra.mxu0 0.0
  %1012 = vmatprep.subr.mxu0 0.0
  %1013 = vmatpush1.msra.mxu0 0.0
  %1014 = vmatprep.subr.mxu0 0.0
  %1015 = vmatpush1.msra.mxu0 0.0
  %1016 = vmatprep.subr.mxu0 0.0
  %1017 = vmatpush1.msra.mxu0 0.0
  %1018 = vmatprep.subr.mxu0 0.0
  %1019 = vmatpush1.msra.mxu0 0.0
  %1020 = vmatprep.subr.mxu0 0.0
  %1021 = vmatpush1.msra.mxu0 0.0
  %1022 = vmatprep.subr.mxu0 0.0
  %1023 = vmatpush1.msra.mxu0 0.0
  %1024 = vmatprep.subr.mxu0 0.0
  %1025 = vmatpush1.msra.mxu0 0.0
  %1026 = vmatprep.subr.mxu0 0.0
  %1027 = vmatpush1.msra.mxu0 0.0
  %1028 = vmatprep.subr.mxu0 0.0
  %1029 = vmatpush1.msra.mxu0 0.0
  %1030 = vmatprep.subr.mxu0 0.0
  %1031 = vmatpush1.msra.mxu0 0.0
  %1032 = vmatprep.subr.mxu0 0.0
  %1033 = vmatpush1.msra.mxu0 0.0
  %1034 = vmatprep.subr.mxu0 0.0
  %1035 = vmatpush1.msra.mxu0 0.0
  %1036 = vmatprep.subr.mxu0 0.0
  %1037 = vmatpush1.msra.mxu0 0.0
  %1038 = vmatprep.subr.mxu0 0.0
  %1039 = vmatpush1.msra.mxu0 0.0
  %1040 = vmatprep.subr.mxu0 0.0
  %1041 = vmatpush1.msra.mxu0 0.0
  %1042 = vmatprep.subr.mxu0 0.0
  %1043 = vmatpush1.msra.mxu0 0.0
  %1044 = vmatprep.subr.mxu0 0.0
  %1045 = vmatpush1.msra.mxu0 0.0
  %1046 = vmatprep.subr.mxu0 0.0
  %1047 = vmatpush1.msra.mxu0 0.0
  %1048 = vmatprep.subr.mxu0 0.0
  %1049 = vmatpush1.msra.mxu0 0.0
  %1050 = vmatprep.subr.mxu0 0.0
  %1051 = vmatpush1.msra.mxu0 0.0
  %1052 = vmatprep.mubr.f32.mxu0 0.0
  %1053 = vmatmul.mubr.f32.gmra.mrb[0].mxu0 %v986
  %v1054 = vpop.f32.mrb[0].mxu0
  %v1055 = vadd.f32 0.0, %v1054
  %v1056 = vpop.f32.mrb[0].mxu0
  %1057 = vdwg.mxu0
  %1058 = vrot.lane.b32.xlu0 %v136, 48
  %v1059 = vpop.permute.xlu0 %1058
  %v1062 = vsel %vm142, %v981, 0
  %1064 = vmatprep.subr.mxu0 0.0
  %1065 = vmatpush1.msra.mxu0 %v1059
  %1066 = vmatprep.subr.mxu0 0.0
  %1067 = vmatpush1.msra.mxu0 0.0
  %1068 = vmatprep.subr.mxu0 0.0
  %1069 = vmatpush1.msra.mxu0 0.0
  %1070 = vmatprep.subr.mxu0 0.0
  %1071 = vmatpush1.msra.mxu0 0.0
  %1072 = vmatprep.subr.mxu0 0.0
  %1073 = vmatpush1.msra.mxu0 0.0
  %1074 = vmatprep.subr.mxu0 0.0
  %1075 = vmatpush1.msra.mxu0 0.0
  %1076 = vmatprep.subr.mxu0 0.0
  %1077 = vmatpush1.msra.mxu0 0.0
  %1078 = vmatprep.subr.mxu0 0.0
  %1079 = vmatpush1.msra.mxu0 0.0
  %1080 = vmatprep.subr.mxu0 0.0
  %1081 = vmatpush1.msra.mxu0 0.0
  %1082 = vmatprep.subr.mxu0 0.0
  %1083 = vmatpush1.msra.mxu0 0.0
  %1084 = vmatprep.subr.mxu0 0.0
  %1085 = vmatpush1.msra.mxu0 0.0
  %1086 = vmatprep.subr.mxu0 0.0
  %1087 = vmatpush1.msra.mxu0 0.0
  %1088 = vmatprep.subr.mxu0 0.0
  %1089 = vmatpush1.msra.mxu0 0.0
  %1090 = vmatprep.subr.mxu0 0.0
  %1091 = vmatpush1.msra.mxu0 0.0
  %1092 = vmatprep.subr.mxu0 0.0
  %1093 = vmatpush1.msra.mxu0 0.0
  %1094 = vmatprep.subr.mxu0 0.0
  %1095 = vmatpush1.msra.mxu0 0.0
  %1096 = vmatprep.subr.mxu0 0.0
  %1097 = vmatpush1.msra.mxu0 0.0
  %1098 = vmatprep.subr.mxu0 0.0
  %1099 = vmatpush1.msra.mxu0 0.0
  %1100 = vmatprep.subr.mxu0 0.0
  %1101 = vmatpush1.msra.mxu0 0.0
  %1102 = vmatprep.subr.mxu0 0.0
  %1103 = vmatpush1.msra.mxu0 0.0
  %1104 = vmatprep.subr.mxu0 0.0
  %1105 = vmatpush1.msra.mxu0 0.0
  %1106 = vmatprep.subr.mxu0 0.0
  %1107 = vmatpush1.msra.mxu0 0.0
  %1108 = vmatprep.subr.mxu0 0.0
  %1109 = vmatpush1.msra.mxu0 0.0
  %1110 = vmatprep.subr.mxu0 0.0
  %1111 = vmatpush1.msra.mxu0 0.0
  %1112 = vmatprep.subr.mxu0 0.0
  %1113 = vmatpush1.msra.mxu0 0.0
  %1114 = vmatprep.subr.mxu0 0.0
  %1115 = vmatpush1.msra.mxu0 0.0
  %1116 = vmatprep.subr.mxu0 0.0
  %1117 = vmatpush1.msra.mxu0 0.0
  %1118 = vmatprep.subr.mxu0 0.0
  %1119 = vmatpush1.msra.mxu0 0.0
  %1120 = vmatprep.subr.mxu0 0.0
  %1121 = vmatpush1.msra.mxu0 0.0
  %1122 = vmatprep.subr.mxu0 0.0
  %1123 = vmatpush1.msra.mxu0 0.0
  %1124 = vmatprep.subr.mxu0 0.0
  %1125 = vmatpush1.msra.mxu0 0.0
  %1126 = vmatprep.subr.mxu0 0.0
  %1127 = vmatpush1.msra.mxu0 0.0
  %1128 = vmatprep.mubr.f32.mxu0 0.0
  %1129 = vmatmul.mubr.f32.gmra.mrb[0].mxu0 %v1062
  %v1130 = vpop.f32.mrb[0].mxu0
  %v1131 = vadd.f32 0.0, %v1130
  %v1132 = vpop.f32.mrb[0].mxu0
  %1133 = vdwg.mxu0
  %1134 = vrot.lane.b32.xlu0 %v131, 104
  %v1135 = vpop.permute.xlu0 %1134
  %1136 = vrot.lane.b32.xlu0 %v131, 72
  %v1137 = vpop.permute.xlu0 %1136
  %v1138 = vsel %vm142, %v1135, 0
  %v1140 = vsel %vm142, %v1137, 0
  %1142 = vmatprep.subr.mxu0 0.0
  %1143 = vmatpush1.xpose.msra.mxu0 %v1140
  %1144 = vmatprep.subr.mxu0 0.0
  %1145 = vmatpush1.xpose.msra.mxu0 0.0
  %1146 = vmatprep.subr.mxu0 0.0
  %1147 = vmatpush1.xpose.msra.mxu0 0.0
  %1148 = vmatprep.subr.mxu0 0.0
  %1149 = vmatpush1.xpose.msra.mxu0 0.0
  %1150 = vmatprep.subr.mxu0 0.0
  %1151 = vmatpush1.xpose.msra.mxu0 0.0
  %1152 = vmatprep.subr.mxu0 0.0
  %1153 = vmatpush1.xpose.msra.mxu0 0.0
  %1154 = vmatprep.subr.mxu0 0.0
  %1155 = vmatpush1.xpose.msra.mxu0 0.0
  %1156 = vmatprep.subr.mxu0 0.0
  %1157 = vmatpush1.xpose.msra.mxu0 0.0
  %1158 = vmatprep.subr.mxu0 0.0
  %1159 = vmatpush1.xpose.msra.mxu0 0.0
  %1160 = vmatprep.subr.mxu0 0.0
  %1161 = vmatpush1.xpose.msra.mxu0 0.0
  %1162 = vmatprep.subr.mxu0 0.0
  %1163 = vmatpush1.xpose.msra.mxu0 0.0
  %1164 = vmatprep.subr.mxu0 0.0
  %1165 = vmatpush1.xpose.msra.mxu0 0.0
  %1166 = vmatprep.subr.mxu0 0.0
  %1167 = vmatpush1.xpose.msra.mxu0 0.0
  %1168 = vmatprep.subr.mxu0 0.0
  %1169 = vmatpush1.xpose.msra.mxu0 0.0
  %1170 = vmatprep.subr.mxu0 0.0
  %1171 = vmatpush1.xpose.msra.mxu0 0.0
  %1172 = vmatprep.subr.mxu0 0.0
  %1173 = vmatpush1.xpose.msra.mxu0 0.0
  %1174 = vmatprep.subr.mxu0 0.0
  %1175 = vmatpush1.xpose.msra.mxu0 0.0
  %1176 = vmatprep.subr.mxu0 0.0
  %1177 = vmatpush1.xpose.msra.mxu0 0.0
  %1178 = vmatprep.subr.mxu0 0.0
  %1179 = vmatpush1.xpose.msra.mxu0 0.0
  %1180 = vmatprep.subr.mxu0 0.0
  %1181 = vmatpush1.xpose.msra.mxu0 0.0
  %1182 = vmatprep.subr.mxu0 0.0
  %1183 = vmatpush1.xpose.msra.mxu0 0.0
  %1184 = vmatprep.subr.mxu0 0.0
  %1185 = vmatpush1.xpose.msra.mxu0 0.0
  %1186 = vmatprep.subr.mxu0 0.0
  %1187 = vmatpush1.xpose.msra.mxu0 0.0
  %1188 = vmatprep.subr.mxu0 0.0
  %1189 = vmatpush1.xpose.msra.mxu0 0.0
  %1190 = vmatprep.subr.mxu0 0.0
  %1191 = vmatpush1.xpose.msra.mxu0 0.0
  %1192 = vmatprep.subr.mxu0 0.0
  %1193 = vmatpush1.xpose.msra.mxu0 0.0
  %1194 = vmatprep.subr.mxu0 0.0
  %1195 = vmatpush1.xpose.msra.mxu0 0.0
  %1196 = vmatprep.subr.mxu0 0.0
  %1197 = vmatpush1.xpose.msra.mxu0 0.0
  %1198 = vmatprep.subr.mxu0 0.0
  %1199 = vmatpush1.xpose.msra.mxu0 0.0
  %1200 = vmatprep.subr.mxu0 0.0
  %1201 = vmatpush1.xpose.msra.mxu0 0.0
  %1202 = vmatprep.subr.mxu0 0.0
  %1203 = vmatpush1.xpose.msra.mxu0 0.0
  %1204 = vmatprep.subr.mxu0 0.0
  %1205 = vmatpush1.xpose.msra.mxu0 0.0
  %1206 = vmatprep.mubr.f32.mxu0 0.0
  %1207 = vmatmul.mubr.f32.gmra.mrb[0].mxu0 %v1138
  %v1208 = vpop.f32.mrb[0].mxu0
  %v1209 = vadd.f32 0.0, %v1208
  %v1210 = vpop.f32.mrb[0].mxu0
  %1211 = vdwg.mxu0
  %1212 = vrot.lane.b32.xlu0 %v136, 104
  %v1213 = vpop.permute.xlu0 %1212
  %1214 = vrot.lane.b32.xlu0 %v136, 72
  %v1215 = vpop.permute.xlu0 %1214
  %v1216 = vsel %vm142, %v1213, 0
  %v1218 = vsel %vm142, %v1215, 0
  %1220 = vmatprep.subr.mxu0 0.0
  %1221 = vmatpush1.xpose.msra.mxu0 %v1218
  %1222 = vmatprep.subr.mxu0 0.0
  %1223 = vmatpush1.xpose.msra.mxu0 0.0
  %1224 = vmatprep.subr.mxu0 0.0
  %1225 = vmatpush1.xpose.msra.mxu0 0.0
  %1226 = vmatprep.subr.mxu0 0.0
  %1227 = vmatpush1.xpose.msra.mxu0 0.0
  %1228 = vmatprep.subr.mxu0 0.0
  %1229 = vmatpush1.xpose.msra.mxu0 0.0
  %1230 = vmatprep.subr.mxu0 0.0
  %1231 = vmatpush1.xpose.msra.mxu0 0.0
  %1232 = vmatprep.subr.mxu0 0.0
  %1233 = vmatpush1.xpose.msra.mxu0 0.0
  %1234 = vmatprep.subr.mxu0 0.0
  %1235 = vmatpush1.xpose.msra.mxu0 0.0
  %1236 = vmatprep.subr.mxu0 0.0
  %1237 = vmatpush1.xpose.msra.mxu0 0.0
  %1238 = vmatprep.subr.mxu0 0.0
  %1239 = vmatpush1.xpose.msra.mxu0 0.0
  %1240 = vmatprep.subr.mxu0 0.0
  %1241 = vmatpush1.xpose.msra.mxu0 0.0
  %1242 = vmatprep.subr.mxu0 0.0
  %1243 = vmatpush1.xpose.msra.mxu0 0.0
  %1244 = vmatprep.subr.mxu0 0.0
  %1245 = vmatpush1.xpose.msra.mxu0 0.0
  %1246 = vmatprep.subr.mxu0 0.0
  %1247 = vmatpush1.xpose.msra.mxu0 0.0
  %1248 = vmatprep.subr.mxu0 0.0
  %1249 = vmatpush1.xpose.msra.mxu0 0.0
  %1250 = vmatprep.subr.mxu0 0.0
  %1251 = vmatpush1.xpose.msra.mxu0 0.0
  %1252 = vmatprep.subr.mxu0 0.0
  %1253 = vmatpush1.xpose.msra.mxu0 0.0
  %1254 = vmatprep.subr.mxu0 0.0
  %1255 = vmatpush1.xpose.msra.mxu0 0.0
  %1256 = vmatprep.subr.mxu0 0.0
  %1257 = vmatpush1.xpose.msra.mxu0 0.0
  %1258 = vmatprep.subr.mxu0 0.0
  %1259 = vmatpush1.xpose.msra.mxu0 0.0
  %1260 = vmatprep.subr.mxu0 0.0
  %1261 = vmatpush1.xpose.msra.mxu0 0.0
  %1262 = vmatprep.subr.mxu0 0.0
  %1263 = vmatpush1.xpose.msra.mxu0 0.0
  %1264 = vmatprep.subr.mxu0 0.0
  %1265 = vmatpush1.xpose.msra.mxu0 0.0
  %1266 = vmatprep.subr.mxu0 0.0
  %1267 = vmatpush1.xpose.msra.mxu0 0.0
  %1268 = vmatprep.subr.mxu0 0.0
  %1269 = vmatpush1.xpose.msra.mxu0 0.0
  %1270 = vmatprep.subr.mxu0 0.0
  %1271 = vmatpush1.xpose.msra.mxu0 0.0
  %1272 = vmatprep.subr.mxu0 0.0
  %1273 = vmatpush1.xpose.msra.mxu0 0.0
  %1274 = vmatprep.subr.mxu0 0.0
  %1275 = vmatpush1.xpose.msra.mxu0 0.0
  %1276 = vmatprep.subr.mxu0 0.0
  %1277 = vmatpush1.xpose.msra.mxu0 0.0
  %1278 = vmatprep.subr.mxu0 0.0
  %1279 = vmatpush1.xpose.msra.mxu0 0.0
  %1280 = vmatprep.subr.mxu0 0.0
  %1281 = vmatpush1.xpose.msra.mxu0 0.0
  %1282 = vmatprep.subr.mxu0 0.0
  %1283 = vmatpush1.xpose.msra.mxu0 0.0
  %1284 = vmatprep.mubr.f32.mxu0 0.0
  %1285 = vmatmul.mubr.f32.gmra.mrb[0].mxu0 %v1216
  %v1286 = vpop.f32.mrb[0].mxu0
  %v1287 = vadd.f32 0.0, %v1286
  %v1288 = vpop.f32.mrb[0].mxu0
  %1289 = vdwg.mxu0
  %v1290 = vmul.f32 %v1209, 0.35355338
  %v1291 = vmul.f32 %v1287, 0.35355338
  %v1292 = vsel %vm142, %v1290, -inf
  %1293 = vmax.xlane.f32.xlu0 %v1292
  %v1294 = vpop.xlane.xlu0 %1293
  %v1295 = vsel %vm142, %v1291, -inf
  %1296 = vmax.xlane.f32.xlu0 %v1295
  %v1297 = vpop.xlane.xlu0 %1296
  %v1298 = vsub.f32 %v1290, %v1294
  %v1299 = vsub.f32 %v1291, %v1297
  %v1300 = vmul.f32 %v1298, 1.442695
  %v1301 = vpow.pop %v1300
  %v1302 = vmul.f32 %v1299, 1.442695
  %v1303 = vpow.pop %v1302
  %v1304 = vsel %vm142, %v1301, 0.0
  %1305 = vadd.xlane.f32.xlu0 %v1304
  %v1306 = vpop.xlane.xlu0 %1305
  %v1307 = vsel %vm142, %v1303, 0.0
  %1308 = vadd.xlane.f32.xlu0 %v1307
  %v1309 = vpop.xlane.xlu0 %1308
  %v1310 = vrcp.pop %v1306
  %v1311 = vrcp.pop %v1309
  %v1312 = vmul.f32 %v1301, %v1310
  %v1313 = vmul.f32 %v1303, %v1311
  %1314 = vrot.lane.b32.xlu0 %v131, 40
  %v1315 = vpop.permute.xlu0 %1314
  %v1318 = vsel %vm142, %v1312, 0
  %1320 = vmatprep.subr.mxu0 0.0
  %1321 = vmatpush1.msra.mxu0 %v1315
  %1322 = vmatprep.subr.mxu0 0.0
  %1323 = vmatpush1.msra.mxu0 0.0
  %1324 = vmatprep.subr.mxu0 0.0
  %1325 = vmatpush1.msra.mxu0 0.0
  %1326 = vmatprep.subr.mxu0 0.0
  %1327 = vmatpush1.msra.mxu0 0.0
  %1328 = vmatprep.subr.mxu0 0.0
  %1329 = vmatpush1.msra.mxu0 0.0
  %1330 = vmatprep.subr.mxu0 0.0
  %1331 = vmatpush1.msra.mxu0 0.0
  %1332 = vmatprep.subr.mxu0 0.0
  %1333 = vmatpush1.msra.mxu0 0.0
  %1334 = vmatprep.subr.mxu0 0.0
  %1335 = vmatpush1.msra.mxu0 0.0
  %1336 = vmatprep.subr.mxu0 0.0
  %1337 = vmatpush1.msra.mxu0 0.0
  %1338 = vmatprep.subr.mxu0 0.0
  %1339 = vmatpush1.msra.mxu0 0.0
  %1340 = vmatprep.subr.mxu0 0.0
  %1341 = vmatpush1.msra.mxu0 0.0
  %1342 = vmatprep.subr.mxu0 0.0
  %1343 = vmatpush1.msra.mxu0 0.0
  %1344 = vmatprep.subr.mxu0 0.0
  %1345 = vmatpush1.msra.mxu0 0.0
  %1346 = vmatprep.subr.mxu0 0.0
  %1347 = vmatpush1.msra.mxu0 0.0
  %1348 = vmatprep.subr.mxu0 0.0
  %1349 = vmatpush1.msra.mxu0 0.0
  %1350 = vmatprep.subr.mxu0 0.0
  %1351 = vmatpush1.msra.mxu0 0.0
  %1352 = vmatprep.subr.mxu0 0.0
  %1353 = vmatpush1.msra.mxu0 0.0
  %1354 = vmatprep.subr.mxu0 0.0
  %1355 = vmatpush1.msra.mxu0 0.0
  %1356 = vmatprep.subr.mxu0 0.0
  %1357 = vmatpush1.msra.mxu0 0.0
  %1358 = vmatprep.subr.mxu0 0.0
  %1359 = vmatpush1.msra.mxu0 0.0
  %1360 = vmatprep.subr.mxu0 0.0
  %1361 = vmatpush1.msra.mxu0 0.0
  %1362 = vmatprep.subr.mxu0 0.0
  %1363 = vmatpush1.msra.mxu0 0.0
  %1364 = vmatprep.subr.mxu0 0.0
  %1365 = vmatpush1.msra.mxu0 0.0
  %1366 = vmatprep.subr.mxu0 0.0
  %1367 = vmatpush1.msra.mxu0 0.0
  %1368 = vmatprep.subr.mxu0 0.0
  %1369 = vmatpush1.msra.mxu0 0.0
  %1370 = vmatprep.subr.mxu0 0.0
  %1371 = vmatpush1.msra.mxu0 0.0
  %1372 = vmatprep.subr.mxu0 0.0
  %1373 = vmatpush1.msra.mxu0 0.0
  %1374 = vmatprep.subr.mxu0 0.0
  %1375 = vmatpush1.msra.mxu0 0.0
  %1376 = vmatprep.subr.mxu0 0.0
  %1377 = vmatpush1.msra.mxu0 0.0
  %1378 = vmatprep.subr.mxu0 0.0
  %1379 = vmatpush1.msra.mxu0 0.0
  %1380 = vmatprep.subr.mxu0 0.0
  %1381 = vmatpush1.msra.mxu0 0.0
  %1382 = vmatprep.subr.mxu0 0.0
  %1383 = vmatpush1.msra.mxu0 0.0
  %1384 = vmatprep.mubr.f32.mxu0 0.0
  %1385 = vmatmul.mubr.f32.gmra.mrb[0].mxu0 %v1318
  %v1386 = vpop.f32.mrb[0].mxu0
  %v1387 = vadd.f32 0.0, %v1386
  %v1388 = vpop.f32.mrb[0].mxu0
  %1389 = vdwg.mxu0
  %1390 = vrot.lane.b32.xlu0 %v136, 40
  %v1391 = vpop.permute.xlu0 %1390
  %v1394 = vsel %vm142, %v1313, 0
  %1396 = vmatprep.subr.mxu0 0.0
  %1397 = vmatpush1.msra.mxu0 %v1391
  %1398 = vmatprep.subr.mxu0 0.0
  %1399 = vmatpush1.msra.mxu0 0.0
  %1400 = vmatprep.subr.mxu0 0.0
  %1401 = vmatpush1.msra.mxu0 0.0
  %1402 = vmatprep.subr.mxu0 0.0
  %1403 = vmatpush1.msra.mxu0 0.0
  %1404 = vmatprep.subr.mxu0 0.0
  %1405 = vmatpush1.msra.mxu0 0.0
  %1406 = vmatprep.subr.mxu0 0.0
  %1407 = vmatpush1.msra.mxu0 0.0
  %1408 = vmatprep.subr.mxu0 0.0
  %1409 = vmatpush1.msra.mxu0 0.0
  %1410 = vmatprep.subr.mxu0 0.0
  %1411 = vmatpush1.msra.mxu0 0.0
  %1412 = vmatprep.subr.mxu0 0.0
  %1413 = vmatpush1.msra.mxu0 0.0
  %1414 = vmatprep.subr.mxu0 0.0
  %1415 = vmatpush1.msra.mxu0 0.0
  %1416 = vmatprep.subr.mxu0 0.0
  %1417 = vmatpush1.msra.mxu0 0.0
  %1418 = vmatprep.subr.mxu0 0.0
  %1419 = vmatpush1.msra.mxu0 0.0
  %1420 = vmatprep.subr.mxu0 0.0
  %1421 = vmatpush1.msra.mxu0 0.0
  %1422 = vmatprep.subr.mxu0 0.0
  %1423 = vmatpush1.msra.mxu0 0.0
  %1424 = vmatprep.subr.mxu0 0.0
  %1425 = vmatpush1.msra.mxu0 0.0
  %1426 = vmatprep.subr.mxu0 0.0
  %1427 = vmatpush1.msra.mxu0 0.0
  %1428 = vmatprep.subr.mxu0 0.0
  %1429 = vmatpush1.msra.mxu0 0.0
  %1430 = vmatprep.subr.mxu0 0.0
  %1431 = vmatpush1.msra.mxu0 0.0
  %1432 = vmatprep.subr.mxu0 0.0
  %1433 = vmatpush1.msra.mxu0 0.0
  %1434 = vmatprep.subr.mxu0 0.0
  %1435 = vmatpush1.msra.mxu0 0.0
  %1436 = vmatprep.subr.mxu0 0.0
  %1437 = vmatpush1.msra.mxu0 0.0
  %1438 = vmatprep.subr.mxu0 0.0
  %1439 = vmatpush1.msra.mxu0 0.0
  %1440 = vmatprep.subr.mxu0 0.0
  %1441 = vmatpush1.msra.mxu0 0.0
  %1442 = vmatprep.subr.mxu0 0.0
  %1443 = vmatpush1.msra.mxu0 0.0
  %1444 = vmatprep.subr.mxu0 0.0
  %1445 = vmatpush1.msra.mxu0 0.0
  %1446 = vmatprep.subr.mxu0 0.0
  %1447 = vmatpush1.msra.mxu0 0.0
  %1448 = vmatprep.subr.mxu0 0.0
  %1449 = vmatpush1.msra.mxu0 0.0
  %1450 = vmatprep.subr.mxu0 0.0
  %1451 = vmatpush1.msra.mxu0 0.0
  %1452 = vmatprep.subr.mxu0 0.0
  %1453 = vmatpush1.msra.mxu0 0.0
  %1454 = vmatprep.subr.mxu0 0.0
  %1455 = vmatpush1.msra.mxu0 0.0
  %1456 = vmatprep.subr.mxu0 0.0
  %1457 = vmatpush1.msra.mxu0 0.0
  %1458 = vmatprep.subr.mxu0 0.0
  %1459 = vmatpush1.msra.mxu0 0.0
  %1460 = vmatprep.mubr.f32.mxu0 0.0
  %1461 = vmatmul.mubr.f32.gmra.mrb[0].mxu0 %v1394
  %v1462 = vpop.f32.mrb[0].mxu0
  %v1463 = vadd.f32 0.0, %v1462
  %v1464 = vpop.f32.mrb[0].mxu0
  %1465 = vdwg.mxu0
  %1468 = vrot.lane.b32.xlu0 %v723, 8
  %v1469 = vpop.permute.xlu0 %1468
  %1470 = vrot.lane.b32.xlu0 %v799, 8
  %v1471 = vpop.permute.xlu0 %1470
  %1476 = vrot.lane.b32.xlu0 %v1055, 16
  %v1477 = vpop.permute.xlu0 %1476
  %1478 = vrot.lane.b32.xlu0 %v1131, 16
  %v1479 = vpop.permute.xlu0 %1478
  %1484 = vrot.lane.b32.xlu0 %v1387, 24
  %v1485 = vpop.permute.xlu0 %1484
  %1486 = vrot.lane.b32.xlu0 %v1463, 24
  %v1487 = vpop.permute.xlu0 %1486
  %v1490 = vsel %vm142, %v391, %v1469
  %v1491 = vsel %vm142, %v467, %v1471
  %vm1492 = vcmask 130048
  %v1493 = vsel %vm1492, %v1490, %v1477
  %v1494 = vsel %vm1492, %v1491, %v1479
  %vm1495 = vcmask 195584
  %v1496 = vsel %vm1495, %v1493, %v1485
  %v1497 = vsel %vm1495, %v1494, %v1487
  %v1498 = vld [vmem:[%s3] sm:$0xff]
  %v1499 = vld [vmem:[%s3 + $0x8] sm:$0xff]
  %v1500 = vld [vmem:[%s3 + $0x10] sm:$0xff]
  %v1501 = vld [vmem:[%s3 + $0x18] sm:$0xff]
  %v1502 = vld [vmem:[%s4] sm:$0x1]
  %v1504 = vlaneseq
  %v1505 = vshrl.u32 %v1504, 7
  %v1506 = vsub.s32 0, %v1505
  %v1507 = vrot.slane %v1502, %v1506
  %v1510 = vsel %vm57, %v1496, 0
  %v1513 = vsel %vm57, %v1497, 0
  %1515 = vmatprep.subr.mxu0 0.0
  %1516 = vmatpush1.msra.mxu0 %v1498
  %1517 = vmatprep.subr.mxu0 0.0
  %1518 = vmatpush1.msra.mxu0 %v1499
  %1519 = vmatprep.subr.mxu0 0.0
  %1520 = vmatpush1.msra.mxu0 %v1500
  %1521 = vmatprep.subr.mxu0 0.0
  %1522 = vmatpush1.msra.mxu0 %v1501
  %1523 = vmatprep.subr.mxu0 0.0
  %1524 = vmatpush1.msra.mxu0 0.0
  %1525 = vmatprep.subr.mxu0 0.0
  %1526 = vmatpush1.msra.mxu0 0.0
  %1527 = vmatprep.subr.mxu0 0.0
  %1528 = vmatpush1.msra.mxu0 0.0
  %1529 = vmatprep.subr.mxu0 0.0
  %1530 = vmatpush1.msra.mxu0 0.0
  %1531 = vmatprep.subr.mxu0 0.0
  %1532 = vmatpush1.msra.mxu0 0.0
  %1533 = vmatprep.subr.mxu0 0.0
  %1534 = vmatpush1.msra.mxu0 0.0
  %1535 = vmatprep.subr.mxu0 0.0
  %1536 = vmatpush1.msra.mxu0 0.0
  %1537 = vmatprep.subr.mxu0 0.0
  %1538 = vmatpush1.msra.mxu0 0.0
  %1539 = vmatprep.subr.mxu0 0.0
  %1540 = vmatpush1.msra.mxu0 0.0
  %1541 = vmatprep.subr.mxu0 0.0
  %1542 = vmatpush1.msra.mxu0 0.0
  %1543 = vmatprep.subr.mxu0 0.0
  %1544 = vmatpush1.msra.mxu0 0.0
  %1545 = vmatprep.subr.mxu0 0.0
  %1546 = vmatpush1.msra.mxu0 0.0
  %1547 = vmatprep.subr.mxu0 0.0
  %1548 = vmatpush1.msra.mxu0 0.0
  %1549 = vmatprep.subr.mxu0 0.0
  %1550 = vmatpush1.msra.mxu0 0.0
  %1551 = vmatprep.subr.mxu0 0.0
  %1552 = vmatpush1.msra.mxu0 0.0
  %1553 = vmatprep.subr.mxu0 0.0
  %1554 = vmatpush1.msra.mxu0 0.0
  %1555 = vmatprep.subr.mxu0 0.0
  %1556 = vmatpush1.msra.mxu0 0.0
  %1557 = vmatprep.subr.mxu0 0.0
  %1558 = vmatpush1.msra.mxu0 0.0
  %1559 = vmatprep.subr.mxu0 0.0
  %1560 = vmatpush1.msra.mxu0 0.0
  %1561 = vmatprep.subr.mxu0 0.0
  %1562 = vmatpush1.msra.mxu0 0.0
  %1563 = vmatprep.subr.mxu0 0.0
  %1564 = vmatpush1.msra.mxu0 0.0
  %1565 = vmatprep.subr.mxu0 0.0
  %1566 = vmatpush1.msra.mxu0 0.0
  %1567 = vmatprep.subr.mxu0 0.0
  %1568 = vmatpush1.msra.mxu0 0.0
  %1569 = vmatprep.subr.mxu0 0.0
  %1570 = vmatpush1.msra.mxu0 0.0
  %1571 = vmatprep.subr.mxu0 0.0
  %1572 = vmatpush1.msra.mxu0 0.0
  %1573 = vmatprep.subr.mxu0 0.0
  %1574 = vmatpush1.msra.mxu0 0.0
  %1575 = vmatprep.subr.mxu0 0.0
  %1576 = vmatpush1.msra.mxu0 0.0
  %1577 = vmatprep.subr.mxu0 0.0
  %1578 = vmatpush1.msra.mxu0 0.0
  %1579 = vmatprep.mubr.f32.mxu0 0.0
  %1580 = vmatmul.mubr.f32.gmra.mrb[0].mxu0 %v1510
  %v1581 = vpop.f32.mrb[0].mxu0
  %v1582 = vadd.f32 %v1507, %v1581
  %v1583 = vpop.f32.mrb[0].mxu0
  %1584 = vmatprep.mubr.f32.mxu0 0.0
  %1585 = vmatmul.mubr.f32.gmra.mrb[0].mxu0 %v1513
  %v1586 = vpop.f32.mrb[0].mxu0
  %v1587 = vadd.f32 %v1507, %v1586
  %v1588 = vpop.f32.mrb[0].mxu0
  %1589 = vdwg.mxu0
  %v1590 = vadd.f32 %v1582, %v44
  %v1591 = vadd.f32 %v1587, %v45
  %v1592 = vld [vmem:[%s5] sm:$0x1]
  %v1593 = vld [vmem:[%s6] sm:$0x1]
  %v1594 = vsel %vm57, %v1590, 0.0
  %1595 = vadd.xlane.f32.xlu0 %v1594
  %v1596 = vpop.xlane.xlu0 %1595
  %v1597 = vsel %vm57, %v1591, 0.0
  %1598 = vadd.xlane.f32.xlu0 %v1597
  %v1599 = vpop.xlane.xlu0 %1598
  %v1600 = vrcp.pop 32.0
  %v1601 = vmul.f32 %v1596, %v1600
  %v1602 = vmul.f32 %v1599, %v1600
  %v1603 = vsub.f32 %v1590, %v1601
  %v1604 = vsub.f32 %v1591, %v1602
  %v1605 = vmul.f32 %v1603, %v1603
  %v1606 = vmul.f32 %v1604, %v1604
  %v1607 = vsel %vm57, %v1605, 0.0
  %1608 = vadd.xlane.f32.xlu0 %v1607
  %v1609 = vpop.xlane.xlu0 %1608
  %v1610 = vsel %vm57, %v1606, 0.0
  %1611 = vadd.xlane.f32.xlu0 %v1610
  %v1612 = vpop.xlane.xlu0 %1611
  %v1613 = vmul.f32 %v1609, %v1600
  %v1614 = vmul.f32 %v1612, %v1600
  %v1615 = vadd.f32 %v1613, 1e-05
  %v1616 = vadd.f32 %v1614, 1e-05
  %v1617 = vrsqrt.pop %v1615
  %v1618 = vrsqrt.pop %v1616
  %v1619 = vmul.f32 %v1603, %v1617
  %v1620 = vmul.f32 %v1604, %v1618
  %v1622 = vlaneseq
  %v1623 = vshrl.u32 %v1622, 7
  %v1624 = vsub.s32 0, %v1623
  %v1625 = vrot.slane %v1592, %v1624
  %v1627 = vmul.f32 %v1619, %v1625
  %v1628 = vmul.f32 %v1620, %v1625
  %v1630 = vlaneseq
  %v1631 = vshrl.u32 %v1630, 7
  %v1632 = vsub.s32 0, %v1631
  %v1633 = vrot.slane %v1593, %v1632
  %v1635 = vadd.f32 %v1627, %v1633
  %v1636 = vadd.f32 %v1628, %v1633
  %v1637 = vld [vmem:[%s7] sm:$0xff]
  %v1638 = vld [vmem:[%s7 + $0x8] sm:$0xff]
  %v1639 = vld [vmem:[%s7 + $0x10] sm:$0xff]
  %v1640 = vld [vmem:[%s7 + $0x18] sm:$0xff]
  %v1641 = vld [vmem:[%s8] sm:$0x1]
  %v1643 = vlaneseq
  %v1644 = vshrl.u32 %v1643, 7
  %v1645 = vsub.s32 0, %v1644
  %v1646 = vrot.slane %v1641, %v1645
  %v1649 = vsel %vm57, %v1635, 0
  %v1652 = vsel %vm57, %v1636, 0
  %1654 = vmatprep.subr.mxu0 0.0
  %1655 = vmatpush1.msra.mxu0 %v1637
  %1656 = vmatprep.subr.mxu0 0.0
  %1657 = vmatpush1.msra.mxu0 %v1638
  %1658 = vmatprep.subr.mxu0 0.0
  %1659 = vmatpush1.msra.mxu0 %v1639
  %1660 = vmatprep.subr.mxu0 0.0
  %1661 = vmatpush1.msra.mxu0 %v1640
  %1662 = vmatprep.subr.mxu0 0.0
  %1663 = vmatpush1.msra.mxu0 0.0
  %1664 = vmatprep.subr.mxu0 0.0
  %1665 = vmatpush1.msra.mxu0 0.0
  %1666 = vmatprep.subr.mxu0 0.0
  %1667 = vmatpush1.msra.mxu0 0.0
  %1668 = vmatprep.subr.mxu0 0.0
  %1669 = vmatpush1.msra.mxu0 0.0
  %1670 = vmatprep.subr.mxu0 0.0
  %1671 = vmatpush1.msra.mxu0 0.0
  %1672 = vmatprep.subr.mxu0 0.0
  %1673 = vmatpush1.msra.mxu0 0.0
  %1674 = vmatprep.subr.mxu0 0.0
  %1675 = vmatpush1.msra.mxu0 0.0
  %1676 = vmatprep.subr.mxu0 0.0
  %1677 = vmatpush1.msra.mxu0 0.0
  %1678 = vmatprep.subr.mxu0 0.0
  %1679 = vmatpush1.msra.mxu0 0.0
  %1680 = vmatprep.subr.mxu0 0.0
  %1681 = vmatpush1.msra.mxu0 0.0
  %1682 = vmatprep.subr.mxu0 0.0
  %1683 = vmatpush1.msra.mxu0 0.0
  %1684 = vmatprep.subr.mxu0 0.0
  %1685 = vmatpush1.msra.mxu0 0.0
  %1686 = vmatprep.subr.mxu0 0.0
  %1687 = vmatpush1.msra.mxu0 0.0
  %1688 = vmatprep.subr.mxu0 0.0
  %1689 = vmatpush1.msra.mxu0 0.0
  %1690 = vmatprep.subr.mxu0 0.0
  %1691 = vmatpush1.msra.mxu0 0.0
  %1692 = vmatprep.subr.mxu0 0.0
  %1693 = vmatpush1.msra.mxu0 0.0
  %1694 = vmatprep.subr.mxu0 0.0
  %1695 = vmatpush1.msra.mxu0 0.0
  %1696 = vmatprep.subr.mxu0 0.0
  %1697 = vmatpush1.msra.mxu0 0.0
  %1698 = vmatprep.subr.mxu0 0.0
  %1699 = vmatpush1.msra.mxu0 0.0
  %1700 = vmatprep.subr.mxu0 0.0
  %1701 = vmatpush1.msra.mxu0 0.0
  %1702 = vmatprep.subr.mxu0 0.0
  %1703 = vmatpush1.msra.mxu0 0.0
  %1704 = vmatprep.subr.mxu0 0.0
  %1705 = vmatpush1.msra.mxu0 0.0
  %1706 = vmatprep.subr.mxu0 0.0
  %1707 = vmatpush1.msra.mxu0 0.0
  %1708 = vmatprep.subr.mxu0 0.0
  %1709 = vmatpush1.msra.mxu0 0.0
  %1710 = vmatprep.subr.mxu0 0.0
  %1711 = vmatpush1.msra.mxu0 0.0
  %1712 = vmatprep.subr.mxu0 0.0
  %1713 = vmatpush1.msra.mxu0 0.0
  %1714 = vmatprep.subr.mxu0 0.0
  %1715 = vmatpush1.msra.mxu0 0.0
  %1716 = vmatprep.subr.mxu0 0.0
  %1717 = vmatpush1.msra.mxu0 0.0
  %1718 = vmatprep.mubr.f32.mxu0 0.0
  %1719 = vmatmul.mubr.f32.gmra.mrb[0].mxu0 %v1649
  %v1720 = vpop.f32.mrb[0].mxu0
  %v1721 = vadd.f32 %v1646, %v1720
  %v1722 = vpop.f32.mrb[0].mxu0
  %1723 = vmatprep.mubr.f32.mxu0 0.0
  %1724 = vmatmul.mubr.f32.gmra.mrb[0].mxu0 %v1652
  %v1725 = vpop.f32.mrb[0].mxu0
  %v1726 = vadd.f32 %v1646, %v1725
  %v1727 = vpop.f32.mrb[0].mxu0
  %1728 = vdwg.mxu0
  %v1729 = vmax.f32 %v1721, 0.0
  %v1730 = vmax.f32 %v1726, 0.0
  %v1731 = vld [vmem:[%s9] sm:$0xff]
  %v1732 = vld [vmem:[%s9 + $0x8] sm:$0xff]
  %v1733 = vld [vmem:[%s9 + $0x10] sm:$0xff]
  %v1734 = vld [vmem:[%s9 + $0x18] sm:$0xff]
  %v1735 = vld [vmem:[%s9 + $0x20] sm:$0xff]
  %v1736 = vld [vmem:[%s9 + $0x28] sm:$0xff]
  %v1737 = vld [vmem:[%s9 + $0x30] sm:$0xff]
  %v1738 = vld [vmem:[%s9 + $0x38] sm:$0xff]
  %v1739 = vld [vmem:[%s10] sm:$0x1]
  %v1741 = vlaneseq
  %v1742 = vshrl.u32 %v1741, 7
  %v1743 = vsub.s32 0, %v1742
  %v1744 = vrot.slane %v1739, %v1743
  %vm1746 = vcmask 523264
  %v1748 = vsel %vm1746, %v1729, 0
  %v1751 = vsel %vm1746, %v1730, 0
  %1753 = vmatprep.subr.mxu0 0.0
  %1754 = vmatpush1.msra.mxu0 %v1731
  %1755 = vmatprep.subr.mxu0 0.0
  %1756 = vmatpush1.msra.mxu0 %v1732
  %1757 = vmatprep.subr.mxu0 0.0
  %1758 = vmatpush1.msra.mxu0 %v1733
  %1759 = vmatprep.subr.mxu0 0.0
  %1760 = vmatpush1.msra.mxu0 %v1734
  %1761 = vmatprep.subr.mxu0 0.0
  %1762 = vmatpush1.msra.mxu0 %v1735
  %1763 = vmatprep.subr.mxu0 0.0
  %1764 = vmatpush1.msra.mxu0 %v1736
  %1765 = vmatprep.subr.mxu0 0.0
  %1766 = vmatpush1.msra.mxu0 %v1737
  %1767 = vmatprep.subr.mxu0 0.0
  %1768 = vmatpush1.msra.mxu0 %v1738
  %1769 = vmatprep.subr.mxu0 0.0
  %1770 = vmatpush1.msra.mxu0 0.0
  %1771 = vmatprep.subr.mxu0 0.0
  %1772 = vmatpush1.msra.mxu0 0.0
  %1773 = vmatprep.subr.mxu0 0.0
  %1774 = vmatpush1.msra.mxu0 0.0
  %1775 = vmatprep.subr.mxu0 0.0
  %1776 = vmatpush1.msra.mxu0 0.0
  %1777 = vmatprep.subr.mxu0 0.0
  %1778 = vmatpush1.msra.mxu0 0.0
  %1779 = vmatprep.subr.mxu0 0.0
  %1780 = vmatpush1.msra.mxu0 0.0
  %1781 = vmatprep.subr.mxu0 0.0
  %1782 = vmatpush1.msra.mxu0 0.0
  %1783 = vmatprep.subr.mxu0 0.0
  %1784 = vmatpush1.msra.mxu0 0.0
  %1785 = vmatprep.subr.mxu0 0.0
  %1786 = vmatpush1.msra.mxu0 0.0
  %1787 = vmatprep.subr.mxu0 0.0
  %1788 = vmatpush1.msra.mxu0 0.0
  %1789 = vmatprep.subr.mxu0 0.0
  %1790 = vmatpush1.msra.mxu0 0.0
  %1791 = vmatprep.subr.mxu0 0.0
  %1792 = vmatpush1.msra.mxu0 0.0
  %1793 = vmatprep.subr.mxu0 0.0
  %1794 = vmatpush1.msra.mxu0 0.0
  %1795 = vmatprep.subr.mxu0 0.0
  %1796 = vmatpush1.msra.mxu0 0.0
  %1797 = vmatprep.subr.mxu0 0.0
  %1798 = vmatpush1.msra.mxu0 0.0
  %1799 = vmatprep.subr.mxu0 0.0
  %1800 = vmatpush1.msra.mxu0 0.0
  %1801 = vmatprep.subr.mxu0 0.0
  %1802 = vmatpush1.msra.mxu0 0.0
  %1803 = vmatprep.subr.mxu0 0.0
  %1804 = vmatpush1.msra.mxu0 0.0
  %1805 = vmatprep.subr.mxu0 0.0
  %1806 = vmatpush1.msra.mxu0 0.0
  %1807 = vmatprep.subr.mxu0 0.0
  %1808 = vmatpush1.msra.mxu0 0.0
  %1809 = vmatprep.subr.mxu0 0.0
  %1810 = vmatpush1.msra.mxu0 0.0
  %1811 = vmatprep.subr.mxu0 0.0
  %1812 = vmatpush1.msra.mxu0 0.0
  %1813 = vmatprep.subr.mxu0 0.0
  %1814 = vmatpush1.msra.mxu0 0.0
  %1815 = vmatprep.subr.mxu0 0.0
  %1816 = vmatpush1.msra.mxu0 0.0
  %1817 = vmatprep.mubr.f32.mxu0 0.0
  %1818 = vmatmul.mubr.f32.gmra.mrb[0].mxu0 %v1748
  %v1819 = vpop.f32.mrb[0].mxu0
  %v1820 = vadd.f32 %v1744, %v1819
  %v1821 = vpop.f32.mrb[0].mxu0
  %1822 = vmatprep.mubr.f32.mxu0 0.0
  %1823 = vmatmul.mubr.f32.gmra.mrb[0].mxu0 %v1751
  %v1824 = vpop.f32.mrb[0].mxu0
  %v1825 = vadd.f32 %v1744, %v1824
  %v1826 = vpop.f32.mrb[0].mxu0
  %1827 = vdwg.mxu0
  %v1828 = vadd.f32 %v1820, %v1635
  %v1829 = vadd.f32 %v1825, %v1636
  %v1830 = vld [vmem:[%s11] sm:$0x1]
  %v1831 = vld [vmem:[%s12] sm:$0x1]
  %v1832 = vsel %vm57, %v1828, 0.0
  %1833 = vadd.xlane.f32.xlu0 %v1832
  %v1834 = vpop.xlane.xlu0 %1833
  %v1835 = vsel %vm57, %v1829, 0.0
  %1836 = vadd.xlane.f32.xlu0 %v1835
  %v1837 = vpop.xlane.xlu0 %1836
  %v1838 = vmul.f32 %v1834, %v1600
  %v1839 = vmul.f32 %v1837, %v1600
  %v1840 = vsub.f32 %v1828, %v1838
  %v1841 = vsub.f32 %v1829, %v1839
  %v1842 = vmul.f32 %v1840, %v1840
  %v1843 = vmul.f32 %v1841, %v1841
  %v1844 = vsel %vm57, %v1842, 0.0
  %1845 = vadd.xlane.f32.xlu0 %v1844
  %v1846 = vpop.xlane.xlu0 %1845
  %v1847 = vsel %vm57, %v1843, 0.0
  %1848 = vadd.xlane.f32.xlu0 %v1847
  %v1849 = vpop.xlane.xlu0 %1848
  %v1850 = vmul.f32 %v1846, %v1600
  %v1851 = vmul.f32 %v1849, %v1600
  %v1852 = vadd.f32 %v1850, 1e-05
  %v1853 = vadd.f32 %v1851, 1e-05
  %v1854 = vrsqrt.pop %v1852
  %v1855 = vrsqrt.pop %v1853
  %v1856 = vmul.f32 %v1840, %v1854
  %v1857 = vmul.f32 %v1841, %v1855
  %v1859 = vlaneseq
  %v1860 = vshrl.u32 %v1859, 7
  %v1861 = vsub.s32 0, %v1860
  %v1862 = vrot.slane %v1830, %v1861
  %v1864 = vmul.f32 %v1856, %v1862
  %v1865 = vmul.f32 %v1857, %v1862
  %v1867 = vlaneseq
  %v1868 = vshrl.u32 %v1867, 7
  %v1869 = vsub.s32 0, %v1868
  %v1870 = vrot.slane %v1831, %v1869
  %v1872 = vadd.f32 %v1864, %v1870
  %v1873 = vadd.f32 %v1865, %v1870
  %1874 = vst.msk [vmem:[%s13] sm:$0xff] %vm57, %v1872
  %1875 = vst.msk [vmem:[%s13 + $0x8] sm:$0xff] %vm57, %v1873
  // Predicated region
  $region54: #{seq2seq_transformer_forward.24} parent=0 // pred_check
    _
  $region55: #{seq2seq_transformer_forward.24} parent=0 // pred_check_branch
    %1877 = sbr.rel (0) target = $region57
  $region56: #{seq2seq_transformer_forward.24} parent=0 // pred_region
    _
  $region57: #{seq2seq_transformer_forward.24} parent=0 // pred_fallthru
    _
  // Predicated region
  $region58: #{seq2seq_transformer_forward.24} parent=0 // pred_check
    _
  $region59: #{seq2seq_transformer_forward.24} parent=0 // pred_check_branch
    %1879 = sbr.rel (0) target = $region61
  $region60: #{seq2seq_transformer_forward.24} parent=0 // pred_region
    _
  $region61: #{seq2seq_transformer_forward.24} parent=0 // pred_fallthru
    _

// kernel: seq2seq_transformer_forward.27
$region0: #{seq2seq_transformer_forward.27}
  #allocation0 [shape = 'u32[]', space=smem, size = 0x4, offset = 0x4, fixed_abs, tag = 'smem constant byte address 0x4 - core index']
  #allocation1 [shape = 'u32[144,128]{1,0:T(1,128)}', space=vmem, size = 0x12000, scoped, tag = 'internal scratch']
  %s0 = inlined_call_operand.vmem [shape: f32[2,8,32], index: 0, kind: input, shape index: {}]
  %s1 = inlined_call_operand.vmem [shape: f32[2,8,32], index: 1, kind: input, shape index: {}]
  %s2 = inlined_call_operand.vmem [shape: f32[1,8], index: 2, kind: input, shape index: {}]
  %s3 = inlined_call_operand.vmem [shape: f32[32,96], index: 3, kind: input, shape index: {}]
  %s4 = inlined_call_operand.vmem [shape: f32[1,96], index: 4, kind: input, shape index: {}]
  %s5 = inlined_call_operand.vmem [shape: f32[32,32], index: 5, kind: input, shape index: {}]
  %s6 = inlined_call_operand.vmem [shape: f32[1,32], index: 6, kind: input, shape index: {}]
  %s7 = inlined_call_operand.vmem [shape: f32[1,32], index: 7, kind: input, shape index: {}]
  %s8 = inlined_call_operand.vmem [shape: f32[1,32], index: 8, kind: input, shape index: {}]
  %s9 = inlined_call_operand.vmem [shape: f32[32,96], index: 9, kind: input, shape index: {}]
  %s10 = inlined_call_operand.vmem [shape: f32[1,96], index: 10, kind: input, shape index: {}]
  %s11 = inlined_call_operand.vmem [shape: f32[32,32], index: 11, kind: input, shape index: {}]
  %s12 = inlined_call_operand.vmem [shape: f32[1,32], index: 12, kind: input, shape index: {}]
  %s13 = inlined_call_operand.vmem [shape: f32[1,32], index: 13, kind: input, shape index: {}]
  %s14 = inlined_call_operand.vmem [shape: f32[1,32], index: 14, kind: input, shape index: {}]
  %s15 = inlined_call_operand.vmem [shape: f32[32,64], index: 15, kind: input, shape index: {}]
  %s16 = inlined_call_operand.vmem [shape: f32[1,64], index: 16, kind: input, shape index: {}]
  %s17 = inlined_call_operand.vmem [shape: f32[64,32], index: 17, kind: input, shape index: {}]
  %s18 = inlined_call_operand.vmem [shape: f32[1,32], index: 18, kind: input, shape index: {}]
  %s19 = inlined_call_operand.vmem [shape: f32[1,32], index: 19, kind: input, shape index: {}]
  %s20 = inlined_call_operand.vmem [shape: f32[1,32], index: 20, kind: input, shape index: {}]
  %s21 = inlined_call_operand.vmem [shape: f32[2,8,32], index: 21, kind: output, shape index: {}]
  %s22 = sld [smem:[#allocation0]]
  $region94: #{seq2seq_transformer_forward.27} parent=0
    _
  %s24 = ssub.s32 1, %s22
  %s25 = scalar_select 0, %s24, %s22
  // Predicated region
  $region2: #{seq2seq_transformer_forward.27} parent=0 // pred_check
    _
  $region3: #{seq2seq_transformer_forward.27} parent=0 // pred_check_branch
    %27 = sbr.rel (0) target = $region5
  $region4: #{seq2seq_transformer_forward.27} parent=0 // pred_region
    _
  $region5: #{seq2seq_transformer_forward.27} parent=0 // pred_fallthru
    _
  // Predicated region
  $region6: #{seq2seq_transformer_forward.27} parent=0 // pred_check
    _
  $region7: #{seq2seq_transformer_forward.27} parent=0 // pred_check_branch
    %29 = sbr.rel (0) target = $region9
  $region8: #{seq2seq_transformer_forward.27} parent=0 // pred_region
    _
  $region9: #{seq2seq_transformer_forward.27} parent=0 // pred_fallthru
    _
  // Predicated region
  $region10: #{seq2seq_transformer_forward.27} parent=0 // pred_check
    _
  $region11: #{seq2seq_transformer_forward.27} parent=0 // pred_check_branch
    %31 = sbr.rel (0) target = $region13
  $region12: #{seq2seq_transformer_forward.27} parent=0 // pred_region
    _
  $region13: #{seq2seq_transformer_forward.27} parent=0 // pred_fallthru
    _
  // Predicated region
  $region14: #{seq2seq_transformer_forward.27} parent=0 // pred_check
    _
  $region15: #{seq2seq_transformer_forward.27} parent=0 // pred_check_branch
    %33 = sbr.rel (0) target = $region17
  $region16: #{seq2seq_transformer_forward.27} parent=0 // pred_region
    _
  $region17: #{seq2seq_transformer_forward.27} parent=0 // pred_fallthru
    _
  // Predicated region
  $region18: #{seq2seq_transformer_forward.27} parent=0 // pred_check
    _
  $region19: #{seq2seq_transformer_forward.27} parent=0 // pred_check_branch
    %35 = sbr.rel (0) target = $region21
  $region20: #{seq2seq_transformer_forward.27} parent=0 // pred_region
    _
  $region21: #{seq2seq_transformer_forward.27} parent=0 // pred_fallthru
    _
  // Predicated region
  $region22: #{seq2seq_transformer_forward.27} parent=0 // pred_check
    _
  $region23: #{seq2seq_transformer_forward.27} parent=0 // pred_check_branch
    %37 = sbr.rel (0) target = $region25
  $region24: #{seq2seq_transformer_forward.27} parent=0 // pred_region
    _
  $region25: #{seq2seq_transformer_forward.27} parent=0 // pred_fallthru
    _
  // Predicated region
  $region26: #{seq2seq_transformer_forward.27} parent=0 // pred_check
    _
  $region27: #{seq2seq_transformer_forward.27} parent=0 // pred_check_branch
    %39 = sbr.rel (0) target = $region29
  $region28: #{seq2seq_transformer_forward.27} parent=0 // pred_region
    _
  $region29: #{seq2seq_transformer_forward.27} parent=0 // pred_fallthru
    _
  // Predicated region
  $region30: #{seq2seq_transformer_forward.27} parent=0 // pred_check
    _
  $region31: #{seq2seq_transformer_forward.27} parent=0 // pred_check_branch
    %41 = sbr.rel (0) target = $region33
  $region32: #{seq2seq_transformer_forward.27} parent=0 // pred_region
    _
  $region33: #{seq2seq_transformer_forward.27} parent=0 // pred_fallthru
    _
  // Predicated region
  $region34: #{seq2seq_transformer_forward.27} parent=0 // pred_check
    _
  $region35: #{seq2seq_transformer_forward.27} parent=0 // pred_check_branch
    %43 = sbr.rel (0) target = $region37
  $region36: #{seq2seq_transformer_forward.27} parent=0 // pred_region
    _
  $region37: #{seq2seq_transformer_forward.27} parent=0 // pred_fallthru
    _
  // Predicated region
  $region38: #{seq2seq_transformer_forward.27} parent=0 // pred_check
    _
  $region39: #{seq2seq_transformer_forward.27} parent=0 // pred_check_branch
    %45 = sbr.rel (0) target = $region41
  $region40: #{seq2seq_transformer_forward.27} parent=0 // pred_region
    _
  $region41: #{seq2seq_transformer_forward.27} parent=0 // pred_fallthru
    _
  // Predicated region
  $region42: #{seq2seq_transformer_forward.27} parent=0 // pred_check
    _
  $region43: #{seq2seq_transformer_forward.27} parent=0 // pred_check_branch
    %47 = sbr.rel (0) target = $region45
  $region44: #{seq2seq_transformer_forward.27} parent=0 // pred_region
    _
  $region45: #{seq2seq_transformer_forward.27} parent=0 // pred_fallthru
    _
  // Predicated region
  $region46: #{seq2seq_transformer_forward.27} parent=0 // pred_check
    _
  $region47: #{seq2seq_transformer_forward.27} parent=0 // pred_check_branch
    %49 = sbr.rel (0) target = $region49
  $region48: #{seq2seq_transformer_forward.27} parent=0 // pred_region
    _
  $region49: #{seq2seq_transformer_forward.27} parent=0 // pred_fallthru
    _
  // Predicated region
  $region50: #{seq2seq_transformer_forward.27} parent=0 // pred_check
    _
  $region51: #{seq2seq_transformer_forward.27} parent=0 // pred_check_branch
    %51 = sbr.rel (0) target = $region53
  $region52: #{seq2seq_transformer_forward.27} parent=0 // pred_region
    _
  $region53: #{seq2seq_transformer_forward.27} parent=0 // pred_fallthru
    _
  // Predicated region
  $region54: #{seq2seq_transformer_forward.27} parent=0 // pred_check
    _
  $region55: #{seq2seq_transformer_forward.27} parent=0 // pred_check_branch
    %53 = sbr.rel (0) target = $region57
  $region56: #{seq2seq_transformer_forward.27} parent=0 // pred_region
    _
  $region57: #{seq2seq_transformer_forward.27} parent=0 // pred_fallthru
    _
  // Predicated region
  $region58: #{seq2seq_transformer_forward.27} parent=0 // pred_check
    _
  $region59: #{seq2seq_transformer_forward.27} parent=0 // pred_check_branch
    %55 = sbr.rel (0) target = $region61
  $region60: #{seq2seq_transformer_forward.27} parent=0 // pred_region
    _
  $region61: #{seq2seq_transformer_forward.27} parent=0 // pred_fallthru
    _
  // Predicated region
  $region62: #{seq2seq_transformer_forward.27} parent=0 // pred_check
    _
  $region63: #{seq2seq_transformer_forward.27} parent=0 // pred_check_branch
    %57 = sbr.rel (0) target = $region65
  $region64: #{seq2seq_transformer_forward.27} parent=0 // pred_region
    _
  $region65: #{seq2seq_transformer_forward.27} parent=0 // pred_fallthru
    _
  // Predicated region
  $region66: #{seq2seq_transformer_forward.27} parent=0 // pred_check
    _
  $region67: #{seq2seq_transformer_forward.27} parent=0 // pred_check_branch
    %59 = sbr.rel (0) target = $region69
  $region68: #{seq2seq_transformer_forward.27} parent=0 // pred_region
    _
  $region69: #{seq2seq_transformer_forward.27} parent=0 // pred_fallthru
    _
  // Predicated region
  $region70: #{seq2seq_transformer_forward.27} parent=0 // pred_check
    _
  $region71: #{seq2seq_transformer_forward.27} parent=0 // pred_check_branch
    %61 = sbr.rel (0) target = $region73
  $region72: #{seq2seq_transformer_forward.27} parent=0 // pred_region
    _
  $region73: #{seq2seq_transformer_forward.27} parent=0 // pred_fallthru
    _
  // Predicated region
  $region74: #{seq2seq_transformer_forward.27} parent=0 // pred_check
    _
  $region75: #{seq2seq_transformer_forward.27} parent=0 // pred_check_branch
    %63 = sbr.rel (0) target = $region77
  $region76: #{seq2seq_transformer_forward.27} parent=0 // pred_region
    _
  $region77: #{seq2seq_transformer_forward.27} parent=0 // pred_fallthru
    _
  // Predicated region
  $region78: #{seq2seq_transformer_forward.27} parent=0 // pred_check
    _
  $region79: #{seq2seq_transformer_forward.27} parent=0 // pred_check_branch
    %65 = sbr.rel (0) target = $region81
  $region80: #{seq2seq_transformer_forward.27} parent=0 // pred_region
    _
  $region81: #{seq2seq_transformer_forward.27} parent=0 // pred_fallthru
    _
  // Predicated region
  $region82: #{seq2seq_transformer_forward.27} parent=0 // pred_check
    _
  $region83: #{seq2seq_transformer_forward.27} parent=0 // pred_check_branch
    %67 = sbr.rel (0) target = $region85
  $region84: #{seq2seq_transformer_forward.27} parent=0 // pred_region
    _
  $region85: #{seq2seq_transformer_forward.27} parent=0 // pred_fallthru
    _
  %v68 = vld [vmem:[%s0] sm:$0xff]
  %v69 = vld [vmem:[%s0 + $0x8] sm:$0xff]
  %v70 = vld [vmem:[%s1] sm:$0xff]
  %v71 = vld [vmem:[%s1 + $0x8] sm:$0xff]
  %v72 = vld [vmem:[%s2] sm:$0x1]
  %v73 = vld [vmem:[%s3] sm:$0xff]
  %v74 = vld [vmem:[%s3 + $0x8] sm:$0xff]
  %v75 = vld [vmem:[%s3 + $0x10] sm:$0xff]
  %v76 = vld [vmem:[%s3 + $0x18] sm:$0xff]
  %v77 = vld [vmem:[%s4] sm:$0x1]
  %v79 = vlaneseq
  %v80 = vshrl.u32 %v79, 7
  %v81 = vsub.s32 0, %v80
  %v82 = vrot.slane %v77, %v81
  %vm84 = vcmask 261120
  %v86 = vsel %vm84, %v68, 0
  %v89 = vsel %vm84, %v69, 0
  %91 = vmatprep.subr.mxu0 0.0
  %92 = vmatpush1.msra.mxu0 %v73
  %93 = vmatprep.subr.mxu0 0.0
  %94 = vmatpush1.msra.mxu0 %v74
  %95 = vmatprep.subr.mxu0 0.0
  %96 = vmatpush1.msra.mxu0 %v75
  %97 = vmatprep.subr.mxu0 0.0
  %98 = vmatpush1.msra.mxu0 %v76
  %99 = vmatprep.subr.mxu0 0.0
  %100 = vmatpush1.msra.mxu0 0.0
  %101 = vmatprep.subr.mxu0 0.0
  %102 = vmatpush1.msra.mxu0 0.0
  %103 = vmatprep.subr.mxu0 0.0
  %104 = vmatpush1.msra.mxu0 0.0
  %105 = vmatprep.subr.mxu0 0.0
  %106 = vmatpush1.msra.mxu0 0.0
  %107 = vmatprep.subr.mxu0 0.0
  %108 = vmatpush1.msra.mxu0 0.0
  %109 = vmatprep.subr.mxu0 0.0
  %110 = vmatpush1.msra.mxu0 0.0
  %111 = vmatprep.subr.mxu0 0.0
  %112 = vmatpush1.msra.mxu0 0.0
  %113 = vmatprep.subr.mxu0 0.0
  %114 = vmatpush1.msra.mxu0 0.0
  %115 = vmatprep.subr.mxu0 0.0
  %116 = vmatpush1.msra.mxu0 0.0
  %117 = vmatprep.subr.mxu0 0.0
  %118 = vmatpush1.msra.mxu0 0.0
  %119 = vmatprep.subr.mxu0 0.0
  %120 = vmatpush1.msra.mxu0 0.0
  %121 = vmatprep.subr.mxu0 0.0
  %122 = vmatpush1.msra.mxu0 0.0
  %123 = vmatprep.subr.mxu0 0.0
  %124 = vmatpush1.msra.mxu0 0.0
  %125 = vmatprep.subr.mxu0 0.0
  %126 = vmatpush1.msra.mxu0 0.0
  %127 = vmatprep.subr.mxu0 0.0
  %128 = vmatpush1.msra.mxu0 0.0
  %129 = vmatprep.subr.mxu0 0.0
  %130 = vmatpush1.msra.mxu0 0.0
  %131 = vmatprep.subr.mxu0 0.0
  %132 = vmatpush1.msra.mxu0 0.0
  %133 = vmatprep.subr.mxu0 0.0
  %134 = vmatpush1.msra.mxu0 0.0
  %135 = vmatprep.subr.mxu0 0.0
  %136 = vmatpush1.msra.mxu0 0.0
  %137 = vmatprep.subr.mxu0 0.0
  %138 = vmatpush1.msra.mxu0 0.0
  %139 = vmatprep.subr.mxu0 0.0
  %140 = vmatpush1.msra.mxu0 0.0
  %141 = vmatprep.subr.mxu0 0.0
  %142 = vmatpush1.msra.mxu0 0.0
  %143 = vmatprep.subr.mxu0 0.0
  %144 = vmatpush1.msra.mxu0 0.0
  %145 = vmatprep.subr.mxu0 0.0
  %146 = vmatpush1.msra.mxu0 0.0
  %147 = vmatprep.subr.mxu0 0.0
  %148 = vmatpush1.msra.mxu0 0.0
  %149 = vmatprep.subr.mxu0 0.0
  %150 = vmatpush1.msra.mxu0 0.0
  %151 = vmatprep.subr.mxu0 0.0
  %152 = vmatpush1.msra.mxu0 0.0
  %153 = vmatprep.subr.mxu0 0.0
  %154 = vmatpush1.msra.mxu0 0.0
  %155 = vmatprep.mubr.f32.mxu0 0.0
  %156 = vmatmul.mubr.f32.gmra.mrb[0].mxu0 %v86
  %v157 = vpop.f32.mrb[0].mxu0
  %v158 = vadd.f32 %v82, %v157
  %v159 = vpop.f32.mrb[0].mxu0
  %160 = vmatprep.mubr.f32.mxu0 0.0
  %161 = vmatmul.mubr.f32.gmra.mrb[0].mxu0 %v89
  %v162 = vpop.f32.mrb[0].mxu0
  %v163 = vadd.f32 %v82, %v162
  %v164 = vpop.f32.mrb[0].mxu0
  %165 = vdwg.mxu0
  %167 = vrot.lane.b32.xlu0 %v158, 96
  %v168 = vpop.permute.xlu0 %167
  %vm169 = vcmask 64512
  %v170 = vsel %vm169, %v158, 0
  %v172 = vsel %vm169, %v168, 0
  %174 = vmatprep.subr.mxu0 0.0
  %175 = vmatpush1.xpose.msra.mxu0 %v172
  %176 = vmatprep.subr.mxu0 0.0
  %177 = vmatpush1.xpose.msra.mxu0 0.0
  %178 = vmatprep.subr.mxu0 0.0
  %179 = vmatpush1.xpose.msra.mxu0 0.0
  %180 = vmatprep.subr.mxu0 0.0
  %181 = vmatpush1.xpose.msra.mxu0 0.0
  %182 = vmatprep.subr.mxu0 0.0
  %183 = vmatpush1.xpose.msra.mxu0 0.0
  %184 = vmatprep.subr.mxu0 0.0
  %185 = vmatpush1.xpose.msra.mxu0 0.0
  %186 = vmatprep.subr.mxu0 0.0
  %187 = vmatpush1.xpose.msra.mxu0 0.0
  %188 = vmatprep.subr.mxu0 0.0
  %189 = vmatpush1.xpose.msra.mxu0 0.0
  %190 = vmatprep.subr.mxu0 0.0
  %191 = vmatpush1.xpose.msra.mxu0 0.0
  %192 = vmatprep.subr.mxu0 0.0
  %193 = vmatpush1.xpose.msra.mxu0 0.0
  %194 = vmatprep.subr.mxu0 0.0
  %195 = vmatpush1.xpose.msra.mxu0 0.0
  %196 = vmatprep.subr.mxu0 0.0
  %197 = vmatpush1.xpose.msra.mxu0 0.0
  %198 = vmatprep.subr.mxu0 0.0
  %199 = vmatpush1.xpose.msra.mxu0 0.0
  %200 = vmatprep.subr.mxu0 0.0
  %201 = vmatpush1.xpose.msra.mxu0 0.0
  %202 = vmatprep.subr.mxu0 0.0
  %203 = vmatpush1.xpose.msra.mxu0 0.0
  %204 = vmatprep.subr.mxu0 0.0
  %205 = vmatpush1.xpose.msra.mxu0 0.0
  %206 = vmatprep.subr.mxu0 0.0
  %207 = vmatpush1.xpose.msra.mxu0 0.0
  %208 = vmatprep.subr.mxu0 0.0
  %209 = vmatpush1.xpose.msra.mxu0 0.0
  %210 = vmatprep.subr.mxu0 0.0
  %211 = vmatpush1.xpose.msra.mxu0 0.0
  %212 = vmatprep.subr.mxu0 0.0
  %213 = vmatpush1.xpose.msra.mxu0 0.0
  %214 = vmatprep.subr.mxu0 0.0
  %215 = vmatpush1.xpose.msra.mxu0 0.0
  %216 = vmatprep.subr.mxu0 0.0
  %217 = vmatpush1.xpose.msra.mxu0 0.0
  %218 = vmatprep.subr.mxu0 0.0
  %219 = vmatpush1.xpose.msra.mxu0 0.0
  %220 = vmatprep.subr.mxu0 0.0
  %221 = vmatpush1.xpose.msra.mxu0 0.0
  %222 = vmatprep.subr.mxu0 0.0
  %223 = vmatpush1.xpose.msra.mxu0 0.0
  %224 = vmatprep.subr.mxu0 0.0
  %225 = vmatpush1.xpose.msra.mxu0 0.0
  %226 = vmatprep.subr.mxu0 0.0
  %227 = vmatpush1.xpose.msra.mxu0 0.0
  %228 = vmatprep.subr.mxu0 0.0
  %229 = vmatpush1.xpose.msra.mxu0 0.0
  %230 = vmatprep.subr.mxu0 0.0
  %231 = vmatpush1.xpose.msra.mxu0 0.0
  %232 = vmatprep.subr.mxu0 0.0
  %233 = vmatpush1.xpose.msra.mxu0 0.0
  %234 = vmatprep.subr.mxu0 0.0
  %235 = vmatpush1.xpose.msra.mxu0 0.0
  %236 = vmatprep.subr.mxu0 0.0
  %237 = vmatpush1.xpose.msra.mxu0 0.0
  %238 = vmatprep.mubr.f32.mxu0 0.0
  %239 = vmatmul.mubr.f32.gmra.mrb[0].mxu0 %v170
  %v240 = vpop.f32.mrb[0].mxu0
  %v241 = vadd.f32 0.0, %v240
  %v242 = vpop.f32.mrb[0].mxu0
  %243 = vdwg.mxu0
  %245 = vrot.lane.b32.xlu0 %v163, 96
  %v246 = vpop.permute.xlu0 %245
  %v247 = vsel %vm169, %v163, 0
  %v249 = vsel %vm169, %v246, 0
  %251 = vmatprep.subr.mxu0 0.0
  %252 = vmatpush1.xpose.msra.mxu0 %v249
  %253 = vmatprep.subr.mxu0 0.0
  %254 = vmatpush1.xpose.msra.mxu0 0.0
  %255 = vmatprep.subr.mxu0 0.0
  %256 = vmatpush1.xpose.msra.mxu0 0.0
  %257 = vmatprep.subr.mxu0 0.0
  %258 = vmatpush1.xpose.msra.mxu0 0.0
  %259 = vmatprep.subr.mxu0 0.0
  %260 = vmatpush1.xpose.msra.mxu0 0.0
  %261 = vmatprep.subr.mxu0 0.0
  %262 = vmatpush1.xpose.msra.mxu0 0.0
  %263 = vmatprep.subr.mxu0 0.0
  %264 = vmatpush1.xpose.msra.mxu0 0.0
  %265 = vmatprep.subr.mxu0 0.0
  %266 = vmatpush1.xpose.msra.mxu0 0.0
  %267 = vmatprep.subr.mxu0 0.0
  %268 = vmatpush1.xpose.msra.mxu0 0.0
  %269 = vmatprep.subr.mxu0 0.0
  %270 = vmatpush1.xpose.msra.mxu0 0.0
  %271 = vmatprep.subr.mxu0 0.0
  %272 = vmatpush1.xpose.msra.mxu0 0.0
  %273 = vmatprep.subr.mxu0 0.0
  %274 = vmatpush1.xpose.msra.mxu0 0.0
  %275 = vmatprep.subr.mxu0 0.0
  %276 = vmatpush1.xpose.msra.mxu0 0.0
  %277 = vmatprep.subr.mxu0 0.0
  %278 = vmatpush1.xpose.msra.mxu0 0.0
  %279 = vmatprep.subr.mxu0 0.0
  %280 = vmatpush1.xpose.msra.mxu0 0.0
  %281 = vmatprep.subr.mxu0 0.0
  %282 = vmatpush1.xpose.msra.mxu0 0.0
  %283 = vmatprep.subr.mxu0 0.0
  %284 = vmatpush1.xpose.msra.mxu0 0.0
  %285 = vmatprep.subr.mxu0 0.0
  %286 = vmatpush1.xpose.msra.mxu0 0.0
  %287 = vmatprep.subr.mxu0 0.0
  %288 = vmatpush1.xpose.msra.mxu0 0.0
  %289 = vmatprep.subr.mxu0 0.0
  %290 = vmatpush1.xpose.msra.mxu0 0.0
  %291 = vmatprep.subr.mxu0 0.0
  %292 = vmatpush1.xpose.msra.mxu0 0.0
  %293 = vmatprep.subr.mxu0 0.0
  %294 = vmatpush1.xpose.msra.mxu0 0.0
  %295 = vmatprep.subr.mxu0 0.0
  %296 = vmatpush1.xpose.msra.mxu0 0.0
  %297 = vmatprep.subr.mxu0 0.0
  %298 = vmatpush1.xpose.msra.mxu0 0.0
  %299 = vmatprep.subr.mxu0 0.0
  %300 = vmatpush1.xpose.msra.mxu0 0.0
  %301 = vmatprep.subr.mxu0 0.0
  %302 = vmatpush1.xpose.msra.mxu0 0.0
  %303 = vmatprep.subr.mxu0 0.0
  %304 = vmatpush1.xpose.msra.mxu0 0.0
  %305 = vmatprep.subr.mxu0 0.0
  %306 = vmatpush1.xpose.msra.mxu0 0.0
  %307 = vmatprep.subr.mxu0 0.0
  %308 = vmatpush1.xpose.msra.mxu0 0.0
  %309 = vmatprep.subr.mxu0 0.0
  %310 = vmatpush1.xpose.msra.mxu0 0.0
  %311 = vmatprep.subr.mxu0 0.0
  %312 = vmatpush1.xpose.msra.mxu0 0.0
  %313 = vmatprep.subr.mxu0 0.0
  %314 = vmatpush1.xpose.msra.mxu0 0.0
  %315 = vmatprep.mubr.f32.mxu0 0.0
  %316 = vmatmul.mubr.f32.gmra.mrb[0].mxu0 %v247
  %v317 = vpop.f32.mrb[0].mxu0
  %v318 = vadd.f32 0.0, %v317
  %v319 = vpop.f32.mrb[0].mxu0
  %320 = vdwg.mxu0
  %v321 = vmul.f32 %v241, 0.35355338
  %v322 = vmul.f32 %v318, 0.35355338
  %v324 = vlaneseq
  %v325 = vshrl.u32 %v324, 7
  %v326 = vsub.s32 0, %v325
  %v327 = vrot.slane %v72, %v326
  %v329 = vadd.f32 %v321, %v327
  %v330 = vadd.f32 %v322, %v327
  %v331 = vsel %vm169, %v329, -inf
  %332 = vmax.xlane.f32.xlu0 %v331
  %v333 = vpop.xlane.xlu0 %332
  %v334 = vsel %vm169, %v330, -inf
  %335 = vmax.xlane.f32.xlu0 %v334
  %v336 = vpop.xlane.xlu0 %335
  %v337 = vsub.f32 %v329, %v333
  %v338 = vsub.f32 %v330, %v336
  %v339 = vmul.f32 %v337, 1.442695
  %v340 = vpow.pop %v339
  %v341 = vmul.f32 %v338, 1.442695
  %v342 = vpow.pop %v341
  %v343 = vsel %vm169, %v340, 0.0
  %344 = vadd.xlane.f32.xlu0 %v343
  %v345 = vpop.xlane.xlu0 %344
  %v346 = vsel %vm169, %v342, 0.0
  %347 = vadd.xlane.f32.xlu0 %v346
  %v348 = vpop.xlane.xlu0 %347
  %v349 = vrcp.pop %v345
  %v350 = vrcp.pop %v348
  %v351 = vmul.f32 %v340, %v349
  %v352 = vmul.f32 %v342, %v350
  %353 = vrot.lane.b32.xlu0 %v158, 64
  %v354 = vpop.permute.xlu0 %353
  %v357 = vsel %vm169, %v351, 0
  %359 = vmatprep.subr.mxu0 0.0
  %360 = vmatpush1.msra.mxu0 %v354
  %361 = vmatprep.subr.mxu0 0.0
  %362 = vmatpush1.msra.mxu0 0.0
  %363 = vmatprep.subr.mxu0 0.0
  %364 = vmatpush1.msra.mxu0 0.0
  %365 = vmatprep.subr.mxu0 0.0
  %366 = vmatpush1.msra.mxu0 0.0
  %367 = vmatprep.subr.mxu0 0.0
  %368 = vmatpush1.msra.mxu0 0.0
  %369 = vmatprep.subr.mxu0 0.0
  %370 = vmatpush1.msra.mxu0 0.0
  %371 = vmatprep.subr.mxu0 0.0
  %372 = vmatpush1.msra.mxu0 0.0
  %373 = vmatprep.subr.mxu0 0.0
  %374 = vmatpush1.msra.mxu0 0.0
  %375 = vmatprep.subr.mxu0 0.0
  %376 = vmatpush1.msra.mxu0 0.0
  %377 = vmatprep.subr.mxu0 0.0
  %378 = vmatpush1.msra.mxu0 0.0
  %379 = vmatprep.subr.mxu0 0.0
  %380 = vmatpush1.msra.mxu0 0.0
  %381 = vmatprep.subr.mxu0 0.0
  %382 = vmatpush1.msra.mxu0 0.0
  %383 = vmatprep.subr.mxu0 0.0
  %384 = vmatpush1.msra.mxu0 0.0
  %385 = vmatprep.subr.mxu0 0.0
  %386 = vmatpush1.msra.mxu0 0.0
  %387 = vmatprep.subr.mxu0 0.0
  %388 = vmatpush1.msra.mxu0 0.0
  %389 = vmatprep.subr.mxu0 0.0
  %390 = vmatpush1.msra.mxu0 0.0
  %391 = vmatprep.subr.mxu0 0.0
  %392 = vmatpush1.msra.mxu0 0.0
  %393 = vmatprep.subr.mxu0 0.0
  %394 = vmatpush1.msra.mxu0 0.0
  %395 = vmatprep.subr.mxu0 0.0
  %396 = vmatpush1.msra.mxu0 0.0
  %397 = vmatprep.subr.mxu0 0.0
  %398 = vmatpush1.msra.mxu0 0.0
  %399 = vmatprep.subr.mxu0 0.0
  %400 = vmatpush1.msra.mxu0 0.0
  %401 = vmatprep.subr.mxu0 0.0
  %402 = vmatpush1.msra.mxu0 0.0
  %403 = vmatprep.subr.mxu0 0.0
  %404 = vmatpush1.msra.mxu0 0.0
  %405 = vmatprep.subr.mxu0 0.0
  %406 = vmatpush1.msra.mxu0 0.0
  %407 = vmatprep.subr.mxu0 0.0
  %408 = vmatpush1.msra.mxu0 0.0
  %409 = vmatprep.subr.mxu0 0.0
  %410 = vmatpush1.msra.mxu0 0.0
  %411 = vmatprep.subr.mxu0 0.0
  %412 = vmatpush1.msra.mxu0 0.0
  %413 = vmatprep.subr.mxu0 0.0
  %414 = vmatpush1.msra.mxu0 0.0
  %415 = vmatprep.subr.mxu0 0.0
  %416 = vmatpush1.msra.mxu0 0.0
  %417 = vmatprep.subr.mxu0 0.0
  %418 = vmatpush1.msra.mxu0 0.0
  %419 = vmatprep.subr.mxu0 0.0
  %420 = vmatpush1.msra.mxu0 0.0
  %421 = vmatprep.subr.mxu0 0.0
  %422 = vmatpush1.msra.mxu0 0.0
  %423 = vmatprep.mubr.f32.mxu0 0.0
  %424 = vmatmul.mubr.f32.gmra.mrb[0].mxu0 %v357
  %v425 = vpop.f32.mrb[0].mxu0
  %v426 = vadd.f32 0.0, %v425
  %v427 = vpop.f32.mrb[0].mxu0
  %428 = vdwg.mxu0
  %429 = vrot.lane.b32.xlu0 %v163, 64
  %v430 = vpop.permute.xlu0 %429
  %v433 = vsel %vm169, %v352, 0
  %435 = vmatprep.subr.mxu0 0.0
  %436 = vmatpush1.msra.mxu0 %v430
  %437 = vmatprep.subr.mxu0 0.0
  %438 = vmatpush1.msra.mxu0 0.0
  %439 = vmatprep.subr.mxu0 0.0
  %440 = vmatpush1.msra.mxu0 0.0
  %441 = vmatprep.subr.mxu0 0.0
  %442 = vmatpush1.msra.mxu0 0.0
  %443 = vmatprep.subr.mxu0 0.0
  %444 = vmatpush1.msra.mxu0 0.0
  %445 = vmatprep.subr.mxu0 0.0
  %446 = vmatpush1.msra.mxu0 0.0
  %447 = vmatprep.subr.mxu0 0.0
  %448 = vmatpush1.msra.mxu0 0.0
  %449 = vmatprep.subr.mxu0 0.0
  %450 = vmatpush1.msra.mxu0 0.0
  %451 = vmatprep.subr.mxu0 0.0
  %452 = vmatpush1.msra.mxu0 0.0
  %453 = vmatprep.subr.mxu0 0.0
  %454 = vmatpush1.msra.mxu0 0.0
  %455 = vmatprep.subr.mxu0 0.0
  %456 = vmatpush1.msra.mxu0 0.0
  %457 = vmatprep.subr.mxu0 0.0
  %458 = vmatpush1.msra.mxu0 0.0
  %459 = vmatprep.subr.mxu0 0.0
  %460 = vmatpush1.msra.mxu0 0.0
  %461 = vmatprep.subr.mxu0 0.0
  %462 = vmatpush1.msra.mxu0 0.0
  %463 = vmatprep.subr.mxu0 0.0
  %464 = vmatpush1.msra.mxu0 0.0
  %465 = vmatprep.subr.mxu0 0.0
  %466 = vmatpush1.msra.mxu0 0.0
  %467 = vmatprep.subr.mxu0 0.0
  %468 = vmatpush1.msra.mxu0 0.0
  %469 = vmatprep.subr.mxu0 0.0
  %470 = vmatpush1.msra.mxu0 0.0
  %471 = vmatprep.subr.mxu0 0.0
  %472 = vmatpush1.msra.mxu0 0.0
  %473 = vmatprep.subr.mxu0 0.0
  %474 = vmatpush1.msra.mxu0 0.0
  %475 = vmatprep.subr.mxu0 0.0
  %476 = vmatpush1.msra.mxu0 0.0
  %477 = vmatprep.subr.mxu0 0.0
  %478 = vmatpush1.msra.mxu0 0.0
  %479 = vmatprep.subr.mxu0 0.0
  %480 = vmatpush1.msra.mxu0 0.0
  %481 = vmatprep.subr.mxu0 0.0
  %482 = vmatpush1.msra.mxu0 0.0
  %483 = vmatprep.subr.mxu0 0.0
  %484 = vmatpush1.msra.mxu0 0.0
  %485 = vmatprep.subr.mxu0 0.0
  %486 = vmatpush1.msra.mxu0 0.0
  %487 = vmatprep.subr.mxu0 0.0
  %488 = vmatpush1.msra.mxu0 0.0
  %489 = vmatprep.subr.mxu0 0.0
  %490 = vmatpush1.msra.mxu0 0.0
  %491 = vmatprep.subr.mxu0 0.0
  %492 = vmatpush1.msra.mxu0 0.0
  %493 = vmatprep.subr.mxu0 0.0
  %494 = vmatpush1.msra.mxu0 0.0
  %495 = vmatprep.subr.mxu0 0.0
  %496 = vmatpush1.msra.mxu0 0.0
  %497 = vmatprep.subr.mxu0 0.0
  %498 = vmatpush1.msra.mxu0 0.0
  %499 = vmatprep.mubr.f32.mxu0 0.0
  %500 = vmatmul.mubr.f32.gmra.mrb[0].mxu0 %v433
  %v501 = vpop.f32.mrb[0].mxu0
  %v502 = vadd.f32 0.0, %v501
  %v503 = vpop.f32.mrb[0].mxu0
  %504 = vdwg.mxu0
  %505 = vrot.lane.b32.xlu0 %v158, 120
  %v506 = vpop.permute.xlu0 %505
  %507 = vrot.lane.b32.xlu0 %v158, 88
  %v508 = vpop.permute.xlu0 %507
  %v509 = vsel %vm169, %v506, 0
  %v511 = vsel %vm169, %v508, 0
  %513 = vmatprep.subr.mxu0 0.0
  %514 = vmatpush1.xpose.msra.mxu0 %v511
  %515 = vmatprep.subr.mxu0 0.0
  %516 = vmatpush1.xpose.msra.mxu0 0.0
  %517 = vmatprep.subr.mxu0 0.0
  %518 = vmatpush1.xpose.msra.mxu0 0.0
  %519 = vmatprep.subr.mxu0 0.0
  %520 = vmatpush1.xpose.msra.mxu0 0.0
  %521 = vmatprep.subr.mxu0 0.0
  %522 = vmatpush1.xpose.msra.mxu0 0.0
  %523 = vmatprep.subr.mxu0 0.0
  %524 = vmatpush1.xpose.msra.mxu0 0.0
  %525 = vmatprep.subr.mxu0 0.0
  %526 = vmatpush1.xpose.msra.mxu0 0.0
  %527 = vmatprep.subr.mxu0 0.0
  %528 = vmatpush1.xpose.msra.mxu0 0.0
  %529 = vmatprep.subr.mxu0 0.0
  %530 = vmatpush1.xpose.msra.mxu0 0.0
  %531 = vmatprep.subr.mxu0 0.0
  %532 = vmatpush1.xpose.msra.mxu0 0.0
  %533 = vmatprep.subr.mxu0 0.0
  %534 = vmatpush1.xpose.msra.mxu0 0.0
  %535 = vmatprep.subr.mxu0 0.0
  %536 = vmatpush1.xpose.msra.mxu0 0.0
  %537 = vmatprep.subr.mxu0 0.0
  %538 = vmatpush1.xpose.msra.mxu0 0.0
  %539 = vmatprep.subr.mxu0 0.0
  %540 = vmatpush1.xpose.msra.mxu0 0.0
  %541 = vmatprep.subr.mxu0 0.0
  %542 = vmatpush1.xpose.msra.mxu0 0.0
  %543 = vmatprep.subr.mxu0 0.0
  %544 = vmatpush1.xpose.msra.mxu0 0.0
  %545 = vmatprep.subr.mxu0 0.0
  %546 = vmatpush1.xpose.msra.mxu0 0.0
  %547 = vmatprep.subr.mxu0 0.0
  %548 = vmatpush1.xpose.msra.mxu0 0.0
  %549 = vmatprep.subr.mxu0 0.0
  %550 = vmatpush1.xpose.msra.mxu0 0.0
  %551 = vmatprep.subr.mxu0 0.0
  %552 = vmatpush1.xpose.msra.mxu0 0.0
  %553 = vmatprep.subr.mxu0 0.0
  %554 = vmatpush1.xpose.msra.mxu0 0.0
  %555 = vmatprep.subr.mxu0 0.0
  %556 = vmatpush1.xpose.msra.mxu0 0.0
  %557 = vmatprep.subr.mxu0 0.0
  %558 = vmatpush1.xpose.msra.mxu0 0.0
  %559 = vmatprep.subr.mxu0 0.0
  %560 = vmatpush1.xpose.msra.mxu0 0.0
  %561 = vmatprep.subr.mxu0 0.0
  %562 = vmatpush1.xpose.msra.mxu0 0.0
  %563 = vmatprep.subr.mxu0 0.0
  %564 = vmatpush1.xpose.msra.mxu0 0.0
  %565 = vmatprep.subr.mxu0 0.0
  %566 = vmatpush1.xpose.msra.mxu0 0.0
  %567 = vmatprep.subr.mxu0 0.0
  %568 = vmatpush1.xpose.msra.mxu0 0.0
  %569 = vmatprep.subr.mxu0 0.0
  %570 = vmatpush1.xpose.msra.mxu0 0.0
  %571 = vmatprep.subr.mxu0 0.0
  %572 = vmatpush1.xpose.msra.mxu0 0.0
  %573 = vmatprep.subr.mxu0 0.0
  %574 = vmatpush1.xpose.msra.mxu0 0.0
  %575 = vmatprep.subr.mxu0 0.0
  %576 = vmatpush1.xpose.msra.mxu0 0.0
  %577 = vmatprep.mubr.f32.mxu0 0.0
  %578 = vmatmul.mubr.f32.gmra.mrb[0].mxu0 %v509
  %v579 = vpop.f32.mrb[0].mxu0
  %v580 = vadd.f32 0.0, %v579
  %v581 = vpop.f32.mrb[0].mxu0
  %582 = vdwg.mxu0
  %583 = vrot.lane.b32.xlu0 %v163, 120
  %v584 = vpop.permute.xlu0 %583
  %585 = vrot.lane.b32.xlu0 %v163, 88
  %v586 = vpop.permute.xlu0 %585
  %v587 = vsel %vm169, %v584, 0
  %v589 = vsel %vm169, %v586, 0
  %591 = vmatprep.subr.mxu0 0.0
  %592 = vmatpush1.xpose.msra.mxu0 %v589
  %593 = vmatprep.subr.mxu0 0.0
  %594 = vmatpush1.xpose.msra.mxu0 0.0
  %595 = vmatprep.subr.mxu0 0.0
  %596 = vmatpush1.xpose.msra.mxu0 0.0
  %597 = vmatprep.subr.mxu0 0.0
  %598 = vmatpush1.xpose.msra.mxu0 0.0
  %599 = vmatprep.subr.mxu0 0.0
  %600 = vmatpush1.xpose.msra.mxu0 0.0
  %601 = vmatprep.subr.mxu0 0.0
  %602 = vmatpush1.xpose.msra.mxu0 0.0
  %603 = vmatprep.subr.mxu0 0.0
  %604 = vmatpush1.xpose.msra.mxu0 0.0
  %605 = vmatprep.subr.mxu0 0.0
  %606 = vmatpush1.xpose.msra.mxu0 0.0
  %607 = vmatprep.subr.mxu0 0.0
  %608 = vmatpush1.xpose.msra.mxu0 0.0
  %609 = vmatprep.subr.mxu0 0.0
  %610 = vmatpush1.xpose.msra.mxu0 0.0
  %611 = vmatprep.subr.mxu0 0.0
  %612 = vmatpush1.xpose.msra.mxu0 0.0
  %613 = vmatprep.subr.mxu0 0.0
  %614 = vmatpush1.xpose.msra.mxu0 0.0
  %615 = vmatprep.subr.mxu0 0.0
  %616 = vmatpush1.xpose.msra.mxu0 0.0
  %617 = vmatprep.subr.mxu0 0.0
  %618 = vmatpush1.xpose.msra.mxu0 0.0
  %619 = vmatprep.subr.mxu0 0.0
  %620 = vmatpush1.xpose.msra.mxu0 0.0
  %621 = vmatprep.subr.mxu0 0.0
  %622 = vmatpush1.xpose.msra.mxu0 0.0
  %623 = vmatprep.subr.mxu0 0.0
  %624 = vmatpush1.xpose.msra.mxu0 0.0
  %625 = vmatprep.subr.mxu0 0.0
  %626 = vmatpush1.xpose.msra.mxu0 0.0
  %627 = vmatprep.subr.mxu0 0.0
  %628 = vmatpush1.xpose.msra.mxu0 0.0
  %629 = vmatprep.subr.mxu0 0.0
  %630 = vmatpush1.xpose.msra.mxu0 0.0
  %631 = vmatprep.subr.mxu0 0.0
  %632 = vmatpush1.xpose.msra.mxu0 0.0
  %633 = vmatprep.subr.mxu0 0.0
  %634 = vmatpush1.xpose.msra.mxu0 0.0
  %635 = vmatprep.subr.mxu0 0.0
  %636 = vmatpush1.xpose.msra.mxu0 0.0
  %637 = vmatprep.subr.mxu0 0.0
  %638 = vmatpush1.xpose.msra.mxu0 0.0
  %639 = vmatprep.subr.mxu0 0.0
  %640 = vmatpush1.xpose.msra.mxu0 0.0
  %641 = vmatprep.subr.mxu0 0.0
  %642 = vmatpush1.xpose.msra.mxu0 0.0
  %643 = vmatprep.subr.mxu0 0.0
  %644 = vmatpush1.xpose.msra.mxu0 0.0
  %645 = vmatprep.subr.mxu0 0.0
  %646 = vmatpush1.xpose.msra.mxu0 0.0
  %647 = vmatprep.subr.mxu0 0.0
  %648 = vmatpush1.xpose.msra.mxu0 0.0
  %649 = vmatprep.subr.mxu0 0.0
  %650 = vmatpush1.xpose.msra.mxu0 0.0
  %651 = vmatprep.subr.mxu0 0.0
  %652 = vmatpush1.xpose.msra.mxu0 0.0
  %653 = vmatprep.subr.mxu0 0.0
  %654 = vmatpush1.xpose.msra.mxu0 0.0
  %655 = vmatprep.mubr.f32.mxu0 0.0
  %656 = vmatmul.mubr.f32.gmra.mrb[0].mxu0 %v587
  %v657 = vpop.f32.mrb[0].mxu0
  %v658 = vadd.f32 0.0, %v657
  %v659 = vpop.f32.mrb[0].mxu0
  %660 = vdwg.mxu0
  %v661 = vmul.f32 %v580, 0.35355338
  %v662 = vmul.f32 %v658, 0.35355338
  %v663 = vadd.f32 %v661, %v327
  %v664 = vadd.f32 %v662, %v327
  %v665 = vsel %vm169, %v663, -inf
  %666 = vmax.xlane.f32.xlu0 %v665
  %v667 = vpop.xlane.xlu0 %666
  %v668 = vsel %vm169, %v664, -inf
  %669 = vmax.xlane.f32.xlu0 %v668
  %v670 = vpop.xlane.xlu0 %669
  %v671 = vsub.f32 %v663, %v667
  %v672 = vsub.f32 %v664, %v670
  %v673 = vmul.f32 %v671, 1.442695
  %v674 = vpow.pop %v673
  %v675 = vmul.f32 %v672, 1.442695
  %v676 = vpow.pop %v675
  %v677 = vsel %vm169, %v674, 0.0
  %678 = vadd.xlane.f32.xlu0 %v677
  %v679 = vpop.xlane.xlu0 %678
  %v680 = vsel %vm169, %v676, 0.0
  %681 = vadd.xlane.f32.xlu0 %v680
  %v682 = vpop.xlane.xlu0 %681
  %v683 = vrcp.pop %v679
  %v684 = vrcp.pop %v682
  %v685 = vmul.f32 %v674, %v683
  %v686 = vmul.f32 %v676, %v684
  %687 = vrot.lane.b32.xlu0 %v158, 56
  %v688 = vpop.permute.xlu0 %687
  %v691 = vsel %vm169, %v685, 0
  %693 = vmatprep.subr.mxu0 0.0
  %694 = vmatpush1.msra.mxu0 %v688
  %695 = vmatprep.subr.mxu0 0.0
  %696 = vmatpush1.msra.mxu0 0.0
  %697 = vmatprep.subr.mxu0 0.0
  %698 = vmatpush1.msra.mxu0 0.0
  %699 = vmatprep.subr.mxu0 0.0
  %700 = vmatpush1.msra.mxu0 0.0
  %701 = vmatprep.subr.mxu0 0.0
  %702 = vmatpush1.msra.mxu0 0.0
  %703 = vmatprep.subr.mxu0 0.0
  %704 = vmatpush1.msra.mxu0 0.0
  %705 = vmatprep.subr.mxu0 0.0
  %706 = vmatpush1.msra.mxu0 0.0
  %707 = vmatprep.subr.mxu0 0.0
  %708 = vmatpush1.msra.mxu0 0.0
  %709 = vmatprep.subr.mxu0 0.0
  %710 = vmatpush1.msra.mxu0 0.0
  %711 = vmatprep.subr.mxu0 0.0
  %712 = vmatpush1.msra.mxu0 0.0
  %713 = vmatprep.subr.mxu0 0.0
  %714 = vmatpush1.msra.mxu0 0.0
  %715 = vmatprep.subr.mxu0 0.0
  %716 = vmatpush1.msra.mxu0 0.0
  %717 = vmatprep.subr.mxu0 0.0
  %718 = vmatpush1.msra.mxu0 0.0
  %719 = vmatprep.subr.mxu0 0.0
  %720 = vmatpush1.msra.mxu0 0.0
  %721 = vmatprep.subr.mxu0 0.0
  %722 = vmatpush1.msra.mxu0 0.0
  %723 = vmatprep.subr.mxu0 0.0
  %724 = vmatpush1.msra.mxu0 0.0
  %725 = vmatprep.subr.mxu0 0.0
  %726 = vmatpush1.msra.mxu0 0.0
  %727 = vmatprep.subr.mxu0 0.0
  %728 = vmatpush1.msra.mxu0 0.0
  %729 = vmatprep.subr.mxu0 0.0
  %730 = vmatpush1.msra.mxu0 0.0
  %731 = vmatprep.subr.mxu0 0.0
  %732 = vmatpush1.msra.mxu0 0.0
  %733 = vmatprep.subr.mxu0 0.0
  %734 = vmatpush1.msra.mxu0 0.0
  %735 = vmatprep.subr.mxu0 0.0
  %736 = vmatpush1.msra.mxu0 0.0
  %737 = vmatprep.subr.mxu0 0.0
  %738 = vmatpush1.msra.mxu0 0.0
  %739 = vmatprep.subr.mxu0 0.0
  %740 = vmatpush1.msra.mxu0 0.0
  %741 = vmatprep.subr.mxu0 0.0
  %742 = vmatpush1.msra.mxu0 0.0
  %743 = vmatprep.subr.mxu0 0.0
  %744 = vmatpush1.msra.mxu0 0.0
  %745 = vmatprep.subr.mxu0 0.0
  %746 = vmatpush1.msra.mxu0 0.0
  %747 = vmatprep.subr.mxu0 0.0
  %748 = vmatpush1.msra.mxu0 0.0
  %749 = vmatprep.subr.mxu0 0.0
  %750 = vmatpush1.msra.mxu0 0.0
  %751 = vmatprep.subr.mxu0 0.0
  %752 = vmatpush1.msra.mxu0 0.0
  %753 = vmatprep.subr.mxu0 0.0
  %754 = vmatpush1.msra.mxu0 0.0
  %755 = vmatprep.subr.mxu0 0.0
  %756 = vmatpush1.msra.mxu0 0.0
  %757 = vmatprep.mubr.f32.mxu0 0.0
  %758 = vmatmul.mubr.f32.gmra.mrb[0].mxu0 %v691
  %v759 = vpop.f32.mrb[0].mxu0
  %v760 = vadd.f32 0.0, %v759
  %v761 = vpop.f32.mrb[0].mxu0
  %762 = vdwg.mxu0
  %763 = vrot.lane.b32.xlu0 %v163, 56
  %v764 = vpop.permute.xlu0 %763
  %v767 = vsel %vm169, %v686, 0
  %769 = vmatprep.subr.mxu0 0.0
  %770 = vmatpush1.msra.mxu0 %v764
  %771 = vmatprep.subr.mxu0 0.0
  %772 = vmatpush1.msra.mxu0 0.0
  %773 = vmatprep.subr.mxu0 0.0
  %774 = vmatpush1.msra.mxu0 0.0
  %775 = vmatprep.subr.mxu0 0.0
  %776 = vmatpush1.msra.mxu0 0.0
  %777 = vmatprep.subr.mxu0 0.0
  %778 = vmatpush1.msra.mxu0 0.0
  %779 = vmatprep.subr.mxu0 0.0
  %780 = vmatpush1.msra.mxu0 0.0
  %781 = vmatprep.subr.mxu0 0.0
  %782 = vmatpush1.msra.mxu0 0.0
  %783 = vmatprep.subr.mxu0 0.0
  %784 = vmatpush1.msra.mxu0 0.0
  %785 = vmatprep.subr.mxu0 0.0
  %786 = vmatpush1.msra.mxu0 0.0
  %787 = vmatprep.subr.mxu0 0.0
  %788 = vmatpush1.msra.mxu0 0.0
  %789 = vmatprep.subr.mxu0 0.0
  %790 = vmatpush1.msra.mxu0 0.0
  %791 = vmatprep.subr.mxu0 0.0
  %792 = vmatpush1.msra.mxu0 0.0
  %793 = vmatprep.subr.mxu0 0.0
  %794 = vmatpush1.msra.mxu0 0.0
  %795 = vmatprep.subr.mxu0 0.0
  %796 = vmatpush1.msra.mxu0 0.0
  %797 = vmatprep.subr.mxu0 0.0
  %798 = vmatpush1.msra.mxu0 0.0
  %799 = vmatprep.subr.mxu0 0.0
  %800 = vmatpush1.msra.mxu0 0.0
  %801 = vmatprep.subr.mxu0 0.0
  %802 = vmatpush1.msra.mxu0 0.0
  %803 = vmatprep.subr.mxu0 0.0
  %804 = vmatpush1.msra.mxu0 0.0
  %805 = vmatprep.subr.mxu0 0.0
  %806 = vmatpush1.msra.mxu0 0.0
  %807 = vmatprep.subr.mxu0 0.0
  %808 = vmatpush1.msra.mxu0 0.0
  %809 = vmatprep.subr.mxu0 0.0
  %810 = vmatpush1.msra.mxu0 0.0
  %811 = vmatprep.subr.mxu0 0.0
  %812 = vmatpush1.msra.mxu0 0.0
  %813 = vmatprep.subr.mxu0 0.0
  %814 = vmatpush1.msra.mxu0 0.0
  %815 = vmatprep.subr.mxu0 0.0
  %816 = vmatpush1.msra.mxu0 0.0
  %817 = vmatprep.subr.mxu0 0.0
  %818 = vmatpush1.msra.mxu0 0.0
  %819 = vmatprep.subr.mxu0 0.0
  %820 = vmatpush1.msra.mxu0 0.0
  %821 = vmatprep.subr.mxu0 0.0
  %822 = vmatpush1.msra.mxu0 0.0
  %823 = vmatprep.subr.mxu0 0.0
  %824 = vmatpush1.msra.mxu0 0.0
  %825 = vmatprep.subr.mxu0 0.0
  %826 = vmatpush1.msra.mxu0 0.0
  %827 = vmatprep.subr.mxu0 0.0
  %828 = vmatpush1.msra.mxu0 0.0
  %829 = vmatprep.subr.mxu0 0.0
  %830 = vmatpush1.msra.mxu0 0.0
  %831 = vmatprep.subr.mxu0 0.0
  %832 = vmatpush1.msra.mxu0 0.0
  %833 = vmatprep.mubr.f32.mxu0 0.0
  %834 = vmatmul.mubr.f32.gmra.mrb[0].mxu0 %v767
  %v835 = vpop.f32.mrb[0].mxu0
  %v836 = vadd.f32 0.0, %v835
  %v837 = vpop.f32.mrb[0].mxu0
  %838 = vdwg.mxu0
  %839 = vrot.lane.b32.xlu0 %v158, 112
  %v840 = vpop.permute.xlu0 %839
  %841 = vrot.lane.b32.xlu0 %v158, 80
  %v842 = vpop.permute.xlu0 %841
  %v843 = vsel %vm169, %v840, 0
  %v845 = vsel %vm169, %v842, 0
  %847 = vmatprep.subr.mxu0 0.0
  %848 = vmatpush1.xpose.msra.mxu0 %v845
  %849 = vmatprep.subr.mxu0 0.0
  %850 = vmatpush1.xpose.msra.mxu0 0.0
  %851 = vmatprep.subr.mxu0 0.0
  %852 = vmatpush1.xpose.msra.mxu0 0.0
  %853 = vmatprep.subr.mxu0 0.0
  %854 = vmatpush1.xpose.msra.mxu0 0.0
  %855 = vmatprep.subr.mxu0 0.0
  %856 = vmatpush1.xpose.msra.mxu0 0.0
  %857 = vmatprep.subr.mxu0 0.0
  %858 = vmatpush1.xpose.msra.mxu0 0.0
  %859 = vmatprep.subr.mxu0 0.0
  %860 = vmatpush1.xpose.msra.mxu0 0.0
  %861 = vmatprep.subr.mxu0 0.0
  %862 = vmatpush1.xpose.msra.mxu0 0.0
  %863 = vmatprep.subr.mxu0 0.0
  %864 = vmatpush1.xpose.msra.mxu0 0.0
  %865 = vmatprep.subr.mxu0 0.0
  %866 = vmatpush1.xpose.msra.mxu0 0.0
  %867 = vmatprep.subr.mxu0 0.0
  %868 = vmatpush1.xpose.msra.mxu0 0.0
  %869 = vmatprep.subr.mxu0 0.0
  %870 = vmatpush1.xpose.msra.mxu0 0.0
  %871 = vmatprep.subr.mxu0 0.0
  %872 = vmatpush1.xpose.msra.mxu0 0.0
  %873 = vmatprep.subr.mxu0 0.0
  %874 = vmatpush1.xpose.msra.mxu0 0.0
  %875 = vmatprep.subr.mxu0 0.0
  %876 = vmatpush1.xpose.msra.mxu0 0.0
  %877 = vmatprep.subr.mxu0 0.0
  %878 = vmatpush1.xpose.msra.mxu0 0.0
  %879 = vmatprep.subr.mxu0 0.0
  %880 = vmatpush1.xpose.msra.mxu0 0.0
  %881 = vmatprep.subr.mxu0 0.0
  %882 = vmatpush1.xpose.msra.mxu0 0.0
  %883 = vmatprep.subr.mxu0 0.0
  %884 = vmatpush1.xpose.msra.mxu0 0.0
  %885 = vmatprep.subr.mxu0 0.0
  %886 = vmatpush1.xpose.msra.mxu0 0.0
  %887 = vmatprep.subr.mxu0 0.0
  %888 = vmatpush1.xpose.msra.mxu0 0.0
  %889 = vmatprep.subr.mxu0 0.0
  %890 = vmatpush1.xpose.msra.mxu0 0.0
  %891 = vmatprep.subr.mxu0 0.0
  %892 = vmatpush1.xpose.msra.mxu0 0.0
  %893 = vmatprep.subr.mxu0 0.0
  %894 = vmatpush1.xpose.msra.mxu0 0.0
  %895 = vmatprep.subr.mxu0 0.0
  %896 = vmatpush1.xpose.msra.mxu0 0.0
  %897 = vmatprep.subr.mxu0 0.0
  %898 = vmatpush1.xpose.msra.mxu0 0.0
  %899 = vmatprep.subr.mxu0 0.0
  %900 = vmatpush1.xpose.msra.mxu0 0.0
  %901 = vmatprep.subr.mxu0 0.0
  %902 = vmatpush1.xpose.msra.mxu0 0.0
  %903 = vmatprep.subr.mxu0 0.0
  %904 = vmatpush1.xpose.msra.mxu0 0.0
  %905 = vmatprep.subr.mxu0 0.0
  %906 = vmatpush1.xpose.msra.mxu0 0.0
  %907 = vmatprep.subr.mxu0 0.0
  %908 = vmatpush1.xpose.msra.mxu0 0.0
  %909 = vmatprep.subr.mxu0 0.0
  %910 = vmatpush1.xpose.msra.mxu0 0.0
  %911 = vmatprep.mubr.f32.mxu0 0.0
  %912 = vmatmul.mubr.f32.gmra.mrb[0].mxu0 %v843
  %v913 = vpop.f32.mrb[0].mxu0
  %v914 = vadd.f32 0.0, %v913
  %v915 = vpop.f32.mrb[0].mxu0
  %916 = vdwg.mxu0
  %917 = vrot.lane.b32.xlu0 %v163, 112
  %v918 = vpop.permute.xlu0 %917
  %919 = vrot.lane.b32.xlu0 %v163, 80
  %v920 = vpop.permute.xlu0 %919
  %v921 = vsel %vm169, %v918, 0
  %v923 = vsel %vm169, %v920, 0
  %925 = vmatprep.subr.mxu0 0.0
  %926 = vmatpush1.xpose.msra.mxu0 %v923
  %927 = vmatprep.subr.mxu0 0.0
  %928 = vmatpush1.xpose.msra.mxu0 0.0
  %929 = vmatprep.subr.mxu0 0.0
  %930 = vmatpush1.xpose.msra.mxu0 0.0
  %931 = vmatprep.subr.mxu0 0.0
  %932 = vmatpush1.xpose.msra.mxu0 0.0
  %933 = vmatprep.subr.mxu0 0.0
  %934 = vmatpush1.xpose.msra.mxu0 0.0
  %935 = vmatprep.subr.mxu0 0.0
  %936 = vmatpush1.xpose.msra.mxu0 0.0
  %937 = vmatprep.subr.mxu0 0.0
  %938 = vmatpush1.xpose.msra.mxu0 0.0
  %939 = vmatprep.subr.mxu0 0.0
  %940 = vmatpush1.xpose.msra.mxu0 0.0
  %941 = vmatprep.subr.mxu0 0.0
  %942 = vmatpush1.xpose.msra.mxu0 0.0
  %943 = vmatprep.subr.mxu0 0.0
  %944 = vmatpush1.xpose.msra.mxu0 0.0
  %945 = vmatprep.subr.mxu0 0.0
  %946 = vmatpush1.xpose.msra.mxu0 0.0
  %947 = vmatprep.subr.mxu0 0.0
  %948 = vmatpush1.xpose.msra.mxu0 0.0
  %949 = vmatprep.subr.mxu0 0.0
  %950 = vmatpush1.xpose.msra.mxu0 0.0
  %951 = vmatprep.subr.mxu0 0.0
  %952 = vmatpush1.xpose.msra.mxu0 0.0
  %953 = vmatprep.subr.mxu0 0.0
  %954 = vmatpush1.xpose.msra.mxu0 0.0
  %955 = vmatprep.subr.mxu0 0.0
  %956 = vmatpush1.xpose.msra.mxu0 0.0
  %957 = vmatprep.subr.mxu0 0.0
  %958 = vmatpush1.xpose.msra.mxu0 0.0
  %959 = vmatprep.subr.mxu0 0.0
  %960 = vmatpush1.xpose.msra.mxu0 0.0
  %961 = vmatprep.subr.mxu0 0.0
  %962 = vmatpush1.xpose.msra.mxu0 0.0
  %963 = vmatprep.subr.mxu0 0.0
  %964 = vmatpush1.xpose.msra.mxu0 0.0
  %965 = vmatprep.subr.mxu0 0.0
  %966 = vmatpush1.xpose.msra.mxu0 0.0
  %967 = vmatprep.subr.mxu0 0.0
  %968 = vmatpush1.xpose.msra.mxu0 0.0
  %969 = vmatprep.subr.mxu0 0.0
  %970 = vmatpush1.xpose.msra.mxu0 0.0
  %971 = vmatprep.subr.mxu0 0.0
  %972 = vmatpush1.xpose.msra.mxu0 0.0
  %973 = vmatprep.subr.mxu0 0.0
  %974 = vmatpush1.xpose.msra.mxu0 0.0
  %975 = vmatprep.subr.mxu0 0.0
  %976 = vmatpush1.xpose.msra.mxu0 0.0
  %977 = vmatprep.subr.mxu0 0.0
  %978 = vmatpush1.xpose.msra.mxu0 0.0
  %979 = vmatprep.subr.mxu0 0.0
  %980 = vmatpush1.xpose.msra.mxu0 0.0
  %981 = vmatprep.subr.mxu0 0.0
  %982 = vmatpush1.xpose.msra.mxu0 0.0
  %983 = vmatprep.subr.mxu0 0.0
  %984 = vmatpush1.xpose.msra.mxu0 0.0
  %985 = vmatprep.subr.mxu0 0.0
  %986 = vmatpush1.xpose.msra.mxu0 0.0
  %987 = vmatprep.subr.mxu0 0.0
  %988 = vmatpush1.xpose.msra.mxu0 0.0
  %989 = vmatprep.mubr.f32.mxu0 0.0
  %990 = vmatmul.mubr.f32.gmra.mrb[0].mxu0 %v921
  %v991 = vpop.f32.mrb[0].mxu0
  %v992 = vadd.f32 0.0, %v991
  %v993 = vpop.f32.mrb[0].mxu0
  %994 = vdwg.mxu0
  %v995 = vmul.f32 %v914, 0.35355338
  %v996 = vmul.f32 %v992, 0.35355338
  %v997 = vadd.f32 %v995, %v327
  %v998 = vadd.f32 %v996, %v327
  %v999 = vsel %vm169, %v997, -inf
  %1000 = vmax.xlane.f32.xlu0 %v999
  %v1001 = vpop.xlane.xlu0 %1000
  %v1002 = vsel %vm169, %v998, -inf
  %1003 = vmax.xlane.f32.xlu0 %v1002
  %v1004 = vpop.xlane.xlu0 %1003
  %v1005 = vsub.f32 %v997, %v1001
  %v1006 = vsub.f32 %v998, %v1004
  %v1007 = vmul.f32 %v1005, 1.442695
  %v1008 = vpow.pop %v1007
  %v1009 = vmul.f32 %v1006, 1.442695
  %v1010 = vpow.pop %v1009
  %v1011 = vsel %vm169, %v1008, 0.0
  %1012 = vadd.xlane.f32.xlu0 %v1011
  %v1013 = vpop.xlane.xlu0 %1012
  %v1014 = vsel %vm169, %v1010, 0.0
  %1015 = vadd.xlane.f32.xlu0 %v1014
  %v1016 = vpop.xlane.xlu0 %1015
  %v1017 = vrcp.pop %v1013
  %v1018 = vrcp.pop %v1016
  %v1019 = vmul.f32 %v1008, %v1017
  %v1020 = vmul.f32 %v1010, %v1018
  %1021 = vrot.lane.b32.xlu0 %v158, 48
  %v1022 = vpop.permute.xlu0 %1021
  %v1025 = vsel %vm169, %v1019, 0
  %1027 = vmatprep.subr.mxu0 0.0
  %1028 = vmatpush1.msra.mxu0 %v1022
  %1029 = vmatprep.subr.mxu0 0.0
  %1030 = vmatpush1.msra.mxu0 0.0
  %1031 = vmatprep.subr.mxu0 0.0
  %1032 = vmatpush1.msra.mxu0 0.0
  %1033 = vmatprep.subr.mxu0 0.0
  %1034 = vmatpush1.msra.mxu0 0.0
  %1035 = vmatprep.subr.mxu0 0.0
  %1036 = vmatpush1.msra.mxu0 0.0
  %1037 = vmatprep.subr.mxu0 0.0
  %1038 = vmatpush1.msra.mxu0 0.0
  %1039 = vmatprep.subr.mxu0 0.0
  %1040 = vmatpush1.msra.mxu0 0.0
  %1041 = vmatprep.subr.mxu0 0.0
  %1042 = vmatpush1.msra.mxu0 0.0
  %1043 = vmatprep.subr.mxu0 0.0
  %1044 = vmatpush1.msra.mxu0 0.0
  %1045 = vmatprep.subr.mxu0 0.0
  %1046 = vmatpush1.msra.mxu0 0.0
  %1047 = vmatprep.subr.mxu0 0.0
  %1048 = vmatpush1.msra.mxu0 0.0
  %1049 = vmatprep.subr.mxu0 0.0
  %1050 = vmatpush1.msra.mxu0 0.0
  %1051 = vmatprep.subr.mxu0 0.0
  %1052 = vmatpush1.msra.mxu0 0.0
  %1053 = vmatprep.subr.mxu0 0.0
  %1054 = vmatpush1.msra.mxu0 0.0
  %1055 = vmatprep.subr.mxu0 0.0
  %1056 = vmatpush1.msra.mxu0 0.0
  %1057 = vmatprep.subr.mxu0 0.0
  %1058 = vmatpush1.msra.mxu0 0.0
  %1059 = vmatprep.subr.mxu0 0.0
  %1060 = vmatpush1.msra.mxu0 0.0
  %1061 = vmatprep.subr.mxu0 0.0
  %1062 = vmatpush1.msra.mxu0 0.0
  %1063 = vmatprep.subr.mxu0 0.0
  %1064 = vmatpush1.msra.mxu0 0.0
  %1065 = vmatprep.subr.mxu0 0.0
  %1066 = vmatpush1.msra.mxu0 0.0
  %1067 = vmatprep.subr.mxu0 0.0
  %1068 = vmatpush1.msra.mxu0 0.0
  %1069 = vmatprep.subr.mxu0 0.0
  %1070 = vmatpush1.msra.mxu0 0.0
  %1071 = vmatprep.subr.mxu0 0.0
  %1072 = vmatpush1.msra.mxu0 0.0
  %1073 = vmatprep.subr.mxu0 0.0
  %1074 = vmatpush1.msra.mxu0 0.0
  %1075 = vmatprep.subr.mxu0 0.0
  %1076 = vmatpush1.msra.mxu0 0.0
  %1077 = vmatprep.subr.mxu0 0.0
  %1078 = vmatpush1.msra.mxu0 0.0
  %1079 = vmatprep.subr.mxu0 0.0
  %1080 = vmatpush1.msra.mxu0 0.0
  %1081 = vmatprep.subr.mxu0 0.0
  %1082 = vmatpush1.msra.mxu0 0.0
  %1083 = vmatprep.subr.mxu0 0.0
  %1084 = vmatpush1.msra.mxu0 0.0
  %1085 = vmatprep.subr.mxu0 0.0
  %1086 = vmatpush1.msra.mxu0 0.0
  %1087 = vmatprep.subr.mxu0 0.0
  %1088 = vmatpush1.msra.mxu0 0.0
  %1089 = vmatprep.subr.mxu0 0.0
  %1090 = vmatpush1.msra.mxu0 0.0
  %1091 = vmatprep.mubr.f32.mxu0 0.0
  %1092 = vmatmul.mubr.f32.gmra.mrb[0].mxu0 %v1025
  %v1093 = vpop.f32.mrb[0].mxu0
  %v1094 = vadd.f32 0.0, %v1093
  %v1095 = vpop.f32.mrb[0].mxu0
  %1096 = vdwg.mxu0
  %1097 = vrot.lane.b32.xlu0 %v163, 48
  %v1098 = vpop.permute.xlu0 %1097
  %v1101 = vsel %vm169, %v1020, 0
  %1103 = vmatprep.subr.mxu0 0.0
  %1104 = vmatpush1.msra.mxu0 %v1098
  %1105 = vmatprep.subr.mxu0 0.0
  %1106 = vmatpush1.msra.mxu0 0.0
  %1107 = vmatprep.subr.mxu0 0.0
  %1108 = vmatpush1.msra.mxu0 0.0
  %1109 = vmatprep.subr.mxu0 0.0
  %1110 = vmatpush1.msra.mxu0 0.0
  %1111 = vmatprep.subr.mxu0 0.0
  %1112 = vmatpush1.msra.mxu0 0.0
  %1113 = vmatprep.subr.mxu0 0.0
  %1114 = vmatpush1.msra.mxu0 0.0
  %1115 = vmatprep.subr.mxu0 0.0
  %1116 = vmatpush1.msra.mxu0 0.0
  %1117 = vmatprep.subr.mxu0 0.0
  %1118 = vmatpush1.msra.mxu0 0.0
  %1119 = vmatprep.subr.mxu0 0.0
  %1120 = vmatpush1.msra.mxu0 0.0
  %1121 = vmatprep.subr.mxu0 0.0
  %1122 = vmatpush1.msra.mxu0 0.0
  %1123 = vmatprep.subr.mxu0 0.0
  %1124 = vmatpush1.msra.mxu0 0.0
  %1125 = vmatprep.subr.mxu0 0.0
  %1126 = vmatpush1.msra.mxu0 0.0
  %1127 = vmatprep.subr.mxu0 0.0
  %1128 = vmatpush1.msra.mxu0 0.0
  %1129 = vmatprep.subr.mxu0 0.0
  %1130 = vmatpush1.msra.mxu0 0.0
  %1131 = vmatprep.subr.mxu0 0.0
  %1132 = vmatpush1.msra.mxu0 0.0
  %1133 = vmatprep.subr.mxu0 0.0
  %1134 = vmatpush1.msra.mxu0 0.0
  %1135 = vmatprep.subr.mxu0 0.0
  %1136 = vmatpush1.msra.mxu0 0.0
  %1137 = vmatprep.subr.mxu0 0.0
  %1138 = vmatpush1.msra.mxu0 0.0
  %1139 = vmatprep.subr.mxu0 0.0
  %1140 = vmatpush1.msra.mxu0 0.0
  %1141 = vmatprep.subr.mxu0 0.0
  %1142 = vmatpush1.msra.mxu0 0.0
  %1143 = vmatprep.subr.mxu0 0.0
  %1144 = vmatpush1.msra.mxu0 0.0
  %1145 = vmatprep.subr.mxu0 0.0
  %1146 = vmatpush1.msra.mxu0 0.0
  %1147 = vmatprep.subr.mxu0 0.0
  %1148 = vmatpush1.msra.mxu0 0.0
  %1149 = vmatprep.subr.mxu0 0.0
  %1150 = vmatpush1.msra.mxu0 0.0
  %1151 = vmatprep.subr.mxu0 0.0
  %1152 = vmatpush1.msra.mxu0 0.0
  %1153 = vmatprep.subr.mxu0 0.0
  %1154 = vmatpush1.msra.mxu0 0.0
  %1155 = vmatprep.subr.mxu0 0.0
  %1156 = vmatpush1.msra.mxu0 0.0
  %1157 = vmatprep.subr.mxu0 0.0
  %1158 = vmatpush1.msra.mxu0 0.0
  %1159 = vmatprep.subr.mxu0 0.0
  %1160 = vmatpush1.msra.mxu0 0.0
  %1161 = vmatprep.subr.mxu0 0.0
  %1162 = vmatpush1.msra.mxu0 0.0
  %1163 = vmatprep.subr.mxu0 0.0
  %1164 = vmatpush1.msra.mxu0 0.0
  %1165 = vmatprep.subr.mxu0 0.0
  %1166 = vmatpush1.msra.mxu0 0.0
  %1167 = vmatprep.mubr.f32.mxu0 0.0
  %1168 = vmatmul.mubr.f32.gmra.mrb[0].mxu0 %v1101
  %v1169 = vpop.f32.mrb[0].mxu0
  %v1170 = vadd.f32 0.0, %v1169
  %v1171 = vpop.f32.mrb[0].mxu0
  %1172 = vdwg.mxu0
  %1173 = vrot.lane.b32.xlu0 %v158, 104
  %v1174 = vpop.permute.xlu0 %1173
  %1175 = vrot.lane.b32.xlu0 %v158, 72
  %v1176 = vpop.permute.xlu0 %1175
  %v1177 = vsel %vm169, %v1174, 0
  %v1179 = vsel %vm169, %v1176, 0
  %1181 = vmatprep.subr.mxu0 0.0
  %1182 = vmatpush1.xpose.msra.mxu0 %v1179
  %1183 = vmatprep.subr.mxu0 0.0
  %1184 = vmatpush1.xpose.msra.mxu0 0.0
  %1185 = vmatprep.subr.mxu0 0.0
  %1186 = vmatpush1.xpose.msra.mxu0 0.0
  %1187 = vmatprep.subr.mxu0 0.0
  %1188 = vmatpush1.xpose.msra.mxu0 0.0
  %1189 = vmatprep.subr.mxu0 0.0
  %1190 = vmatpush1.xpose.msra.mxu0 0.0
  %1191 = vmatprep.subr.mxu0 0.0
  %1192 = vmatpush1.xpose.msra.mxu0 0.0
  %1193 = vmatprep.subr.mxu0 0.0
  %1194 = vmatpush1.xpose.msra.mxu0 0.0
  %1195 = vmatprep.subr.mxu0 0.0
  %1196 = vmatpush1.xpose.msra.mxu0 0.0
  %1197 = vmatprep.subr.mxu0 0.0
  %1198 = vmatpush1.xpose.msra.mxu0 0.0
  %1199 = vmatprep.subr.mxu0 0.0
  %1200 = vmatpush1.xpose.msra.mxu0 0.0
  %1201 = vmatprep.subr.mxu0 0.0
  %1202 = vmatpush1.xpose.msra.mxu0 0.0
  %1203 = vmatprep.subr.mxu0 0.0
  %1204 = vmatpush1.xpose.msra.mxu0 0.0
  %1205 = vmatprep.subr.mxu0 0.0
  %1206 = vmatpush1.xpose.msra.mxu0 0.0
  %1207 = vmatprep.subr.mxu0 0.0
  %1208 = vmatpush1.xpose.msra.mxu0 0.0
  %1209 = vmatprep.subr.mxu0 0.0
  %1210 = vmatpush1.xpose.msra.mxu0 0.0
  %1211 = vmatprep.subr.mxu0 0.0
  %1212 = vmatpush1.xpose.msra.mxu0 0.0
  %1213 = vmatprep.subr.mxu0 0.0
  %1214 = vmatpush1.xpose.msra.mxu0 0.0
  %1215 = vmatprep.subr.mxu0 0.0
  %1216 = vmatpush1.xpose.msra.mxu0 0.0
  %1217 = vmatprep.subr.mxu0 0.0
  %1218 = vmatpush1.xpose.msra.mxu0 0.0
  %1219 = vmatprep.subr.mxu0 0.0
  %1220 = vmatpush1.xpose.msra.mxu0 0.0
  %1221 = vmatprep.subr.mxu0 0.0
  %1222 = vmatpush1.xpose.msra.mxu0 0.0
  %1223 = vmatprep.subr.mxu0 0.0
  %1224 = vmatpush1.xpose.msra.mxu0 0.0
  %1225 = vmatprep.subr.mxu0 0.0
  %1226 = vmatpush1.xpose.msra.mxu0 0.0
  %1227 = vmatprep.subr.mxu0 0.0
  %1228 = vmatpush1.xpose.msra.mxu0 0.0
  %1229 = vmatprep.subr.mxu0 0.0
  %1230 = vmatpush1.xpose.msra.mxu0 0.0
  %1231 = vmatprep.subr.mxu0 0.0
  %1232 = vmatpush1.xpose.msra.mxu0 0.0
  %1233 = vmatprep.subr.mxu0 0.0
  %1234 = vmatpush1.xpose.msra.mxu0 0.0
  %1235 = vmatprep.subr.mxu0 0.0
  %1236 = vmatpush1.xpose.msra.mxu0 0.0
  %1237 = vmatprep.subr.mxu0 0.0
  %1238 = vmatpush1.xpose.msra.mxu0 0.0
  %1239 = vmatprep.subr.mxu0 0.0
  %1240 = vmatpush1.xpose.msra.mxu0 0.0
  %1241 = vmatprep.subr.mxu0 0.0
  %1242 = vmatpush1.xpose.msra.mxu0 0.0
  %1243 = vmatprep.subr.mxu0 0.0
  %1244 = vmatpush1.xpose.msra.mxu0 0.0
  %1245 = vmatprep.mubr.f32.mxu0 0.0
  %1246 = vmatmul.mubr.f32.gmra.mrb[0].mxu0 %v1177
  %v1247 = vpop.f32.mrb[0].mxu0
  %v1248 = vadd.f32 0.0, %v1247
  %v1249 = vpop.f32.mrb[0].mxu0
  %1250 = vdwg.mxu0
  %1251 = vrot.lane.b32.xlu0 %v163, 104
  %v1252 = vpop.permute.xlu0 %1251
  %1253 = vrot.lane.b32.xlu0 %v163, 72
  %v1254 = vpop.permute.xlu0 %1253
  %v1255 = vsel %vm169, %v1252, 0
  %v1257 = vsel %vm169, %v1254, 0
  %1259 = vmatprep.subr.mxu0 0.0
  %1260 = vmatpush1.xpose.msra.mxu0 %v1257
  %1261 = vmatprep.subr.mxu0 0.0
  %1262 = vmatpush1.xpose.msra.mxu0 0.0
  %1263 = vmatprep.subr.mxu0 0.0
  %1264 = vmatpush1.xpose.msra.mxu0 0.0
  %1265 = vmatprep.subr.mxu0 0.0
  %1266 = vmatpush1.xpose.msra.mxu0 0.0
  %1267 = vmatprep.subr.mxu0 0.0
  %1268 = vmatpush1.xpose.msra.mxu0 0.0
  %1269 = vmatprep.subr.mxu0 0.0
  %1270 = vmatpush1.xpose.msra.mxu0 0.0
  %1271 = vmatprep.subr.mxu0 0.0
  %1272 = vmatpush1.xpose.msra.mxu0 0.0
  %1273 = vmatprep.subr.mxu0 0.0
  %1274 = vmatpush1.xpose.msra.mxu0 0.0
  %1275 = vmatprep.subr.mxu0 0.0
  %1276 = vmatpush1.xpose.msra.mxu0 0.0
  %1277 = vmatprep.subr.mxu0 0.0
  %1278 = vmatpush1.xpose.msra.mxu0 0.0
  %1279 = vmatprep.subr.mxu0 0.0
  %1280 = vmatpush1.xpose.msra.mxu0 0.0
  %1281 = vmatprep.subr.mxu0 0.0
  %1282 = vmatpush1.xpose.msra.mxu0 0.0
  %1283 = vmatprep.subr.mxu0 0.0
  %1284 = vmatpush1.xpose.msra.mxu0 0.0
  %1285 = vmatprep.subr.mxu0 0.0
  %1286 = vmatpush1.xpose.msra.mxu0 0.0
  %1287 = vmatprep.subr.mxu0 0.0
  %1288 = vmatpush1.xpose.msra.mxu0 0.0
  %1289 = vmatprep.subr.mxu0 0.0
  %1290 = vmatpush1.xpose.msra.mxu0 0.0
  %1291 = vmatprep.subr.mxu0 0.0
  %1292 = vmatpush1.xpose.msra.mxu0 0.0
  %1293 = vmatprep.subr.mxu0 0.0
  %1294 = vmatpush1.xpose.msra.mxu0 0.0
  %1295 = vmatprep.subr.mxu0 0.0
  %1296 = vmatpush1.xpose.msra.mxu0 0.0
  %1297 = vmatprep.subr.mxu0 0.0
  %1298 = vmatpush1.xpose.msra.mxu0 0.0
  %1299 = vmatprep.subr.mxu0 0.0
  %1300 = vmatpush1.xpose.msra.mxu0 0.0
  %1301 = vmatprep.subr.mxu0 0.0
  %1302 = vmatpush1.xpose.msra.mxu0 0.0
  %1303 = vmatprep.subr.mxu0 0.0
  %1304 = vmatpush1.xpose.msra.mxu0 0.0
  %1305 = vmatprep.subr.mxu0 0.0
  %1306 = vmatpush1.xpose.msra.mxu0 0.0
  %1307 = vmatprep.subr.mxu0 0.0
  %1308 = vmatpush1.xpose.msra.mxu0 0.0
  %1309 = vmatprep.subr.mxu0 0.0
  %1310 = vmatpush1.xpose.msra.mxu0 0.0
  %1311 = vmatprep.subr.mxu0 0.0
  %1312 = vmatpush1.xpose.msra.mxu0 0.0
  %1313 = vmatprep.subr.mxu0 0.0
  %1314 = vmatpush1.xpose.msra.mxu0 0.0
  %1315 = vmatprep.subr.mxu0 0.0
  %1316 = vmatpush1.xpose.msra.mxu0 0.0
  %1317 = vmatprep.subr.mxu0 0.0
  %1318 = vmatpush1.xpose.msra.mxu0 0.0
  %1319 = vmatprep.subr.mxu0 0.0
  %1320 = vmatpush1.xpose.msra.mxu0 0.0
  %1321 = vmatprep.subr.mxu0 0.0
  %1322 = vmatpush1.xpose.msra.mxu0 0.0
  %1323 = vmatprep.mubr.f32.mxu0 0.0
  %1324 = vmatmul.mubr.f32.gmra.mrb[0].mxu0 %v1255
  %v1325 = vpop.f32.mrb[0].mxu0
  %v1326 = vadd.f32 0.0, %v1325
  %v1327 = vpop.f32.mrb[0].mxu0
  %1328 = vdwg.mxu0
  %v1329 = vmul.f32 %v1248, 0.35355338
  %v1330 = vmul.f32 %v1326, 0.35355338
  %v1331 = vadd.f32 %v1329, %v327
  %v1332 = vadd.f32 %v1330, %v327
  %v1333 = vsel %vm169, %v1331, -inf
  %1334 = vmax.xlane.f32.xlu0 %v1333
  %v1335 = vpop.xlane.xlu0 %1334
  %v1336 = vsel %vm169, %v1332, -inf
  %1337 = vmax.xlane.f32.xlu0 %v1336
  %v1338 = vpop.xlane.xlu0 %1337
  %v1339 = vsub.f32 %v1331, %v1335
  %v1340 = vsub.f32 %v1332, %v1338
  %v1341 = vmul.f32 %v1339, 1.442695
  %v1342 = vpow.pop %v1341
  %v1343 = vmul.f32 %v1340, 1.442695
  %v1344 = vpow.pop %v1343
  %v1345 = vsel %vm169, %v1342, 0.0
  %1346 = vadd.xlane.f32.xlu0 %v1345
  %v1347 = vpop.xlane.xlu0 %1346
  %v1348 = vsel %vm169, %v1344, 0.0
  %1349 = vadd.xlane.f32.xlu0 %v1348
  %v1350 = vpop.xlane.xlu0 %1349
  %v1351 = vrcp.pop %v1347
  %v1352 = vrcp.pop %v1350
  %v1353 = vmul.f32 %v1342, %v1351
  %v1354 = vmul.f32 %v1344, %v1352
  %1355 = vrot.lane.b32.xlu0 %v158, 40
  %v1356 = vpop.permute.xlu0 %1355
  %v1359 = vsel %vm169, %v1353, 0
  %1361 = vmatprep.subr.mxu0 0.0
  %1362 = vmatpush1.msra.mxu0 %v1356
  %1363 = vmatprep.subr.mxu0 0.0
  %1364 = vmatpush1.msra.mxu0 0.0
  %1365 = vmatprep.subr.mxu0 0.0
  %1366 = vmatpush1.msra.mxu0 0.0
  %1367 = vmatprep.subr.mxu0 0.0
  %1368 = vmatpush1.msra.mxu0 0.0
  %1369 = vmatprep.subr.mxu0 0.0
  %1370 = vmatpush1.msra.mxu0 0.0
  %1371 = vmatprep.subr.mxu0 0.0
  %1372 = vmatpush1.msra.mxu0 0.0
  %1373 = vmatprep.subr.mxu0 0.0
  %1374 = vmatpush1.msra.mxu0 0.0
  %1375 = vmatprep.subr.mxu0 0.0
  %1376 = vmatpush1.msra.mxu0 0.0
  %1377 = vmatprep.subr.mxu0 0.0
  %1378 = vmatpush1.msra.mxu0 0.0
  %1379 = vmatprep.subr.mxu0 0.0
  %1380 = vmatpush1.msra.mxu0 0.0
  %1381 = vmatprep.subr.mxu0 0.0
  %1382 = vmatpush1.msra.mxu0 0.0
  %1383 = vmatprep.subr.mxu0 0.0
  %1384 = vmatpush1.msra.mxu0 0.0
  %1385 = vmatprep.subr.mxu0 0.0
  %1386 = vmatpush1.msra.mxu0 0.0
  %1387 = vmatprep.subr.mxu0 0.0
  %1388 = vmatpush1.msra.mxu0 0.0
  %1389 = vmatprep.subr.mxu0 0.0
  %1390 = vmatpush1.msra.mxu0 0.0
  %1391 = vmatprep.subr.mxu0 0.0
  %1392 = vmatpush1.msra.mxu0 0.0
  %1393 = vmatprep.subr.mxu0 0.0
  %1394 = vmatpush1.msra.mxu0 0.0
  %1395 = vmatprep.subr.mxu0 0.0
  %1396 = vmatpush1.msra.mxu0 0.0
  %1397 = vmatprep.subr.mxu0 0.0
  %1398 = vmatpush1.msra.mxu0 0.0
  %1399 = vmatprep.subr.mxu0 0.0
  %1400 = vmatpush1.msra.mxu0 0.0
  %1401 = vmatprep.subr.mxu0 0.0
  %1402 = vmatpush1.msra.mxu0 0.0
  %1403 = vmatprep.subr.mxu0 0.0
  %1404 = vmatpush1.msra.mxu0 0.0
  %1405 = vmatprep.subr.mxu0 0.0
  %1406 = vmatpush1.msra.mxu0 0.0
  %1407 = vmatprep.subr.mxu0 0.0
  %1408 = vmatpush1.msra.mxu0 0.0
  %1409 = vmatprep.subr.mxu0 0.0
  %1410 = vmatpush1.msra.mxu0 0.0
  %1411 = vmatprep.subr.mxu0 0.0
  %1412 = vmatpush1.msra.mxu0 0.0
  %1413 = vmatprep.subr.mxu0 0.0
  %1414 = vmatpush1.msra.mxu0 0.0
  %1415 = vmatprep.subr.mxu0 0.0
  %1416 = vmatpush1.msra.mxu0 0.0
  %1417 = vmatprep.subr.mxu0 0.0
  %1418 = vmatpush1.msra.mxu0 0.0
  %1419 = vmatprep.subr.mxu0 0.0
  %1420 = vmatpush1.msra.mxu0 0.0
  %1421 = vmatprep.subr.mxu0 0.0
  %1422 = vmatpush1.msra.mxu0 0.0
  %1423 = vmatprep.subr.mxu0 0.0
  %1424 = vmatpush1.msra.mxu0 0.0
  %1425 = vmatprep.mubr.f32.mxu0 0.0
  %1426 = vmatmul.mubr.f32.gmra.mrb[0].mxu0 %v1359
  %v1427 = vpop.f32.mrb[0].mxu0
  %v1428 = vadd.f32 0.0, %v1427
  %v1429 = vpop.f32.mrb[0].mxu0
  %1430 = vdwg.mxu0
  %1431 = vrot.lane.b32.xlu0 %v163, 40
  %v1432 = vpop.permute.xlu0 %1431
  %v1435 = vsel %vm169, %v1354, 0
  %1437 = vmatprep.subr.mxu0 0.0
  %1438 = vmatpush1.msra.mxu0 %v1432
  %1439 = vmatprep.subr.mxu0 0.0
  %1440 = vmatpush1.msra.mxu0 0.0
  %1441 = vmatprep.subr.mxu0 0.0
  %1442 = vmatpush1.msra.mxu0 0.0
  %1443 = vmatprep.subr.mxu0 0.0
  %1444 = vmatpush1.msra.mxu0 0.0
  %1445 = vmatprep.subr.mxu0 0.0
  %1446 = vmatpush1.msra.mxu0 0.0
  %1447 = vmatprep.subr.mxu0 0.0
  %1448 = vmatpush1.msra.mxu0 0.0
  %1449 = vmatprep.subr.mxu0 0.0
  %1450 = vmatpush1.msra.mxu0 0.0
  %1451 = vmatprep.subr.mxu0 0.0
  %1452 = vmatpush1.msra.mxu0 0.0
  %1453 = vmatprep.subr.mxu0 0.0
  %1454 = vmatpush1.msra.mxu0 0.0
  %1455 = vmatprep.subr.mxu0 0.0
  %1456 = vmatpush1.msra.mxu0 0.0
  %1457 = vmatprep.subr.mxu0 0.0
  %1458 = vmatpush1.msra.mxu0 0.0
  %1459 = vmatprep.subr.mxu0 0.0
  %1460 = vmatpush1.msra.mxu0 0.0
  %1461 = vmatprep.subr.mxu0 0.0
  %1462 = vmatpush1.msra.mxu0 0.0
  %1463 = vmatprep.subr.mxu0 0.0
  %1464 = vmatpush1.msra.mxu0 0.0
  %1465 = vmatprep.subr.mxu0 0.0
  %1466 = vmatpush1.msra.mxu0 0.0
  %1467 = vmatprep.subr.mxu0 0.0
  %1468 = vmatpush1.msra.mxu0 0.0
  %1469 = vmatprep.subr.mxu0 0.0
  %1470 = vmatpush1.msra.mxu0 0.0
  %1471 = vmatprep.subr.mxu0 0.0
  %1472 = vmatpush1.msra.mxu0 0.0
  %1473 = vmatprep.subr.mxu0 0.0
  %1474 = vmatpush1.msra.mxu0 0.0
  %1475 = vmatprep.subr.mxu0 0.0
  %1476 = vmatpush1.msra.mxu0 0.0
  %1477 = vmatprep.subr.mxu0 0.0
  %1478 = vmatpush1.msra.mxu0 0.0
  %1479 = vmatprep.subr.mxu0 0.0
  %1480 = vmatpush1.msra.mxu0 0.0
  %1481 = vmatprep.subr.mxu0 0.0
  %1482 = vmatpush1.msra.mxu0 0.0
  %1483 = vmatprep.subr.mxu0 0.0
  %1484 = vmatpush1.msra.mxu0 0.0
  %1485 = vmatprep.subr.mxu0 0.0
  %1486 = vmatpush1.msra.mxu0 0.0
  %1487 = vmatprep.subr.mxu0 0.0
  %1488 = vmatpush1.msra.mxu0 0.0
  %1489 = vmatprep.subr.mxu0 0.0
  %1490 = vmatpush1.msra.mxu0 0.0
  %1491 = vmatprep.subr.mxu0 0.0
  %1492 = vmatpush1.msra.mxu0 0.0
  %1493 = vmatprep.subr.mxu0 0.0
  %1494 = vmatpush1.msra.mxu0 0.0
  %1495 = vmatprep.subr.mxu0 0.0
  %1496 = vmatpush1.msra.mxu0 0.0
  %1497 = vmatprep.subr.mxu0 0.0
  %1498 = vmatpush1.msra.mxu0 0.0
  %1499 = vmatprep.subr.mxu0 0.0
  %1500 = vmatpush1.msra.mxu0 0.0
  %1501 = vmatprep.mubr.f32.mxu0 0.0
  %1502 = vmatmul.mubr.f32.gmra.mrb[0].mxu0 %v1435
  %v1503 = vpop.f32.mrb[0].mxu0
  %v1504 = vadd.f32 0.0, %v1503
  %v1505 = vpop.f32.mrb[0].mxu0
  %1506 = vdwg.mxu0
  %1509 = vrot.lane.b32.xlu0 %v760, 8
  %v1510 = vpop.permute.xlu0 %1509
  %1511 = vrot.lane.b32.xlu0 %v836, 8
  %v1512 = vpop.permute.xlu0 %1511
  %1517 = vrot.lane.b32.xlu0 %v1094, 16
  %v1518 = vpop.permute.xlu0 %1517
  %1519 = vrot.lane.b32.xlu0 %v1170, 16
  %v1520 = vpop.permute.xlu0 %1519
  %1525 = vrot.lane.b32.xlu0 %v1428, 24
  %v1526 = vpop.permute.xlu0 %1525
  %1527 = vrot.lane.b32.xlu0 %v1504, 24
  %v1528 = vpop.permute.xlu0 %1527
  %v1531 = vsel %vm169, %v426, %v1510
  %v1532 = vsel %vm169, %v502, %v1512
  %vm1533 = vcmask 130048
  %v1534 = vsel %vm1533, %v1531, %v1518
  %v1535 = vsel %vm1533, %v1532, %v1520
  %vm1536 = vcmask 195584
  %v1537 = vsel %vm1536, %v1534, %v1526
  %v1538 = vsel %vm1536, %v1535, %v1528
  %v1539 = vld [vmem:[%s5] sm:$0xff]
  %v1540 = vld [vmem:[%s5 + $0x8] sm:$0xff]
  %v1541 = vld [vmem:[%s5 + $0x10] sm:$0xff]
  %v1542 = vld [vmem:[%s5 + $0x18] sm:$0xff]
  %v1543 = vld [vmem:[%s6] sm:$0x1]
  %v1545 = vlaneseq
  %v1546 = vshrl.u32 %v1545, 7
  %v1547 = vsub.s32 0, %v1546
  %v1548 = vrot.slane %v1543, %v1547
  %v1551 = vsel %vm84, %v1537, 0
  %v1554 = vsel %vm84, %v1538, 0
  %1556 = vmatprep.subr.mxu0 0.0
  %1557 = vmatpush1.msra.mxu0 %v1539
  %1558 = vmatprep.subr.mxu0 0.0
  %1559 = vmatpush1.msra.mxu0 %v1540
  %1560 = vmatprep.subr.mxu0 0.0
  %1561 = vmatpush1.msra.mxu0 %v1541
  %1562 = vmatprep.subr.mxu0 0.0
  %1563 = vmatpush1.msra.mxu0 %v1542
  %1564 = vmatprep.subr.mxu0 0.0
  %1565 = vmatpush1.msra.mxu0 0.0
  %1566 = vmatprep.subr.mxu0 0.0
  %1567 = vmatpush1.msra.mxu0 0.0
  %1568 = vmatprep.subr.mxu0 0.0
  %1569 = vmatpush1.msra.mxu0 0.0
  %1570 = vmatprep.subr.mxu0 0.0
  %1571 = vmatpush1.msra.mxu0 0.0
  %1572 = vmatprep.subr.mxu0 0.0
  %1573 = vmatpush1.msra.mxu0 0.0
  %1574 = vmatprep.subr.mxu0 0.0
  %1575 = vmatpush1.msra.mxu0 0.0
  %1576 = vmatprep.subr.mxu0 0.0
  %1577 = vmatpush1.msra.mxu0 0.0
  %1578 = vmatprep.subr.mxu0 0.0
  %1579 = vmatpush1.msra.mxu0 0.0
  %1580 = vmatprep.subr.mxu0 0.0
  %1581 = vmatpush1.msra.mxu0 0.0
  %1582 = vmatprep.subr.mxu0 0.0
  %1583 = vmatpush1.msra.mxu0 0.0
  %1584 = vmatprep.subr.mxu0 0.0
  %1585 = vmatpush1.msra.mxu0 0.0
  %1586 = vmatprep.subr.mxu0 0.0
  %1587 = vmatpush1.msra.mxu0 0.0
  %1588 = vmatprep.subr.mxu0 0.0
  %1589 = vmatpush1.msra.mxu0 0.0
  %1590 = vmatprep.subr.mxu0 0.0
  %1591 = vmatpush1.msra.mxu0 0.0
  %1592 = vmatprep.subr.mxu0 0.0
  %1593 = vmatpush1.msra.mxu0 0.0
  %1594 = vmatprep.subr.mxu0 0.0
  %1595 = vmatpush1.msra.mxu0 0.0
  %1596 = vmatprep.subr.mxu0 0.0
  %1597 = vmatpush1.msra.mxu0 0.0
  %1598 = vmatprep.subr.mxu0 0.0
  %1599 = vmatpush1.msra.mxu0 0.0
  %1600 = vmatprep.subr.mxu0 0.0
  %1601 = vmatpush1.msra.mxu0 0.0
  %1602 = vmatprep.subr.mxu0 0.0
  %1603 = vmatpush1.msra.mxu0 0.0
  %1604 = vmatprep.subr.mxu0 0.0
  %1605 = vmatpush1.msra.mxu0 0.0
  %1606 = vmatprep.subr.mxu0 0.0
  %1607 = vmatpush1.msra.mxu0 0.0
  %1608 = vmatprep.subr.mxu0 0.0
  %1609 = vmatpush1.msra.mxu0 0.0
  %1610 = vmatprep.subr.mxu0 0.0
  %1611 = vmatpush1.msra.mxu0 0.0
  %1612 = vmatprep.subr.mxu0 0.0
  %1613 = vmatpush1.msra.mxu0 0.0
  %1614 = vmatprep.subr.mxu0 0.0
  %1615 = vmatpush1.msra.mxu0 0.0
  %1616 = vmatprep.subr.mxu0 0.0
  %1617 = vmatpush1.msra.mxu0 0.0
  %1618 = vmatprep.subr.mxu0 0.0
  %1619 = vmatpush1.msra.mxu0 0.0
  %1620 = vmatprep.mubr.f32.mxu0 0.0
  %1621 = vmatmul.mubr.f32.gmra.mrb[0].mxu0 %v1551
  %v1622 = vpop.f32.mrb[0].mxu0
  %v1623 = vadd.f32 %v1548, %v1622
  %v1624 = vpop.f32.mrb[0].mxu0
  %1625 = vmatprep.mubr.f32.mxu0 0.0
  %1626 = vmatmul.mubr.f32.gmra.mrb[0].mxu0 %v1554
  %v1627 = vpop.f32.mrb[0].mxu0
  %v1628 = vadd.f32 %v1548, %v1627
  %v1629 = vpop.f32.mrb[0].mxu0
  %1630 = vdwg.mxu0
  %v1631 = vadd.f32 %v1623, %v68
  %v1632 = vadd.f32 %v1628, %v69
  %v1633 = vld [vmem:[%s7] sm:$0x1]
  %v1634 = vld [vmem:[%s8] sm:$0x1]
  %v1635 = vsel %vm84, %v1631, 0.0
  %1636 = vadd.xlane.f32.xlu0 %v1635
  %v1637 = vpop.xlane.xlu0 %1636
  %v1638 = vsel %vm84, %v1632, 0.0
  %1639 = vadd.xlane.f32.xlu0 %v1638
  %v1640 = vpop.xlane.xlu0 %1639
  %v1641 = vrcp.pop 32.0
  %v1642 = vmul.f32 %v1637, %v1641
  %v1643 = vmul.f32 %v1640, %v1641
  %v1644 = vsub.f32 %v1631, %v1642
  %v1645 = vsub.f32 %v1632, %v1643
  %v1646 = vmul.f32 %v1644, %v1644
  %v1647 = vmul.f32 %v1645, %v1645
  %v1648 = vsel %vm84, %v1646, 0.0
  %1649 = vadd.xlane.f32.xlu0 %v1648
  %v1650 = vpop.xlane.xlu0 %1649
  %v1651 = vsel %vm84, %v1647, 0.0
  %1652 = vadd.xlane.f32.xlu0 %v1651
  %v1653 = vpop.xlane.xlu0 %1652
  %v1654 = vmul.f32 %v1650, %v1641
  %v1655 = vmul.f32 %v1653, %v1641
  %v1656 = vadd.f32 %v1654, 1e-05
  %v1657 = vadd.f32 %v1655, 1e-05
  %v1658 = vrsqrt.pop %v1656
  %v1659 = vrsqrt.pop %v1657
  %v1660 = vmul.f32 %v1644, %v1658
  %v1661 = vmul.f32 %v1645, %v1659
  %v1663 = vlaneseq
  %v1664 = vshrl.u32 %v1663, 7
  %v1665 = vsub.s32 0, %v1664
  %v1666 = vrot.slane %v1633, %v1665
  %v1668 = vmul.f32 %v1660, %v1666
  %v1669 = vmul.f32 %v1661, %v1666
  %v1671 = vlaneseq
  %v1672 = vshrl.u32 %v1671, 7
  %v1673 = vsub.s32 0, %v1672
  %v1674 = vrot.slane %v1634, %v1673
  %v1676 = vadd.f32 %v1668, %v1674
  %v1677 = vadd.f32 %v1669, %v1674
  %v1678 = vld [vmem:[%s9] sm:$0xff]
  %v1679 = vld [vmem:[%s9 + $0x8] sm:$0xff]
  %v1680 = vld [vmem:[%s9 + $0x10] sm:$0xff]
  %v1681 = vld [vmem:[%s9 + $0x18] sm:$0xff]
  %v1682 = vld [vmem:[%s10] sm:$0x1]
  %v1684 = vlaneseq
  %v1685 = vshrl.u32 %v1684, 7
  %v1686 = vsub.s32 0, %v1685
  %v1687 = vrot.slane %v1682, %v1686
  %v1690 = vsel %vm84, %v1676, 0
  %v1693 = vsel %vm84, %v1677, 0
  %1695 = vmatprep.subr.mxu0 0.0
  %1696 = vmatpush1.msra.mxu0 %v1678
  %1697 = vmatprep.subr.mxu0 0.0
  %1698 = vmatpush1.msra.mxu0 %v1679
  %1699 = vmatprep.subr.mxu0 0.0
  %1700 = vmatpush1.msra.mxu0 %v1680
  %1701 = vmatprep.subr.mxu0 0.0
  %1702 = vmatpush1.msra.mxu0 %v1681
  %1703 = vmatprep.subr.mxu0 0.0
  %1704 = vmatpush1.msra.mxu0 0.0
  %1705 = vmatprep.subr.mxu0 0.0
  %1706 = vmatpush1.msra.mxu0 0.0
  %1707 = vmatprep.subr.mxu0 0.0
  %1708 = vmatpush1.msra.mxu0 0.0
  %1709 = vmatprep.subr.mxu0 0.0
  %1710 = vmatpush1.msra.mxu0 0.0
  %1711 = vmatprep.subr.mxu0 0.0
  %1712 = vmatpush1.msra.mxu0 0.0
  %1713 = vmatprep.subr.mxu0 0.0
  %1714 = vmatpush1.msra.mxu0 0.0
  %1715 = vmatprep.subr.mxu0 0.0
  %1716 = vmatpush1.msra.mxu0 0.0
  %1717 = vmatprep.subr.mxu0 0.0
  %1718 = vmatpush1.msra.mxu0 0.0
  %1719 = vmatprep.subr.mxu0 0.0
  %1720 = vmatpush1.msra.mxu0 0.0
  %1721 = vmatprep.subr.mxu0 0.0
  %1722 = vmatpush1.msra.mxu0 0.0
  %1723 = vmatprep.subr.mxu0 0.0
  %1724 = vmatpush1.msra.mxu0 0.0
  %1725 = vmatprep.subr.mxu0 0.0
  %1726 = vmatpush1.msra.mxu0 0.0
  %1727 = vmatprep.subr.mxu0 0.0
  %1728 = vmatpush1.msra.mxu0 0.0
  %1729 = vmatprep.subr.mxu0 0.0
  %1730 = vmatpush1.msra.mxu0 0.0
  %1731 = vmatprep.subr.mxu0 0.0
  %1732 = vmatpush1.msra.mxu0 0.0
  %1733 = vmatprep.subr.mxu0 0.0
  %1734 = vmatpush1.msra.mxu0 0.0
  %1735 = vmatprep.subr.mxu0 0.0
  %1736 = vmatpush1.msra.mxu0 0.0
  %1737 = vmatprep.subr.mxu0 0.0
  %1738 = vmatpush1.msra.mxu0 0.0
  %1739 = vmatprep.subr.mxu0 0.0
  %1740 = vmatpush1.msra.mxu0 0.0
  %1741 = vmatprep.subr.mxu0 0.0
  %1742 = vmatpush1.msra.mxu0 0.0
  %1743 = vmatprep.subr.mxu0 0.0
  %1744 = vmatpush1.msra.mxu0 0.0
  %1745 = vmatprep.subr.mxu0 0.0
  %1746 = vmatpush1.msra.mxu0 0.0
  %1747 = vmatprep.subr.mxu0 0.0
  %1748 = vmatpush1.msra.mxu0 0.0
  %1749 = vmatprep.subr.mxu0 0.0
  %1750 = vmatpush1.msra.mxu0 0.0
  %1751 = vmatprep.subr.mxu0 0.0
  %1752 = vmatpush1.msra.mxu0 0.0
  %1753 = vmatprep.subr.mxu0 0.0
  %1754 = vmatpush1.msra.mxu0 0.0
  %1755 = vmatprep.subr.mxu0 0.0
  %1756 = vmatpush1.msra.mxu0 0.0
  %1757 = vmatprep.subr.mxu0 0.0
  %1758 = vmatpush1.msra.mxu0 0.0
  %1759 = vmatprep.mubr.f32.mxu0 0.0
  %1760 = vmatmul.mubr.f32.gmra.mrb[0].mxu0 %v1690
  %v1761 = vpop.f32.mrb[0].mxu0
  %v1762 = vadd.f32 %v1687, %v1761
  %v1763 = vpop.f32.mrb[0].mxu0
  %1764 = vmatprep.mubr.f32.mxu0 0.0
  %1765 = vmatmul.mubr.f32.gmra.mrb[0].mxu0 %v1693
  %v1766 = vpop.f32.mrb[0].mxu0
  %v1767 = vadd.f32 %v1687, %v1766
  %v1768 = vpop.f32.mrb[0].mxu0
  %1769 = vdwg.mxu0
  %1774 = vrot.lane.b32.xlu0 %v1678, 96
  %v1775 = vpop.permute.xlu0 %1774
  %1776 = vrot.lane.b32.xlu0 %v1679, 96
  %v1777 = vpop.permute.xlu0 %1776
  %1778 = vrot.lane.b32.xlu0 %v1680, 96
  %v1779 = vpop.permute.xlu0 %1778
  %1780 = vrot.lane.b32.xlu0 %v1681, 96
  %v1781 = vpop.permute.xlu0 %1780
  %1786 = vrot.lane.b32.xlu0 %v1687, 96
  %v1787 = vpop.permute.xlu0 %1786
  %v1790 = vsel %vm84, %v70, 0
  %v1793 = vsel %vm84, %v71, 0
  %1795 = vmatprep.subr.mxu0 0.0
  %1796 = vmatpush1.msra.mxu0 %v1775
  %1797 = vmatprep.subr.mxu0 0.0
  %1798 = vmatpush1.msra.mxu0 %v1777
  %1799 = vmatprep.subr.mxu0 0.0
  %1800 = vmatpush1.msra.mxu0 %v1779
  %1801 = vmatprep.subr.mxu0 0.0
  %1802 = vmatpush1.msra.mxu0 %v1781
  %1803 = vmatprep.subr.mxu0 0.0
  %1804 = vmatpush1.msra.mxu0 0.0
  %1805 = vmatprep.subr.mxu0 0.0
  %1806 = vmatpush1.msra.mxu0 0.0
  %1807 = vmatprep.subr.mxu0 0.0
  %1808 = vmatpush1.msra.mxu0 0.0
  %1809 = vmatprep.subr.mxu0 0.0
  %1810 = vmatpush1.msra.mxu0 0.0
  %1811 = vmatprep.subr.mxu0 0.0
  %1812 = vmatpush1.msra.mxu0 0.0
  %1813 = vmatprep.subr.mxu0 0.0
  %1814 = vmatpush1.msra.mxu0 0.0
  %1815 = vmatprep.subr.mxu0 0.0
  %1816 = vmatpush1.msra.mxu0 0.0
  %1817 = vmatprep.subr.mxu0 0.0
  %1818 = vmatpush1.msra.mxu0 0.0
  %1819 = vmatprep.subr.mxu0 0.0
  %1820 = vmatpush1.msra.mxu0 0.0
  %1821 = vmatprep.subr.mxu0 0.0
  %1822 = vmatpush1.msra.mxu0 0.0
  %1823 = vmatprep.subr.mxu0 0.0
  %1824 = vmatpush1.msra.mxu0 0.0
  %1825 = vmatprep.subr.mxu0 0.0
  %1826 = vmatpush1.msra.mxu0 0.0
  %1827 = vmatprep.subr.mxu0 0.0
  %1828 = vmatpush1.msra.mxu0 0.0
  %1829 = vmatprep.subr.mxu0 0.0
  %1830 = vmatpush1.msra.mxu0 0.0
  %1831 = vmatprep.subr.mxu0 0.0
  %1832 = vmatpush1.msra.mxu0 0.0
  %1833 = vmatprep.subr.mxu0 0.0
  %1834 = vmatpush1.msra.mxu0 0.0
  %1835 = vmatprep.subr.mxu0 0.0
  %1836 = vmatpush1.msra.mxu0 0.0
  %1837 = vmatprep.subr.mxu0 0.0
  %1838 = vmatpush1.msra.mxu0 0.0
  %1839 = vmatprep.subr.mxu0 0.0
  %1840 = vmatpush1.msra.mxu0 0.0
  %1841 = vmatprep.subr.mxu0 0.0
  %1842 = vmatpush1.msra.mxu0 0.0
  %1843 = vmatprep.subr.mxu0 0.0
  %1844 = vmatpush1.msra.mxu0 0.0
  %1845 = vmatprep.subr.mxu0 0.0
  %1846 = vmatpush1.msra.mxu0 0.0
  %1847 = vmatprep.subr.mxu0 0.0
  %1848 = vmatpush1.msra.mxu0 0.0
  %1849 = vmatprep.subr.mxu0 0.0
  %1850 = vmatpush1.msra.mxu0 0.0
  %1851 = vmatprep.subr.mxu0 0.0
  %1852 = vmatpush1.msra.mxu0 0.0
  %1853 = vmatprep.subr.mxu0 0.0
  %1854 = vmatpush1.msra.mxu0 0.0
  %1855 = vmatprep.subr.mxu0 0.0
  %1856 = vmatpush1.msra.mxu0 0.0
  %1857 = vmatprep.subr.mxu0 0.0
  %1858 = vmatpush1.msra.mxu0 0.0
  %1859 = vmatprep.mubr.f32.mxu0 0.0
  %1860 = vmatmul.mubr.f32.gmra.mrb[0].mxu0 %v1790
  %v1861 = vpop.f32.mrb[0].mxu0
  %v1862 = vadd.f32 %v1787, %v1861
  %v1863 = vpop.f32.mrb[0].mxu0
  %1864 = vmatprep.mubr.f32.mxu0 0.0
  %1865 = vmatmul.mubr.f32.gmra.mrb[0].mxu0 %v1793
  %v1866 = vpop.f32.mrb[0].mxu0
  %v1867 = vadd.f32 %v1787, %v1866
  %v1868 = vpop.f32.mrb[0].mxu0
  %1869 = vdwg.mxu0
  %v1871 = vsel %vm169, %v1762, 0
  %v1874 = vsel %vm169, %v1862, 0
  %1876 = vmatprep.subr.mxu0 0.0
  %1877 = vmatpush1.xpose.msra.mxu0 %v1874
  %1878 = vmatprep.subr.mxu0 0.0
  %1879 = vmatpush1.xpose.msra.mxu0 0.0
  %1880 = vmatprep.subr.mxu0 0.0
  %1881 = vmatpush1.xpose.msra.mxu0 0.0
  %1882 = vmatprep.subr.mxu0 0.0
  %1883 = vmatpush1.xpose.msra.mxu0 0.0
  %1884 = vmatprep.subr.mxu0 0.0
  %1885 = vmatpush1.xpose.msra.mxu0 0.0
  %1886 = vmatprep.subr.mxu0 0.0
  %1887 = vmatpush1.xpose.msra.mxu0 0.0
  %1888 = vmatprep.subr.mxu0 0.0
  %1889 = vmatpush1.xpose.msra.mxu0 0.0
  %1890 = vmatprep.subr.mxu0 0.0
  %1891 = vmatpush1.xpose.msra.mxu0 0.0
  %1892 = vmatprep.subr.mxu0 0.0
  %1893 = vmatpush1.xpose.msra.mxu0 0.0
  %1894 = vmatprep.subr.mxu0 0.0
  %1895 = vmatpush1.xpose.msra.mxu0 0.0
  %1896 = vmatprep.subr.mxu0 0.0
  %1897 = vmatpush1.xpose.msra.mxu0 0.0
  %1898 = vmatprep.subr.mxu0 0.0
  %1899 = vmatpush1.xpose.msra.mxu0 0.0
  %1900 = vmatprep.subr.mxu0 0.0
  %1901 = vmatpush1.xpose.msra.mxu0 0.0
  %1902 = vmatprep.subr.mxu0 0.0
  %1903 = vmatpush1.xpose.msra.mxu0 0.0
  %1904 = vmatprep.subr.mxu0 0.0
  %1905 = vmatpush1.xpose.msra.mxu0 0.0
  %1906 = vmatprep.subr.mxu0 0.0
  %1907 = vmatpush1.xpose.msra.mxu0 0.0
  %1908 = vmatprep.subr.mxu0 0.0
  %1909 = vmatpush1.xpose.msra.mxu0 0.0
  %1910 = vmatprep.subr.mxu0 0.0
  %1911 = vmatpush1.xpose.msra.mxu0 0.0
  %1912 = vmatprep.subr.mxu0 0.0
  %1913 = vmatpush1.xpose.msra.mxu0 0.0
  %1914 = vmatprep.subr.mxu0 0.0
  %1915 = vmatpush1.xpose.msra.mxu0 0.0
  %1916 = vmatprep.subr.mxu0 0.0
  %1917 = vmatpush1.xpose.msra.mxu0 0.0
  %1918 = vmatprep.subr.mxu0 0.0
  %1919 = vmatpush1.xpose.msra.mxu0 0.0
  %1920 = vmatprep.subr.mxu0 0.0
  %1921 = vmatpush1.xpose.msra.mxu0 0.0
  %1922 = vmatprep.subr.mxu0 0.0
  %1923 = vmatpush1.xpose.msra.mxu0 0.0
  %1924 = vmatprep.subr.mxu0 0.0
  %1925 = vmatpush1.xpose.msra.mxu0 0.0
  %1926 = vmatprep.subr.mxu0 0.0
  %1927 = vmatpush1.xpose.msra.mxu0 0.0
  %1928 = vmatprep.subr.mxu0 0.0
  %1929 = vmatpush1.xpose.msra.mxu0 0.0
  %1930 = vmatprep.subr.mxu0 0.0
  %1931 = vmatpush1.xpose.msra.mxu0 0.0
  %1932 = vmatprep.subr.mxu0 0.0
  %1933 = vmatpush1.xpose.msra.mxu0 0.0
  %1934 = vmatprep.subr.mxu0 0.0
  %1935 = vmatpush1.xpose.msra.mxu0 0.0
  %1936 = vmatprep.subr.mxu0 0.0
  %1937 = vmatpush1.xpose.msra.mxu0 0.0
  %1938 = vmatprep.subr.mxu0 0.0
  %1939 = vmatpush1.xpose.msra.mxu0 0.0
  %1940 = vmatprep.mubr.f32.mxu0 0.0
  %1941 = vmatmul.mubr.f32.gmra.mrb[0].mxu0 %v1871
  %v1942 = vpop.f32.mrb[0].mxu0
  %v1943 = vadd.f32 0.0, %v1942
  %v1944 = vpop.f32.mrb[0].mxu0
  %1945 = vdwg.mxu0
  %v1947 = vsel %vm169, %v1767, 0
  %v1950 = vsel %vm169, %v1867, 0
  %1952 = vmatprep.subr.mxu0 0.0
  %1953 = vmatpush1.xpose.msra.mxu0 %v1950
  %1954 = vmatprep.subr.mxu0 0.0
  %1955 = vmatpush1.xpose.msra.mxu0 0.0
  %1956 = vmatprep.subr.mxu0 0.0
  %1957 = vmatpush1.xpose.msra.mxu0 0.0
  %1958 = vmatprep.subr.mxu0 0.0
  %1959 = vmatpush1.xpose.msra.mxu0 0.0
  %1960 = vmatprep.subr.mxu0 0.0
  %1961 = vmatpush1.xpose.msra.mxu0 0.0
  %1962 = vmatprep.subr.mxu0 0.0
  %1963 = vmatpush1.xpose.msra.mxu0 0.0
  %1964 = vmatprep.subr.mxu0 0.0
  %1965 = vmatpush1.xpose.msra.mxu0 0.0
  %1966 = vmatprep.subr.mxu0 0.0
  %1967 = vmatpush1.xpose.msra.mxu0 0.0
  %1968 = vmatprep.subr.mxu0 0.0
  %1969 = vmatpush1.xpose.msra.mxu0 0.0
  %1970 = vmatprep.subr.mxu0 0.0
  %1971 = vmatpush1.xpose.msra.mxu0 0.0
  %1972 = vmatprep.subr.mxu0 0.0
  %1973 = vmatpush1.xpose.msra.mxu0 0.0
  %1974 = vmatprep.subr.mxu0 0.0
  %1975 = vmatpush1.xpose.msra.mxu0 0.0
  %1976 = vmatprep.subr.mxu0 0.0
  %1977 = vmatpush1.xpose.msra.mxu0 0.0
  %1978 = vmatprep.subr.mxu0 0.0
  %1979 = vmatpush1.xpose.msra.mxu0 0.0
  %1980 = vmatprep.subr.mxu0 0.0
  %1981 = vmatpush1.xpose.msra.mxu0 0.0
  %1982 = vmatprep.subr.mxu0 0.0
  %1983 = vmatpush1.xpose.msra.mxu0 0.0
  %1984 = vmatprep.subr.mxu0 0.0
  %1985 = vmatpush1.xpose.msra.mxu0 0.0
  %1986 = vmatprep.subr.mxu0 0.0
  %1987 = vmatpush1.xpose.msra.mxu0 0.0
  %1988 = vmatprep.subr.mxu0 0.0
  %1989 = vmatpush1.xpose.msra.mxu0 0.0
  %1990 = vmatprep.subr.mxu0 0.0
  %1991 = vmatpush1.xpose.msra.mxu0 0.0
  %1992 = vmatprep.subr.mxu0 0.0
  %1993 = vmatpush1.xpose.msra.mxu0 0.0
  %1994 = vmatprep.subr.mxu0 0.0
  %1995 = vmatpush1.xpose.msra.mxu0 0.0
  %1996 = vmatprep.subr.mxu0 0.0
  %1997 = vmatpush1.xpose.msra.mxu0 0.0
  %1998 = vmatprep.subr.mxu0 0.0
  %1999 = vmatpush1.xpose.msra.mxu0 0.0
  %2000 = vmatprep.subr.mxu0 0.0
  %2001 = vmatpush1.xpose.msra.mxu0 0.0
  %2002 = vmatprep.subr.mxu0 0.0
  %2003 = vmatpush1.xpose.msra.mxu0 0.0
  %2004 = vmatprep.subr.mxu0 0.0
  %2005 = vmatpush1.xpose.msra.mxu0 0.0
  %2006 = vmatprep.subr.mxu0 0.0
  %2007 = vmatpush1.xpose.msra.mxu0 0.0
  %2008 = vmatprep.subr.mxu0 0.0
  %2009 = vmatpush1.xpose.msra.mxu0 0.0
  %2010 = vmatprep.subr.mxu0 0.0
  %2011 = vmatpush1.xpose.msra.mxu0 0.0
  %2012 = vmatprep.subr.mxu0 0.0
  %2013 = vmatpush1.xpose.msra.mxu0 0.0
  %2014 = vmatprep.subr.mxu0 0.0
  %2015 = vmatpush1.xpose.msra.mxu0 0.0
  %2016 = vmatprep.mubr.f32.mxu0 0.0
  %2017 = vmatmul.mubr.f32.gmra.mrb[0].mxu0 %v1947
  %v2018 = vpop.f32.mrb[0].mxu0
  %v2019 = vadd.f32 0.0, %v2018
  %v2020 = vpop.f32.mrb[0].mxu0
  %2021 = vdwg.mxu0
  %v2022 = vmul.f32 %v1943, 0.35355338
  %v2023 = vmul.f32 %v2019, 0.35355338
  %v2024 = vsel %vm169, %v2022, -inf
  %2025 = vmax.xlane.f32.xlu0 %v2024
  %v2026 = vpop.xlane.xlu0 %2025
  %v2027 = vsel %vm169, %v2023, -inf
  %2028 = vmax.xlane.f32.xlu0 %v2027
  %v2029 = vpop.xlane.xlu0 %2028
  %v2030 = vsub.f32 %v2022, %v2026
  %v2031 = vsub.f32 %v2023, %v2029
  %v2032 = vmul.f32 %v2030, 1.442695
  %v2033 = vpow.pop %v2032
  %v2034 = vmul.f32 %v2031, 1.442695
  %v2035 = vpow.pop %v2034
  %v2036 = vsel %vm169, %v2033, 0.0
  %2037 = vadd.xlane.f32.xlu0 %v2036
  %v2038 = vpop.xlane.xlu0 %2037
  %v2039 = vsel %vm169, %v2035, 0.0
  %2040 = vadd.xlane.f32.xlu0 %v2039
  %v2041 = vpop.xlane.xlu0 %2040
  %v2042 = vrcp.pop %v2038
  %v2043 = vrcp.pop %v2041
  %v2044 = vmul.f32 %v2033, %v2042
  %v2045 = vmul.f32 %v2035, %v2043
  %2046 = vrot.lane.b32.xlu0 %v1862, 96
  %v2047 = vpop.permute.xlu0 %2046
  %v2050 = vsel %vm169, %v2044, 0
  %2052 = vmatprep.subr.mxu0 0.0
  %2053 = vmatpush1.msra.mxu0 %v2047
  %2054 = vmatprep.subr.mxu0 0.0
  %2055 = vmatpush1.msra.mxu0 0.0
  %2056 = vmatprep.subr.mxu0 0.0
  %2057 = vmatpush1.msra.mxu0 0.0
  %2058 = vmatprep.subr.mxu0 0.0
  %2059 = vmatpush1.msra.mxu0 0.0
  %2060 = vmatprep.subr.mxu0 0.0
  %2061 = vmatpush1.msra.mxu0 0.0
  %2062 = vmatprep.subr.mxu0 0.0
  %2063 = vmatpush1.msra.mxu0 0.0
  %2064 = vmatprep.subr.mxu0 0.0
  %2065 = vmatpush1.msra.mxu0 0.0
  %2066 = vmatprep.subr.mxu0 0.0
  %2067 = vmatpush1.msra.mxu0 0.0
  %2068 = vmatprep.subr.mxu0 0.0
  %2069 = vmatpush1.msra.mxu0 0.0
  %2070 = vmatprep.subr.mxu0 0.0
  %2071 = vmatpush1.msra.mxu0 0.0
  %2072 = vmatprep.subr.mxu0 0.0
  %2073 = vmatpush1.msra.mxu0 0.0
  %2074 = vmatprep.subr.mxu0 0.0
  %2075 = vmatpush1.msra.mxu0 0.0
  %2076 = vmatprep.subr.mxu0 0.0
  %2077 = vmatpush1.msra.mxu0 0.0
  %2078 = vmatprep.subr.mxu0 0.0
  %2079 = vmatpush1.msra.mxu0 0.0
  %2080 = vmatprep.subr.mxu0 0.0
  %2081 = vmatpush1.msra.mxu0 0.0
  %2082 = vmatprep.subr.mxu0 0.0
  %2083 = vmatpush1.msra.mxu0 0.0
  %2084 = vmatprep.subr.mxu0 0.0
  %2085 = vmatpush1.msra.mxu0 0.0
  %2086 = vmatprep.subr.mxu0 0.0
  %2087 = vmatpush1.msra.mxu0 0.0
  %2088 = vmatprep.subr.mxu0 0.0
  %2089 = vmatpush1.msra.mxu0 0.0
  %2090 = vmatprep.subr.mxu0 0.0
  %2091 = vmatpush1.msra.mxu0 0.0
  %2092 = vmatprep.subr.mxu0 0.0
  %2093 = vmatpush1.msra.mxu0 0.0
  %2094 = vmatprep.subr.mxu0 0.0
  %2095 = vmatpush1.msra.mxu0 0.0
  %2096 = vmatprep.subr.mxu0 0.0
  %2097 = vmatpush1.msra.mxu0 0.0
  %2098 = vmatprep.subr.mxu0 0.0
  %2099 = vmatpush1.msra.mxu0 0.0
  %2100 = vmatprep.subr.mxu0 0.0
  %2101 = vmatpush1.msra.mxu0 0.0
  %2102 = vmatprep.subr.mxu0 0.0
  %2103 = vmatpush1.msra.mxu0 0.0
  %2104 = vmatprep.subr.mxu0 0.0
  %2105 = vmatpush1.msra.mxu0 0.0
  %2106 = vmatprep.subr.mxu0 0.0
  %2107 = vmatpush1.msra.mxu0 0.0
  %2108 = vmatprep.subr.mxu0 0.0
  %2109 = vmatpush1.msra.mxu0 0.0
  %2110 = vmatprep.subr.mxu0 0.0
  %2111 = vmatpush1.msra.mxu0 0.0
  %2112 = vmatprep.subr.mxu0 0.0
  %2113 = vmatpush1.msra.mxu0 0.0
  %2114 = vmatprep.subr.mxu0 0.0
  %2115 = vmatpush1.msra.mxu0 0.0
  %2116 = vmatprep.mubr.f32.mxu0 0.0
  %2117 = vmatmul.mubr.f32.gmra.mrb[0].mxu0 %v2050
  %v2118 = vpop.f32.mrb[0].mxu0
  %v2119 = vadd.f32 0.0, %v2118
  %v2120 = vpop.f32.mrb[0].mxu0
  %2121 = vdwg.mxu0
  %2122 = vrot.lane.b32.xlu0 %v1867, 96
  %v2123 = vpop.permute.xlu0 %2122
  %v2126 = vsel %vm169, %v2045, 0
  %2128 = vmatprep.subr.mxu0 0.0
  %2129 = vmatpush1.msra.mxu0 %v2123
  %2130 = vmatprep.subr.mxu0 0.0
  %2131 = vmatpush1.msra.mxu0 0.0
  %2132 = vmatprep.subr.mxu0 0.0
  %2133 = vmatpush1.msra.mxu0 0.0
  %2134 = vmatprep.subr.mxu0 0.0
  %2135 = vmatpush1.msra.mxu0 0.0
  %2136 = vmatprep.subr.mxu0 0.0
  %2137 = vmatpush1.msra.mxu0 0.0
  %2138 = vmatprep.subr.mxu0 0.0
  %2139 = vmatpush1.msra.mxu0 0.0
  %2140 = vmatprep.subr.mxu0 0.0
  %2141 = vmatpush1.msra.mxu0 0.0
  %2142 = vmatprep.subr.mxu0 0.0
  %2143 = vmatpush1.msra.mxu0 0.0
  %2144 = vmatprep.subr.mxu0 0.0
  %2145 = vmatpush1.msra.mxu0 0.0
  %2146 = vmatprep.subr.mxu0 0.0
  %2147 = vmatpush1.msra.mxu0 0.0
  %2148 = vmatprep.subr.mxu0 0.0
  %2149 = vmatpush1.msra.mxu0 0.0
  %2150 = vmatprep.subr.mxu0 0.0
  %2151 = vmatpush1.msra.mxu0 0.0
  %2152 = vmatprep.subr.mxu0 0.0
  %2153 = vmatpush1.msra.mxu0 0.0
  %2154 = vmatprep.subr.mxu0 0.0
  %2155 = vmatpush1.msra.mxu0 0.0
  %2156 = vmatprep.subr.mxu0 0.0
  %2157 = vmatpush1.msra.mxu0 0.0
  %2158 = vmatprep.subr.mxu0 0.0
  %2159 = vmatpush1.msra.mxu0 0.0
  %2160 = vmatprep.subr.mxu0 0.0
  %2161 = vmatpush1.msra.mxu0 0.0
  %2162 = vmatprep.subr.mxu0 0.0
  %2163 = vmatpush1.msra.mxu0 0.0
  %2164 = vmatprep.subr.mxu0 0.0
  %2165 = vmatpush1.msra.mxu0 0.0
  %2166 = vmatprep.subr.mxu0 0.0
  %2167 = vmatpush1.msra.mxu0 0.0
  %2168 = vmatprep.subr.mxu0 0.0
  %2169 = vmatpush1.msra.mxu0 0.0
  %2170 = vmatprep.subr.mxu0 0.0
  %2171 = vmatpush1.msra.mxu0 0.0
  %2172 = vmatprep.subr.mxu0 0.0
  %2173 = vmatpush1.msra.mxu0 0.0
  %2174 = vmatprep.subr.mxu0 0.0
  %2175 = vmatpush1.msra.mxu0 0.0
  %2176 = vmatprep.subr.mxu0 0.0
  %2177 = vmatpush1.msra.mxu0 0.0
  %2178 = vmatprep.subr.mxu0 0.0
  %2179 = vmatpush1.msra.mxu0 0.0
  %2180 = vmatprep.subr.mxu0 0.0
  %2181 = vmatpush1.msra.mxu0 0.0
  %2182 = vmatprep.subr.mxu0 0.0
  %2183 = vmatpush1.msra.mxu0 0.0
  %2184 = vmatprep.subr.mxu0 0.0
  %2185 = vmatpush1.msra.mxu0 0.0
  %2186 = vmatprep.subr.mxu0 0.0
  %2187 = vmatpush1.msra.mxu0 0.0
  %2188 = vmatprep.subr.mxu0 0.0
  %2189 = vmatpush1.msra.mxu0 0.0
  %2190 = vmatprep.subr.mxu0 0.0
  %2191 = vmatpush1.msra.mxu0 0.0
  %2192 = vmatprep.mubr.f32.mxu0 0.0
  %2193 = vmatmul.mubr.f32.gmra.mrb[0].mxu0 %v2126
  %v2194 = vpop.f32.mrb[0].mxu0
  %v2195 = vadd.f32 0.0, %v2194
  %v2196 = vpop.f32.mrb[0].mxu0
  %2197 = vdwg.mxu0
  %2198 = vrot.lane.b32.xlu0 %v1762, 120
  %v2199 = vpop.permute.xlu0 %2198
  %2200 = vrot.lane.b32.xlu0 %v1862, 120
  %v2201 = vpop.permute.xlu0 %2200
  %v2202 = vsel %vm169, %v2199, 0
  %v2204 = vsel %vm169, %v2201, 0
  %2206 = vmatprep.subr.mxu0 0.0
  %2207 = vmatpush1.xpose.msra.mxu0 %v2204
  %2208 = vmatprep.subr.mxu0 0.0
  %2209 = vmatpush1.xpose.msra.mxu0 0.0
  %2210 = vmatprep.subr.mxu0 0.0
  %2211 = vmatpush1.xpose.msra.mxu0 0.0
  %2212 = vmatprep.subr.mxu0 0.0
  %2213 = vmatpush1.xpose.msra.mxu0 0.0
  %2214 = vmatprep.subr.mxu0 0.0
  %2215 = vmatpush1.xpose.msra.mxu0 0.0
  %2216 = vmatprep.subr.mxu0 0.0
  %2217 = vmatpush1.xpose.msra.mxu0 0.0
  %2218 = vmatprep.subr.mxu0 0.0
  %2219 = vmatpush1.xpose.msra.mxu0 0.0
  %2220 = vmatprep.subr.mxu0 0.0
  %2221 = vmatpush1.xpose.msra.mxu0 0.0
  %2222 = vmatprep.subr.mxu0 0.0
  %2223 = vmatpush1.xpose.msra.mxu0 0.0
  %2224 = vmatprep.subr.mxu0 0.0
  %2225 = vmatpush1.xpose.msra.mxu0 0.0
  %2226 = vmatprep.subr.mxu0 0.0
  %2227 = vmatpush1.xpose.msra.mxu0 0.0
  %2228 = vmatprep.subr.mxu0 0.0
  %2229 = vmatpush1.xpose.msra.mxu0 0.0
  %2230 = vmatprep.subr.mxu0 0.0
  %2231 = vmatpush1.xpose.msra.mxu0 0.0
  %2232 = vmatprep.subr.mxu0 0.0
  %2233 = vmatpush1.xpose.msra.mxu0 0.0
  %2234 = vmatprep.subr.mxu0 0.0
  %2235 = vmatpush1.xpose.msra.mxu0 0.0
  %2236 = vmatprep.subr.mxu0 0.0
  %2237 = vmatpush1.xpose.msra.mxu0 0.0
  %2238 = vmatprep.subr.mxu0 0.0
  %2239 = vmatpush1.xpose.msra.mxu0 0.0
  %2240 = vmatprep.subr.mxu0 0.0
  %2241 = vmatpush1.xpose.msra.mxu0 0.0
  %2242 = vmatprep.subr.mxu0 0.0
  %2243 = vmatpush1.xpose.msra.mxu0 0.0
  %2244 = vmatprep.subr.mxu0 0.0
  %2245 = vmatpush1.xpose.msra.mxu0 0.0
  %2246 = vmatprep.subr.mxu0 0.0
  %2247 = vmatpush1.xpose.msra.mxu0 0.0
  %2248 = vmatprep.subr.mxu0 0.0
  %2249 = vmatpush1.xpose.msra.mxu0 0.0
  %2250 = vmatprep.subr.mxu0 0.0
  %2251 = vmatpush1.xpose.msra.mxu0 0.0
  %2252 = vmatprep.subr.mxu0 0.0
  %2253 = vmatpush1.xpose.msra.mxu0 0.0
  %2254 = vmatprep.subr.mxu0 0.0
  %2255 = vmatpush1.xpose.msra.mxu0 0.0
  %2256 = vmatprep.subr.mxu0 0.0
  %2257 = vmatpush1.xpose.msra.mxu0 0.0
  %2258 = vmatprep.subr.mxu0 0.0
  %2259 = vmatpush1.xpose.msra.mxu0 0.0
  %2260 = vmatprep.subr.mxu0 0.0
  %2261 = vmatpush1.xpose.msra.mxu0 0.0
  %2262 = vmatprep.subr.mxu0 0.0
  %2263 = vmatpush1.xpose.msra.mxu0 0.0
  %2264 = vmatprep.subr.mxu0 0.0
  %2265 = vmatpush1.xpose.msra.mxu0 0.0
  %2266 = vmatprep.subr.mxu0 0.0
  %2267 = vmatpush1.xpose.msra.mxu0 0.0
  %2268 = vmatprep.subr.mxu0 0.0
  %2269 = vmatpush1.xpose.msra.mxu0 0.0
  %2270 = vmatprep.mubr.f32.mxu0 0.0
  %2271 = vmatmul.mubr.f32.gmra.mrb[0].mxu0 %v2202
  %v2272 = vpop.f32.mrb[0].mxu0
  %v2273 = vadd.f32 0.0, %v2272
  %v2274 = vpop.f32.mrb[0].mxu0
  %2275 = vdwg.mxu0
  %2276 = vrot.lane.b32.xlu0 %v1767, 120
  %v2277 = vpop.permute.xlu0 %2276
  %2278 = vrot.lane.b32.xlu0 %v1867, 120
  %v2279 = vpop.permute.xlu0 %2278
  %v2280 = vsel %vm169, %v2277, 0
  %v2282 = vsel %vm169, %v2279, 0
  %2284 = vmatprep.subr.mxu0 0.0
  %2285 = vmatpush1.xpose.msra.mxu0 %v2282
  %2286 = vmatprep.subr.mxu0 0.0
  %2287 = vmatpush1.xpose.msra.mxu0 0.0
  %2288 = vmatprep.subr.mxu0 0.0
  %2289 = vmatpush1.xpose.msra.mxu0 0.0
  %2290 = vmatprep.subr.mxu0 0.0
  %2291 = vmatpush1.xpose.msra.mxu0 0.0
  %2292 = vmatprep.subr.mxu0 0.0
  %2293 = vmatpush1.xpose.msra.mxu0 0.0
  %2294 = vmatprep.subr.mxu0 0.0
  %2295 = vmatpush1.xpose.msra.mxu0 0.0
  %2296 = vmatprep.subr.mxu0 0.0
  %2297 = vmatpush1.xpose.msra.mxu0 0.0
  %2298 = vmatprep.subr.mxu0 0.0
  %2299 = vmatpush1.xpose.msra.mxu0 0.0
  %2300 = vmatprep.subr.mxu0 0.0
  %2301 = vmatpush1.xpose.msra.mxu0 0.0
  %2302 = vmatprep.subr.mxu0 0.0
  %2303 = vmatpush1.xpose.msra.mxu0 0.0
  %2304 = vmatprep.subr.mxu0 0.0
  %2305 = vmatpush1.xpose.msra.mxu0 0.0
  %2306 = vmatprep.subr.mxu0 0.0
  %2307 = vmatpush1.xpose.msra.mxu0 0.0
  %2308 = vmatprep.subr.mxu0 0.0
  %2309 = vmatpush1.xpose.msra.mxu0 0.0
  %2310 = vmatprep.subr.mxu0 0.0
  %2311 = vmatpush1.xpose.msra.mxu0 0.0
  %2312 = vmatprep.subr.mxu0 0.0
  %2313 = vmatpush1.xpose.msra.mxu0 0.0
  %2314 = vmatprep.subr.mxu0 0.0
  %2315 = vmatpush1.xpose.msra.mxu0 0.0
  %2316 = vmatprep.subr.mxu0 0.0
  %2317 = vmatpush1.xpose.msra.mxu0 0.0
  %2318 = vmatprep.subr.mxu0 0.0
  %2319 = vmatpush1.xpose.msra.mxu0 0.0
  %2320 = vmatprep.subr.mxu0 0.0
  %2321 = vmatpush1.xpose.msra.mxu0 0.0
  %2322 = vmatprep.subr.mxu0 0.0
  %2323 = vmatpush1.xpose.msra.mxu0 0.0
  %2324 = vmatprep.subr.mxu0 0.0
  %2325 = vmatpush1.xpose.msra.mxu0 0.0
  %2326 = vmatprep.subr.mxu0 0.0
  %2327 = vmatpush1.xpose.msra.mxu0 0.0
  %2328 = vmatprep.subr.mxu0 0.0
  %2329 = vmatpush1.xpose.msra.mxu0 0.0
  %2330 = vmatprep.subr.mxu0 0.0
  %2331 = vmatpush1.xpose.msra.mxu0 0.0
  %2332 = vmatprep.subr.mxu0 0.0
  %2333 = vmatpush1.xpose.msra.mxu0 0.0
  %2334 = vmatprep.subr.mxu0 0.0
  %2335 = vmatpush1.xpose.msra.mxu0 0.0
  %2336 = vmatprep.subr.mxu0 0.0
  %2337 = vmatpush1.xpose.msra.mxu0 0.0
  %2338 = vmatprep.subr.mxu0 0.0
  %2339 = vmatpush1.xpose.msra.mxu0 0.0
  %2340 = vmatprep.subr.mxu0 0.0
  %2341 = vmatpush1.xpose.msra.mxu0 0.0
  %2342 = vmatprep.subr.mxu0 0.0
  %2343 = vmatpush1.xpose.msra.mxu0 0.0
  %2344 = vmatprep.subr.mxu0 0.0
  %2345 = vmatpush1.xpose.msra.mxu0 0.0
  %2346 = vmatprep.subr.mxu0 0.0
  %2347 = vmatpush1.xpose.msra.mxu0 0.0
  %2348 = vmatprep.mubr.f32.mxu0 0.0
  %2349 = vmatmul.mubr.f32.gmra.mrb[0].mxu0 %v2280
  %v2350 = vpop.f32.mrb[0].mxu0
  %v2351 = vadd.f32 0.0, %v2350
  %v2352 = vpop.f32.mrb[0].mxu0
  %2353 = vdwg.mxu0
  %v2354 = vmul.f32 %v2273, 0.35355338
  %v2355 = vmul.f32 %v2351, 0.35355338
  %v2356 = vsel %vm169, %v2354, -inf
  %2357 = vmax.xlane.f32.xlu0 %v2356
  %v2358 = vpop.xlane.xlu0 %2357
  %v2359 = vsel %vm169, %v2355, -inf
  %2360 = vmax.xlane.f32.xlu0 %v2359
  %v2361 = vpop.xlane.xlu0 %2360
  %v2362 = vsub.f32 %v2354, %v2358
  %v2363 = vsub.f32 %v2355, %v2361
  %v2364 = vmul.f32 %v2362, 1.442695
  %v2365 = vpow.pop %v2364
  %v2366 = vmul.f32 %v2363, 1.442695
  %v2367 = vpow.pop %v2366
  %v2368 = vsel %vm169, %v2365, 0.0
  %2369 = vadd.xlane.f32.xlu0 %v2368
  %v2370 = vpop.xlane.xlu0 %2369
  %v2371 = vsel %vm169, %v2367, 0.0
  %2372 = vadd.xlane.f32.xlu0 %v2371
  %v2373 = vpop.xlane.xlu0 %2372
  %v2374 = vrcp.pop %v2370
  %v2375 = vrcp.pop %v2373
  %v2376 = vmul.f32 %v2365, %v2374
  %v2377 = vmul.f32 %v2367, %v2375
  %2378 = vrot.lane.b32.xlu0 %v1862, 88
  %v2379 = vpop.permute.xlu0 %2378
  %v2382 = vsel %vm169, %v2376, 0
  %2384 = vmatprep.subr.mxu0 0.0
  %2385 = vmatpush1.msra.mxu0 %v2379
  %2386 = vmatprep.subr.mxu0 0.0
  %2387 = vmatpush1.msra.mxu0 0.0
  %2388 = vmatprep.subr.mxu0 0.0
  %2389 = vmatpush1.msra.mxu0 0.0
  %2390 = vmatprep.subr.mxu0 0.0
  %2391 = vmatpush1.msra.mxu0 0.0
  %2392 = vmatprep.subr.mxu0 0.0
  %2393 = vmatpush1.msra.mxu0 0.0
  %2394 = vmatprep.subr.mxu0 0.0
  %2395 = vmatpush1.msra.mxu0 0.0
  %2396 = vmatprep.subr.mxu0 0.0
  %2397 = vmatpush1.msra.mxu0 0.0
  %2398 = vmatprep.subr.mxu0 0.0
  %2399 = vmatpush1.msra.mxu0 0.0
  %2400 = vmatprep.subr.mxu0 0.0
  %2401 = vmatpush1.msra.mxu0 0.0
  %2402 = vmatprep.subr.mxu0 0.0
  %2403 = vmatpush1.msra.mxu0 0.0
  %2404 = vmatprep.subr.mxu0 0.0
  %2405 = vmatpush1.msra.mxu0 0.0
  %2406 = vmatprep.subr.mxu0 0.0
  %2407 = vmatpush1.msra.mxu0 0.0
  %2408 = vmatprep.subr.mxu0 0.0
  %2409 = vmatpush1.msra.mxu0 0.0
  %2410 = vmatprep.subr.mxu0 0.0
  %2411 = vmatpush1.msra.mxu0 0.0
  %2412 = vmatprep.subr.mxu0 0.0
  %2413 = vmatpush1.msra.mxu0 0.0
  %2414 = vmatprep.subr.mxu0 0.0
  %2415 = vmatpush1.msra.mxu0 0.0
  %2416 = vmatprep.subr.mxu0 0.0
  %2417 = vmatpush1.msra.mxu0 0.0
  %2418 = vmatprep.subr.mxu0 0.0
  %2419 = vmatpush1.msra.mxu0 0.0
  %2420 = vmatprep.subr.mxu0 0.0
  %2421 = vmatpush1.msra.mxu0 0.0
  %2422 = vmatprep.subr.mxu0 0.0
  %2423 = vmatpush1.msra.mxu0 0.0
  %2424 = vmatprep.subr.mxu0 0.0
  %2425 = vmatpush1.msra.mxu0 0.0
  %2426 = vmatprep.subr.mxu0 0.0
  %2427 = vmatpush1.msra.mxu0 0.0
  %2428 = vmatprep.subr.mxu0 0.0
  %2429 = vmatpush1.msra.mxu0 0.0
  %2430 = vmatprep.subr.mxu0 0.0
  %2431 = vmatpush1.msra.mxu0 0.0
  %2432 = vmatprep.subr.mxu0 0.0
  %2433 = vmatpush1.msra.mxu0 0.0
  %2434 = vmatprep.subr.mxu0 0.0
  %2435 = vmatpush1.msra.mxu0 0.0
  %2436 = vmatprep.subr.mxu0 0.0
  %2437 = vmatpush1.msra.mxu0 0.0
  %2438 = vmatprep.subr.mxu0 0.0
  %2439 = vmatpush1.msra.mxu0 0.0
  %2440 = vmatprep.subr.mxu0 0.0
  %2441 = vmatpush1.msra.mxu0 0.0
  %2442 = vmatprep.subr.mxu0 0.0
  %2443 = vmatpush1.msra.mxu0 0.0
  %2444 = vmatprep.subr.mxu0 0.0
  %2445 = vmatpush1.msra.mxu0 0.0
  %2446 = vmatprep.subr.mxu0 0.0
  %2447 = vmatpush1.msra.mxu0 0.0
  %2448 = vmatprep.mubr.f32.mxu0 0.0
  %2449 = vmatmul.mubr.f32.gmra.mrb[0].mxu0 %v2382
  %v2450 = vpop.f32.mrb[0].mxu0
  %v2451 = vadd.f32 0.0, %v2450
  %v2452 = vpop.f32.mrb[0].mxu0
  %2453 = vdwg.mxu0
  %2454 = vrot.lane.b32.xlu0 %v1867, 88
  %v2455 = vpop.permute.xlu0 %2454
  %v2458 = vsel %vm169, %v2377, 0
  %2460 = vmatprep.subr.mxu0 0.0
  %2461 = vmatpush1.msra.mxu0 %v2455
  %2462 = vmatprep.subr.mxu0 0.0
  %2463 = vmatpush1.msra.mxu0 0.0
  %2464 = vmatprep.subr.mxu0 0.0
  %2465 = vmatpush1.msra.mxu0 0.0
  %2466 = vmatprep.subr.mxu0 0.0
  %2467 = vmatpush1.msra.mxu0 0.0
  %2468 = vmatprep.subr.mxu0 0.0
  %2469 = vmatpush1.msra.mxu0 0.0
  %2470 = vmatprep.subr.mxu0 0.0
  %2471 = vmatpush1.msra.mxu0 0.0
  %2472 = vmatprep.subr.mxu0 0.0
  %2473 = vmatpush1.msra.mxu0 0.0
  %2474 = vmatprep.subr.mxu0 0.0
  %2475 = vmatpush1.msra.mxu0 0.0
  %2476 = vmatprep.subr.mxu0 0.0
  %2477 = vmatpush1.msra.mxu0 0.0
  %2478 = vmatprep.subr.mxu0 0.0
  %2479 = vmatpush1.msra.mxu0 0.0
  %2480 = vmatprep.subr.mxu0 0.0
  %2481 = vmatpush1.msra.mxu0 0.0
  %2482 = vmatprep.subr.mxu0 0.0
  %2483 = vmatpush1.msra.mxu0 0.0
  %2484 = vmatprep.subr.mxu0 0.0
  %2485 = vmatpush1.msra.mxu0 0.0
  %2486 = vmatprep.subr.mxu0 0.0
  %2487 = vmatpush1.msra.mxu0 0.0
  %2488 = vmatprep.subr.mxu0 0.0
  %2489 = vmatpush1.msra.mxu0 0.0
  %2490 = vmatprep.subr.mxu0 0.0
  %2491 = vmatpush1.msra.mxu0 0.0
  %2492 = vmatprep.subr.mxu0 0.0
  %2493 = vmatpush1.msra.mxu0 0.0
  %2494 = vmatprep.subr.mxu0 0.0
  %2495 = vmatpush1.msra.mxu0 0.0
  %2496 = vmatprep.subr.mxu0 0.0
  %2497 = vmatpush1.msra.mxu0 0.0
  %2498 = vmatprep.subr.mxu0 0.0
  %2499 = vmatpush1.msra.mxu0 0.0
  %2500 = vmatprep.subr.mxu0 0.0
  %2501 = vmatpush1.msra.mxu0 0.0
  %2502 = vmatprep.subr.mxu0 0.0
  %2503 = vmatpush1.msra.mxu0 0.0
  %2504 = vmatprep.subr.mxu0 0.0
  %2505 = vmatpush1.msra.mxu0 0.0
  %2506 = vmatprep.subr.mxu0 0.0
  %2507 = vmatpush1.msra.mxu0 0.0
  %2508 = vmatprep.subr.mxu0 0.0
  %2509 = vmatpush1.msra.mxu0 0.0
  %2510 = vmatprep.subr.mxu0 0.0
  %2511 = vmatpush1.msra.mxu0 0.0
  %2512 = vmatprep.subr.mxu0 0.0
  %2513 = vmatpush1.msra.mxu0 0.0
  %2514 = vmatprep.subr.mxu0 0.0
  %2515 = vmatpush1.msra.mxu0 0.0
  %2516 = vmatprep.subr.mxu0 0.0
  %2517 = vmatpush1.msra.mxu0 0.0
  %2518 = vmatprep.subr.mxu0 0.0
  %2519 = vmatpush1.msra.mxu0 0.0
  %2520 = vmatprep.subr.mxu0 0.0
  %2521 = vmatpush1.msra.mxu0 0.0
  %2522 = vmatprep.subr.mxu0 0.0
  %2523 = vmatpush1.msra.mxu0 0.0
  %2524 = vmatprep.mubr.f32.mxu0 0.0
  %2525 = vmatmul.mubr.f32.gmra.mrb[0].mxu0 %v2458
  %v2526 = vpop.f32.mrb[0].mxu0
  %v2527 = vadd.f32 0.0, %v2526
  %v2528 = vpop.f32.mrb[0].mxu0
  %2529 = vdwg.mxu0
  %2530 = vrot.lane.b32.xlu0 %v1762, 112
  %v2531 = vpop.permute.xlu0 %2530
  %2532 = vrot.lane.b32.xlu0 %v1862, 112
  %v2533 = vpop.permute.xlu0 %2532
  %v2534 = vsel %vm169, %v2531, 0
  %v2536 = vsel %vm169, %v2533, 0
  %2538 = vmatprep.subr.mxu0 0.0
  %2539 = vmatpush1.xpose.msra.mxu0 %v2536
  %2540 = vmatprep.subr.mxu0 0.0
  %2541 = vmatpush1.xpose.msra.mxu0 0.0
  %2542 = vmatprep.subr.mxu0 0.0
  %2543 = vmatpush1.xpose.msra.mxu0 0.0
  %2544 = vmatprep.subr.mxu0 0.0
  %2545 = vmatpush1.xpose.msra.mxu0 0.0
  %2546 = vmatprep.subr.mxu0 0.0
  %2547 = vmatpush1.xpose.msra.mxu0 0.0
  %2548 = vmatprep.subr.mxu0 0.0
  %2549 = vmatpush1.xpose.msra.mxu0 0.0
  %2550 = vmatprep.subr.mxu0 0.0
  %2551 = vmatpush1.xpose.msra.mxu0 0.0
  %2552 = vmatprep.subr.mxu0 0.0
  %2553 = vmatpush1.xpose.msra.mxu0 0.0
  %2554 = vmatprep.subr.mxu0 0.0
  %2555 = vmatpush1.xpose.msra.mxu0 0.0
  %2556 = vmatprep.subr.mxu0 0.0
  %2557 = vmatpush1.xpose.msra.mxu0 0.0
  %2558 = vmatprep.subr.mxu0 0.0
  %2559 = vmatpush1.xpose.msra.mxu0 0.0
  %2560 = vmatprep.subr.mxu0 0.0
  %2561 = vmatpush1.xpose.msra.mxu0 0.0
  %2562 = vmatprep.subr.mxu0 0.0
  %2563 = vmatpush1.xpose.msra.mxu0 0.0
  %2564 = vmatprep.subr.mxu0 0.0
  %2565 = vmatpush1.xpose.msra.mxu0 0.0
  %2566 = vmatprep.subr.mxu0 0.0
  %2567 = vmatpush1.xpose.msra.mxu0 0.0
  %2568 = vmatprep.subr.mxu0 0.0
  %2569 = vmatpush1.xpose.msra.mxu0 0.0
  %2570 = vmatprep.subr.mxu0 0.0
  %2571 = vmatpush1.xpose.msra.mxu0 0.0
  %2572 = vmatprep.subr.mxu0 0.0
  %2573 = vmatpush1.xpose.msra.mxu0 0.0
  %2574 = vmatprep.subr.mxu0 0.0
  %2575 = vmatpush1.xpose.msra.mxu0 0.0
  %2576 = vmatprep.subr.mxu0 0.0
  %2577 = vmatpush1.xpose.msra.mxu0 0.0
  %2578 = vmatprep.subr.mxu0 0.0
  %2579 = vmatpush1.xpose.msra.mxu0 0.0
  %2580 = vmatprep.subr.mxu0 0.0
  %2581 = vmatpush1.xpose.msra.mxu0 0.0
  %2582 = vmatprep.subr.mxu0 0.0
  %2583 = vmatpush1.xpose.msra.mxu0 0.0
  %2584 = vmatprep.subr.mxu0 0.0
  %2585 = vmatpush1.xpose.msra.mxu0 0.0
  %2586 = vmatprep.subr.mxu0 0.0
  %2587 = vmatpush1.xpose.msra.mxu0 0.0
  %2588 = vmatprep.subr.mxu0 0.0
  %2589 = vmatpush1.xpose.msra.mxu0 0.0
  %2590 = vmatprep.subr.mxu0 0.0
  %2591 = vmatpush1.xpose.msra.mxu0 0.0
  %2592 = vmatprep.subr.mxu0 0.0
  %2593 = vmatpush1.xpose.msra.mxu0 0.0
  %2594 = vmatprep.subr.mxu0 0.0
  %2595 = vmatpush1.xpose.msra.mxu0 0.0
  %2596 = vmatprep.subr.mxu0 0.0
  %2597 = vmatpush1.xpose.msra.mxu0 0.0
  %2598 = vmatprep.subr.mxu0 0.0
  %2599 = vmatpush1.xpose.msra.mxu0 0.0
  %2600 = vmatprep.subr.mxu0 0.0
  %2601 = vmatpush1.xpose.msra.mxu0 0.0
  %2602 = vmatprep.mubr.f32.mxu0 0.0
  %2603 = vmatmul.mubr.f32.gmra.mrb[0].mxu0 %v2534
  %v2604 = vpop.f32.mrb[0].mxu0
  %v2605 = vadd.f32 0.0, %v2604
  %v2606 = vpop.f32.mrb[0].mxu0
  %2607 = vdwg.mxu0
  %2608 = vrot.lane.b32.xlu0 %v1767, 112
  %v2609 = vpop.permute.xlu0 %2608
  %2610 = vrot.lane.b32.xlu0 %v1867, 112
  %v2611 = vpop.permute.xlu0 %2610
  %v2612 = vsel %vm169, %v2609, 0
  %v2614 = vsel %vm169, %v2611, 0
  %2616 = vmatprep.subr.mxu0 0.0
  %2617 = vmatpush1.xpose.msra.mxu0 %v2614
  %2618 = vmatprep.subr.mxu0 0.0
  %2619 = vmatpush1.xpose.msra.mxu0 0.0
  %2620 = vmatprep.subr.mxu0 0.0
  %2621 = vmatpush1.xpose.msra.mxu0 0.0
  %2622 = vmatprep.subr.mxu0 0.0
  %2623 = vmatpush1.xpose.msra.mxu0 0.0
  %2624 = vmatprep.subr.mxu0 0.0
  %2625 = vmatpush1.xpose.msra.mxu0 0.0
  %2626 = vmatprep.subr.mxu0 0.0
  %2627 = vmatpush1.xpose.msra.mxu0 0.0
  %2628 = vmatprep.subr.mxu0 0.0
  %2629 = vmatpush1.xpose.msra.mxu0 0.0
  %2630 = vmatprep.subr.mxu0 0.0
  %2631 = vmatpush1.xpose.msra.mxu0 0.0
  %2632 = vmatprep.subr.mxu0 0.0
  %2633 = vmatpush1.xpose.msra.mxu0 0.0
  %2634 = vmatprep.subr.mxu0 0.0
  %2635 = vmatpush1.xpose.msra.mxu0 0.0
  %2636 = vmatprep.subr.mxu0 0.0
  %2637 = vmatpush1.xpose.msra.mxu0 0.0
  %2638 = vmatprep.subr.mxu0 0.0
  %2639 = vmatpush1.xpose.msra.mxu0 0.0
  %2640 = vmatprep.subr.mxu0 0.0
  %2641 = vmatpush1.xpose.msra.mxu0 0.0
  %2642 = vmatprep.subr.mxu0 0.0
  %2643 = vmatpush1.xpose.msra.mxu0 0.0
  %2644 = vmatprep.subr.mxu0 0.0
  %2645 = vmatpush1.xpose.msra.mxu0 0.0
  %2646 = vmatprep.subr.mxu0 0.0
  %2647 = vmatpush1.xpose.msra.mxu0 0.0
  %2648 = vmatprep.subr.mxu0 0.0
  %2649 = vmatpush1.xpose.msra.mxu0 0.0
  %2650 = vmatprep.subr.mxu0 0.0
  %2651 = vmatpush1.xpose.msra.mxu0 0.0
  %2652 = vmatprep.subr.mxu0 0.0
  %2653 = vmatpush1.xpose.msra.mxu0 0.0
  %2654 = vmatprep.subr.mxu0 0.0
  %2655 = vmatpush1.xpose.msra.mxu0 0.0
  %2656 = vmatprep.subr.mxu0 0.0
  %2657 = vmatpush1.xpose.msra.mxu0 0.0
  %2658 = vmatprep.subr.mxu0 0.0
  %2659 = vmatpush1.xpose.msra.mxu0 0.0
  %2660 = vmatprep.subr.mxu0 0.0
  %2661 = vmatpush1.xpose.msra.mxu0 0.0
  %2662 = vmatprep.subr.mxu0 0.0
  %2663 = vmatpush1.xpose.msra.mxu0 0.0
  %2664 = vmatprep.subr.mxu0 0.0
  %2665 = vmatpush1.xpose.msra.mxu0 0.0
  %2666 = vmatprep.subr.mxu0 0.0
  %2667 = vmatpush1.xpose.msra.mxu0 0.0
  %2668 = vmatprep.subr.mxu0 0.0
  %2669 = vmatpush1.xpose.msra.mxu0 0.0
  %2670 = vmatprep.subr.mxu0 0.0
  %2671 = vmatpush1.xpose.msra.mxu0 0.0
  %2672 = vmatprep.subr.mxu0 0.0
  %2673 = vmatpush1.xpose.msra.mxu0 0.0
  %2674 = vmatprep.subr.mxu0 0.0
  %2675 = vmatpush1.xpose.msra.mxu0 0.0
  %2676 = vmatprep.subr.mxu0 0.0
  %2677 = vmatpush1.xpose.msra.mxu0 0.0
  %2678 = vmatprep.subr.mxu0 0.0
  %2679 = vmatpush1.xpose.msra.mxu0 0.0
  %2680 = vmatprep.mubr.f32.mxu0 0.0
  %2681 = vmatmul.mubr.f32.gmra.mrb[0].mxu0 %v2612
  %v2682 = vpop.f32.mrb[0].mxu0
  %v2683 = vadd.f32 0.0, %v2682
  %v2684 = vpop.f32.mrb[0].mxu0
  %2685 = vdwg.mxu0
  %v2686 = vmul.f32 %v2605, 0.35355338
  %v2687 = vmul.f32 %v2683, 0.35355338
  %v2688 = vsel %vm169, %v2686, -inf
  %2689 = vmax.xlane.f32.xlu0 %v2688
  %v2690 = vpop.xlane.xlu0 %2689
  %v2691 = vsel %vm169, %v2687, -inf
  %2692 = vmax.xlane.f32.xlu0 %v2691
  %v2693 = vpop.xlane.xlu0 %2692
  %v2694 = vsub.f32 %v2686, %v2690
  %v2695 = vsub.f32 %v2687, %v2693
  %v2696 = vmul.f32 %v2694, 1.442695
  %v2697 = vpow.pop %v2696
  %v2698 = vmul.f32 %v2695, 1.442695
  %v2699 = vpow.pop %v2698
  %v2700 = vsel %vm169, %v2697, 0.0
  %2701 = vadd.xlane.f32.xlu0 %v2700
  %v2702 = vpop.xlane.xlu0 %2701
  %v2703 = vsel %vm169, %v2699, 0.0
  %2704 = vadd.xlane.f32.xlu0 %v2703
  %v2705 = vpop.xlane.xlu0 %2704
  %v2706 = vrcp.pop %v2702
  %v2707 = vrcp.pop %v2705
  %v2708 = vmul.f32 %v2697, %v2706
  %v2709 = vmul.f32 %v2699, %v2707
  %2710 = vrot.lane.b32.xlu0 %v1862, 80
  %v2711 = vpop.permute.xlu0 %2710
  %v2714 = vsel %vm169, %v2708, 0
  %2716 = vmatprep.subr.mxu0 0.0
  %2717 = vmatpush1.msra.mxu0 %v2711
  %2718 = vmatprep.subr.mxu0 0.0
  %2719 = vmatpush1.msra.mxu0 0.0
  %2720 = vmatprep.subr.mxu0 0.0
  %2721 = vmatpush1.msra.mxu0 0.0
  %2722 = vmatprep.subr.mxu0 0.0
  %2723 = vmatpush1.msra.mxu0 0.0
  %2724 = vmatprep.subr.mxu0 0.0
  %2725 = vmatpush1.msra.mxu0 0.0
  %2726 = vmatprep.subr.mxu0 0.0
  %2727 = vmatpush1.msra.mxu0 0.0
  %2728 = vmatprep.subr.mxu0 0.0
  %2729 = vmatpush1.msra.mxu0 0.0
  %2730 = vmatprep.subr.mxu0 0.0
  %2731 = vmatpush1.msra.mxu0 0.0
  %2732 = vmatprep.subr.mxu0 0.0
  %2733 = vmatpush1.msra.mxu0 0.0
  %2734 = vmatprep.subr.mxu0 0.0
  %2735 = vmatpush1.msra.mxu0 0.0
  %2736 = vmatprep.subr.mxu0 0.0
  %2737 = vmatpush1.msra.mxu0 0.0
  %2738 = vmatprep.subr.mxu0 0.0
  %2739 = vmatpush1.msra.mxu0 0.0
  %2740 = vmatprep.subr.mxu0 0.0
  %2741 = vmatpush1.msra.mxu0 0.0
  %2742 = vmatprep.subr.mxu0 0.0
  %2743 = vmatpush1.msra.mxu0 0.0
  %2744 = vmatprep.subr.mxu0 0.0
  %2745 = vmatpush1.msra.mxu0 0.0
  %2746 = vmatprep.subr.mxu0 0.0
  %2747 = vmatpush1.msra.mxu0 0.0
  %2748 = vmatprep.subr.mxu0 0.0
  %2749 = vmatpush1.msra.mxu0 0.0
  %2750 = vmatprep.subr.mxu0 0.0
  %2751 = vmatpush1.msra.mxu0 0.0
  %2752 = vmatprep.subr.mxu0 0.0
  %2753 = vmatpush1.msra.mxu0 0.0
  %2754 = vmatprep.subr.mxu0 0.0
  %2755 = vmatpush1.msra.mxu0 0.0
  %2756 = vmatprep.subr.mxu0 0.0
  %2757 = vmatpush1.msra.mxu0 0.0
  %2758 = vmatprep.subr.mxu0 0.0
  %2759 = vmatpush1.msra.mxu0 0.0
  %2760 = vmatprep.subr.mxu0 0.0
  %2761 = vmatpush1.msra.mxu0 0.0
  %2762 = vmatprep.subr.mxu0 0.0
  %2763 = vmatpush1.msra.mxu0 0.0
  %2764 = vmatprep.subr.mxu0 0.0
  %2765 = vmatpush1.msra.mxu0 0.0
  %2766 = vmatprep.subr.mxu0 0.0
  %2767 = vmatpush1.msra.mxu0 0.0
  %2768 = vmatprep.subr.mxu0 0.0
  %2769 = vmatpush1.msra.mxu0 0.0
  %2770 = vmatprep.subr.mxu0 0.0
  %2771 = vmatpush1.msra.mxu0 0.0
  %2772 = vmatprep.subr.mxu0 0.0
  %2773 = vmatpush1.msra.mxu0 0.0
  %2774 = vmatprep.subr.mxu0 0.0
  %2775 = vmatpush1.msra.mxu0 0.0
  %2776 = vmatprep.subr.mxu0 0.0
  %2777 = vmatpush1.msra.mxu0 0.0
  %2778 = vmatprep.subr.mxu0 0.0
  %2779 = vmatpush1.msra.mxu0 0.0
  %2780 = vmatprep.mubr.f32.mxu0 0.0
  %2781 = vmatmul.mubr.f32.gmra.mrb[0].mxu0 %v2714
  %v2782 = vpop.f32.mrb[0].mxu0
  %v2783 = vadd.f32 0.0, %v2782
  %v2784 = vpop.f32.mrb[0].mxu0
  %2785 = vdwg.mxu0
  %2786 = vrot.lane.b32.xlu0 %v1867, 80
  %v2787 = vpop.permute.xlu0 %2786
  %v2790 = vsel %vm169, %v2709, 0
  %2792 = vmatprep.subr.mxu0 0.0
  %2793 = vmatpush1.msra.mxu0 %v2787
  %2794 = vmatprep.subr.mxu0 0.0
  %2795 = vmatpush1.msra.mxu0 0.0
  %2796 = vmatprep.subr.mxu0 0.0
  %2797 = vmatpush1.msra.mxu0 0.0
  %2798 = vmatprep.subr.mxu0 0.0
  %2799 = vmatpush1.msra.mxu0 0.0
  %2800 = vmatprep.subr.mxu0 0.0
  %2801 = vmatpush1.msra.mxu0 0.0
  %2802 = vmatprep.subr.mxu0 0.0
  %2803 = vmatpush1.msra.mxu0 0.0
  %2804 = vmatprep.subr.mxu0 0.0
  %2805 = vmatpush1.msra.mxu0 0.0
  %2806 = vmatprep.subr.mxu0 0.0
  %2807 = vmatpush1.msra.mxu0 0.0
  %2808 = vmatprep.subr.mxu0 0.0
  %2809 = vmatpush1.msra.mxu0 0.0
  %2810 = vmatprep.subr.mxu0 0.0
  %2811 = vmatpush1.msra.mxu0 0.0
  %2812 = vmatprep.subr.mxu0 0.0
  %2813 = vmatpush1.msra.mxu0 0.0
  %2814 = vmatprep.subr.mxu0 0.0
  %2815 = vmatpush1.msra.mxu0 0.0
  %2816 = vmatprep.subr.mxu0 0.0
  %2817 = vmatpush1.msra.mxu0 0.0
  %2818 = vmatprep.subr.mxu0 0.0
  %2819 = vmatpush1.msra.mxu0 0.0
  %2820 = vmatprep.subr.mxu0 0.0
  %2821 = vmatpush1.msra.mxu0 0.0
  %2822 = vmatprep.subr.mxu0 0.0
  %2823 = vmatpush1.msra.mxu0 0.0
  %2824 = vmatprep.subr.mxu0 0.0
  %2825 = vmatpush1.msra.mxu0 0.0
  %2826 = vmatprep.subr.mxu0 0.0
  %2827 = vmatpush1.msra.mxu0 0.0
  %2828 = vmatprep.subr.mxu0 0.0
  %2829 = vmatpush1.msra.mxu0 0.0
  %2830 = vmatprep.subr.mxu0 0.0
  %2831 = vmatpush1.msra.mxu0 0.0
  %2832 = vmatprep.subr.mxu0 0.0
  %2833 = vmatpush1.msra.mxu0 0.0
  %2834 = vmatprep.subr.mxu0 0.0
  %2835 = vmatpush1.msra.mxu0 0.0
  %2836 = vmatprep.subr.mxu0 0.0
  %2837 = vmatpush1.msra.mxu0 0.0
  %2838 = vmatprep.subr.mxu0 0.0
  %2839 = vmatpush1.msra.mxu0 0.0
  %2840 = vmatprep.subr.mxu0 0.0
  %2841 = vmatpush1.msra.mxu0 0.0
  %2842 = vmatprep.subr.mxu0 0.0
  %2843 = vmatpush1.msra.mxu0 0.0
  %2844 = vmatprep.subr.mxu0 0.0
  %2845 = vmatpush1.msra.mxu0 0.0
  %2846 = vmatprep.subr.mxu0 0.0
  %2847 = vmatpush1.msra.mxu0 0.0
  %2848 = vmatprep.subr.mxu0 0.0
  %2849 = vmatpush1.msra.mxu0 0.0
  %2850 = vmatprep.subr.mxu0 0.0
  %2851 = vmatpush1.msra.mxu0 0.0
  %2852 = vmatprep.subr.mxu0 0.0
  %2853 = vmatpush1.msra.mxu0 0.0
  %2854 = vmatprep.subr.mxu0 0.0
  %2855 = vmatpush1.msra.mxu0 0.0
  %2856 = vmatprep.mubr.f32.mxu0 0.0
  %2857 = vmatmul.mubr.f32.gmra.mrb[0].mxu0 %v2790
  %v2858 = vpop.f32.mrb[0].mxu0
  %v2859 = vadd.f32 0.0, %v2858
  %v2860 = vpop.f32.mrb[0].mxu0
  %2861 = vdwg.mxu0
  %2862 = vrot.lane.b32.xlu0 %v1762, 104
  %v2863 = vpop.permute.xlu0 %2862
  %2864 = vrot.lane.b32.xlu0 %v1862, 104
  %v2865 = vpop.permute.xlu0 %2864
  %v2866 = vsel %vm169, %v2863, 0
  %v2868 = vsel %vm169, %v2865, 0
  %2870 = vmatprep.subr.mxu0 0.0
  %2871 = vmatpush1.xpose.msra.mxu0 %v2868
  %2872 = vmatprep.subr.mxu0 0.0
  %2873 = vmatpush1.xpose.msra.mxu0 0.0
  %2874 = vmatprep.subr.mxu0 0.0
  %2875 = vmatpush1.xpose.msra.mxu0 0.0
  %2876 = vmatprep.subr.mxu0 0.0
  %2877 = vmatpush1.xpose.msra.mxu0 0.0
  %2878 = vmatprep.subr.mxu0 0.0
  %2879 = vmatpush1.xpose.msra.mxu0 0.0
  %2880 = vmatprep.subr.mxu0 0.0
  %2881 = vmatpush1.xpose.msra.mxu0 0.0
  %2882 = vmatprep.subr.mxu0 0.0
  %2883 = vmatpush1.xpose.msra.mxu0 0.0
  %2884 = vmatprep.subr.mxu0 0.0
  %2885 = vmatpush1.xpose.msra.mxu0 0.0
  %2886 = vmatprep.subr.mxu0 0.0
  %2887 = vmatpush1.xpose.msra.mxu0 0.0
  %2888 = vmatprep.subr.mxu0 0.0
  %2889 = vmatpush1.xpose.msra.mxu0 0.0
  %2890 = vmatprep.subr.mxu0 0.0
  %2891 = vmatpush1.xpose.msra.mxu0 0.0
  %2892 = vmatprep.subr.mxu0 0.0
  %2893 = vmatpush1.xpose.msra.mxu0 0.0
  %2894 = vmatprep.subr.mxu0 0.0
  %2895 = vmatpush1.xpose.msra.mxu0 0.0
  %2896 = vmatprep.subr.mxu0 0.0
  %2897 = vmatpush1.xpose.msra.mxu0 0.0
  %2898 = vmatprep.subr.mxu0 0.0
  %2899 = vmatpush1.xpose.msra.mxu0 0.0
  %2900 = vmatprep.subr.mxu0 0.0
  %2901 = vmatpush1.xpose.msra.mxu0 0.0
  %2902 = vmatprep.subr.mxu0 0.0
  %2903 = vmatpush1.xpose.msra.mxu0 0.0
  %2904 = vmatprep.subr.mxu0 0.0
  %2905 = vmatpush1.xpose.msra.mxu0 0.0
  %2906 = vmatprep.subr.mxu0 0.0
  %2907 = vmatpush1.xpose.msra.mxu0 0.0
  %2908 = vmatprep.subr.mxu0 0.0
  %2909 = vmatpush1.xpose.msra.mxu0 0.0
  %2910 = vmatprep.subr.mxu0 0.0
  %2911 = vmatpush1.xpose.msra.mxu0 0.0
  %2912 = vmatprep.subr.mxu0 0.0
  %2913 = vmatpush1.xpose.msra.mxu0 0.0
  %2914 = vmatprep.subr.mxu0 0.0
  %2915 = vmatpush1.xpose.msra.mxu0 0.0
  %2916 = vmatprep.subr.mxu0 0.0
  %2917 = vmatpush1.xpose.msra.mxu0 0.0
  %2918 = vmatprep.subr.mxu0 0.0
  %2919 = vmatpush1.xpose.msra.mxu0 0.0
  %2920 = vmatprep.subr.mxu0 0.0
  %2921 = vmatpush1.xpose.msra.mxu0 0.0
  %2922 = vmatprep.subr.mxu0 0.0
  %2923 = vmatpush1.xpose.msra.mxu0 0.0
  %2924 = vmatprep.subr.mxu0 0.0
  %2925 = vmatpush1.xpose.msra.mxu0 0.0
  %2926 = vmatprep.subr.mxu0 0.0
  %2927 = vmatpush1.xpose.msra.mxu0 0.0
  %2928 = vmatprep.subr.mxu0 0.0
  %2929 = vmatpush1.xpose.msra.mxu0 0.0
  %2930 = vmatprep.subr.mxu0 0.0
  %2931 = vmatpush1.xpose.msra.mxu0 0.0
  %2932 = vmatprep.subr.mxu0 0.0
  %2933 = vmatpush1.xpose.msra.mxu0 0.0
  %2934 = vmatprep.mubr.f32.mxu0 0.0
  %2935 = vmatmul.mubr.f32.gmra.mrb[0].mxu0 %v2866
  %v2936 = vpop.f32.mrb[0].mxu0
  %v2937 = vadd.f32 0.0, %v2936
  %v2938 = vpop.f32.mrb[0].mxu0
  %2939 = vdwg.mxu0
  %2940 = vrot.lane.b32.xlu0 %v1767, 104
  %v2941 = vpop.permute.xlu0 %2940
  %2942 = vrot.lane.b32.xlu0 %v1867, 104
  %v2943 = vpop.permute.xlu0 %2942
  %v2944 = vsel %vm169, %v2941, 0
  %v2946 = vsel %vm169, %v2943, 0
  %2948 = vmatprep.subr.mxu0 0.0
  %2949 = vmatpush1.xpose.msra.mxu0 %v2946
  %2950 = vmatprep.subr.mxu0 0.0
  %2951 = vmatpush1.xpose.msra.mxu0 0.0
  %2952 = vmatprep.subr.mxu0 0.0
  %2953 = vmatpush1.xpose.msra.mxu0 0.0
  %2954 = vmatprep.subr.mxu0 0.0
  %2955 = vmatpush1.xpose.msra.mxu0 0.0
  %2956 = vmatprep.subr.mxu0 0.0
  %2957 = vmatpush1.xpose.msra.mxu0 0.0
  %2958 = vmatprep.subr.mxu0 0.0
  %2959 = vmatpush1.xpose.msra.mxu0 0.0
  %2960 = vmatprep.subr.mxu0 0.0
  %2961 = vmatpush1.xpose.msra.mxu0 0.0
  %2962 = vmatprep.subr.mxu0 0.0
  %2963 = vmatpush1.xpose.msra.mxu0 0.0
  %2964 = vmatprep.subr.mxu0 0.0
  %2965 = vmatpush1.xpose.msra.mxu0 0.0
  %2966 = vmatprep.subr.mxu0 0.0
  %2967 = vmatpush1.xpose.msra.mxu0 0.0
  %2968 = vmatprep.subr.mxu0 0.0
  %2969 = vmatpush1.xpose.msra.mxu0 0.0
  %2970 = vmatprep.subr.mxu0 0.0
  %2971 = vmatpush1.xpose.msra.mxu0 0.0
  %2972 = vmatprep.subr.mxu0 0.0
  %2973 = vmatpush1.xpose.msra.mxu0 0.0
  %2974 = vmatprep.subr.mxu0 0.0
  %2975 = vmatpush1.xpose.msra.mxu0 0.0
  %2976 = vmatprep.subr.mxu0 0.0
  %2977 = vmatpush1.xpose.msra.mxu0 0.0
  %2978 = vmatprep.subr.mxu0 0.0
  %2979 = vmatpush1.xpose.msra.mxu0 0.0
  %2980 = vmatprep.subr.mxu0 0.0
  %2981 = vmatpush1.xpose.msra.mxu0 0.0
  %2982 = vmatprep.subr.mxu0 0.0
  %2983 = vmatpush1.xpose.msra.mxu0 0.0
  %2984 = vmatprep.subr.mxu0 0.0
  %2985 = vmatpush1.xpose.msra.mxu0 0.0
  %2986 = vmatprep.subr.mxu0 0.0
  %2987 = vmatpush1.xpose.msra.mxu0 0.0
  %2988 = vmatprep.subr.mxu0 0.0
  %2989 = vmatpush1.xpose.msra.mxu0 0.0
  %2990 = vmatprep.subr.mxu0 0.0
  %2991 = vmatpush1.xpose.msra.mxu0 0.0
  %2992 = vmatprep.subr.mxu0 0.0
  %2993 = vmatpush1.xpose.msra.mxu0 0.0
  %2994 = vmatprep.subr.mxu0 0.0
  %2995 = vmatpush1.xpose.msra.mxu0 0.0
  %2996 = vmatprep.subr.mxu0 0.0
  %2997 = vmatpush1.xpose.msra.mxu0 0.0
  %2998 = vmatprep.subr.mxu0 0.0
  %2999 = vmatpush1.xpose.msra.mxu0 0.0
  %3000 = vmatprep.subr.mxu0 0.0
  %3001 = vmatpush1.xpose.msra.mxu0 0.0
  %3002 = vmatprep.subr.mxu0 0.0
  %3003 = vmatpush1.xpose.msra.mxu0 0.0
  %3004 = vmatprep.subr.mxu0 0.0
  %3005 = vmatpush1.xpose.msra.mxu0 0.0
  %3006 = vmatprep.subr.mxu0 0.0
  %3007 = vmatpush1.xpose.msra.mxu0 0.0
  %3008 = vmatprep.subr.mxu0 0.0
  %3009 = vmatpush1.xpose.msra.mxu0 0.0
  %3010 = vmatprep.subr.mxu0 0.0
  %3011 = vmatpush1.xpose.msra.mxu0 0.0
  %3012 = vmatprep.mubr.f32.mxu0 0.0
  %3013 = vmatmul.mubr.f32.gmra.mrb[0].mxu0 %v2944
  %v3014 = vpop.f32.mrb[0].mxu0
  %v3015 = vadd.f32 0.0, %v3014
  %v3016 = vpop.f32.mrb[0].mxu0
  %3017 = vdwg.mxu0
  %v3018 = vmul.f32 %v2937, 0.35355338
  %v3019 = vmul.f32 %v3015, 0.35355338
  %v3020 = vsel %vm169, %v3018, -inf
  %3021 = vmax.xlane.f32.xlu0 %v3020
  %v3022 = vpop.xlane.xlu0 %3021
  %v3023 = vsel %vm169, %v3019, -inf
  %3024 = vmax.xlane.f32.xlu0 %v3023
  %v3025 = vpop.xlane.xlu0 %3024
  %v3026 = vsub.f32 %v3018, %v3022
  %v3027 = vsub.f32 %v3019, %v3025
  %v3028 = vmul.f32 %v3026, 1.442695
  %v3029 = vpow.pop %v3028
  %v3030 = vmul.f32 %v3027, 1.442695
  %v3031 = vpow.pop %v3030
  %v3032 = vsel %vm169, %v3029, 0.0
  %3033 = vadd.xlane.f32.xlu0 %v3032
  %v3034 = vpop.xlane.xlu0 %3033
  %v3035 = vsel %vm169, %v3031, 0.0
  %3036 = vadd.xlane.f32.xlu0 %v3035
  %v3037 = vpop.xlane.xlu0 %3036
  %v3038 = vrcp.pop %v3034
  %v3039 = vrcp.pop %v3037
  %v3040 = vmul.f32 %v3029, %v3038
  %v3041 = vmul.f32 %v3031, %v3039
  %3042 = vrot.lane.b32.xlu0 %v1862, 72
  %v3043 = vpop.permute.xlu0 %3042
  %v3046 = vsel %vm169, %v3040, 0
  %3048 = vmatprep.subr.mxu0 0.0
  %3049 = vmatpush1.msra.mxu0 %v3043
  %3050 = vmatprep.subr.mxu0 0.0
  %3051 = vmatpush1.msra.mxu0 0.0
  %3052 = vmatprep.subr.mxu0 0.0
  %3053 = vmatpush1.msra.mxu0 0.0
  %3054 = vmatprep.subr.mxu0 0.0
  %3055 = vmatpush1.msra.mxu0 0.0
  %3056 = vmatprep.subr.mxu0 0.0
  %3057 = vmatpush1.msra.mxu0 0.0
  %3058 = vmatprep.subr.mxu0 0.0
  %3059 = vmatpush1.msra.mxu0 0.0
  %3060 = vmatprep.subr.mxu0 0.0
  %3061 = vmatpush1.msra.mxu0 0.0
  %3062 = vmatprep.subr.mxu0 0.0
  %3063 = vmatpush1.msra.mxu0 0.0
  %3064 = vmatprep.subr.mxu0 0.0
  %3065 = vmatpush1.msra.mxu0 0.0
  %3066 = vmatprep.subr.mxu0 0.0
  %3067 = vmatpush1.msra.mxu0 0.0
  %3068 = vmatprep.subr.mxu0 0.0
  %3069 = vmatpush1.msra.mxu0 0.0
  %3070 = vmatprep.subr.mxu0 0.0
  %3071 = vmatpush1.msra.mxu0 0.0
  %3072 = vmatprep.subr.mxu0 0.0
  %3073 = vmatpush1.msra.mxu0 0.0
  %3074 = vmatprep.subr.mxu0 0.0
  %3075 = vmatpush1.msra.mxu0 0.0
  %3076 = vmatprep.subr.mxu0 0.0
  %3077 = vmatpush1.msra.mxu0 0.0
  %3078 = vmatprep.subr.mxu0 0.0
  %3079 = vmatpush1.msra.mxu0 0.0
  %3080 = vmatprep.subr.mxu0 0.0
  %3081 = vmatpush1.msra.mxu0 0.0
  %3082 = vmatprep.subr.mxu0 0.0
  %3083 = vmatpush1.msra.mxu0 0.0
  %3084 = vmatprep.subr.mxu0 0.0
  %3085 = vmatpush1.msra.mxu0 0.0
  %3086 = vmatprep.subr.mxu0 0.0
  %3087 = vmatpush1.msra.mxu0 0.0
  %3088 = vmatprep.subr.mxu0 0.0
  %3089 = vmatpush1.msra.mxu0 0.0
  %3090 = vmatprep.subr.mxu0 0.0
  %3091 = vmatpush1.msra.mxu0 0.0
  %3092 = vmatprep.subr.mxu0 0.0
  %3093 = vmatpush1.msra.mxu0 0.0
  %3094 = vmatprep.subr.mxu0 0.0
  %3095 = vmatpush1.msra.mxu0 0.0
  %3096 = vmatprep.subr.mxu0 0.0
  %3097 = vmatpush1.msra.mxu0 0.0
  %3098 = vmatprep.subr.mxu0 0.0
  %3099 = vmatpush1.msra.mxu0 0.0
  %3100 = vmatprep.subr.mxu0 0.0
  %3101 = vmatpush1.msra.mxu0 0.0
  %3102 = vmatprep.subr.mxu0 0.0
  %3103 = vmatpush1.msra.mxu0 0.0
  %3104 = vmatprep.subr.mxu0 0.0
  %3105 = vmatpush1.msra.mxu0 0.0
  %3106 = vmatprep.subr.mxu0 0.0
  %3107 = vmatpush1.msra.mxu0 0.0
  %3108 = vmatprep.subr.mxu0 0.0
  %3109 = vmatpush1.msra.mxu0 0.0
  %3110 = vmatprep.subr.mxu0 0.0
  %3111 = vmatpush1.msra.mxu0 0.0
  %3112 = vmatprep.mubr.f32.mxu0 0.0
  %3113 = vmatmul.mubr.f32.gmra.mrb[0].mxu0 %v3046
  %v3114 = vpop.f32.mrb[0].mxu0
  %v3115 = vadd.f32 0.0, %v3114
  %v3116 = vpop.f32.mrb[0].mxu0
  %3117 = vdwg.mxu0
  %3118 = vrot.lane.b32.xlu0 %v1867, 72
  %v3119 = vpop.permute.xlu0 %3118
  %v3122 = vsel %vm169, %v3041, 0
  %3124 = vmatprep.subr.mxu0 0.0
  %3125 = vmatpush1.msra.mxu0 %v3119
  %3126 = vmatprep.subr.mxu0 0.0
  %3127 = vmatpush1.msra.mxu0 0.0
  %3128 = vmatprep.subr.mxu0 0.0
  %3129 = vmatpush1.msra.mxu0 0.0
  %3130 = vmatprep.subr.mxu0 0.0
  %3131 = vmatpush1.msra.mxu0 0.0
  %3132 = vmatprep.subr.mxu0 0.0
  %3133 = vmatpush1.msra.mxu0 0.0
  %3134 = vmatprep.subr.mxu0 0.0
  %3135 = vmatpush1.msra.mxu0 0.0
  %3136 = vmatprep.subr.mxu0 0.0
  %3137 = vmatpush1.msra.mxu0 0.0
  %3138 = vmatprep.subr.mxu0 0.0
  %3139 = vmatpush1.msra.mxu0 0.0
  %3140 = vmatprep.subr.mxu0 0.0
  %3141 = vmatpush1.msra.mxu0 0.0
  %3142 = vmatprep.subr.mxu0 0.0
  %3143 = vmatpush1.msra.mxu0 0.0
  %3144 = vmatprep.subr.mxu0 0.0
  %3145 = vmatpush1.msra.mxu0 0.0
  %3146 = vmatprep.subr.mxu0 0.0
  %3147 = vmatpush1.msra.mxu0 0.0
  %3148 = vmatprep.subr.mxu0 0.0
  %3149 = vmatpush1.msra.mxu0 0.0
  %3150 = vmatprep.subr.mxu0 0.0
  %3151 = vmatpush1.msra.mxu0 0.0
  %3152 = vmatprep.subr.mxu0 0.0
  %3153 = vmatpush1.msra.mxu0 0.0
  %3154 = vmatprep.subr.mxu0 0.0
  %3155 = vmatpush1.msra.mxu0 0.0
  %3156 = vmatprep.subr.mxu0 0.0
  %3157 = vmatpush1.msra.mxu0 0.0
  %3158 = vmatprep.subr.mxu0 0.0
  %3159 = vmatpush1.msra.mxu0 0.0
  %3160 = vmatprep.subr.mxu0 0.0
  %3161 = vmatpush1.msra.mxu0 0.0
  %3162 = vmatprep.subr.mxu0 0.0
  %3163 = vmatpush1.msra.mxu0 0.0
  %3164 = vmatprep.subr.mxu0 0.0
  %3165 = vmatpush1.msra.mxu0 0.0
  %3166 = vmatprep.subr.mxu0 0.0
  %3167 = vmatpush1.msra.mxu0 0.0
  %3168 = vmatprep.subr.mxu0 0.0
  %3169 = vmatpush1.msra.mxu0 0.0
  %3170 = vmatprep.subr.mxu0 0.0
  %3171 = vmatpush1.msra.mxu0 0.0
  %3172 = vmatprep.subr.mxu0 0.0
  %3173 = vmatpush1.msra.mxu0 0.0
  %3174 = vmatprep.subr.mxu0 0.0
  %3175 = vmatpush1.msra.mxu0 0.0
  %3176 = vmatprep.subr.mxu0 0.0
  %3177 = vmatpush1.msra.mxu0 0.0
  %3178 = vmatprep.subr.mxu0 0.0
  %3179 = vmatpush1.msra.mxu0 0.0
  %3180 = vmatprep.subr.mxu0 0.0
  %3181 = vmatpush1.msra.mxu0 0.0
  %3182 = vmatprep.subr.mxu0 0.0
  %3183 = vmatpush1.msra.mxu0 0.0
  %3184 = vmatprep.subr.mxu0 0.0
  %3185 = vmatpush1.msra.mxu0 0.0
  %3186 = vmatprep.subr.mxu0 0.0
  %3187 = vmatpush1.msra.mxu0 0.0
  %3188 = vmatprep.mubr.f32.mxu0 0.0
  %3189 = vmatmul.mubr.f32.gmra.mrb[0].mxu0 %v3122
  %v3190 = vpop.f32.mrb[0].mxu0
  %v3191 = vadd.f32 0.0, %v3190
  %v3192 = vpop.f32.mrb[0].mxu0
  %3193 = vdwg.mxu0
  %3196 = vrot.lane.b32.xlu0 %v2451, 8
  %v3197 = vpop.permute.xlu0 %3196
  %3198 = vrot.lane.b32.xlu0 %v2527, 8
  %v3199 = vpop.permute.xlu0 %3198
  %3204 = vrot.lane.b32.xlu0 %v2783, 16
  %v3205 = vpop.permute.xlu0 %3204
  %3206 = vrot.lane.b32.xlu0 %v2859, 16
  %v3207 = vpop.permute.xlu0 %3206
  %3212 = vrot.lane.b32.xlu0 %v3115, 24
  %v3213 = vpop.permute.xlu0 %3212
  %3214 = vrot.lane.b32.xlu0 %v3191, 24
  %v3215 = vpop.permute.xlu0 %3214
  %v3218 = vsel %vm169, %v2119, %v3197
  %v3219 = vsel %vm169, %v2195, %v3199
  %v3220 = vsel %vm1533, %v3218, %v3205
  %v3221 = vsel %vm1533, %v3219, %v3207
  %v3222 = vsel %vm1536, %v3220, %v3213
  %v3223 = vsel %vm1536, %v3221, %v3215
  %v3224 = vld [vmem:[%s11] sm:$0xff]
  %v3225 = vld [vmem:[%s11 + $0x8] sm:$0xff]
  %v3226 = vld [vmem:[%s11 + $0x10] sm:$0xff]
  %v3227 = vld [vmem:[%s11 + $0x18] sm:$0xff]
  %v3228 = vld [vmem:[%s12] sm:$0x1]
  %v3230 = vlaneseq
  %v3231 = vshrl.u32 %v3230, 7
  %v3232 = vsub.s32 0, %v3231
  %v3233 = vrot.slane %v3228, %v3232
  %v3236 = vsel %vm84, %v3222, 0
  %v3239 = vsel %vm84, %v3223, 0
  %3241 = vmatprep.subr.mxu0 0.0
  %3242 = vmatpush1.msra.mxu0 %v3224
  %3243 = vmatprep.subr.mxu0 0.0
  %3244 = vmatpush1.msra.mxu0 %v3225
  %3245 = vmatprep.subr.mxu0 0.0
  %3246 = vmatpush1.msra.mxu0 %v3226
  %3247 = vmatprep.subr.mxu0 0.0
  %3248 = vmatpush1.msra.mxu0 %v3227
  %3249 = vmatprep.subr.mxu0 0.0
  %3250 = vmatpush1.msra.mxu0 0.0
  %3251 = vmatprep.subr.mxu0 0.0
  %3252 = vmatpush1.msra.mxu0 0.0
  %3253 = vmatprep.subr.mxu0 0.0
  %3254 = vmatpush1.msra.mxu0 0.0
  %3255 = vmatprep.subr.mxu0 0.0
  %3256 = vmatpush1.msra.mxu0 0.0
  %3257 = vmatprep.subr.mxu0 0.0
  %3258 = vmatpush1.msra.mxu0 0.0
  %3259 = vmatprep.subr.mxu0 0.0
  %3260 = vmatpush1.msra.mxu0 0.0
  %3261 = vmatprep.subr.mxu0 0.0
  %3262 = vmatpush1.msra.mxu0 0.0
  %3263 = vmatprep.subr.mxu0 0.0
  %3264 = vmatpush1.msra.mxu0 0.0
  %3265 = vmatprep.subr.mxu0 0.0
  %3266 = vmatpush1.msra.mxu0 0.0
  %3267 = vmatprep.subr.mxu0 0.0
  %3268 = vmatpush1.msra.mxu0 0.0
  %3269 = vmatprep.subr.mxu0 0.0
  %3270 = vmatpush1.msra.mxu0 0.0
  %3271 = vmatprep.subr.mxu0 0.0
  %3272 = vmatpush1.msra.mxu0 0.0
  %3273 = vmatprep.subr.mxu0 0.0
  %3274 = vmatpush1.msra.mxu0 0.0
  %3275 = vmatprep.subr.mxu0 0.0
  %3276 = vmatpush1.msra.mxu0 0.0
  %3277 = vmatprep.subr.mxu0 0.0
  %3278 = vmatpush1.msra.mxu0 0.0
  %3279 = vmatprep.subr.mxu0 0.0
  %3280 = vmatpush1.msra.mxu0 0.0
  %3281 = vmatprep.subr.mxu0 0.0
  %3282 = vmatpush1.msra.mxu0 0.0
  %3283 = vmatprep.subr.mxu0 0.0
  %3284 = vmatpush1.msra.mxu0 0.0
  %3285 = vmatprep.subr.mxu0 0.0
  %3286 = vmatpush1.msra.mxu0 0.0
  %3287 = vmatprep.subr.mxu0 0.0
  %3288 = vmatpush1.msra.mxu0 0.0
  %3289 = vmatprep.subr.mxu0 0.0
  %3290 = vmatpush1.msra.mxu0 0.0
  %3291 = vmatprep.subr.mxu0 0.0
  %3292 = vmatpush1.msra.mxu0 0.0
  %3293 = vmatprep.subr.mxu0 0.0
  %3294 = vmatpush1.msra.mxu0 0.0
  %3295 = vmatprep.subr.mxu0 0.0
  %3296 = vmatpush1.msra.mxu0 0.0
  %3297 = vmatprep.subr.mxu0 0.0
  %3298 = vmatpush1.msra.mxu0 0.0
  %3299 = vmatprep.subr.mxu0 0.0
  %3300 = vmatpush1.msra.mxu0 0.0
  %3301 = vmatprep.subr.mxu0 0.0
  %3302 = vmatpush1.msra.mxu0 0.0
  %3303 = vmatprep.subr.mxu0 0.0
  %3304 = vmatpush1.msra.mxu0 0.0
  %3305 = vmatprep.mubr.f32.mxu0 0.0
  %3306 = vmatmul.mubr.f32.gmra.mrb[0].mxu0 %v3236
  %v3307 = vpop.f32.mrb[0].mxu0
  %v3308 = vadd.f32 %v3233, %v3307
  %v3309 = vpop.f32.mrb[0].mxu0
  %3310 = vmatprep.mubr.f32.mxu0 0.0
  %3311 = vmatmul.mubr.f32.gmra.mrb[0].mxu0 %v3239
  %v3312 = vpop.f32.mrb[0].mxu0
  %v3313 = vadd.f32 %v3233, %v3312
  %v3314 = vpop.f32.mrb[0].mxu0
  %3315 = vdwg.mxu0
  %v3316 = vadd.f32 %v3308, %v1676
  %v3317 = vadd.f32 %v3313, %v1677
  %v3318 = vld [vmem:[%s13] sm:$0x1]
  %v3319 = vld [vmem:[%s14] sm:$0x1]
  %v3320 = vsel %vm84, %v3316, 0.0
  %3321 = vadd.xlane.f32.xlu0 %v3320
  %v3322 = vpop.xlane.xlu0 %3321
  %v3323 = vsel %vm84, %v3317, 0.0
  %3324 = vadd.xlane.f32.xlu0 %v3323
  %v3325 = vpop.xlane.xlu0 %3324
  %v3326 = vmul.f32 %v3322, %v1641
  %v3327 = vmul.f32 %v3325, %v1641
  %v3328 = vsub.f32 %v3316, %v3326
  %v3329 = vsub.f32 %v3317, %v3327
  %v3330 = vmul.f32 %v3328, %v3328
  %v3331 = vmul.f32 %v3329, %v3329
  %v3332 = vsel %vm84, %v3330, 0.0
  %3333 = vadd.xlane.f32.xlu0 %v3332
  %v3334 = vpop.xlane.xlu0 %3333
  %v3335 = vsel %vm84, %v3331, 0.0
  %3336 = vadd.xlane.f32.xlu0 %v3335
  %v3337 = vpop.xlane.xlu0 %3336
  %v3338 = vmul.f32 %v3334, %v1641
  %v3339 = vmul.f32 %v3337, %v1641
  %v3340 = vadd.f32 %v3338, 1e-05
  %v3341 = vadd.f32 %v3339, 1e-05
  %v3342 = vrsqrt.pop %v3340
  %v3343 = vrsqrt.pop %v3341
  %v3344 = vmul.f32 %v3328, %v3342
  %v3345 = vmul.f32 %v3329, %v3343
  %v3347 = vlaneseq
  %v3348 = vshrl.u32 %v3347, 7
  %v3349 = vsub.s32 0, %v3348
  %v3350 = vrot.slane %v3318, %v3349
  %v3352 = vmul.f32 %v3344, %v3350
  %v3353 = vmul.f32 %v3345, %v3350
  %v3355 = vlaneseq
  %v3356 = vshrl.u32 %v3355, 7
  %v3357 = vsub.s32 0, %v3356
  %v3358 = vrot.slane %v3319, %v3357
  %v3360 = vadd.f32 %v3352, %v3358
  %v3361 = vadd.f32 %v3353, %v3358
  %v3362 = vld [vmem:[%s15] sm:$0xff]
  %v3363 = vld [vmem:[%s15 + $0x8] sm:$0xff]
  %v3364 = vld [vmem:[%s15 + $0x10] sm:$0xff]
  %v3365 = vld [vmem:[%s15 + $0x18] sm:$0xff]
  %v3366 = vld [vmem:[%s16] sm:$0x1]
  %v3368 = vlaneseq
  %v3369 = vshrl.u32 %v3368, 7
  %v3370 = vsub.s32 0, %v3369
  %v3371 = vrot.slane %v3366, %v3370
  %v3374 = vsel %vm84, %v3360, 0
  %v3377 = vsel %vm84, %v3361, 0
  %3379 = vmatprep.subr.mxu0 0.0
  %3380 = vmatpush1.msra.mxu0 %v3362
  %3381 = vmatprep.subr.mxu0 0.0
  %3382 = vmatpush1.msra.mxu0 %v3363
  %3383 = vmatprep.subr.mxu0 0.0
  %3384 = vmatpush1.msra.mxu0 %v3364
  %3385 = vmatprep.subr.mxu0 0.0
  %3386 = vmatpush1.msra.mxu0 %v3365
  %3387 = vmatprep.subr.mxu0 0.0
  %3388 = vmatpush1.msra.mxu0 0.0
  %3389 = vmatprep.subr.mxu0 0.0
  %3390 = vmatpush1.msra.mxu0 0.0
  %3391 = vmatprep.subr.mxu0 0.0
  %3392 = vmatpush1.msra.mxu0 0.0
  %3393 = vmatprep.subr.mxu0 0.0
  %3394 = vmatpush1.msra.mxu0 0.0
  %3395 = vmatprep.subr.mxu0 0.0
  %3396 = vmatpush1.msra.mxu0 0.0
  %3397 = vmatprep.subr.mxu0 0.0
  %3398 = vmatpush1.msra.mxu0 0.0
  %3399 = vmatprep.subr.mxu0 0.0
  %3400 = vmatpush1.msra.mxu0 0.0
  %3401 = vmatprep.subr.mxu0 0.0
  %3402 = vmatpush1.msra.mxu0 0.0
  %3403 = vmatprep.subr.mxu0 0.0
  %3404 = vmatpush1.msra.mxu0 0.0
  %3405 = vmatprep.subr.mxu0 0.0
  %3406 = vmatpush1.msra.mxu0 0.0
  %3407 = vmatprep.subr.mxu0 0.0
  %3408 = vmatpush1.msra.mxu0 0.0
  %3409 = vmatprep.subr.mxu0 0.0
  %3410 = vmatpush1.msra.mxu0 0.0
  %3411 = vmatprep.subr.mxu0 0.0
  %3412 = vmatpush1.msra.mxu0 0.0
  %3413 = vmatprep.subr.mxu0 0.0
  %3414 = vmatpush1.msra.mxu0 0.0
  %3415 = vmatprep.subr.mxu0 0.0
  %3416 = vmatpush1.msra.mxu0 0.0
  %3417 = vmatprep.subr.mxu0 0.0
  %3418 = vmatpush1.msra.mxu0 0.0
  %3419 = vmatprep.subr.mxu0 0.0
  %3420 = vmatpush1.msra.mxu0 0.0
  %3421 = vmatprep.subr.mxu0 0.0
  %3422 = vmatpush1.msra.mxu0 0.0
  %3423 = vmatprep.subr.mxu0 0.0
  %3424 = vmatpush1.msra.mxu0 0.0
  %3425 = vmatprep.subr.mxu0 0.0
  %3426 = vmatpush1.msra.mxu0 0.0
  %3427 = vmatprep.subr.mxu0 0.0
  %3428 = vmatpush1.msra.mxu0 0.0
  %3429 = vmatprep.subr.mxu0 0.0
  %3430 = vmatpush1.msra.mxu0 0.0
  %3431 = vmatprep.subr.mxu0 0.0
  %3432 = vmatpush1.msra.mxu0 0.0
  %3433 = vmatprep.subr.mxu0 0.0
  %3434 = vmatpush1.msra.mxu0 0.0
  %3435 = vmatprep.subr.mxu0 0.0
  %3436 = vmatpush1.msra.mxu0 0.0
  %3437 = vmatprep.subr.mxu0 0.0
  %3438 = vmatpush1.msra.mxu0 0.0
  %3439 = vmatprep.subr.mxu0 0.0
  %3440 = vmatpush1.msra.mxu0 0.0
  %3441 = vmatprep.subr.mxu0 0.0
  %3442 = vmatpush1.msra.mxu0 0.0
  %3443 = vmatprep.mubr.f32.mxu0 0.0
  %3444 = vmatmul.mubr.f32.gmra.mrb[0].mxu0 %v3374
  %v3445 = vpop.f32.mrb[0].mxu0
  %v3446 = vadd.f32 %v3371, %v3445
  %v3447 = vpop.f32.mrb[0].mxu0
  %3448 = vmatprep.mubr.f32.mxu0 0.0
  %3449 = vmatmul.mubr.f32.gmra.mrb[0].mxu0 %v3377
  %v3450 = vpop.f32.mrb[0].mxu0
  %v3451 = vadd.f32 %v3371, %v3450
  %v3452 = vpop.f32.mrb[0].mxu0
  %3453 = vdwg.mxu0
  %v3454 = vmax.f32 %v3446, 0.0
  %v3455 = vmax.f32 %v3451, 0.0
  %v3456 = vld [vmem:[%s17] sm:$0xff]
  %v3457 = vld [vmem:[%s17 + $0x8] sm:$0xff]
  %v3458 = vld [vmem:[%s17 + $0x10] sm:$0xff]
  %v3459 = vld [vmem:[%s17 + $0x18] sm:$0xff]
  %v3460 = vld [vmem:[%s17 + $0x20] sm:$0xff]
  %v3461 = vld [vmem:[%s17 + $0x28] sm:$0xff]
  %v3462 = vld [vmem:[%s17 + $0x30] sm:$0xff]
  %v3463 = vld [vmem:[%s17 + $0x38] sm:$0xff]
  %v3464 = vld [vmem:[%s18] sm:$0x1]
  %v3466 = vlaneseq
  %v3467 = vshrl.u32 %v3466, 7
  %v3468 = vsub.s32 0, %v3467
  %v3469 = vrot.slane %v3464, %v3468
  %vm3471 = vcmask 523264
  %v3473 = vsel %vm3471, %v3454, 0
  %v3476 = vsel %vm3471, %v3455, 0
  %3478 = vmatprep.subr.mxu0 0.0
  %3479 = vmatpush1.msra.mxu0 %v3456
  %3480 = vmatprep.subr.mxu0 0.0
  %3481 = vmatpush1.msra.mxu0 %v3457
  %3482 = vmatprep.subr.mxu0 0.0
  %3483 = vmatpush1.msra.mxu0 %v3458
  %3484 = vmatprep.subr.mxu0 0.0
  %3485 = vmatpush1.msra.mxu0 %v3459
  %3486 = vmatprep.subr.mxu0 0.0
  %3487 = vmatpush1.msra.mxu0 %v3460
  %3488 = vmatprep.subr.mxu0 0.0
  %3489 = vmatpush1.msra.mxu0 %v3461
  %3490 = vmatprep.subr.mxu0 0.0
  %3491 = vmatpush1.msra.mxu0 %v3462
  %3492 = vmatprep.subr.mxu0 0.0
  %3493 = vmatpush1.msra.mxu0 %v3463
  %3494 = vmatprep.subr.mxu0 0.0
  %3495 = vmatpush1.msra.mxu0 0.0
  %3496 = vmatprep.subr.mxu0 0.0
  %3497 = vmatpush1.msra.mxu0 0.0
  %3498 = vmatprep.subr.mxu0 0.0
  %3499 = vmatpush1.msra.mxu0 0.0
  %3500 = vmatprep.subr.mxu0 0.0
  %3501 = vmatpush1.msra.mxu0 0.0
  %3502 = vmatprep.subr.mxu0 0.0
  %3503 = vmatpush1.msra.mxu0 0.0
  %3504 = vmatprep.subr.mxu0 0.0
  %3505 = vmatpush1.msra.mxu0 0.0
  %3506 = vmatprep.subr.mxu0 0.0
  %3507 = vmatpush1.msra.mxu0 0.0
  %3508 = vmatprep.subr.mxu0 0.0
  %3509 = vmatpush1.msra.mxu0 0.0
  %3510 = vmatprep.subr.mxu0 0.0
  %3511 = vmatpush1.msra.mxu0 0.0
  %3512 = vmatprep.subr.mxu0 0.0
  %3513 = vmatpush1.msra.mxu0 0.0
  %3514 = vmatprep.subr.mxu0 0.0
  %3515 = vmatpush1.msra.mxu0 0.0
  %3516 = vmatprep.subr.mxu0 0.0
  %3517 = vmatpush1.msra.mxu0 0.0
  %3518 = vmatprep.subr.mxu0 0.0
  %3519 = vmatpush1.msra.mxu0 0.0
  %3520 = vmatprep.subr.mxu0 0.0
  %3521 = vmatpush1.msra.mxu0 0.0
  %3522 = vmatprep.subr.mxu0 0.0
  %3523 = vmatpush1.msra.mxu0 0.0
  %3524 = vmatprep.subr.mxu0 0.0
  %3525 = vmatpush1.msra.mxu0 0.0
  %3526 = vmatprep.subr.mxu0 0.0
  %3527 = vmatpush1.msra.mxu0 0.0
  %3528 = vmatprep.subr.mxu0 0.0
  %3529 = vmatpush1.msra.mxu0 0.0
  %3530 = vmatprep.subr.mxu0 0.0
  %3531 = vmatpush1.msra.mxu0 0.0
  %3532 = vmatprep.subr.mxu0 0.0
  %3533 = vmatpush1.msra.mxu0 0.0
  %3534 = vmatprep.subr.mxu0 0.0
  %3535 = vmatpush1.msra.mxu0 0.0
  %3536 = vmatprep.subr.mxu0 0.0
  %3537 = vmatpush1.msra.mxu0 0.0
  %3538 = vmatprep.subr.mxu0 0.0
  %3539 = vmatpush1.msra.mxu0 0.0
  %3540 = vmatprep.subr.mxu0 0.0
  %3541 = vmatpush1.msra.mxu0 0.0
  %3542 = vmatprep.mubr.f32.mxu0 0.0
  %3543 = vmatmul.mubr.f32.gmra.mrb[0].mxu0 %v3473
  %v3544 = vpop.f32.mrb[0].mxu0
  %v3545 = vadd.f32 %v3469, %v3544
  %v3546 = vpop.f32.mrb[0].mxu0
  %3547 = vmatprep.mubr.f32.mxu0 0.0
  %3548 = vmatmul.mubr.f32.gmra.mrb[0].mxu0 %v3476
  %v3549 = vpop.f32.mrb[0].mxu0
  %v3550 = vadd.f32 %v3469, %v3549
  %v3551 = vpop.f32.mrb[0].mxu0
  %3552 = vdwg.mxu0
  %v3553 = vadd.f32 %v3545, %v3360
  %v3554 = vadd.f32 %v3550, %v3361
  %v3555 = vld [vmem:[%s19] sm:$0x1]
  %v3556 = vld [vmem:[%s20] sm:$0x1]
  %v3557 = vsel %vm84, %v3553, 0.0
  %3558 = vadd.xlane.f32.xlu0 %v3557
  %v3559 = vpop.xlane.xlu0 %3558
  %v3560 = vsel %vm84, %v3554, 0.0
  %3561 = vadd.xlane.f32.xlu0 %v3560
  %v3562 = vpop.xlane.xlu0 %3561
  %v3563 = vmul.f32 %v3559, %v1641
  %v3564 = vmul.f32 %v3562, %v1641
  %v3565 = vsub.f32 %v3553, %v3563
  %v3566 = vsub.f32 %v3554, %v3564
  %v3567 = vmul.f32 %v3565, %v3565
  %v3568 = vmul.f32 %v3566, %v3566
  %v3569 = vsel %vm84, %v3567, 0.0
  %3570 = vadd.xlane.f32.xlu0 %v3569
  %v3571 = vpop.xlane.xlu0 %3570
  %v3572 = vsel %vm84, %v3568, 0.0
  %3573 = vadd.xlane.f32.xlu0 %v3572
  %v3574 = vpop.xlane.xlu0 %3573
  %v3575 = vmul.f32 %v3571, %v1641
  %v3576 = vmul.f32 %v3574, %v1641
  %v3577 = vadd.f32 %v3575, 1e-05
  %v3578 = vadd.f32 %v3576, 1e-05
  %v3579 = vrsqrt.pop %v3577
  %v3580 = vrsqrt.pop %v3578
  %v3581 = vmul.f32 %v3565, %v3579
  %v3582 = vmul.f32 %v3566, %v3580
  %v3584 = vlaneseq
  %v3585 = vshrl.u32 %v3584, 7
  %v3586 = vsub.s32 0, %v3585
  %v3587 = vrot.slane %v3555, %v3586
  %v3589 = vmul.f32 %v3581, %v3587
  %v3590 = vmul.f32 %v3582, %v3587
  %v3592 = vlaneseq
  %v3593 = vshrl.u32 %v3592, 7
  %v3594 = vsub.s32 0, %v3593
  %v3595 = vrot.slane %v3556, %v3594
  %v3597 = vadd.f32 %v3589, %v3595
  %v3598 = vadd.f32 %v3590, %v3595
  %3599 = vst.msk [vmem:[%s21] sm:$0xff] %vm84, %v3597
  %3600 = vst.msk [vmem:[%s21 + $0x8] sm:$0xff] %vm84, %v3598
  // Predicated region
  $region86: #{seq2seq_transformer_forward.27} parent=0 // pred_check
    _
  $region87: #{seq2seq_transformer_forward.27} parent=0 // pred_check_branch
    %3602 = sbr.rel (0) target = $region89
  $region88: #{seq2seq_transformer_forward.27} parent=0 // pred_region
    _
  $region89: #{seq2seq_transformer_forward.27} parent=0 // pred_fallthru
    _
  // Predicated region
  $region90: #{seq2seq_transformer_forward.27} parent=0 // pred_check
    _
  $region91: #{seq2seq_transformer_forward.27} parent=0 // pred_check_branch
    %3604 = sbr.rel (0) target = $region93
  $region92: #{seq2seq_transformer_forward.27} parent=0 // pred_region
    _
  $region93: #{seq2seq_transformer_forward.27} parent=0 // pred_fallthru
    _

</llo_original>
